<compile_context>
chip_gen: v7x
topology: tpu7x:2x2x1
jax: 0.10.0
libtpu: 0.0.40
codegen_flags: <defaults>
</compile_context>

<pallas_src>
import numpy as np

import jax
import jax.numpy as jnp
from jax import lax
from jax.experimental import pallas as pl
from jax.experimental.pallas import tpu as pltpu

EPS = 1e-5

# ---------------------------------------------------------------------------
# Static geometry for the canonical DQN screen (3 x 40 x 80 -> 448 features).
# ---------------------------------------------------------------------------
B = 2
C0, H0, W0 = 3, 40, 80
C1, H1, W1 = 16, 18, 38          # conv1 output (k=5, stride 2, valid)
C2, H2, W2 = 32, 7, 17           # conv2 output
C3, H3, W3 = 32, 2, 7            # conv3 output -> 32*2*7 = 448 flat features
NP3 = H3 * W3                    # 14 spatial positions in the flatten
N1 = B * H1 * W1                 # 1368 BN1 samples
N2 = B * H2 * W2                 # 238  BN2 samples
N3 = B * H3 * W3                 # 28   BN3 samples

# Every activation lives on the same quarter-resolution spatial grid:
# rows = b*GRID + i*GW + j, lanes = channels.  conv1 additionally packs its
# four stride-2 output parities into lanes (4*16 = 64).
GH, GW = H0 // 4, W0 // 4        # (10, 20) coarse grid per batch image
GRID = GH * GW                   # 200 rows per batch image
INR = 424                        # 4x4-s2d input slab rows (400 + tap overreach)
H1R = B * GRID                   # 400 conv1 rows (parity-packed, 64 lanes)
R2 = 344                         # conv2 rows computed (last valid row = 336)
R3S = 256                        # conv3 im2col span (last valid base row = 252)
R3 = 32                          # conv3 output rows (28 valid, (p, b) order)

# -- static safety checks for the padded-row scheme (review concern) ---------
assert H1R - 1 + (GW + 1) < INR                         # conv1 taps in input slab
assert R2 - 1 + (2 * GW + 2) < H1R                      # conv2 taps in h1 slab
assert (B - 1) * GRID + (H2 - 1) * GW + (W2 - 1) < R2   # last valid conv2 row computed
assert R3S - 1 + (4 * GW + 4) < R2                      # conv3 taps in h2 slab
assert (B - 1) * GRID + 2 * (H3 - 1) * GW + 2 * (W3 - 1) < R3S
assert (H1 - 1) // 2 + 1 < GH and (W1 - 1) // 2 + 1 < GW  # valid conv1 reads real input
assert (H2 - 1) + 2 < GH and (W2 - 1) + 2 < GW            # valid conv2 reads valid h1
assert 2 * (H3 - 1) + 4 < H2 and 2 * (W3 - 1) + 4 < W2    # valid conv3 reads valid h2


# ---------------------------------------------------------------------------
# Fused Pallas kernel: whole forward pass, activations resident in VMEM.
# ---------------------------------------------------------------------------
def _dqn_kernel(x4_ref, w1_ref, g1_ref, be1_ref, m1_ref,
                w2_ref, g2_ref, be2_ref, m2_ref,
                w3_ref, sel3_ref, g3_ref, be3_ref, m3_ref,
                wh_ref, bh_ref,
                out_ref,
                h1_ref, h2_ref):
    f32, bf16 = jnp.float32, jnp.bfloat16

    def bn_relu(z, mask_row, gamma, beta, count, fold=1):
        # Train-mode BatchNorm over the rows selected by mask_row.  Column sums
        # run on the MXU ((1,R) @ (R,C)); statistics stay f32; two-pass
        # (x - mean)^2 variance.  `fold` adds lane groups together when several
        # output parities of the same channel sit side by side in lanes.
        def col_sum(v):
            s = jnp.dot(mask_row, v, preferred_element_type=f32)      # (1, C)
            if fold > 1:
                c = s.shape[1] // fold
                s = sum(s[:, k * c:(k + 1) * c] for k in range(fold))
                s = jnp.concatenate([s] * fold, axis=1)
            return s

        inv = 1.0 / count
        mean = col_sum(z) * inv
        cen = z - mean
        var = col_sum(cen * cen) * inv
        return jnp.maximum(cen * lax.rsqrt(var + EPS) * gamma + beta, 0.0)

    # ---- conv1 + bn1 + relu -------------------------------------------------
    # 4x4 space-to-depth'd input => the stride-2 5x5 conv is a stride-1 2x2
    # conv on the coarse grid producing all four output parities at once:
    # one (400, 192) @ (192, 64) bf16 matmul.
    x1 = jnp.concatenate(
        [x4_ref[pl.ds(dr * GW + dc, H1R), :]
         for dr in range(2) for dc in range(2)], axis=1)
    z1 = jnp.dot(x1, w1_ref[...], preferred_element_type=f32)
    h1_ref[...] = bn_relu(z1, m1_ref[...], g1_ref[...], be1_ref[...],
                          float(N1), fold=4).astype(bf16)

    # ---- conv2 + bn2 + relu -------------------------------------------------
    # On the parity-packed conv1 grid the stride-2 5x5 conv is a stride-1 3x3
    # conv with 64-lane taps: one (344, 576) @ (576, 32) bf16 matmul.
    x2 = jnp.concatenate(
        [h1_ref[pl.ds(dh * GW + dw, R2), :]
         for dh in range(3) for dw in range(3)], axis=1)
    z2 = jnp.dot(x2, w2_ref[...], preferred_element_type=f32)
    h2_ref[...] = bn_relu(z2, m2_ref[...], g2_ref[...], be2_ref[...],
                          float(N2)).astype(bf16)

    # ---- conv3 + bn3 + relu -------------------------------------------------
    # Plain 25-tap im2col (256, 800); a tiny 0/1 row gather (32, 256) picks the
    # 28 strided output positions (rows ordered (p, b)); one (32, 800)@(800, 32)
    # matmul.  The gather is exact in bf16 (0/1 weights, one hit per row).
    x3 = jnp.concatenate(
        [h2_ref[pl.ds(kh * GW + kw, R3S), :]
         for kh in range(5) for kw in range(5)], axis=1)
    x3s = jnp.dot(sel3_ref[...], x3, preferred_element_type=f32).astype(bf16)
    z3 = jnp.dot(x3s, w3_ref[...], preferred_element_type=f32)
    h3 = bn_relu(z3, m3_ref[...], g3_ref[...], be3_ref[...], float(N3))

    # ---- linear head ----------------------------------------------------------
    # PyTorch flatten order (c, h, w) is folded into the reordered head weight;
    # (28, 32) activations become a (2, 448) operand via a cheap lane-concat of
    # per-position row pairs, then ONE (2, 448) @ (448, A) matmul.
    flat = jnp.concatenate([h3[2 * p:2 * p + 2, :] for p in range(NP3)], axis=1)
    q = jnp.dot(flat.astype(bf16), wh_ref[...], preferred_element_type=f32)
    out_ref[...] = q + bh_ref[...]


# ---------------------------------------------------------------------------
# Wrapper: layout/dtype plumbing only (weight re-ordering, 4x4 space-to-depth
# of the input, tiny constant gather/mask matrices) + the single pallas_call.
# ---------------------------------------------------------------------------
def _expand_w1(w1):
    # conv1 weight (16,3,5,5) -> (192, 64).
    # Rows: (dr, dc, fr, fc, ci) over a 2x2 window of 4x4 space-to-depth input
    # blocks; cols: (rh, rw, co) over the four stride-2 output parities.
    blk = jnp.zeros((2, 2, 4, 4, C0, 2, 2, C1), jnp.float32)
    for rh in range(2):
        for rw in range(2):
            for kh in range(5):
                for kw in range(5):
                    fr_abs, fc_abs = kh + 2 * rh, kw + 2 * rw
                    dr, fr = fr_abs // 4, fr_abs % 4
                    dc, fc = fc_abs // 4, fc_abs % 4
                    blk = blk.at[dr, dc, fr, fc, :, rh, rw, :].set(
                        w1[:, :, kh, kw].T)
    return blk.reshape(4 * 16 * C0, 4 * C1).astype(jnp.bfloat16)


def _expand_w2(w2):
    # conv2 weight (32,16,5,5) -> (576, 32); rows (dh, dw, rh, rw, ci).
    # Tap (dh, dw) on the parity-packed conv1 grid carries the original
    # (2*dh+rh, 2*dw+rw) kernel entry for parity (rh, rw); zero when off 5x5.
    blk = jnp.zeros((3, 3, 2, 2, C1, C2), jnp.float32)
    for dh in range(3):
        for dw in range(3):
            for rh in range(2):
                for rw in range(2):
                    kh, kw = 2 * dh + rh, 2 * dw + rw
                    if kh < 5 and kw < 5:
                        blk = blk.at[dh, dw, rh, rw, :, :].set(w2[:, :, kh, kw].T)
    return blk.reshape(9 * 4 * C1, C2).astype(jnp.bfloat16)


def _expand_w3(w3):
    # conv3 weight (32,32,5,5) -> (800, 32); rows (kh, kw, ci).
    return jnp.transpose(w3, (2, 3, 1, 0)).reshape(25 * C2, C3).astype(jnp.bfloat16)


def _expand_head(head_w):
    # head weight (A, 448), feature = c*14 + (h*7+w)  ->  (448, A), row = p*32+c.
    n_act = head_w.shape[0]
    w = head_w.reshape(n_act, C3, NP3)
    return jnp.transpose(w, (2, 1, 0)).reshape(NP3 * C3, n_act).astype(jnp.bfloat16)


def _constants():
    # conv3 0/1 row gather (32 x 256) and the BN validity masks (1 x rows).
    sel3 = np.zeros((R3, R3S), np.float32)
    for b in range(B):
        for h in range(H3):
            for w in range(W3):
                p = h * W3 + w
                sel3[2 * p + b, b * GRID + 2 * h * GW + 2 * w] = 1.0

    m1 = np.zeros((1, H1R), np.float32)
    for b in range(B):
        for i in range((H1 + 1) // 2):       # 9 coarse rows cover h1 = 0..17
            for j in range((W1 + 1) // 2):   # 19 coarse cols cover w1 = 0..37
                m1[0, b * GRID + i * GW + j] = 1.0

    m2 = np.zeros((1, R2), np.float32)
    for b in range(B):
        for i in range(H2):
            for j in range(W2):
                m2[0, b * GRID + i * GW + j] = 1.0

    m3 = np.zeros((1, R3), np.float32)
    m3[0, :N3] = 1.0
    return sel3, m1, m2, m3


def dqn_image_forward(x_nchw, params):
    assert x_nchw.shape == (B, C0, H0, W0), x_nchw.shape
    n_actions = params["head_w"].shape[0]

    # 4x4 space-to-depth of the input (pure re-layout of the same ~77 KB):
    # rows (b, hc, wc) on the (10, 20) coarse grid, lanes (fr, fc, ci) = 48.
    x = jnp.transpose(x_nchw, (0, 2, 3, 1)).astype(jnp.float32)
    x = x.reshape(B, GH, 4, GW, 4, C0)
    x = jnp.transpose(x, (0, 1, 3, 2, 4, 5)).reshape(B * GRID, 16 * C0)
    x4 = jnp.pad(x, ((0, INR - B * GRID), (0, 0))).astype(jnp.bfloat16)

    sel3_np, m1_np, m2_np, m3_np = _constants()

    def row(v, reps=1):
        if reps > 1:
            v = jnp.tile(v, reps)
        return v.reshape(1, -1).astype(jnp.float32)

    args = (
        x4, _expand_w1(params["w1"]),
        row(params["g1"], 4), row(params["be1"], 4), jnp.asarray(m1_np),
        _expand_w2(params["w2"]),
        row(params["g2"]), row(params["be2"]), jnp.asarray(m2_np),
        _expand_w3(params["w3"]), jnp.asarray(sel3_np, jnp.bfloat16),
        row(params["g3"]), row(params["be3"]), jnp.asarray(m3_np),
        _expand_head(params["head_w"]), row(params["head_b"]),
    )

    vmem = pl.BlockSpec(memory_space=pltpu.MemorySpace.VMEM)
    return pl.pallas_call(
        _dqn_kernel,
        out_shape=jax.ShapeDtypeStruct((B, n_actions), jnp.float32),
        in_specs=[vmem] * len(args),
        out_specs=vmem,
        scratch_shapes=[
            pltpu.VMEM((H1R, 4 * C1), jnp.bfloat16),   # parity-packed conv1 acts
            pltpu.VMEM((R2, C2), jnp.bfloat16),        # conv2 acts
        ],
        compiler_params=pltpu.CompilerParams(
            vmem_limit_bytes=16 * 1024 * 1024,
        ),
    )(*args)


# ---------------------------------------------------------------------------
# Deterministic parameter init + pure-JAX reference for verification.
# ---------------------------------------------------------------------------
def init_params(key, n_actions):
    ks = jax.random.split(key, 14)

    def nrm(k, shape, scale):
        return scale * jax.random.normal(k, shape, jnp.float32)

    return {
        "w1": nrm(ks[0], (16, 3, 5, 5), 1.0 / np.sqrt(75.0)),
        "b1": nrm(ks[1], (16,), 0.05),
        "g1": 1.0 + 0.1 * jax.random.normal(ks[2], (16,), jnp.float32),
        "be1": 0.1 * jax.random.normal(ks[3], (16,), jnp.float32),
        "w2": nrm(ks[4], (32, 16, 5, 5), 1.0 / np.sqrt(400.0)),
        "b2": nrm(ks[5], (32,), 0.05),
        "g2": 1.0 + 0.1 * jax.random.normal(ks[6], (32,), jnp.float32),
        "be2": 0.1 * jax.random.normal(ks[7], (32,), jnp.float32),
        "w3": nrm(ks[8], (32, 32, 5, 5), 1.0 / np.sqrt(800.0)),
        "b3": nrm(ks[9], (32,), 0.05),
        "g3": 1.0 + 0.1 * jax.random.normal(ks[10], (32,), jnp.float32),
        "be3": 0.1 * jax.random.normal(ks[11], (32,), jnp.float32),
        "head_w": nrm(ks[12], (n_actions, 448), 1.0 / np.sqrt(448.0)),
        "head_b": nrm(ks[13], (n_actions,), 0.05),
    }


def reference_forward(x, p):
    def conv(h, w, b):
        y = lax.conv_general_dilated(
            h, w, window_strides=(2, 2), padding="VALID",
            dimension_numbers=("NCHW", "OIHW", "NCHW"),
            precision=lax.Precision.HIGHEST,
        )
        return y + b[None, :, None, None]

    def bn_train(h, g, be):
        mean = jnp.mean(h, axis=(0, 2, 3), keepdims=True)
        var = jnp.mean((h - mean) ** 2, axis=(0, 2, 3), keepdims=True)
        return (h - mean) * lax.rsqrt(var + EPS) * g[None, :, None, None] \
            + be[None, :, None, None]

    h = jax.nn.relu(bn_train(conv(x, p["w1"], p["b1"]), p["g1"], p["be1"]))
    h = jax.nn.relu(bn_train(conv(h, p["w2"], p["b2"]), p["g2"], p["be2"]))
    h = jax.nn.relu(bn_train(conv(h, p["w3"], p["b3"]), p["g3"], p["be3"]))
    feat = h.reshape(h.shape[0], -1)
    return jnp.dot(feat, p["head_w"].T,
                   precision=lax.Precision.HIGHEST) + p["head_b"]


if __name__ == "__main__":
    key = jax.random.PRNGKey(0)
    kx, kp = jax.random.split(key)
    n_actions = 4
    # Canonical DQNImage input: batch=2, 3-channel 40x80 screen -> 448 features.
    x = jax.random.normal(kx, (B, C0, H0, W0), jnp.float32)
    params = init_params(kp, n_actions)

    fwd = jax.jit(dqn_image_forward)
    out = jax.block_until_ready(fwd(x, params))
    assert out.shape == (B, n_actions), out.shape

    ref = np.asarray(reference_forward(x, params))
    # Every MXU operand (input, 3 conv layers, gather, head) is bf16 with f32
    # accumulation, compared against an all-f32 HIGHEST reference -> 3e-2 tol.
    if not np.allclose(np.asarray(out), ref, rtol=3e-2, atol=3e-2):
        raise AssertionError(
            f"mismatch: max abs diff {np.max(np.abs(np.asarray(out) - ref))}"
        )
    print("KERNEL_OK")
</pallas_src>

<mosaic_0001>
module attributes {stable_mosaic.version = 11 : i64} {
  func.func @_dqn_kernel(%arg0: memref<424x48xbf16, #tpu.memory_space<vmem>>, %arg1: memref<192x64xbf16, #tpu.memory_space<vmem>>, %arg2: memref<1x64xf32, #tpu.memory_space<vmem>>, %arg3: memref<1x64xf32, #tpu.memory_space<vmem>>, %arg4: memref<1x400xf32, #tpu.memory_space<vmem>>, %arg5: memref<576x32xbf16, #tpu.memory_space<vmem>>, %arg6: memref<1x32xf32, #tpu.memory_space<vmem>>, %arg7: memref<1x32xf32, #tpu.memory_space<vmem>>, %arg8: memref<1x344xf32, #tpu.memory_space<vmem>>, %arg9: memref<800x32xbf16, #tpu.memory_space<vmem>>, %arg10: memref<32x256xbf16, #tpu.memory_space<vmem>>, %arg11: memref<1x32xf32, #tpu.memory_space<vmem>>, %arg12: memref<1x32xf32, #tpu.memory_space<vmem>>, %arg13: memref<1x32xf32, #tpu.memory_space<vmem>>, %arg14: memref<448x4xbf16, #tpu.memory_space<vmem>>, %arg15: memref<1x4xf32, #tpu.memory_space<vmem>>, %arg16: memref<2x4xf32, #tpu.memory_space<vmem>>, %arg17: memref<400x64xbf16, #tpu.memory_space<vmem>>, %arg18: memref<344x32xbf16, #tpu.memory_space<vmem>>) attributes {dimension_semantics = [], scalar_prefetch = 0 : i64, scratch_operands = 2 : i64, tpu.core_type = #tpu.core_type<tc>} {
    %c0 = arith.constant 0 : index
    %c0_0 = arith.constant 0 : index
    %0 = vector.load %arg0[%c0, %c0_0] : memref<424x48xbf16, #tpu.memory_space<vmem>>, vector<400x48xbf16>
    %c1 = arith.constant 1 : index
    %c0_1 = arith.constant 0 : index
    %1 = vector.load %arg0[%c1, %c0_1] : memref<424x48xbf16, #tpu.memory_space<vmem>>, vector<400x48xbf16>
    %c20 = arith.constant 20 : index
    %c0_2 = arith.constant 0 : index
    %2 = vector.load %arg0[%c20, %c0_2] : memref<424x48xbf16, #tpu.memory_space<vmem>>, vector<400x48xbf16>
    %c21 = arith.constant 21 : index
    %c0_3 = arith.constant 0 : index
    %3 = vector.load %arg0[%c21, %c0_3] : memref<424x48xbf16, #tpu.memory_space<vmem>>, vector<400x48xbf16>
    %4 = tpu.concatenate %0, %1, %2, %3 in 1 : vector<400x48xbf16>, vector<400x48xbf16>, vector<400x48xbf16>, vector<400x48xbf16> -> vector<400x192xbf16>
    %c0_4 = arith.constant 0 : index
    %c0_5 = arith.constant 0 : index
    %5 = vector.load %arg1[%c0_4, %c0_5] : memref<192x64xbf16, #tpu.memory_space<vmem>>, vector<192x64xbf16>
    %cst = arith.constant dense<0.000000e+00> : vector<400x64xf32>
    %6 = tpu.matmul %4, %5, %cst {dimension_numbers = #tpu.dot_dimension_numbers<[1], [0], [0], [1], [0, 0, 1, 1], [], []>} : vector<400x192xbf16>, vector<192x64xbf16>, vector<400x64xf32> -> vector<400x64xf32>
    %c0_6 = arith.constant 0 : index
    %c0_7 = arith.constant 0 : index
    %7 = vector.load %arg4[%c0_6, %c0_7] : memref<1x400xf32, #tpu.memory_space<vmem>>, vector<1x400xf32>
    %c0_8 = arith.constant 0 : index
    %c0_9 = arith.constant 0 : index
    %8 = vector.load %arg2[%c0_8, %c0_9] : memref<1x64xf32, #tpu.memory_space<vmem>>, vector<1x64xf32>
    %c0_10 = arith.constant 0 : index
    %c0_11 = arith.constant 0 : index
    %9 = vector.load %arg3[%c0_10, %c0_11] : memref<1x64xf32, #tpu.memory_space<vmem>>, vector<1x64xf32>
    %cst_12 = arith.constant dense<0.000000e+00> : vector<1x64xf32>
    %10 = tpu.matmul %7, %6, %cst_12 {dimension_numbers = #tpu.dot_dimension_numbers<[1], [0], [0], [1], [0, 0, 1, 1], [], []>} : vector<1x400xf32>, vector<400x64xf32>, vector<1x64xf32> -> vector<1x64xf32>
    %11 = vector.extract_strided_slice %10 {offsets = [0, 0], sizes = [1, 16], strides = [1, 1]} : vector<1x64xf32> to vector<1x16xf32>
    %cst_13 = arith.constant 0.000000e+00 : f32
    %12 = vector.broadcast %cst_13 : f32 to vector<1x16xf32>
    %13 = arith.addf %12, %11 : vector<1x16xf32>
    %14 = vector.extract_strided_slice %10 {offsets = [0, 16], sizes = [1, 16], strides = [1, 1]} : vector<1x64xf32> to vector<1x16xf32>
    %15 = arith.addf %13, %14 : vector<1x16xf32>
    %16 = vector.extract_strided_slice %10 {offsets = [0, 32], sizes = [1, 16], strides = [1, 1]} : vector<1x64xf32> to vector<1x16xf32>
    %17 = arith.addf %15, %16 : vector<1x16xf32>
    %18 = vector.extract_strided_slice %10 {offsets = [0, 48], sizes = [1, 16], strides = [1, 1]} : vector<1x64xf32> to vector<1x16xf32>
    %19 = arith.addf %17, %18 : vector<1x16xf32>
    %20 = tpu.concatenate %19, %19, %19, %19 in 1 : vector<1x16xf32>, vector<1x16xf32>, vector<1x16xf32>, vector<1x16xf32> -> vector<1x64xf32>
    %cst_14 = arith.constant 7.30994157E-4 : f32
    %21 = vector.broadcast %cst_14 : f32 to vector<1x64xf32>
    %22 = arith.mulf %20, %21 : vector<1x64xf32>
    %23 = vector.broadcast %22 : vector<1x64xf32> to vector<400x64xf32>
    %24 = arith.subf %6, %23 : vector<400x64xf32>
    %25 = arith.mulf %24, %24 : vector<400x64xf32>
    %cst_15 = arith.constant dense<0.000000e+00> : vector<1x64xf32>
    %26 = tpu.matmul %7, %25, %cst_15 {dimension_numbers = #tpu.dot_dimension_numbers<[1], [0], [0], [1], [0, 0, 1, 1], [], []>} : vector<1x400xf32>, vector<400x64xf32>, vector<1x64xf32> -> vector<1x64xf32>
    %27 = vector.extract_strided_slice %26 {offsets = [0, 0], sizes = [1, 16], strides = [1, 1]} : vector<1x64xf32> to vector<1x16xf32>
    %cst_16 = arith.constant 0.000000e+00 : f32
    %28 = vector.broadcast %cst_16 : f32 to vector<1x16xf32>
    %29 = arith.addf %28, %27 : vector<1x16xf32>
    %30 = vector.extract_strided_slice %26 {offsets = [0, 16], sizes = [1, 16], strides = [1, 1]} : vector<1x64xf32> to vector<1x16xf32>
    %31 = arith.addf %29, %30 : vector<1x16xf32>
    %32 = vector.extract_strided_slice %26 {offsets = [0, 32], sizes = [1, 16], strides = [1, 1]} : vector<1x64xf32> to vector<1x16xf32>
    %33 = arith.addf %31, %32 : vector<1x16xf32>
    %34 = vector.extract_strided_slice %26 {offsets = [0, 48], sizes = [1, 16], strides = [1, 1]} : vector<1x64xf32> to vector<1x16xf32>
    %35 = arith.addf %33, %34 : vector<1x16xf32>
    %36 = tpu.concatenate %35, %35, %35, %35 in 1 : vector<1x16xf32>, vector<1x16xf32>, vector<1x16xf32>, vector<1x16xf32> -> vector<1x64xf32>
    %cst_17 = arith.constant 7.30994157E-4 : f32
    %37 = vector.broadcast %cst_17 : f32 to vector<1x64xf32>
    %38 = arith.mulf %36, %37 : vector<1x64xf32>
    %cst_18 = arith.constant 9.99999974E-6 : f32
    %39 = vector.broadcast %cst_18 : f32 to vector<1x64xf32>
    %40 = arith.addf %38, %39 : vector<1x64xf32>
    %41 = math.rsqrt %40 : vector<1x64xf32>
    %42 = vector.broadcast %41 : vector<1x64xf32> to vector<400x64xf32>
    %43 = arith.mulf %24, %42 : vector<400x64xf32>
    %44 = vector.broadcast %8 : vector<1x64xf32> to vector<400x64xf32>
    %45 = arith.mulf %43, %44 : vector<400x64xf32>
    %46 = vector.broadcast %9 : vector<1x64xf32> to vector<400x64xf32>
    %47 = arith.addf %45, %46 : vector<400x64xf32>
    %cst_19 = arith.constant 0.000000e+00 : f32
    %48 = vector.broadcast %cst_19 : f32 to vector<400x64xf32>
    %49 = arith.maximumf %47, %48 : vector<400x64xf32>
    %50 = arith.truncf %49 : vector<400x64xf32> to vector<400x64xbf16>
    %c0_20 = arith.constant 0 : index
    %c0_21 = arith.constant 0 : index
    %51 = vector.load %arg17[%c0_20, %c0_21] : memref<400x64xbf16, #tpu.memory_space<vmem>>, vector<400x64xbf16>
    tpu.vector_store %arg17[%c0_20, %c0_21], %50 {strides = array<i32>} : memref<400x64xbf16, #tpu.memory_space<vmem>>, vector<400x64xbf16>,
    %c0_22 = arith.constant 0 : index
    %c0_23 = arith.constant 0 : index
    %52 = vector.load %arg17[%c0_22, %c0_23] : memref<400x64xbf16, #tpu.memory_space<vmem>>, vector<344x64xbf16>
    %c1_24 = arith.constant 1 : index
    %c0_25 = arith.constant 0 : index
    %53 = vector.load %arg17[%c1_24, %c0_25] : memref<400x64xbf16, #tpu.memory_space<vmem>>, vector<344x64xbf16>
    %c2 = arith.constant 2 : index
    %c0_26 = arith.constant 0 : index
    %54 = vector.load %arg17[%c2, %c0_26] : memref<400x64xbf16, #tpu.memory_space<vmem>>, vector<344x64xbf16>
    %c20_27 = arith.constant 20 : index
    %c0_28 = arith.constant 0 : index
    %55 = vector.load %arg17[%c20_27, %c0_28] : memref<400x64xbf16, #tpu.memory_space<vmem>>, vector<344x64xbf16>
    %c21_29 = arith.constant 21 : index
    %c0_30 = arith.constant 0 : index
    %56 = vector.load %arg17[%c21_29, %c0_30] : memref<400x64xbf16, #tpu.memory_space<vmem>>, vector<344x64xbf16>
    %c22 = arith.constant 22 : index
    %c0_31 = arith.constant 0 : index
    %57 = vector.load %arg17[%c22, %c0_31] : memref<400x64xbf16, #tpu.memory_space<vmem>>, vector<344x64xbf16>
    %c40 = arith.constant 40 : index
    %c0_32 = arith.constant 0 : index
    %58 = vector.load %arg17[%c40, %c0_32] : memref<400x64xbf16, #tpu.memory_space<vmem>>, vector<344x64xbf16>
    %c41 = arith.constant 41 : index
    %c0_33 = arith.constant 0 : index
    %59 = vector.load %arg17[%c41, %c0_33] : memref<400x64xbf16, #tpu.memory_space<vmem>>, vector<344x64xbf16>
    %c42 = arith.constant 42 : index
    %c0_34 = arith.constant 0 : index
    %60 = vector.load %arg17[%c42, %c0_34] : memref<400x64xbf16, #tpu.memory_space<vmem>>, vector<344x64xbf16>
    %61 = tpu.concatenate %52, %53, %54, %55, %56, %57, %58, %59, %60 in 1 : vector<344x64xbf16>, vector<344x64xbf16>, vector<344x64xbf16>, vector<344x64xbf16>, vector<344x64xbf16>, vector<344x64xbf16>, vector<344x64xbf16>, vector<344x64xbf16>, vector<344x64xbf16> -> vector<344x576xbf16>
    %c0_35 = arith.constant 0 : index
    %c0_36 = arith.constant 0 : index
    %62 = vector.load %arg5[%c0_35, %c0_36] : memref<576x32xbf16, #tpu.memory_space<vmem>>, vector<576x32xbf16>
    %cst_37 = arith.constant dense<0.000000e+00> : vector<344x32xf32>
    %63 = tpu.matmul %61, %62, %cst_37 {dimension_numbers = #tpu.dot_dimension_numbers<[1], [0], [0], [1], [0, 0, 1, 1], [], []>} : vector<344x576xbf16>, vector<576x32xbf16>, vector<344x32xf32> -> vector<344x32xf32>
    %c0_38 = arith.constant 0 : index
    %c0_39 = arith.constant 0 : index
    %64 = vector.load %arg8[%c0_38, %c0_39] : memref<1x344xf32, #tpu.memory_space<vmem>>, vector<1x344xf32>
    %c0_40 = arith.constant 0 : index
    %c0_41 = arith.constant 0 : index
    %65 = vector.load %arg6[%c0_40, %c0_41] : memref<1x32xf32, #tpu.memory_space<vmem>>, vector<1x32xf32>
    %c0_42 = arith.constant 0 : index
    %c0_43 = arith.constant 0 : index
    %66 = vector.load %arg7[%c0_42, %c0_43] : memref<1x32xf32, #tpu.memory_space<vmem>>, vector<1x32xf32>
    %cst_44 = arith.constant dense<0.000000e+00> : vector<1x32xf32>
    %67 = tpu.matmul %64, %63, %cst_44 {dimension_numbers = #tpu.dot_dimension_numbers<[1], [0], [0], [1], [0, 0, 1, 1], [], []>} : vector<1x344xf32>, vector<344x32xf32>, vector<1x32xf32> -> vector<1x32xf32>
    %cst_45 = arith.constant 0.00420168089 : f32
    %68 = vector.broadcast %cst_45 : f32 to vector<1x32xf32>
    %69 = arith.mulf %67, %68 : vector<1x32xf32>
    %70 = vector.broadcast %69 : vector<1x32xf32> to vector<344x32xf32>
    %71 = arith.subf %63, %70 : vector<344x32xf32>
    %72 = arith.mulf %71, %71 : vector<344x32xf32>
    %cst_46 = arith.constant dense<0.000000e+00> : vector<1x32xf32>
    %73 = tpu.matmul %64, %72, %cst_46 {dimension_numbers = #tpu.dot_dimension_numbers<[1], [0], [0], [1], [0, 0, 1, 1], [], []>} : vector<1x344xf32>, vector<344x32xf32>, vector<1x32xf32> -> vector<1x32xf32>
    %cst_47 = arith.constant 0.00420168089 : f32
    %74 = vector.broadcast %cst_47 : f32 to vector<1x32xf32>
    %75 = arith.mulf %73, %74 : vector<1x32xf32>
    %cst_48 = arith.constant 9.99999974E-6 : f32
    %76 = vector.broadcast %cst_48 : f32 to vector<1x32xf32>
    %77 = arith.addf %75, %76 : vector<1x32xf32>
    %78 = math.rsqrt %77 : vector<1x32xf32>
    %79 = vector.broadcast %78 : vector<1x32xf32> to vector<344x32xf32>
    %80 = arith.mulf %71, %79 : vector<344x32xf32>
    %81 = vector.broadcast %65 : vector<1x32xf32> to vector<344x32xf32>
    %82 = arith.mulf %80, %81 : vector<344x32xf32>
    %83 = vector.broadcast %66 : vector<1x32xf32> to vector<344x32xf32>
    %84 = arith.addf %82, %83 : vector<344x32xf32>
    %cst_49 = arith.constant 0.000000e+00 : f32
    %85 = vector.broadcast %cst_49 : f32 to vector<344x32xf32>
    %86 = arith.maximumf %84, %85 : vector<344x32xf32>
    %87 = arith.truncf %86 : vector<344x32xf32> to vector<344x32xbf16>
    %c0_50 = arith.constant 0 : index
    %c0_51 = arith.constant 0 : index
    %88 = vector.load %arg18[%c0_50, %c0_51] : memref<344x32xbf16, #tpu.memory_space<vmem>>, vector<344x32xbf16>
    tpu.vector_store %arg18[%c0_50, %c0_51], %87 {strides = array<i32>} : memref<344x32xbf16, #tpu.memory_space<vmem>>, vector<344x32xbf16>,
    %c0_52 = arith.constant 0 : index
    %c0_53 = arith.constant 0 : index
    %89 = vector.load %arg18[%c0_52, %c0_53] : memref<344x32xbf16, #tpu.memory_space<vmem>>, vector<256x32xbf16>
    %c1_54 = arith.constant 1 : index
    %c0_55 = arith.constant 0 : index
    %90 = vector.load %arg18[%c1_54, %c0_55] : memref<344x32xbf16, #tpu.memory_space<vmem>>, vector<256x32xbf16>
    %c2_56 = arith.constant 2 : index
    %c0_57 = arith.constant 0 : index
    %91 = vector.load %arg18[%c2_56, %c0_57] : memref<344x32xbf16, #tpu.memory_space<vmem>>, vector<256x32xbf16>
    %c3 = arith.constant 3 : index
    %c0_58 = arith.constant 0 : index
    %92 = vector.load %arg18[%c3, %c0_58] : memref<344x32xbf16, #tpu.memory_space<vmem>>, vector<256x32xbf16>
    %c4 = arith.constant 4 : index
    %c0_59 = arith.constant 0 : index
    %93 = vector.load %arg18[%c4, %c0_59] : memref<344x32xbf16, #tpu.memory_space<vmem>>, vector<256x32xbf16>
    %c20_60 = arith.constant 20 : index
    %c0_61 = arith.constant 0 : index
    %94 = vector.load %arg18[%c20_60, %c0_61] : memref<344x32xbf16, #tpu.memory_space<vmem>>, vector<256x32xbf16>
    %c21_62 = arith.constant 21 : index
    %c0_63 = arith.constant 0 : index
    %95 = vector.load %arg18[%c21_62, %c0_63] : memref<344x32xbf16, #tpu.memory_space<vmem>>, vector<256x32xbf16>
    %c22_64 = arith.constant 22 : index
    %c0_65 = arith.constant 0 : index
    %96 = vector.load %arg18[%c22_64, %c0_65] : memref<344x32xbf16, #tpu.memory_space<vmem>>, vector<256x32xbf16>
    %c23 = arith.constant 23 : index
    %c0_66 = arith.constant 0 : index
    %97 = vector.load %arg18[%c23, %c0_66] : memref<344x32xbf16, #tpu.memory_space<vmem>>, vector<256x32xbf16>
    %c24 = arith.constant 24 : index
    %c0_67 = arith.constant 0 : index
    %98 = vector.load %arg18[%c24, %c0_67] : memref<344x32xbf16, #tpu.memory_space<vmem>>, vector<256x32xbf16>
    %c40_68 = arith.constant 40 : index
    %c0_69 = arith.constant 0 : index
    %99 = vector.load %arg18[%c40_68, %c0_69] : memref<344x32xbf16, #tpu.memory_space<vmem>>, vector<256x32xbf16>
    %c41_70 = arith.constant 41 : index
    %c0_71 = arith.constant 0 : index
    %100 = vector.load %arg18[%c41_70, %c0_71] : memref<344x32xbf16, #tpu.memory_space<vmem>>, vector<256x32xbf16>
    %c42_72 = arith.constant 42 : index
    %c0_73 = arith.constant 0 : index
    %101 = vector.load %arg18[%c42_72, %c0_73] : memref<344x32xbf16, #tpu.memory_space<vmem>>, vector<256x32xbf16>
    %c43 = arith.constant 43 : index
    %c0_74 = arith.constant 0 : index
    %102 = vector.load %arg18[%c43, %c0_74] : memref<344x32xbf16, #tpu.memory_space<vmem>>, vector<256x32xbf16>
    %c44 = arith.constant 44 : index
    %c0_75 = arith.constant 0 : index
    %103 = vector.load %arg18[%c44, %c0_75] : memref<344x32xbf16, #tpu.memory_space<vmem>>, vector<256x32xbf16>
    %c60 = arith.constant 60 : index
    %c0_76 = arith.constant 0 : index
    %104 = vector.load %arg18[%c60, %c0_76] : memref<344x32xbf16, #tpu.memory_space<vmem>>, vector<256x32xbf16>
    %c61 = arith.constant 61 : index
    %c0_77 = arith.constant 0 : index
    %105 = vector.load %arg18[%c61, %c0_77] : memref<344x32xbf16, #tpu.memory_space<vmem>>, vector<256x32xbf16>
    %c62 = arith.constant 62 : index
    %c0_78 = arith.constant 0 : index
    %106 = vector.load %arg18[%c62, %c0_78] : memref<344x32xbf16, #tpu.memory_space<vmem>>, vector<256x32xbf16>
    %c63 = arith.constant 63 : index
    %c0_79 = arith.constant 0 : index
    %107 = vector.load %arg18[%c63, %c0_79] : memref<344x32xbf16, #tpu.memory_space<vmem>>, vector<256x32xbf16>
    %c64 = arith.constant 64 : index
    %c0_80 = arith.constant 0 : index
    %108 = vector.load %arg18[%c64, %c0_80] : memref<344x32xbf16, #tpu.memory_space<vmem>>, vector<256x32xbf16>
    %c80 = arith.constant 80 : index
    %c0_81 = arith.constant 0 : index
    %109 = vector.load %arg18[%c80, %c0_81] : memref<344x32xbf16, #tpu.memory_space<vmem>>, vector<256x32xbf16>
    %c81 = arith.constant 81 : index
    %c0_82 = arith.constant 0 : index
    %110 = vector.load %arg18[%c81, %c0_82] : memref<344x32xbf16, #tpu.memory_space<vmem>>, vector<256x32xbf16>
    %c82 = arith.constant 82 : index
    %c0_83 = arith.constant 0 : index
    %111 = vector.load %arg18[%c82, %c0_83] : memref<344x32xbf16, #tpu.memory_space<vmem>>, vector<256x32xbf16>
    %c83 = arith.constant 83 : index
    %c0_84 = arith.constant 0 : index
    %112 = vector.load %arg18[%c83, %c0_84] : memref<344x32xbf16, #tpu.memory_space<vmem>>, vector<256x32xbf16>
    %c84 = arith.constant 84 : index
    %c0_85 = arith.constant 0 : index
    %113 = vector.load %arg18[%c84, %c0_85] : memref<344x32xbf16, #tpu.memory_space<vmem>>, vector<256x32xbf16>
    %114 = tpu.concatenate %89, %90, %91, %92, %93, %94, %95, %96, %97, %98, %99, %100, %101, %102, %103, %104 in 1 : vector<256x32xbf16>, vector<256x32xbf16>, vector<256x32xbf16>, vector<256x32xbf16>, vector<256x32xbf16>, vector<256x32xbf16>, vector<256x32xbf16>, vector<256x32xbf16>, vector<256x32xbf16>, vector<256x32xbf16>, vector<256x32xbf16>, vector<256x32xbf16>, vector<256x32xbf16>, vector<256x32xbf16>, vector<256x32xbf16>, vector<256x32xbf16> -> vector<256x512xbf16>
    %115 = tpu.concatenate %105, %106, %107, %108, %109, %110, %111, %112, %113 in 1 : vector<256x32xbf16>, vector<256x32xbf16>, vector<256x32xbf16>, vector<256x32xbf16>, vector<256x32xbf16>, vector<256x32xbf16>, vector<256x32xbf16>, vector<256x32xbf16>, vector<256x32xbf16> -> vector<256x288xbf16>
    %116 = tpu.concatenate %114, %115 in 1 : vector<256x512xbf16>, vector<256x288xbf16> -> vector<256x800xbf16>
    %c0_86 = arith.constant 0 : index
    %c0_87 = arith.constant 0 : index
    %117 = vector.load %arg10[%c0_86, %c0_87] : memref<32x256xbf16, #tpu.memory_space<vmem>>, vector<32x256xbf16>
    %cst_88 = arith.constant dense<0.000000e+00> : vector<32x800xf32>
    %118 = tpu.matmul %117, %116, %cst_88 {dimension_numbers = #tpu.dot_dimension_numbers<[1], [0], [0], [1], [0, 0, 1, 1], [], []>} : vector<32x256xbf16>, vector<256x800xbf16>, vector<32x800xf32> -> vector<32x800xf32>
    %119 = arith.truncf %118 : vector<32x800xf32> to vector<32x800xbf16>
    %c0_89 = arith.constant 0 : index
    %c0_90 = arith.constant 0 : index
    %120 = vector.load %arg9[%c0_89, %c0_90] : memref<800x32xbf16, #tpu.memory_space<vmem>>, vector<800x32xbf16>
    %cst_91 = arith.constant dense<0.000000e+00> : vector<32x32xf32>
    %121 = tpu.matmul %119, %120, %cst_91 {dimension_numbers = #tpu.dot_dimension_numbers<[1], [0], [0], [1], [0, 0, 1, 1], [], []>} : vector<32x800xbf16>, vector<800x32xbf16>, vector<32x32xf32> -> vector<32x32xf32>
    %c0_92 = arith.constant 0 : index
    %c0_93 = arith.constant 0 : index
    %122 = vector.load %arg13[%c0_92, %c0_93] : memref<1x32xf32, #tpu.memory_space<vmem>>, vector<1x32xf32>
    %c0_94 = arith.constant 0 : index
    %c0_95 = arith.constant 0 : index
    %123 = vector.load %arg11[%c0_94, %c0_95] : memref<1x32xf32, #tpu.memory_space<vmem>>, vector<1x32xf32>
    %c0_96 = arith.constant 0 : index
    %c0_97 = arith.constant 0 : index
    %124 = vector.load %arg12[%c0_96, %c0_97] : memref<1x32xf32, #tpu.memory_space<vmem>>, vector<1x32xf32>
    %cst_98 = arith.constant dense<0.000000e+00> : vector<1x32xf32>
    %125 = tpu.matmul %122, %121, %cst_98 {dimension_numbers = #tpu.dot_dimension_numbers<[1], [0], [0], [1], [0, 0, 1, 1], [], []>} : vector<1x32xf32>, vector<32x32xf32>, vector<1x32xf32> -> vector<1x32xf32>
    %cst_99 = arith.constant 0.0357142873 : f32
    %126 = vector.broadcast %cst_99 : f32 to vector<1x32xf32>
    %127 = arith.mulf %125, %126 : vector<1x32xf32>
    %128 = vector.broadcast %127 : vector<1x32xf32> to vector<32x32xf32>
    %129 = arith.subf %121, %128 : vector<32x32xf32>
    %130 = arith.mulf %129, %129 : vector<32x32xf32>
    %cst_100 = arith.constant dense<0.000000e+00> : vector<1x32xf32>
    %131 = tpu.matmul %122, %130, %cst_100 {dimension_numbers = #tpu.dot_dimension_numbers<[1], [0], [0], [1], [0, 0, 1, 1], [], []>} : vector<1x32xf32>, vector<32x32xf32>, vector<1x32xf32> -> vector<1x32xf32>
    %cst_101 = arith.constant 0.0357142873 : f32
    %132 = vector.broadcast %cst_101 : f32 to vector<1x32xf32>
    %133 = arith.mulf %131, %132 : vector<1x32xf32>
    %cst_102 = arith.constant 9.99999974E-6 : f32
    %134 = vector.broadcast %cst_102 : f32 to vector<1x32xf32>
    %135 = arith.addf %133, %134 : vector<1x32xf32>
    %136 = math.rsqrt %135 : vector<1x32xf32>
    %137 = vector.broadcast %136 : vector<1x32xf32> to vector<32x32xf32>
    %138 = arith.mulf %129, %137 : vector<32x32xf32>
    %139 = vector.broadcast %123 : vector<1x32xf32> to vector<32x32xf32>
    %140 = arith.mulf %138, %139 : vector<32x32xf32>
    %141 = vector.broadcast %124 : vector<1x32xf32> to vector<32x32xf32>
    %142 = arith.addf %140, %141 : vector<32x32xf32>
    %cst_103 = arith.constant 0.000000e+00 : f32
    %143 = vector.broadcast %cst_103 : f32 to vector<32x32xf32>
    %144 = arith.maximumf %142, %143 : vector<32x32xf32>
    %145 = vector.extract_strided_slice %144 {offsets = [0, 0], sizes = [2, 32], strides = [1, 1]} : vector<32x32xf32> to vector<2x32xf32>
    %146 = vector.extract_strided_slice %144 {offsets = [2, 0], sizes = [2, 32], strides = [1, 1]} : vector<32x32xf32> to vector<2x32xf32>
    %147 = vector.extract_strided_slice %144 {offsets = [4, 0], sizes = [2, 32], strides = [1, 1]} : vector<32x32xf32> to vector<2x32xf32>
    %148 = vector.extract_strided_slice %144 {offsets = [6, 0], sizes = [2, 32], strides = [1, 1]} : vector<32x32xf32> to vector<2x32xf32>
    %149 = vector.extract_strided_slice %144 {offsets = [8, 0], sizes = [2, 32], strides = [1, 1]} : vector<32x32xf32> to vector<2x32xf32>
    %150 = vector.extract_strided_slice %144 {offsets = [10, 0], sizes = [2, 32], strides = [1, 1]} : vector<32x32xf32> to vector<2x32xf32>
    %151 = vector.extract_strided_slice %144 {offsets = [12, 0], sizes = [2, 32], strides = [1, 1]} : vector<32x32xf32> to vector<2x32xf32>
    %152 = vector.extract_strided_slice %144 {offsets = [14, 0], sizes = [2, 32], strides = [1, 1]} : vector<32x32xf32> to vector<2x32xf32>
    %153 = vector.extract_strided_slice %144 {offsets = [16, 0], sizes = [2, 32], strides = [1, 1]} : vector<32x32xf32> to vector<2x32xf32>
    %154 = vector.extract_strided_slice %144 {offsets = [18, 0], sizes = [2, 32], strides = [1, 1]} : vector<32x32xf32> to vector<2x32xf32>
    %155 = vector.extract_strided_slice %144 {offsets = [20, 0], sizes = [2, 32], strides = [1, 1]} : vector<32x32xf32> to vector<2x32xf32>
    %156 = vector.extract_strided_slice %144 {offsets = [22, 0], sizes = [2, 32], strides = [1, 1]} : vector<32x32xf32> to vector<2x32xf32>
    %157 = vector.extract_strided_slice %144 {offsets = [24, 0], sizes = [2, 32], strides = [1, 1]} : vector<32x32xf32> to vector<2x32xf32>
    %158 = vector.extract_strided_slice %144 {offsets = [26, 0], sizes = [2, 32], strides = [1, 1]} : vector<32x32xf32> to vector<2x32xf32>
    %159 = tpu.concatenate %145, %146, %147, %148, %149, %150, %151, %152, %153, %154, %155, %156, %157, %158 in 1 : vector<2x32xf32>, vector<2x32xf32>, vector<2x32xf32>, vector<2x32xf32>, vector<2x32xf32>, vector<2x32xf32>, vector<2x32xf32>, vector<2x32xf32>, vector<2x32xf32>, vector<2x32xf32>, vector<2x32xf32>, vector<2x32xf32>, vector<2x32xf32>, vector<2x32xf32> -> vector<2x448xf32>
    %160 = arith.truncf %159 : vector<2x448xf32> to vector<2x448xbf16>
    %c0_104 = arith.constant 0 : index
    %c0_105 = arith.constant 0 : index
    %161 = vector.load %arg14[%c0_104, %c0_105] : memref<448x4xbf16, #tpu.memory_space<vmem>>, vector<448x4xbf16>
    %cst_106 = arith.constant dense<0.000000e+00> : vector<2x4xf32>
    %162 = tpu.matmul %160, %161, %cst_106 {dimension_numbers = #tpu.dot_dimension_numbers<[1], [0], [0], [1], [0, 0, 1, 1], [], []>} : vector<2x448xbf16>, vector<448x4xbf16>, vector<2x4xf32> -> vector<2x4xf32>
    %c0_107 = arith.constant 0 : index
    %c0_108 = arith.constant 0 : index
    %163 = vector.load %arg15[%c0_107, %c0_108] : memref<1x4xf32, #tpu.memory_space<vmem>>, vector<1x4xf32>
    %164 = vector.broadcast %163 : vector<1x4xf32> to vector<2x4xf32>
    %165 = arith.addf %162, %164 : vector<2x4xf32>
    %c0_109 = arith.constant 0 : index
    %c0_110 = arith.constant 0 : index
    %166 = vector.load %arg16[%c0_109, %c0_110] : memref<2x4xf32, #tpu.memory_space<vmem>>, vector<2x4xf32>
    tpu.vector_store %arg16[%c0_109, %c0_110], %165 {strides = array<i32>} : memref<2x4xf32, #tpu.memory_space<vmem>>, vector<2x4xf32>,
    return
  }
}

</mosaic_0001>

<llo_original>
// kernel: tile.13
$region0: #{tile.13}
  #allocation0 [shape = 's32[1]{0}', space=sflag, size = 0x4, scoped, tag = 'scoped memory for tile.13']
  %s0 = inlined_call_operand.vmem [shape: f32[16], index: 0, kind: input, shape index: {}]
  %s1 = inlined_call_operand.vmem [shape: f32[4,16], index: 1, kind: output, shape index: {}]
  // Predicated region
  $region2: #{tile.13} parent=0 // pred_check
    _
  $region3: #{tile.13} parent=0 // pred_check_branch
    %3 = sbr.rel (0) target = $region5
  $region4: #{tile.13} parent=0 // pred_region
    _
  $region5: #{tile.13} parent=0 // pred_fallthru
    _
  %v4 = vld [vmem:[%s0] ss:$0 sm:$0xff]
  %5 = vst [vmem:[%s1] sm:$0xf] %v4

// kernel: tile.14
$region0: #{tile.14}
  %s0 = inlined_call_operand.vmem [shape: f32[4,16], index: 0, kind: input, shape index: {}]
  %s1 = inlined_call_operand.vmem [shape: f32[1,64], index: 1, kind: output, shape index: {}]
  $region1: #{tile.14} parent=0
    #allocation0 [shape = 'u8[4096]{0}', space=vmem, size = 0x1000, scoped, tag = 'scoped mem for output reshape']
    #allocation1 [shape = 'u8[4096]{0}', space=vmem, size = 0x1000, scoped, tag = 'scoped mem for input reshape']
    %s3 = sshllo.u32 0, 4
    %v4 = vld [vmem:[%s0] sm:%s3]
    %5 = vst [vmem:[#allocation1] sm:%s3] %v4
    %v6 = vld [vmem:[#allocation1] sm:$0x1]
    %vm7 = vcmask 130048
    %8 = vst.msk [vmem:[#allocation0] sm:$0x1] %vm7, %v6
    %s9 = scalar_lea.vmem [#allocation1], 3
    %v10 = vld [vmem:[%s9] sm:$0x1]
    %11 = vrot.lane.b32.xlu0 %v10, 48
    %v12 = vpop.permute.xlu0 %11
    %vm13 = vcmask 523648
    %14 = vst.msk [vmem:[#allocation0] sm:$0x1] %vm13, %v12
    %s15 = scalar_lea.vmem [#allocation1], 2
    %v16 = vld [vmem:[%s15] sm:$0x1]
    %17 = vrot.lane.b32.xlu0 %v16, 32
    %v18 = vpop.permute.xlu0 %17
    %vm19 = vcmask 392448
    %20 = vst.msk [vmem:[#allocation0] sm:$0x1] %vm19, %v18
    %s21 = scalar_lea.vmem [#allocation1], 1
    %v22 = vld [vmem:[%s21] sm:$0x1]
    %23 = vrot.lane.b32.xlu0 %v22, 16
    %v24 = vpop.permute.xlu0 %23
    %vm25 = vcmask 261248
    %26 = vst.msk [vmem:[#allocation0] sm:$0x1] %vm25, %v24
    %s28 = sshllo.u32 0, 1
    %v30 = vld [vmem:[#allocation0] sm:%s28]
    %s31 = sshllo.u32 0, 1
    %32 = vst [vmem:[%s1] sm:%s31] %v30

// kernel: dqn_image_forward.1
$region0: #{dqn_image_forward.1}
  #allocation0 [shape = 'u32[]', space=smem, size = 0x4, offset = 0x4, fixed_abs, tag = 'smem constant byte address 0x4 - core index']
  #allocation1 [shape = 'u32[144,128]{1,0:T(1,128)}', space=vmem, size = 0x12000, scoped, tag = 'internal scratch']
  #allocation2 [shape = 'bf16[400,64]{1,0:T(16,128)(2,1)}', space=vmem, size = 0x19000, scoped, tag = 'scratch operand']
  #allocation3 [shape = 'bf16[344,32]{1,0:T(8,128)(2,1)}', space=vmem, size = 0x15800, scoped, tag = 'scratch operand']
  %s0 = inlined_call_operand.vmem [shape: bf16[424,48], index: 0, kind: input, shape index: {}]
  %s1 = inlined_call_operand.vmem [shape: bf16[192,64], index: 1, kind: input, shape index: {}]
  %s2 = inlined_call_operand.vmem [shape: f32[1,64], index: 2, kind: input, shape index: {}]
  %s3 = inlined_call_operand.vmem [shape: f32[1,64], index: 3, kind: input, shape index: {}]
  %s4 = inlined_call_operand.vmem [shape: f32[1,400], index: 4, kind: input, shape index: {}]
  %s5 = inlined_call_operand.vmem [shape: bf16[576,32], index: 5, kind: input, shape index: {}]
  %s6 = inlined_call_operand.vmem [shape: f32[1,32], index: 6, kind: input, shape index: {}]
  %s7 = inlined_call_operand.vmem [shape: f32[1,32], index: 7, kind: input, shape index: {}]
  %s8 = inlined_call_operand.vmem [shape: f32[1,344], index: 8, kind: input, shape index: {}]
  %s9 = inlined_call_operand.vmem [shape: bf16[800,32], index: 9, kind: input, shape index: {}]
  %s10 = inlined_call_operand.vmem [shape: bf16[32,256], index: 10, kind: input, shape index: {}]
  %s11 = inlined_call_operand.vmem [shape: f32[1,32], index: 11, kind: input, shape index: {}]
  %s12 = inlined_call_operand.vmem [shape: f32[1,32], index: 12, kind: input, shape index: {}]
  %s13 = inlined_call_operand.vmem [shape: f32[1,32], index: 13, kind: input, shape index: {}]
  %s14 = inlined_call_operand.vmem [shape: bf16[448,4], index: 14, kind: input, shape index: {}]
  %s15 = inlined_call_operand.vmem [shape: f32[1,4], index: 15, kind: input, shape index: {}]
  %s16 = inlined_call_operand.hbm [shape: f32[2,4], index: 16, kind: output, shape index: {}]
  %s17 = sld [smem:[#allocation0]]
  $region74: #{dqn_image_forward.1} parent=0
    _
  %s19 = ssub.s32 1, %s17
  %s20 = scalar_select 0, %s19, %s17
  $region1: #{dqn_image_forward.1} parent=0
    #allocation4 [shape = 'u8[1024]{0}', space=vmem, size = 0x400, scoped, tag = 'output window, operand 0, single buffered']
    #allocation5 [shape = 's32[1]{0}', space=sflag, size = 0x4, scoped, tag = 'scoped memory for dqn_image_forward.1']
    %21 = vsyncpa [#allocation5], 0
    // Predicated region
    $region2: #{dqn_image_forward.1} parent=1 // pred_check
      _
    $region3: #{dqn_image_forward.1} parent=1 // pred_check_branch
      %23 = sbr.rel (0) target = $region5
    $region4: #{dqn_image_forward.1} parent=1 // pred_region
      _
    $region5: #{dqn_image_forward.1} parent=1 // pred_fallthru
      _
    // Predicated region
    $region6: #{dqn_image_forward.1} parent=1 // pred_check
      _
    $region7: #{dqn_image_forward.1} parent=1 // pred_check_branch
      %25 = sbr.rel (0) target = $region9
    $region8: #{dqn_image_forward.1} parent=1 // pred_region
      _
    $region9: #{dqn_image_forward.1} parent=1 // pred_fallthru
      _
    // Predicated region
    $region10: #{dqn_image_forward.1} parent=1 // pred_check
      _
    $region11: #{dqn_image_forward.1} parent=1 // pred_check_branch
      %27 = sbr.rel (0) target = $region13
    $region12: #{dqn_image_forward.1} parent=1 // pred_region
      _
    $region13: #{dqn_image_forward.1} parent=1 // pred_fallthru
      _
    // Predicated region
    $region14: #{dqn_image_forward.1} parent=1 // pred_check
      _
    $region15: #{dqn_image_forward.1} parent=1 // pred_check_branch
      %29 = sbr.rel (0) target = $region17
    $region16: #{dqn_image_forward.1} parent=1 // pred_region
      _
    $region17: #{dqn_image_forward.1} parent=1 // pred_fallthru
      _
    // Predicated region
    $region18: #{dqn_image_forward.1} parent=1 // pred_check
      _
    $region19: #{dqn_image_forward.1} parent=1 // pred_check_branch
      %31 = sbr.rel (0) target = $region21
    $region20: #{dqn_image_forward.1} parent=1 // pred_region
      _
    $region21: #{dqn_image_forward.1} parent=1 // pred_fallthru
      _
    // Predicated region
    $region22: #{dqn_image_forward.1} parent=1 // pred_check
      _
    $region23: #{dqn_image_forward.1} parent=1 // pred_check_branch
      %33 = sbr.rel (0) target = $region25
    $region24: #{dqn_image_forward.1} parent=1 // pred_region
      _
    $region25: #{dqn_image_forward.1} parent=1 // pred_fallthru
      _
    // Predicated region
    $region26: #{dqn_image_forward.1} parent=1 // pred_check
      _
    $region27: #{dqn_image_forward.1} parent=1 // pred_check_branch
      %35 = sbr.rel (0) target = $region29
    $region28: #{dqn_image_forward.1} parent=1 // pred_region
      _
    $region29: #{dqn_image_forward.1} parent=1 // pred_fallthru
      _
    // Predicated region
    $region30: #{dqn_image_forward.1} parent=1 // pred_check
      _
    $region31: #{dqn_image_forward.1} parent=1 // pred_check_branch
      %37 = sbr.rel (0) target = $region33
    $region32: #{dqn_image_forward.1} parent=1 // pred_region
      _
    $region33: #{dqn_image_forward.1} parent=1 // pred_fallthru
      _
    // Predicated region
    $region34: #{dqn_image_forward.1} parent=1 // pred_check
      _
    $region35: #{dqn_image_forward.1} parent=1 // pred_check_branch
      %39 = sbr.rel (0) target = $region37
    $region36: #{dqn_image_forward.1} parent=1 // pred_region
      _
    $region37: #{dqn_image_forward.1} parent=1 // pred_fallthru
      _
    // Predicated region
    $region38: #{dqn_image_forward.1} parent=1 // pred_check
      _
    $region39: #{dqn_image_forward.1} parent=1 // pred_check_branch
      %41 = sbr.rel (0) target = $region41
    $region40: #{dqn_image_forward.1} parent=1 // pred_region
      _
    $region41: #{dqn_image_forward.1} parent=1 // pred_fallthru
      _
    // Predicated region
    $region42: #{dqn_image_forward.1} parent=1 // pred_check
      _
    $region43: #{dqn_image_forward.1} parent=1 // pred_check_branch
      %43 = sbr.rel (0) target = $region45
    $region44: #{dqn_image_forward.1} parent=1 // pred_region
      _
    $region45: #{dqn_image_forward.1} parent=1 // pred_fallthru
      _
    // Predicated region
    $region46: #{dqn_image_forward.1} parent=1 // pred_check
      _
    $region47: #{dqn_image_forward.1} parent=1 // pred_check_branch
      %45 = sbr.rel (0) target = $region49
    $region48: #{dqn_image_forward.1} parent=1 // pred_region
      _
    $region49: #{dqn_image_forward.1} parent=1 // pred_fallthru
      _
    // Predicated region
    $region50: #{dqn_image_forward.1} parent=1 // pred_check
      _
    $region51: #{dqn_image_forward.1} parent=1 // pred_check_branch
      %47 = sbr.rel (0) target = $region53
    $region52: #{dqn_image_forward.1} parent=1 // pred_region
      _
    $region53: #{dqn_image_forward.1} parent=1 // pred_fallthru
      _
    // Predicated region
    $region54: #{dqn_image_forward.1} parent=1 // pred_check
      _
    $region55: #{dqn_image_forward.1} parent=1 // pred_check_branch
      %49 = sbr.rel (0) target = $region57
    $region56: #{dqn_image_forward.1} parent=1 // pred_region
      _
    $region57: #{dqn_image_forward.1} parent=1 // pred_fallthru
      _
    // Predicated region
    $region58: #{dqn_image_forward.1} parent=1 // pred_check
      _
    $region59: #{dqn_image_forward.1} parent=1 // pred_check_branch
      %51 = sbr.rel (0) target = $region61
    $region60: #{dqn_image_forward.1} parent=1 // pred_region
      _
    $region61: #{dqn_image_forward.1} parent=1 // pred_fallthru
      _
    // Predicated region
    $region62: #{dqn_image_forward.1} parent=1 // pred_check
      _
    $region63: #{dqn_image_forward.1} parent=1 // pred_check_branch
      %53 = sbr.rel (0) target = $region65
    $region64: #{dqn_image_forward.1} parent=1 // pred_region
      _
    $region65: #{dqn_image_forward.1} parent=1 // pred_fallthru
      _
    %v55 = vld [vmem:[%s0] sm:$0xf]
    %v56 = vld [vmem:[%s0 + $0x4] sm:$0xf]
    %v57 = vld [vmem:[%s0 + $0x8] sm:$0xf]
    %v58 = vld [vmem:[%s0 + $0xc] sm:$0xf]
    %v59 = vld [vmem:[%s0 + $0x10] sm:$0xf]
    %v60 = vld [vmem:[%s0 + $0x14] sm:$0xf]
    %v61 = vld [vmem:[%s0 + $0x18] sm:$0xf]
    %v62 = vld [vmem:[%s0 + $0x1c] sm:$0xf]
    %v63 = vld [vmem:[%s0 + $0x20] sm:$0xf]
    %v64 = vld [vmem:[%s0 + $0x24] sm:$0xf]
    %v65 = vld [vmem:[%s0 + $0x28] sm:$0xf]
    %v66 = vld [vmem:[%s0 + $0x2c] sm:$0xf]
    %v67 = vld [vmem:[%s0 + $0x30] sm:$0xf]
    %v68 = vld [vmem:[%s0 + $0x34] sm:$0xf]
    %v69 = vld [vmem:[%s0 + $0x38] sm:$0xf]
    %v70 = vld [vmem:[%s0 + $0x3c] sm:$0xf]
    %v71 = vld [vmem:[%s0 + $0x40] sm:$0xf]
    %v72 = vld [vmem:[%s0 + $0x44] sm:$0xf]
    %v73 = vld [vmem:[%s0 + $0x48] sm:$0xf]
    %v74 = vld [vmem:[%s0 + $0x4c] sm:$0xf]
    %v75 = vld [vmem:[%s0 + $0x50] sm:$0xf]
    %v76 = vld [vmem:[%s0 + $0x54] sm:$0xf]
    %v77 = vld [vmem:[%s0 + $0x58] sm:$0xf]
    %v78 = vld [vmem:[%s0 + $0x5c] sm:$0xf]
    %v79 = vld [vmem:[%s0 + $0x60] sm:$0xf]
    %v80 = vld [vmem:[%s0 + $0x64] sm:$0xf]
    %v81 = vld [vmem:[%s0 + $0x68] sm:$0xf]
    %v82 = vld [vmem:[%s0 + $0x6c] sm:$0xf]
    %v83 = vld [vmem:[%s0 + $0x70] sm:$0xf]
    %v84 = vld [vmem:[%s0 + $0x74] sm:$0xf]
    %v85 = vld [vmem:[%s0 + $0x78] sm:$0xf]
    %v86 = vld [vmem:[%s0 + $0x7c] sm:$0xf]
    %v87 = vld [vmem:[%s0 + $0x80] sm:$0xf]
    %v88 = vld [vmem:[%s0 + $0x84] sm:$0xf]
    %v89 = vld [vmem:[%s0 + $0x88] sm:$0xf]
    %v90 = vld [vmem:[%s0 + $0x8c] sm:$0xf]
    %v91 = vld [vmem:[%s0 + $0x90] sm:$0xf]
    %v92 = vld [vmem:[%s0 + $0x94] sm:$0xf]
    %v93 = vld [vmem:[%s0 + $0x98] sm:$0xf]
    %v94 = vld [vmem:[%s0 + $0x9c] sm:$0xf]
    %v95 = vld [vmem:[%s0 + $0xa0] sm:$0xf]
    %v96 = vld [vmem:[%s0 + $0xa4] sm:$0xf]
    %v97 = vld [vmem:[%s0 + $0xa8] sm:$0xf]
    %v98 = vld [vmem:[%s0 + $0xac] sm:$0xf]
    %v99 = vld [vmem:[%s0 + $0xb0] sm:$0xf]
    %v100 = vld [vmem:[%s0 + $0xb4] sm:$0xf]
    %v101 = vld [vmem:[%s0 + $0xb8] sm:$0xf]
    %v102 = vld [vmem:[%s0 + $0xbc] sm:$0xf]
    %v103 = vld [vmem:[%s0 + $0xc0] sm:$0xf]
    %v104 = vld [vmem:[%s0 + $0xc4] sm:$0xf]
    %v105 = vld [vmem:[%s0 + $0xc8] sm:$0x1]
    %v106 = vld [vmem:[%s0 + $0x8] sm:$0xc]
    %v107 = vld [vmem:[%s0 + $0xc8] sm:$0xf]
    %v108 = vld [vmem:[%s0 + $0xcc] sm:$0xf]
    %v109 = vld [vmem:[%s0 + $0xd0] sm:$0x3]
    %v110 = vld [vmem:[%s0 + $0xd0] sm:$0x7]
    %v161 = vunpack.c.l.b16 %v55
    %v162 = vunpack.c.l.b16 %v56
    %v163 = vunpack.c.l.b16 %v57
    %v164 = vunpack.c.l.b16 %v58
    %v165 = vunpack.c.l.b16 %v59
    %v166 = vunpack.c.l.b16 %v60
    %v167 = vunpack.c.l.b16 %v61
    %v168 = vunpack.c.l.b16 %v62
    %v169 = vunpack.c.l.b16 %v63
    %v170 = vunpack.c.l.b16 %v64
    %v171 = vunpack.c.l.b16 %v65
    %v172 = vunpack.c.l.b16 %v66
    %v173 = vunpack.c.l.b16 %v67
    %v174 = vunpack.c.l.b16 %v68
    %v175 = vunpack.c.l.b16 %v69
    %v176 = vunpack.c.l.b16 %v70
    %v177 = vunpack.c.l.b16 %v71
    %v178 = vunpack.c.l.b16 %v72
    %v179 = vunpack.c.l.b16 %v73
    %v180 = vunpack.c.l.b16 %v74
    %v181 = vunpack.c.l.b16 %v75
    %v182 = vunpack.c.l.b16 %v76
    %v183 = vunpack.c.l.b16 %v77
    %v184 = vunpack.c.l.b16 %v78
    %v185 = vunpack.c.l.b16 %v79
    %v186 = vunpack.c.l.b16 %v80
    %v187 = vunpack.c.l.b16 %v81
    %v188 = vunpack.c.l.b16 %v82
    %v189 = vunpack.c.l.b16 %v83
    %v190 = vunpack.c.l.b16 %v84
    %v191 = vunpack.c.l.b16 %v85
    %v192 = vunpack.c.l.b16 %v86
    %v193 = vunpack.c.l.b16 %v87
    %v194 = vunpack.c.l.b16 %v88
    %v195 = vunpack.c.l.b16 %v89
    %v196 = vunpack.c.l.b16 %v90
    %v197 = vunpack.c.l.b16 %v91
    %v198 = vunpack.c.l.b16 %v92
    %v199 = vunpack.c.l.b16 %v93
    %v200 = vunpack.c.l.b16 %v94
    %v201 = vunpack.c.l.b16 %v95
    %v202 = vunpack.c.l.b16 %v96
    %v203 = vunpack.c.l.b16 %v97
    %v204 = vunpack.c.l.b16 %v98
    %v205 = vunpack.c.l.b16 %v99
    %v206 = vunpack.c.l.b16 %v100
    %v207 = vunpack.c.l.b16 %v101
    %v208 = vunpack.c.l.b16 %v102
    %v209 = vunpack.c.l.b16 %v103
    %v210 = vunpack.c.l.b16 %v104
    %v211 = vpack.c.b16 %v162, %v161
    %v212 = vpack.c.b16 %v164, %v163
    %v213 = vpack.c.b16 %v166, %v165
    %v214 = vpack.c.b16 %v168, %v167
    %v215 = vpack.c.b16 %v170, %v169
    %v216 = vpack.c.b16 %v172, %v171
    %v217 = vpack.c.b16 %v174, %v173
    %v218 = vpack.c.b16 %v176, %v175
    %v219 = vpack.c.b16 %v178, %v177
    %v220 = vpack.c.b16 %v180, %v179
    %v221 = vpack.c.b16 %v182, %v181
    %v222 = vpack.c.b16 %v184, %v183
    %v223 = vpack.c.b16 %v186, %v185
    %v224 = vpack.c.b16 %v188, %v187
    %v225 = vpack.c.b16 %v190, %v189
    %v226 = vpack.c.b16 %v192, %v191
    %v227 = vpack.c.b16 %v194, %v193
    %v228 = vpack.c.b16 %v196, %v195
    %v229 = vpack.c.b16 %v198, %v197
    %v230 = vpack.c.b16 %v200, %v199
    %v231 = vpack.c.b16 %v202, %v201
    %v232 = vpack.c.b16 %v204, %v203
    %v233 = vpack.c.b16 %v206, %v205
    %v234 = vpack.c.b16 %v208, %v207
    %v235 = vpack.c.b16 %v210, %v209
    %v237 = vunpack.c.l.b16 %v105
    %v238 = vpack.c.b16 %v237, %v237
    %vm239 = vsmask.f32 7424
    %v241 = vshrl.u32 %v211, 16
    %v243 = vshll.u32 %v211, 16
    %v245 = vrot.slane %v243, 1
    %v246 = vor.u32 %v241, %v245
    %v248 = vshll.u32 %v212, 16
    %v250 = vrot.slane %v248, 1
    %v251 = vsel %vm239, %v246, %v250
    %v252 = vshrl.u32 %v212, 16
    %v254 = vor.u32 %v252, %v250
    %v256 = vshll.u32 %v213, 16
    %v258 = vrot.slane %v256, 1
    %v259 = vsel %vm239, %v254, %v258
    %v260 = vshrl.u32 %v213, 16
    %v262 = vor.u32 %v260, %v258
    %v264 = vshll.u32 %v214, 16
    %v266 = vrot.slane %v264, 1
    %v267 = vsel %vm239, %v262, %v266
    %v268 = vshrl.u32 %v214, 16
    %v270 = vor.u32 %v268, %v266
    %v272 = vshll.u32 %v215, 16
    %v274 = vrot.slane %v272, 1
    %v275 = vsel %vm239, %v270, %v274
    %v276 = vshrl.u32 %v215, 16
    %v278 = vor.u32 %v276, %v274
    %v280 = vshll.u32 %v216, 16
    %v282 = vrot.slane %v280, 1
    %v283 = vsel %vm239, %v278, %v282
    %v284 = vshrl.u32 %v216, 16
    %v286 = vor.u32 %v284, %v282
    %v288 = vshll.u32 %v217, 16
    %v290 = vrot.slane %v288, 1
    %v291 = vsel %vm239, %v286, %v290
    %v292 = vshrl.u32 %v217, 16
    %v294 = vor.u32 %v292, %v290
    %v296 = vshll.u32 %v218, 16
    %v298 = vrot.slane %v296, 1
    %v299 = vsel %vm239, %v294, %v298
    %v300 = vshrl.u32 %v218, 16
    %v302 = vor.u32 %v300, %v298
    %v304 = vshll.u32 %v219, 16
    %v306 = vrot.slane %v304, 1
    %v307 = vsel %vm239, %v302, %v306
    %v308 = vshrl.u32 %v219, 16
    %v310 = vor.u32 %v308, %v306
    %v312 = vshll.u32 %v220, 16
    %v314 = vrot.slane %v312, 1
    %v315 = vsel %vm239, %v310, %v314
    %v316 = vshrl.u32 %v220, 16
    %v318 = vor.u32 %v316, %v314
    %v320 = vshll.u32 %v221, 16
    %v322 = vrot.slane %v320, 1
    %v323 = vsel %vm239, %v318, %v322
    %v324 = vshrl.u32 %v221, 16
    %v326 = vor.u32 %v324, %v322
    %v328 = vshll.u32 %v222, 16
    %v330 = vrot.slane %v328, 1
    %v331 = vsel %vm239, %v326, %v330
    %v332 = vshrl.u32 %v222, 16
    %v334 = vor.u32 %v332, %v330
    %v336 = vshll.u32 %v223, 16
    %v338 = vrot.slane %v336, 1
    %v339 = vsel %vm239, %v334, %v338
    %v340 = vshrl.u32 %v223, 16
    %v342 = vor.u32 %v340, %v338
    %v344 = vshll.u32 %v224, 16
    %v346 = vrot.slane %v344, 1
    %v347 = vsel %vm239, %v342, %v346
    %v348 = vshrl.u32 %v224, 16
    %v350 = vor.u32 %v348, %v346
    %v352 = vshll.u32 %v225, 16
    %v354 = vrot.slane %v352, 1
    %v355 = vsel %vm239, %v350, %v354
    %v356 = vshrl.u32 %v225, 16
    %v358 = vor.u32 %v356, %v354
    %v360 = vshll.u32 %v226, 16
    %v362 = vrot.slane %v360, 1
    %v363 = vsel %vm239, %v358, %v362
    %v364 = vshrl.u32 %v226, 16
    %v366 = vor.u32 %v364, %v362
    %v368 = vshll.u32 %v227, 16
    %v370 = vrot.slane %v368, 1
    %v371 = vsel %vm239, %v366, %v370
    %v372 = vshrl.u32 %v227, 16
    %v374 = vor.u32 %v372, %v370
    %v376 = vshll.u32 %v228, 16
    %v378 = vrot.slane %v376, 1
    %v379 = vsel %vm239, %v374, %v378
    %v380 = vshrl.u32 %v228, 16
    %v382 = vor.u32 %v380, %v378
    %v384 = vshll.u32 %v229, 16
    %v386 = vrot.slane %v384, 1
    %v387 = vsel %vm239, %v382, %v386
    %v388 = vshrl.u32 %v229, 16
    %v390 = vor.u32 %v388, %v386
    %v392 = vshll.u32 %v230, 16
    %v394 = vrot.slane %v392, 1
    %v395 = vsel %vm239, %v390, %v394
    %v396 = vshrl.u32 %v230, 16
    %v398 = vor.u32 %v396, %v394
    %v400 = vshll.u32 %v231, 16
    %v402 = vrot.slane %v400, 1
    %v403 = vsel %vm239, %v398, %v402
    %v404 = vshrl.u32 %v231, 16
    %v406 = vor.u32 %v404, %v402
    %v408 = vshll.u32 %v232, 16
    %v410 = vrot.slane %v408, 1
    %v411 = vsel %vm239, %v406, %v410
    %v412 = vshrl.u32 %v232, 16
    %v414 = vor.u32 %v412, %v410
    %v416 = vshll.u32 %v233, 16
    %v418 = vrot.slane %v416, 1
    %v419 = vsel %vm239, %v414, %v418
    %v420 = vshrl.u32 %v233, 16
    %v422 = vor.u32 %v420, %v418
    %v424 = vshll.u32 %v234, 16
    %v426 = vrot.slane %v424, 1
    %v427 = vsel %vm239, %v422, %v426
    %v428 = vshrl.u32 %v234, 16
    %v430 = vor.u32 %v428, %v426
    %v432 = vshll.u32 %v235, 16
    %v434 = vrot.slane %v432, 1
    %v435 = vsel %vm239, %v430, %v434
    %v436 = vshrl.u32 %v235, 16
    %v438 = vor.u32 %v436, %v434
    %v440 = vshll.u32 %v238, 16
    %v442 = vrot.slane %v440, 1
    %v443 = vsel %vm239, %v438, %v442
    %444 = vrot.lane.b32.xlu0 %v251, 48
    %v445 = vpop.permute.xlu0 %444
    %446 = vrot.lane.b32.xlu0 %v259, 48
    %v447 = vpop.permute.xlu0 %446
    %448 = vrot.lane.b32.xlu0 %v267, 48
    %v449 = vpop.permute.xlu0 %448
    %450 = vrot.lane.b32.xlu0 %v275, 48
    %v451 = vpop.permute.xlu0 %450
    %452 = vrot.lane.b32.xlu0 %v283, 48
    %v453 = vpop.permute.xlu0 %452
    %454 = vrot.lane.b32.xlu0 %v291, 48
    %v455 = vpop.permute.xlu0 %454
    %456 = vrot.lane.b32.xlu0 %v299, 48
    %v457 = vpop.permute.xlu0 %456
    %458 = vrot.lane.b32.xlu0 %v307, 48
    %v459 = vpop.permute.xlu0 %458
    %460 = vrot.lane.b32.xlu0 %v315, 48
    %v461 = vpop.permute.xlu0 %460
    %462 = vrot.lane.b32.xlu0 %v323, 48
    %v463 = vpop.permute.xlu0 %462
    %464 = vrot.lane.b32.xlu0 %v331, 48
    %v465 = vpop.permute.xlu0 %464
    %466 = vrot.lane.b32.xlu0 %v339, 48
    %v467 = vpop.permute.xlu0 %466
    %468 = vrot.lane.b32.xlu0 %v347, 48
    %v469 = vpop.permute.xlu0 %468
    %470 = vrot.lane.b32.xlu0 %v355, 48
    %v471 = vpop.permute.xlu0 %470
    %472 = vrot.lane.b32.xlu0 %v363, 48
    %v473 = vpop.permute.xlu0 %472
    %474 = vrot.lane.b32.xlu0 %v371, 48
    %v475 = vpop.permute.xlu0 %474
    %476 = vrot.lane.b32.xlu0 %v379, 48
    %v477 = vpop.permute.xlu0 %476
    %478 = vrot.lane.b32.xlu0 %v387, 48
    %v479 = vpop.permute.xlu0 %478
    %480 = vrot.lane.b32.xlu0 %v395, 48
    %v481 = vpop.permute.xlu0 %480
    %482 = vrot.lane.b32.xlu0 %v403, 48
    %v483 = vpop.permute.xlu0 %482
    %484 = vrot.lane.b32.xlu0 %v411, 48
    %v485 = vpop.permute.xlu0 %484
    %486 = vrot.lane.b32.xlu0 %v419, 48
    %v487 = vpop.permute.xlu0 %486
    %488 = vrot.lane.b32.xlu0 %v427, 48
    %v489 = vpop.permute.xlu0 %488
    %490 = vrot.lane.b32.xlu0 %v435, 48
    %v491 = vpop.permute.xlu0 %490
    %492 = vrot.lane.b32.xlu0 %v443, 48
    %v493 = vpop.permute.xlu0 %492
    %v498 = vunpack.c.l.b16 %v106
    %v499 = vunpack.c.l.b16 %v107
    %v500 = vunpack.c.l.b16 %v108
    %v501 = vunpack.c.l.b16 %v109
    %v502 = vpack.c.b16 %v164, %v498
    %v503 = vpack.c.b16 %v500, %v499
    %v504 = vpack.c.b16 %v501, %v501
    %vm505 = vcmask 1045504
    %v506 = vrot.slane %v502, 2
    %v507 = vrot.slane %v213, 2
    %v508 = vsel %vm505, %v506, %v507
    %v509 = vrot.slane %v214, 2
    %v510 = vsel %vm505, %v507, %v509
    %v511 = vrot.slane %v215, 2
    %v512 = vsel %vm505, %v509, %v511
    %v513 = vrot.slane %v216, 2
    %v514 = vsel %vm505, %v511, %v513
    %v515 = vrot.slane %v217, 2
    %v516 = vsel %vm505, %v513, %v515
    %v517 = vrot.slane %v218, 2
    %v518 = vsel %vm505, %v515, %v517
    %v519 = vrot.slane %v219, 2
    %v520 = vsel %vm505, %v517, %v519
    %v521 = vrot.slane %v220, 2
    %v522 = vsel %vm505, %v519, %v521
    %v523 = vrot.slane %v221, 2
    %v524 = vsel %vm505, %v521, %v523
    %v525 = vrot.slane %v222, 2
    %v526 = vsel %vm505, %v523, %v525
    %v527 = vrot.slane %v223, 2
    %v528 = vsel %vm505, %v525, %v527
    %v529 = vrot.slane %v224, 2
    %v530 = vsel %vm505, %v527, %v529
    %v531 = vrot.slane %v225, 2
    %v532 = vsel %vm505, %v529, %v531
    %v533 = vrot.slane %v226, 2
    %v534 = vsel %vm505, %v531, %v533
    %v535 = vrot.slane %v227, 2
    %v536 = vsel %vm505, %v533, %v535
    %v537 = vrot.slane %v228, 2
    %v538 = vsel %vm505, %v535, %v537
    %v539 = vrot.slane %v229, 2
    %v540 = vsel %vm505, %v537, %v539
    %v541 = vrot.slane %v230, 2
    %v542 = vsel %vm505, %v539, %v541
    %v543 = vrot.slane %v231, 2
    %v544 = vsel %vm505, %v541, %v543
    %v545 = vrot.slane %v232, 2
    %v546 = vsel %vm505, %v543, %v545
    %v547 = vrot.slane %v233, 2
    %v548 = vsel %vm505, %v545, %v547
    %v549 = vrot.slane %v234, 2
    %v550 = vsel %vm505, %v547, %v549
    %v551 = vrot.slane %v235, 2
    %v552 = vsel %vm505, %v549, %v551
    %v553 = vrot.slane %v503, 2
    %v554 = vsel %vm505, %v551, %v553
    %v555 = vrot.slane %v504, 2
    %v556 = vsel %vm505, %v553, %v555
    %557 = vrot.lane.b32.xlu0 %v508, 96
    %v558 = vpop.permute.xlu0 %557
    %559 = vrot.lane.b32.xlu0 %v510, 96
    %v560 = vpop.permute.xlu0 %559
    %561 = vrot.lane.b32.xlu0 %v512, 96
    %v562 = vpop.permute.xlu0 %561
    %563 = vrot.lane.b32.xlu0 %v514, 96
    %v564 = vpop.permute.xlu0 %563
    %565 = vrot.lane.b32.xlu0 %v516, 96
    %v566 = vpop.permute.xlu0 %565
    %567 = vrot.lane.b32.xlu0 %v518, 96
    %v568 = vpop.permute.xlu0 %567
    %569 = vrot.lane.b32.xlu0 %v520, 96
    %v570 = vpop.permute.xlu0 %569
    %571 = vrot.lane.b32.xlu0 %v522, 96
    %v572 = vpop.permute.xlu0 %571
    %573 = vrot.lane.b32.xlu0 %v524, 96
    %v574 = vpop.permute.xlu0 %573
    %575 = vrot.lane.b32.xlu0 %v526, 96
    %v576 = vpop.permute.xlu0 %575
    %577 = vrot.lane.b32.xlu0 %v528, 96
    %v578 = vpop.permute.xlu0 %577
    %579 = vrot.lane.b32.xlu0 %v530, 96
    %v580 = vpop.permute.xlu0 %579
    %581 = vrot.lane.b32.xlu0 %v532, 96
    %v582 = vpop.permute.xlu0 %581
    %583 = vrot.lane.b32.xlu0 %v534, 96
    %v584 = vpop.permute.xlu0 %583
    %585 = vrot.lane.b32.xlu0 %v536, 96
    %v586 = vpop.permute.xlu0 %585
    %587 = vrot.lane.b32.xlu0 %v538, 96
    %v588 = vpop.permute.xlu0 %587
    %589 = vrot.lane.b32.xlu0 %v540, 96
    %v590 = vpop.permute.xlu0 %589
    %591 = vrot.lane.b32.xlu0 %v542, 96
    %v592 = vpop.permute.xlu0 %591
    %593 = vrot.lane.b32.xlu0 %v544, 96
    %v594 = vpop.permute.xlu0 %593
    %595 = vrot.lane.b32.xlu0 %v546, 96
    %v596 = vpop.permute.xlu0 %595
    %597 = vrot.lane.b32.xlu0 %v548, 96
    %v598 = vpop.permute.xlu0 %597
    %599 = vrot.lane.b32.xlu0 %v550, 96
    %v600 = vpop.permute.xlu0 %599
    %601 = vrot.lane.b32.xlu0 %v552, 96
    %v602 = vpop.permute.xlu0 %601
    %603 = vrot.lane.b32.xlu0 %v554, 96
    %v604 = vpop.permute.xlu0 %603
    %605 = vrot.lane.b32.xlu0 %v556, 96
    %v606 = vpop.permute.xlu0 %605
    %v608 = vunpack.c.l.b16 %v110
    %v609 = vpack.c.b16 %v608, %v608
    %vm610 = vsmask.f32 5376
    %v612 = vshrl.u32 %v502, 16
    %v614 = vrot.slane %v612, 2
    %v615 = vshll.u32 %v502, 16
    %v617 = vrot.slane %v615, 3
    %v618 = vor.u32 %v614, %v617
    %v619 = vrot.slane %v260, 2
    %v620 = vrot.slane %v256, 3
    %v621 = vor.u32 %v619, %v620
    %v622 = vsel %vm610, %v618, %v621
    %v623 = vrot.slane %v268, 2
    %v624 = vrot.slane %v264, 3
    %v625 = vor.u32 %v623, %v624
    %v626 = vsel %vm610, %v621, %v625
    %v627 = vrot.slane %v276, 2
    %v628 = vrot.slane %v272, 3
    %v629 = vor.u32 %v627, %v628
    %v630 = vsel %vm610, %v625, %v629
    %v631 = vrot.slane %v284, 2
    %v632 = vrot.slane %v280, 3
    %v633 = vor.u32 %v631, %v632
    %v634 = vsel %vm610, %v629, %v633
    %v635 = vrot.slane %v292, 2
    %v636 = vrot.slane %v288, 3
    %v637 = vor.u32 %v635, %v636
    %v638 = vsel %vm610, %v633, %v637
    %v639 = vrot.slane %v300, 2
    %v640 = vrot.slane %v296, 3
    %v641 = vor.u32 %v639, %v640
    %v642 = vsel %vm610, %v637, %v641
    %v643 = vrot.slane %v308, 2
    %v644 = vrot.slane %v304, 3
    %v645 = vor.u32 %v643, %v644
    %v646 = vsel %vm610, %v641, %v645
    %v647 = vrot.slane %v316, 2
    %v648 = vrot.slane %v312, 3
    %v649 = vor.u32 %v647, %v648
    %v650 = vsel %vm610, %v645, %v649
    %v651 = vrot.slane %v324, 2
    %v652 = vrot.slane %v320, 3
    %v653 = vor.u32 %v651, %v652
    %v654 = vsel %vm610, %v649, %v653
    %v655 = vrot.slane %v332, 2
    %v656 = vrot.slane %v328, 3
    %v657 = vor.u32 %v655, %v656
    %v658 = vsel %vm610, %v653, %v657
    %v659 = vrot.slane %v340, 2
    %v660 = vrot.slane %v336, 3
    %v661 = vor.u32 %v659, %v660
    %v662 = vsel %vm610, %v657, %v661
    %v663 = vrot.slane %v348, 2
    %v664 = vrot.slane %v344, 3
    %v665 = vor.u32 %v663, %v664
    %v666 = vsel %vm610, %v661, %v665
    %v667 = vrot.slane %v356, 2
    %v668 = vrot.slane %v352, 3
    %v669 = vor.u32 %v667, %v668
    %v670 = vsel %vm610, %v665, %v669
    %v671 = vrot.slane %v364, 2
    %v672 = vrot.slane %v360, 3
    %v673 = vor.u32 %v671, %v672
    %v674 = vsel %vm610, %v669, %v673
    %v675 = vrot.slane %v372, 2
    %v676 = vrot.slane %v368, 3
    %v677 = vor.u32 %v675, %v676
    %v678 = vsel %vm610, %v673, %v677
    %v679 = vrot.slane %v380, 2
    %v680 = vrot.slane %v376, 3
    %v681 = vor.u32 %v679, %v680
    %v682 = vsel %vm610, %v677, %v681
    %v683 = vrot.slane %v388, 2
    %v684 = vrot.slane %v384, 3
    %v685 = vor.u32 %v683, %v684
    %v686 = vsel %vm610, %v681, %v685
    %v687 = vrot.slane %v396, 2
    %v688 = vrot.slane %v392, 3
    %v689 = vor.u32 %v687, %v688
    %v690 = vsel %vm610, %v685, %v689
    %v691 = vrot.slane %v404, 2
    %v692 = vrot.slane %v400, 3
    %v693 = vor.u32 %v691, %v692
    %v694 = vsel %vm610, %v689, %v693
    %v695 = vrot.slane %v412, 2
    %v696 = vrot.slane %v408, 3
    %v697 = vor.u32 %v695, %v696
    %v698 = vsel %vm610, %v693, %v697
    %v699 = vrot.slane %v420, 2
    %v700 = vrot.slane %v416, 3
    %v701 = vor.u32 %v699, %v700
    %v702 = vsel %vm610, %v697, %v701
    %v703 = vrot.slane %v428, 2
    %v704 = vrot.slane %v424, 3
    %v705 = vor.u32 %v703, %v704
    %v706 = vsel %vm610, %v701, %v705
    %v707 = vrot.slane %v436, 2
    %v708 = vrot.slane %v432, 3
    %v709 = vor.u32 %v707, %v708
    %v710 = vsel %vm610, %v705, %v709
    %v712 = vshrl.u32 %v503, 16
    %v714 = vrot.slane %v712, 2
    %v715 = vshll.u32 %v503, 16
    %v717 = vrot.slane %v715, 3
    %v718 = vor.u32 %v714, %v717
    %v719 = vsel %vm610, %v709, %v718
    %v721 = vshrl.u32 %v609, 16
    %v723 = vrot.slane %v721, 2
    %v724 = vshll.u32 %v609, 16
    %v726 = vrot.slane %v724, 3
    %v727 = vor.u32 %v723, %v726
    %v728 = vsel %vm610, %v718, %v727
    %729 = vrot.lane.b32.xlu0 %v622, 16
    %v730 = vpop.permute.xlu0 %729
    %731 = vrot.lane.b32.xlu0 %v626, 16
    %v732 = vpop.permute.xlu0 %731
    %733 = vrot.lane.b32.xlu0 %v630, 16
    %v734 = vpop.permute.xlu0 %733
    %735 = vrot.lane.b32.xlu0 %v634, 16
    %v736 = vpop.permute.xlu0 %735
    %737 = vrot.lane.b32.xlu0 %v638, 16
    %v738 = vpop.permute.xlu0 %737
    %739 = vrot.lane.b32.xlu0 %v642, 16
    %v740 = vpop.permute.xlu0 %739
    %741 = vrot.lane.b32.xlu0 %v646, 16
    %v742 = vpop.permute.xlu0 %741
    %743 = vrot.lane.b32.xlu0 %v650, 16
    %v744 = vpop.permute.xlu0 %743
    %745 = vrot.lane.b32.xlu0 %v654, 16
    %v746 = vpop.permute.xlu0 %745
    %747 = vrot.lane.b32.xlu0 %v658, 16
    %v748 = vpop.permute.xlu0 %747
    %749 = vrot.lane.b32.xlu0 %v662, 16
    %v750 = vpop.permute.xlu0 %749
    %751 = vrot.lane.b32.xlu0 %v666, 16
    %v752 = vpop.permute.xlu0 %751
    %753 = vrot.lane.b32.xlu0 %v670, 16
    %v754 = vpop.permute.xlu0 %753
    %755 = vrot.lane.b32.xlu0 %v674, 16
    %v756 = vpop.permute.xlu0 %755
    %757 = vrot.lane.b32.xlu0 %v678, 16
    %v758 = vpop.permute.xlu0 %757
    %759 = vrot.lane.b32.xlu0 %v682, 16
    %v760 = vpop.permute.xlu0 %759
    %761 = vrot.lane.b32.xlu0 %v686, 16
    %v762 = vpop.permute.xlu0 %761
    %763 = vrot.lane.b32.xlu0 %v690, 16
    %v764 = vpop.permute.xlu0 %763
    %765 = vrot.lane.b32.xlu0 %v694, 16
    %v766 = vpop.permute.xlu0 %765
    %767 = vrot.lane.b32.xlu0 %v698, 16
    %v768 = vpop.permute.xlu0 %767
    %769 = vrot.lane.b32.xlu0 %v702, 16
    %v770 = vpop.permute.xlu0 %769
    %771 = vrot.lane.b32.xlu0 %v706, 16
    %v772 = vpop.permute.xlu0 %771
    %773 = vrot.lane.b32.xlu0 %v710, 16
    %v774 = vpop.permute.xlu0 %773
    %775 = vrot.lane.b32.xlu0 %v719, 16
    %v776 = vpop.permute.xlu0 %775
    %777 = vrot.lane.b32.xlu0 %v728, 16
    %v778 = vpop.permute.xlu0 %777
    %vm779 = vcmask 392192
    %v781 = vsel %vm779, %v211, %v445
    %v783 = vsel %vm779, %v212, %v447
    %v785 = vsel %vm779, %v213, %v449
    %v787 = vsel %vm779, %v214, %v451
    %v789 = vsel %vm779, %v215, %v453
    %v791 = vsel %vm779, %v216, %v455
    %v793 = vsel %vm779, %v217, %v457
    %v795 = vsel %vm779, %v218, %v459
    %v797 = vsel %vm779, %v219, %v461
    %v799 = vsel %vm779, %v220, %v463
    %v801 = vsel %vm779, %v221, %v465
    %v803 = vsel %vm779, %v222, %v467
    %v805 = vsel %vm779, %v223, %v469
    %v807 = vsel %vm779, %v224, %v471
    %v809 = vsel %vm779, %v225, %v473
    %v811 = vsel %vm779, %v226, %v475
    %v813 = vsel %vm779, %v227, %v477
    %v815 = vsel %vm779, %v228, %v479
    %v817 = vsel %vm779, %v229, %v481
    %v819 = vsel %vm779, %v230, %v483
    %v821 = vsel %vm779, %v231, %v485
    %v823 = vsel %vm779, %v232, %v487
    %v825 = vsel %vm779, %v233, %v489
    %v827 = vsel %vm779, %v234, %v491
    %v829 = vsel %vm779, %v235, %v493
    %vm830 = vcmask 785408
    %v832 = vsel %vm830, %v781, %v558
    %v835 = vsel %vm830, %v783, %v560
    %v838 = vsel %vm830, %v785, %v562
    %v841 = vsel %vm830, %v787, %v564
    %v844 = vsel %vm830, %v789, %v566
    %v847 = vsel %vm830, %v791, %v568
    %v850 = vsel %vm830, %v793, %v570
    %v853 = vsel %vm830, %v795, %v572
    %v856 = vsel %vm830, %v797, %v574
    %v859 = vsel %vm830, %v799, %v576
    %v862 = vsel %vm830, %v801, %v578
    %v865 = vsel %vm830, %v803, %v580
    %v868 = vsel %vm830, %v805, %v582
    %v871 = vsel %vm830, %v807, %v584
    %v874 = vsel %vm830, %v809, %v586
    %v877 = vsel %vm830, %v811, %v588
    %v880 = vsel %vm830, %v813, %v590
    %v883 = vsel %vm830, %v815, %v592
    %v886 = vsel %vm830, %v817, %v594
    %v889 = vsel %vm830, %v819, %v596
    %v892 = vsel %vm830, %v821, %v598
    %v895 = vsel %vm830, %v823, %v600
    %v898 = vsel %vm830, %v825, %v602
    %v901 = vsel %vm830, %v827, %v604
    %v904 = vsel %vm830, %v829, %v606
    %vm906 = vcmask 130048
    %v908 = vsel %vm906, %v558, %v730
    %v910 = vsel %vm906, %v560, %v732
    %v912 = vsel %vm906, %v562, %v734
    %v914 = vsel %vm906, %v564, %v736
    %v916 = vsel %vm906, %v566, %v738
    %v918 = vsel %vm906, %v568, %v740
    %v920 = vsel %vm906, %v570, %v742
    %v922 = vsel %vm906, %v572, %v744
    %v924 = vsel %vm906, %v574, %v746
    %v926 = vsel %vm906, %v576, %v748
    %v928 = vsel %vm906, %v578, %v750
    %v930 = vsel %vm906, %v580, %v752
    %v932 = vsel %vm906, %v582, %v754
    %v934 = vsel %vm906, %v584, %v756
    %v936 = vsel %vm906, %v586, %v758
    %v938 = vsel %vm906, %v588, %v760
    %v940 = vsel %vm906, %v590, %v762
    %v942 = vsel %vm906, %v592, %v764
    %v944 = vsel %vm906, %v594, %v766
    %v946 = vsel %vm906, %v596, %v768
    %v948 = vsel %vm906, %v598, %v770
    %v950 = vsel %vm906, %v600, %v772
    %v952 = vsel %vm906, %v602, %v774
    %v954 = vsel %vm906, %v604, %v776
    %v956 = vsel %vm906, %v606, %v778
    %v957 = vld [vmem:[%s1] sm:$0xf]
    %v958 = vld [vmem:[%s1 + $0x4] sm:$0xf]
    %v959 = vld [vmem:[%s1 + $0x8] sm:$0xf]
    %v960 = vld [vmem:[%s1 + $0xc] sm:$0xf]
    %v961 = vld [vmem:[%s1 + $0x10] sm:$0xf]
    %v962 = vld [vmem:[%s1 + $0x14] sm:$0xf]
    %v963 = vld [vmem:[%s1 + $0x18] sm:$0xf]
    %v964 = vld [vmem:[%s1 + $0x1c] sm:$0xf]
    %v965 = vld [vmem:[%s1 + $0x20] sm:$0xf]
    %v966 = vld [vmem:[%s1 + $0x24] sm:$0xf]
    %v967 = vld [vmem:[%s1 + $0x28] sm:$0xf]
    %v968 = vld [vmem:[%s1 + $0x2c] sm:$0xf]
    %v969 = vld [vmem:[%s1 + $0x30] sm:$0xf]
    %v970 = vld [vmem:[%s1 + $0x34] sm:$0xf]
    %v971 = vld [vmem:[%s1 + $0x38] sm:$0xf]
    %v972 = vld [vmem:[%s1 + $0x3c] sm:$0xf]
    %v973 = vld [vmem:[%s1 + $0x40] sm:$0xf]
    %v974 = vld [vmem:[%s1 + $0x44] sm:$0xf]
    %v975 = vld [vmem:[%s1 + $0x48] sm:$0xf]
    %v976 = vld [vmem:[%s1 + $0x4c] sm:$0xf]
    %v977 = vld [vmem:[%s1 + $0x50] sm:$0xf]
    %v978 = vld [vmem:[%s1 + $0x54] sm:$0xf]
    %v979 = vld [vmem:[%s1 + $0x58] sm:$0xf]
    %v980 = vld [vmem:[%s1 + $0x5c] sm:$0xf]
    %v1005 = vunpack.c.l.b16 %v957
    %v1006 = vunpack.c.l.b16 %v958
    %v1007 = vunpack.c.l.b16 %v959
    %v1008 = vunpack.c.l.b16 %v960
    %v1009 = vunpack.c.l.b16 %v961
    %v1010 = vunpack.c.l.b16 %v962
    %v1011 = vunpack.c.l.b16 %v963
    %v1012 = vunpack.c.l.b16 %v964
    %v1013 = vunpack.c.l.b16 %v965
    %v1014 = vunpack.c.l.b16 %v966
    %v1015 = vunpack.c.l.b16 %v967
    %v1016 = vunpack.c.l.b16 %v968
    %v1017 = vunpack.c.l.b16 %v969
    %v1018 = vunpack.c.l.b16 %v970
    %v1019 = vunpack.c.l.b16 %v971
    %v1020 = vunpack.c.l.b16 %v972
    %v1021 = vunpack.c.l.b16 %v973
    %v1022 = vunpack.c.l.b16 %v974
    %v1023 = vunpack.c.l.b16 %v975
    %v1024 = vunpack.c.l.b16 %v976
    %v1025 = vunpack.c.l.b16 %v977
    %v1026 = vunpack.c.l.b16 %v978
    %v1027 = vunpack.c.l.b16 %v979
    %v1028 = vunpack.c.l.b16 %v980
    %v1029 = vpack.c.b16 %v1006, %v1005
    %v1030 = vpack.c.b16 %v1008, %v1007
    %v1031 = vpack.c.b16 %v1010, %v1009
    %v1032 = vpack.c.b16 %v1012, %v1011
    %v1033 = vpack.c.b16 %v1014, %v1013
    %v1034 = vpack.c.b16 %v1016, %v1015
    %v1035 = vpack.c.b16 %v1018, %v1017
    %v1036 = vpack.c.b16 %v1020, %v1019
    %v1037 = vpack.c.b16 %v1022, %v1021
    %v1038 = vpack.c.b16 %v1024, %v1023
    %v1039 = vpack.c.b16 %v1026, %v1025
    %v1040 = vpack.c.b16 %v1028, %v1027
    %vm1053 = vcmask 523264
    %v1054 = vsel %vm1053, %v908, 0
    %v1056 = vsel %vm1053, %v910, 0
    %v1058 = vsel %vm1053, %v912, 0
    %v1060 = vsel %vm1053, %v914, 0
    %v1062 = vsel %vm1053, %v916, 0
    %v1064 = vsel %vm1053, %v918, 0
    %v1066 = vsel %vm1053, %v920, 0
    %v1068 = vsel %vm1053, %v922, 0
    %v1070 = vsel %vm1053, %v924, 0
    %v1072 = vsel %vm1053, %v926, 0
    %v1074 = vsel %vm1053, %v928, 0
    %v1076 = vsel %vm1053, %v930, 0
    %v1078 = vsel %vm1053, %v932, 0
    %v1080 = vsel %vm1053, %v934, 0
    %v1082 = vsel %vm1053, %v936, 0
    %v1084 = vsel %vm1053, %v938, 0
    %v1086 = vsel %vm1053, %v940, 0
    %v1088 = vsel %vm1053, %v942, 0
    %v1090 = vsel %vm1053, %v944, 0
    %v1092 = vsel %vm1053, %v946, 0
    %v1094 = vsel %vm1053, %v948, 0
    %v1096 = vsel %vm1053, %v950, 0
    %v1098 = vsel %vm1053, %v952, 0
    %v1100 = vsel %vm1053, %v954, 0
    %v1102 = vsel %vm1053, %v956, 0
    %1104 = vmatprep.subr.bf16.mxu0 0
    %1105 = vmatpush1.bf16.msra.mxu0 %v1029
    %1106 = vmatprep.subr.bf16.mxu0 0
    %1107 = vmatpush1.bf16.msra.mxu0 %v1030
    %1108 = vmatprep.subr.bf16.mxu0 0
    %1109 = vmatpush1.bf16.msra.mxu0 %v1031
    %1110 = vmatprep.subr.bf16.mxu0 0
    %1111 = vmatpush1.bf16.msra.mxu0 %v1032
    %1112 = vmatprep.subr.bf16.mxu0 0
    %1113 = vmatpush1.bf16.msra.mxu0 %v1033
    %1114 = vmatprep.subr.bf16.mxu0 0
    %1115 = vmatpush1.bf16.msra.mxu0 %v1034
    %1116 = vmatprep.subr.bf16.mxu0 0
    %1117 = vmatpush1.bf16.msra.mxu0 %v1035
    %1118 = vmatprep.subr.bf16.mxu0 0
    %1119 = vmatpush1.bf16.msra.mxu0 %v1036
    %1120 = vmatprep.subr.bf16.mxu0 0
    %1121 = vmatpush1.bf16.msra.mxu0 %v1037
    %1122 = vmatprep.subr.bf16.mxu0 0
    %1123 = vmatpush1.bf16.msra.mxu0 %v1038
    %1124 = vmatprep.subr.bf16.mxu0 0
    %1125 = vmatpush1.bf16.msra.mxu0 %v1039
    %1126 = vmatprep.subr.bf16.mxu0 0
    %1127 = vmatpush1.bf16.msra.mxu0 %v1040
    %1128 = vmatprep.subr.bf16.mxu0 0
    %1129 = vmatpush1.bf16.msra.mxu0 0
    %1130 = vmatprep.subr.bf16.mxu0 0
    %1131 = vmatpush1.bf16.msra.mxu0 0
    %1132 = vmatprep.subr.bf16.mxu0 0
    %1133 = vmatpush1.bf16.msra.mxu0 0
    %1134 = vmatprep.subr.bf16.mxu0 0
    %1135 = vmatpush1.bf16.msra.mxu0 0
    %1136 = vmatprep.mubr.bf16.mxu0 %v1054
    %1137 = vmatmul.mubr.bf16.gmra.mrb[0].mxu0 %v832
    %v1138 = vpop.f32.mrb[0].mxu0
    %v1139 = vadd.f32 0.0, %v1138
    %v1140 = vpop.f32.mrb[0].mxu0
    %v1141 = vpop.f32.mrb[0].mxu0
    %v1142 = vadd.f32 0.0, %v1141
    %v1143 = vpop.f32.mrb[0].mxu0
    %1144 = vmatprep.mubr.bf16.mxu0 %v1056
    %1145 = vmatmul.mubr.bf16.gmra.mrb[0].mxu0 %v835
    %v1146 = vpop.f32.mrb[0].mxu0
    %v1147 = vadd.f32 0.0, %v1146
    %v1148 = vpop.f32.mrb[0].mxu0
    %v1149 = vpop.f32.mrb[0].mxu0
    %v1150 = vadd.f32 0.0, %v1149
    %v1151 = vpop.f32.mrb[0].mxu0
    %1152 = vmatprep.mubr.bf16.mxu0 %v1058
    %1153 = vmatmul.mubr.bf16.gmra.mrb[0].mxu0 %v838
    %v1154 = vpop.f32.mrb[0].mxu0
    %v1155 = vadd.f32 0.0, %v1154
    %v1156 = vpop.f32.mrb[0].mxu0
    %v1157 = vpop.f32.mrb[0].mxu0
    %v1158 = vadd.f32 0.0, %v1157
    %v1159 = vpop.f32.mrb[0].mxu0
    %1160 = vmatprep.mubr.bf16.mxu0 %v1060
    %1161 = vmatmul.mubr.bf16.gmra.mrb[0].mxu0 %v841
    %v1162 = vpop.f32.mrb[0].mxu0
    %v1163 = vadd.f32 0.0, %v1162
    %v1164 = vpop.f32.mrb[0].mxu0
    %v1165 = vpop.f32.mrb[0].mxu0
    %v1166 = vadd.f32 0.0, %v1165
    %v1167 = vpop.f32.mrb[0].mxu0
    %1168 = vmatprep.mubr.bf16.mxu0 %v1062
    %1169 = vmatmul.mubr.bf16.gmra.mrb[0].mxu0 %v844
    %v1170 = vpop.f32.mrb[0].mxu0
    %v1171 = vadd.f32 0.0, %v1170
    %v1172 = vpop.f32.mrb[0].mxu0
    %v1173 = vpop.f32.mrb[0].mxu0
    %v1174 = vadd.f32 0.0, %v1173
    %v1175 = vpop.f32.mrb[0].mxu0
    %1176 = vmatprep.mubr.bf16.mxu0 %v1064
    %1177 = vmatmul.mubr.bf16.gmra.mrb[0].mxu0 %v847
    %v1178 = vpop.f32.mrb[0].mxu0
    %v1179 = vadd.f32 0.0, %v1178
    %v1180 = vpop.f32.mrb[0].mxu0
    %v1181 = vpop.f32.mrb[0].mxu0
    %v1182 = vadd.f32 0.0, %v1181
    %v1183 = vpop.f32.mrb[0].mxu0
    %1184 = vmatprep.mubr.bf16.mxu0 %v1066
    %1185 = vmatmul.mubr.bf16.gmra.mrb[0].mxu0 %v850
    %v1186 = vpop.f32.mrb[0].mxu0
    %v1187 = vadd.f32 0.0, %v1186
    %v1188 = vpop.f32.mrb[0].mxu0
    %v1189 = vpop.f32.mrb[0].mxu0
    %v1190 = vadd.f32 0.0, %v1189
    %v1191 = vpop.f32.mrb[0].mxu0
    %1192 = vmatprep.mubr.bf16.mxu0 %v1068
    %1193 = vmatmul.mubr.bf16.gmra.mrb[0].mxu0 %v853
    %v1194 = vpop.f32.mrb[0].mxu0
    %v1195 = vadd.f32 0.0, %v1194
    %v1196 = vpop.f32.mrb[0].mxu0
    %v1197 = vpop.f32.mrb[0].mxu0
    %v1198 = vadd.f32 0.0, %v1197
    %v1199 = vpop.f32.mrb[0].mxu0
    %1200 = vmatprep.mubr.bf16.mxu0 %v1070
    %1201 = vmatmul.mubr.bf16.gmra.mrb[0].mxu0 %v856
    %v1202 = vpop.f32.mrb[0].mxu0
    %v1203 = vadd.f32 0.0, %v1202
    %v1204 = vpop.f32.mrb[0].mxu0
    %v1205 = vpop.f32.mrb[0].mxu0
    %v1206 = vadd.f32 0.0, %v1205
    %v1207 = vpop.f32.mrb[0].mxu0
    %1208 = vmatprep.mubr.bf16.mxu0 %v1072
    %1209 = vmatmul.mubr.bf16.gmra.mrb[0].mxu0 %v859
    %v1210 = vpop.f32.mrb[0].mxu0
    %v1211 = vadd.f32 0.0, %v1210
    %v1212 = vpop.f32.mrb[0].mxu0
    %v1213 = vpop.f32.mrb[0].mxu0
    %v1214 = vadd.f32 0.0, %v1213
    %v1215 = vpop.f32.mrb[0].mxu0
    %1216 = vmatprep.mubr.bf16.mxu0 %v1074
    %1217 = vmatmul.mubr.bf16.gmra.mrb[0].mxu0 %v862
    %v1218 = vpop.f32.mrb[0].mxu0
    %v1219 = vadd.f32 0.0, %v1218
    %v1220 = vpop.f32.mrb[0].mxu0
    %v1221 = vpop.f32.mrb[0].mxu0
    %v1222 = vadd.f32 0.0, %v1221
    %v1223 = vpop.f32.mrb[0].mxu0
    %1224 = vmatprep.mubr.bf16.mxu0 %v1076
    %1225 = vmatmul.mubr.bf16.gmra.mrb[0].mxu0 %v865
    %v1226 = vpop.f32.mrb[0].mxu0
    %v1227 = vadd.f32 0.0, %v1226
    %v1228 = vpop.f32.mrb[0].mxu0
    %v1229 = vpop.f32.mrb[0].mxu0
    %v1230 = vadd.f32 0.0, %v1229
    %v1231 = vpop.f32.mrb[0].mxu0
    %1232 = vmatprep.mubr.bf16.mxu0 %v1078
    %1233 = vmatmul.mubr.bf16.gmra.mrb[0].mxu0 %v868
    %v1234 = vpop.f32.mrb[0].mxu0
    %v1235 = vadd.f32 0.0, %v1234
    %v1236 = vpop.f32.mrb[0].mxu0
    %v1237 = vpop.f32.mrb[0].mxu0
    %v1238 = vadd.f32 0.0, %v1237
    %v1239 = vpop.f32.mrb[0].mxu0
    %1240 = vmatprep.mubr.bf16.mxu0 %v1080
    %1241 = vmatmul.mubr.bf16.gmra.mrb[0].mxu0 %v871
    %v1242 = vpop.f32.mrb[0].mxu0
    %v1243 = vadd.f32 0.0, %v1242
    %v1244 = vpop.f32.mrb[0].mxu0
    %v1245 = vpop.f32.mrb[0].mxu0
    %v1246 = vadd.f32 0.0, %v1245
    %v1247 = vpop.f32.mrb[0].mxu0
    %1248 = vmatprep.mubr.bf16.mxu0 %v1082
    %1249 = vmatmul.mubr.bf16.gmra.mrb[0].mxu0 %v874
    %v1250 = vpop.f32.mrb[0].mxu0
    %v1251 = vadd.f32 0.0, %v1250
    %v1252 = vpop.f32.mrb[0].mxu0
    %v1253 = vpop.f32.mrb[0].mxu0
    %v1254 = vadd.f32 0.0, %v1253
    %v1255 = vpop.f32.mrb[0].mxu0
    %1256 = vmatprep.mubr.bf16.mxu0 %v1084
    %1257 = vmatmul.mubr.bf16.gmra.mrb[0].mxu0 %v877
    %v1258 = vpop.f32.mrb[0].mxu0
    %v1259 = vadd.f32 0.0, %v1258
    %v1260 = vpop.f32.mrb[0].mxu0
    %v1261 = vpop.f32.mrb[0].mxu0
    %v1262 = vadd.f32 0.0, %v1261
    %v1263 = vpop.f32.mrb[0].mxu0
    %1264 = vmatprep.mubr.bf16.mxu0 %v1086
    %1265 = vmatmul.mubr.bf16.gmra.mrb[0].mxu0 %v880
    %v1266 = vpop.f32.mrb[0].mxu0
    %v1267 = vadd.f32 0.0, %v1266
    %v1268 = vpop.f32.mrb[0].mxu0
    %v1269 = vpop.f32.mrb[0].mxu0
    %v1270 = vadd.f32 0.0, %v1269
    %v1271 = vpop.f32.mrb[0].mxu0
    %1272 = vmatprep.mubr.bf16.mxu0 %v1088
    %1273 = vmatmul.mubr.bf16.gmra.mrb[0].mxu0 %v883
    %v1274 = vpop.f32.mrb[0].mxu0
    %v1275 = vadd.f32 0.0, %v1274
    %v1276 = vpop.f32.mrb[0].mxu0
    %v1277 = vpop.f32.mrb[0].mxu0
    %v1278 = vadd.f32 0.0, %v1277
    %v1279 = vpop.f32.mrb[0].mxu0
    %1280 = vmatprep.mubr.bf16.mxu0 %v1090
    %1281 = vmatmul.mubr.bf16.gmra.mrb[0].mxu0 %v886
    %v1282 = vpop.f32.mrb[0].mxu0
    %v1283 = vadd.f32 0.0, %v1282
    %v1284 = vpop.f32.mrb[0].mxu0
    %v1285 = vpop.f32.mrb[0].mxu0
    %v1286 = vadd.f32 0.0, %v1285
    %v1287 = vpop.f32.mrb[0].mxu0
    %1288 = vmatprep.mubr.bf16.mxu0 %v1092
    %1289 = vmatmul.mubr.bf16.gmra.mrb[0].mxu0 %v889
    %v1290 = vpop.f32.mrb[0].mxu0
    %v1291 = vadd.f32 0.0, %v1290
    %v1292 = vpop.f32.mrb[0].mxu0
    %v1293 = vpop.f32.mrb[0].mxu0
    %v1294 = vadd.f32 0.0, %v1293
    %v1295 = vpop.f32.mrb[0].mxu0
    %1296 = vmatprep.mubr.bf16.mxu0 %v1094
    %1297 = vmatmul.mubr.bf16.gmra.mrb[0].mxu0 %v892
    %v1298 = vpop.f32.mrb[0].mxu0
    %v1299 = vadd.f32 0.0, %v1298
    %v1300 = vpop.f32.mrb[0].mxu0
    %v1301 = vpop.f32.mrb[0].mxu0
    %v1302 = vadd.f32 0.0, %v1301
    %v1303 = vpop.f32.mrb[0].mxu0
    %1304 = vmatprep.mubr.bf16.mxu0 %v1096
    %1305 = vmatmul.mubr.bf16.gmra.mrb[0].mxu0 %v895
    %v1306 = vpop.f32.mrb[0].mxu0
    %v1307 = vadd.f32 0.0, %v1306
    %v1308 = vpop.f32.mrb[0].mxu0
    %v1309 = vpop.f32.mrb[0].mxu0
    %v1310 = vadd.f32 0.0, %v1309
    %v1311 = vpop.f32.mrb[0].mxu0
    %1312 = vmatprep.mubr.bf16.mxu0 %v1098
    %1313 = vmatmul.mubr.bf16.gmra.mrb[0].mxu0 %v898
    %v1314 = vpop.f32.mrb[0].mxu0
    %v1315 = vadd.f32 0.0, %v1314
    %v1316 = vpop.f32.mrb[0].mxu0
    %v1317 = vpop.f32.mrb[0].mxu0
    %v1318 = vadd.f32 0.0, %v1317
    %v1319 = vpop.f32.mrb[0].mxu0
    %1320 = vmatprep.mubr.bf16.mxu0 %v1100
    %1321 = vmatmul.mubr.bf16.gmra.mrb[0].mxu0 %v901
    %v1322 = vpop.f32.mrb[0].mxu0
    %v1323 = vadd.f32 0.0, %v1322
    %v1324 = vpop.f32.mrb[0].mxu0
    %v1325 = vpop.f32.mrb[0].mxu0
    %v1326 = vadd.f32 0.0, %v1325
    %v1327 = vpop.f32.mrb[0].mxu0
    %1328 = vmatprep.mubr.bf16.mxu0 %v1102
    %1329 = vmatmul.mubr.bf16.gmra.mrb[0].mxu0 %v904
    %v1330 = vpop.f32.mrb[0].mxu0
    %v1331 = vadd.f32 0.0, %v1330
    %v1332 = vpop.f32.mrb[0].mxu0
    %v1333 = vpop.f32.mrb[0].mxu0
    %v1334 = vadd.f32 0.0, %v1333
    %v1335 = vpop.f32.mrb[0].mxu0
    %1336 = vdwg.mxu0
    %v1337 = vld [vmem:[%s4] sm:$0xf]
    %v1338 = vld [vmem:[%s2] sm:$0x1]
    %v1339 = vld [vmem:[%s3] sm:$0x1]
    %v1341 = vlaneseq
    %v1342 = vshrl.u32 %v1341, 7
    %v1343 = vsub.s32 0, %v1342
    %v1344 = vrot.slane %v1337, %v1343
    %v1345 = vlaneseq
    %v1346 = vshrl.u32 %v1345, 7
    %v1347 = vsub.s32 1, %v1346
    %v1348 = vrot.slane %v1337, %v1347
    %v1349 = vlaneseq
    %v1350 = vshrl.u32 %v1349, 7
    %v1351 = vsub.s32 2, %v1350
    %v1352 = vrot.slane %v1337, %v1351
    %v1353 = vlaneseq
    %v1354 = vshrl.u32 %v1353, 7
    %v1355 = vsub.s32 3, %v1354
    %v1356 = vrot.slane %v1337, %v1355
    %v1360 = vsel %vm906, %v1356, 0
    %1362 = vmatprep.subr.mxu0 0.0
    %1363 = vmatpush1.msra.mxu0 %v1139
    %1364 = vmatprep.subr.mxu0 0.0
    %1365 = vmatpush1.msra.mxu0 %v1142
    %1366 = vmatprep.subr.mxu0 0.0
    %1367 = vmatpush1.msra.mxu0 %v1147
    %1368 = vmatprep.subr.mxu0 0.0
    %1369 = vmatpush1.msra.mxu0 %v1150
    %1370 = vmatprep.subr.mxu0 0.0
    %1371 = vmatpush1.msra.mxu0 %v1155
    %1372 = vmatprep.subr.mxu0 0.0
    %1373 = vmatpush1.msra.mxu0 %v1158
    %1374 = vmatprep.subr.mxu0 0.0
    %1375 = vmatpush1.msra.mxu0 %v1163
    %1376 = vmatprep.subr.mxu0 0.0
    %1377 = vmatpush1.msra.mxu0 %v1166
    %1378 = vmatprep.subr.mxu0 0.0
    %1379 = vmatpush1.msra.mxu0 %v1171
    %1380 = vmatprep.subr.mxu0 0.0
    %1381 = vmatpush1.msra.mxu0 %v1174
    %1382 = vmatprep.subr.mxu0 0.0
    %1383 = vmatpush1.msra.mxu0 %v1179
    %1384 = vmatprep.subr.mxu0 0.0
    %1385 = vmatpush1.msra.mxu0 %v1182
    %1386 = vmatprep.subr.mxu0 0.0
    %1387 = vmatpush1.msra.mxu0 %v1187
    %1388 = vmatprep.subr.mxu0 0.0
    %1389 = vmatpush1.msra.mxu0 %v1190
    %1390 = vmatprep.subr.mxu0 0.0
    %1391 = vmatpush1.msra.mxu0 %v1195
    %1392 = vmatprep.subr.mxu0 0.0
    %1393 = vmatpush1.msra.mxu0 %v1198
    %1394 = vmatprep.subr.mxu0 0.0
    %1395 = vmatpush1.msra.mxu0 %v1203
    %1396 = vmatprep.subr.mxu0 0.0
    %1397 = vmatpush1.msra.mxu0 %v1206
    %1398 = vmatprep.subr.mxu0 0.0
    %1399 = vmatpush1.msra.mxu0 %v1211
    %1400 = vmatprep.subr.mxu0 0.0
    %1401 = vmatpush1.msra.mxu0 %v1214
    %1402 = vmatprep.subr.mxu0 0.0
    %1403 = vmatpush1.msra.mxu0 %v1219
    %1404 = vmatprep.subr.mxu0 0.0
    %1405 = vmatpush1.msra.mxu0 %v1222
    %1406 = vmatprep.subr.mxu0 0.0
    %1407 = vmatpush1.msra.mxu0 %v1227
    %1408 = vmatprep.subr.mxu0 0.0
    %1409 = vmatpush1.msra.mxu0 %v1230
    %1410 = vmatprep.subr.mxu0 0.0
    %1411 = vmatpush1.msra.mxu0 %v1235
    %1412 = vmatprep.subr.mxu0 0.0
    %1413 = vmatpush1.msra.mxu0 %v1238
    %1414 = vmatprep.subr.mxu0 0.0
    %1415 = vmatpush1.msra.mxu0 %v1243
    %1416 = vmatprep.subr.mxu0 0.0
    %1417 = vmatpush1.msra.mxu0 %v1246
    %1418 = vmatprep.subr.mxu0 0.0
    %1419 = vmatpush1.msra.mxu0 %v1251
    %1420 = vmatprep.subr.mxu0 0.0
    %1421 = vmatpush1.msra.mxu0 %v1254
    %1422 = vmatprep.subr.mxu0 0.0
    %1423 = vmatpush1.msra.mxu0 %v1259
    %1424 = vmatprep.subr.mxu0 0.0
    %1425 = vmatpush1.msra.mxu0 %v1262
    %1426 = vmatprep.mubr.f32.mxu0 %v1348
    %1427 = vmatmul.mubr.f32.gmra.mrb[0].mxu0 %v1344
    %v1428 = vpop.f32.mrb[0].mxu0
    %v1429 = vadd.f32 0.0, %v1428
    %v1430 = vpop.f32.mrb[0].mxu0
    %1431 = vdwg.mxu0
    %1432 = vmatprep.subr.mxu0 0.0
    %1433 = vmatpush1.msra.mxu0 %v1267
    %1434 = vmatprep.subr.mxu0 0.0
    %1435 = vmatpush1.msra.mxu0 %v1270
    %1436 = vmatprep.subr.mxu0 0.0
    %1437 = vmatpush1.msra.mxu0 %v1275
    %1438 = vmatprep.subr.mxu0 0.0
    %1439 = vmatpush1.msra.mxu0 %v1278
    %1440 = vmatprep.subr.mxu0 0.0
    %1441 = vmatpush1.msra.mxu0 %v1283
    %1442 = vmatprep.subr.mxu0 0.0
    %1443 = vmatpush1.msra.mxu0 %v1286
    %1444 = vmatprep.subr.mxu0 0.0
    %1445 = vmatpush1.msra.mxu0 %v1291
    %1446 = vmatprep.subr.mxu0 0.0
    %1447 = vmatpush1.msra.mxu0 %v1294
    %1448 = vmatprep.subr.mxu0 0.0
    %1449 = vmatpush1.msra.mxu0 %v1299
    %1450 = vmatprep.subr.mxu0 0.0
    %1451 = vmatpush1.msra.mxu0 %v1302
    %1452 = vmatprep.subr.mxu0 0.0
    %1453 = vmatpush1.msra.mxu0 %v1307
    %1454 = vmatprep.subr.mxu0 0.0
    %1455 = vmatpush1.msra.mxu0 %v1310
    %1456 = vmatprep.subr.mxu0 0.0
    %1457 = vmatpush1.msra.mxu0 %v1315
    %1458 = vmatprep.subr.mxu0 0.0
    %1459 = vmatpush1.msra.mxu0 %v1318
    %1460 = vmatprep.subr.mxu0 0.0
    %1461 = vmatpush1.msra.mxu0 %v1323
    %1462 = vmatprep.subr.mxu0 0.0
    %1463 = vmatpush1.msra.mxu0 %v1326
    %1464 = vmatprep.subr.mxu0 0.0
    %1465 = vmatpush1.msra.mxu0 %v1331
    %1466 = vmatprep.subr.mxu0 0.0
    %1467 = vmatpush1.msra.mxu0 %v1334
    %1468 = vmatprep.subr.mxu0 0.0
    %1469 = vmatpush1.msra.mxu0 0.0
    %1470 = vmatprep.subr.mxu0 0.0
    %1471 = vmatpush1.msra.mxu0 0.0
    %1472 = vmatprep.subr.mxu0 0.0
    %1473 = vmatpush1.msra.mxu0 0.0
    %1474 = vmatprep.subr.mxu0 0.0
    %1475 = vmatpush1.msra.mxu0 0.0
    %1476 = vmatprep.subr.mxu0 0.0
    %1477 = vmatpush1.msra.mxu0 0.0
    %1478 = vmatprep.subr.mxu0 0.0
    %1479 = vmatpush1.msra.mxu0 0.0
    %1480 = vmatprep.subr.mxu0 0.0
    %1481 = vmatpush1.msra.mxu0 0.0
    %1482 = vmatprep.subr.mxu0 0.0
    %1483 = vmatpush1.msra.mxu0 0.0
    %1484 = vmatprep.subr.mxu0 0.0
    %1485 = vmatpush1.msra.mxu0 0.0
    %1486 = vmatprep.subr.mxu0 0.0
    %1487 = vmatpush1.msra.mxu0 0.0
    %1488 = vmatprep.subr.mxu0 0.0
    %1489 = vmatpush1.msra.mxu0 0.0
    %1490 = vmatprep.subr.mxu0 0.0
    %1491 = vmatpush1.msra.mxu0 0.0
    %1492 = vmatprep.subr.mxu0 0.0
    %1493 = vmatpush1.msra.mxu0 0.0
    %1494 = vmatprep.subr.mxu0 0.0
    %1495 = vmatpush1.msra.mxu0 0.0
    %1496 = vmatprep.mubr.f32.mxu0 %v1360
    %1497 = vmatmul.mubr.f32.gmra.mrb[0].mxu0 %v1352
    %v1498 = vpop.f32.mrb[0].mxu0
    %v1499 = vadd.f32 %v1429, %v1498
    %v1500 = vpop.f32.mrb[0].mxu0
    %1501 = vdwg.mxu0
    %v1502 = vadd.f32 %v1499, 0.0
    %1504 = vrot.lane.b32.xlu0 %v1499, 112
    %v1505 = vpop.permute.xlu0 %1504
    %v1507 = vadd.f32 %v1502, %v1505
    %1508 = vrot.lane.b32.xlu0 %v1499, 96
    %v1509 = vpop.permute.xlu0 %1508
    %v1511 = vadd.f32 %v1507, %v1509
    %1512 = vrot.lane.b32.xlu0 %v1499, 80
    %v1513 = vpop.permute.xlu0 %1512
    %v1515 = vadd.f32 %v1511, %v1513
    %1517 = vrot.lane.b32.xlu0 %v1515, 16
    %v1518 = vpop.permute.xlu0 %1517
    %1520 = vrot.lane.b32.xlu0 %v1515, 32
    %v1521 = vpop.permute.xlu0 %1520
    %1523 = vrot.lane.b32.xlu0 %v1515, 48
    %v1524 = vpop.permute.xlu0 %1523
    %v1526 = vsel %vm906, %v1515, %v1518
    %vm1527 = vcmask 261120
    %v1528 = vsel %vm1527, %v1526, %v1521
    %v1529 = vsel %vm779, %v1528, %v1524
    %v1530 = vmul.f32 %v1529, 0.00073099416
    %v1531 = vlaneseq
    %v1532 = vshrl.u32 %v1531, 7
    %v1533 = vsub.s32 0, %v1532
    %v1534 = vrot.slane %v1530, %v1533
    %v1535 = vsub.f32 %v1139, %v1534
    %v1536 = vsub.f32 %v1142, %v1534
    %v1537 = vsub.f32 %v1147, %v1534
    %v1538 = vsub.f32 %v1150, %v1534
    %v1539 = vsub.f32 %v1155, %v1534
    %v1540 = vsub.f32 %v1158, %v1534
    %v1541 = vsub.f32 %v1163, %v1534
    %v1542 = vsub.f32 %v1166, %v1534
    %v1543 = vsub.f32 %v1171, %v1534
    %v1544 = vsub.f32 %v1174, %v1534
    %v1545 = vsub.f32 %v1179, %v1534
    %v1546 = vsub.f32 %v1182, %v1534
    %v1547 = vsub.f32 %v1187, %v1534
    %v1548 = vsub.f32 %v1190, %v1534
    %v1549 = vsub.f32 %v1195, %v1534
    %v1550 = vsub.f32 %v1198, %v1534
    %v1551 = vsub.f32 %v1203, %v1534
    %v1552 = vsub.f32 %v1206, %v1534
    %v1553 = vsub.f32 %v1211, %v1534
    %v1554 = vsub.f32 %v1214, %v1534
    %v1555 = vsub.f32 %v1219, %v1534
    %v1556 = vsub.f32 %v1222, %v1534
    %v1557 = vsub.f32 %v1227, %v1534
    %v1558 = vsub.f32 %v1230, %v1534
    %v1559 = vsub.f32 %v1235, %v1534
    %v1560 = vsub.f32 %v1238, %v1534
    %v1561 = vsub.f32 %v1243, %v1534
    %v1562 = vsub.f32 %v1246, %v1534
    %v1563 = vsub.f32 %v1251, %v1534
    %v1564 = vsub.f32 %v1254, %v1534
    %v1565 = vsub.f32 %v1259, %v1534
    %v1566 = vsub.f32 %v1262, %v1534
    %v1567 = vsub.f32 %v1267, %v1534
    %v1568 = vsub.f32 %v1270, %v1534
    %v1569 = vsub.f32 %v1275, %v1534
    %v1570 = vsub.f32 %v1278, %v1534
    %v1571 = vsub.f32 %v1283, %v1534
    %v1572 = vsub.f32 %v1286, %v1534
    %v1573 = vsub.f32 %v1291, %v1534
    %v1574 = vsub.f32 %v1294, %v1534
    %v1575 = vsub.f32 %v1299, %v1534
    %v1576 = vsub.f32 %v1302, %v1534
    %v1577 = vsub.f32 %v1307, %v1534
    %v1578 = vsub.f32 %v1310, %v1534
    %v1579 = vsub.f32 %v1315, %v1534
    %v1580 = vsub.f32 %v1318, %v1534
    %v1581 = vsub.f32 %v1323, %v1534
    %v1582 = vsub.f32 %v1326, %v1534
    %v1583 = vsub.f32 %v1331, %v1534
    %v1584 = vsub.f32 %v1334, %v1534
    %v1585 = vmul.f32 %v1535, %v1535
    %v1586 = vmul.f32 %v1536, %v1536
    %v1587 = vmul.f32 %v1537, %v1537
    %v1588 = vmul.f32 %v1538, %v1538
    %v1589 = vmul.f32 %v1539, %v1539
    %v1590 = vmul.f32 %v1540, %v1540
    %v1591 = vmul.f32 %v1541, %v1541
    %v1592 = vmul.f32 %v1542, %v1542
    %v1593 = vmul.f32 %v1543, %v1543
    %v1594 = vmul.f32 %v1544, %v1544
    %v1595 = vmul.f32 %v1545, %v1545
    %v1596 = vmul.f32 %v1546, %v1546
    %v1597 = vmul.f32 %v1547, %v1547
    %v1598 = vmul.f32 %v1548, %v1548
    %v1599 = vmul.f32 %v1549, %v1549
    %v1600 = vmul.f32 %v1550, %v1550
    %v1601 = vmul.f32 %v1551, %v1551
    %v1602 = vmul.f32 %v1552, %v1552
    %v1603 = vmul.f32 %v1553, %v1553
    %v1604 = vmul.f32 %v1554, %v1554
    %v1605 = vmul.f32 %v1555, %v1555
    %v1606 = vmul.f32 %v1556, %v1556
    %v1607 = vmul.f32 %v1557, %v1557
    %v1608 = vmul.f32 %v1558, %v1558
    %v1609 = vmul.f32 %v1559, %v1559
    %v1610 = vmul.f32 %v1560, %v1560
    %v1611 = vmul.f32 %v1561, %v1561
    %v1612 = vmul.f32 %v1562, %v1562
    %v1613 = vmul.f32 %v1563, %v1563
    %v1614 = vmul.f32 %v1564, %v1564
    %v1615 = vmul.f32 %v1565, %v1565
    %v1616 = vmul.f32 %v1566, %v1566
    %v1617 = vmul.f32 %v1567, %v1567
    %v1618 = vmul.f32 %v1568, %v1568
    %v1619 = vmul.f32 %v1569, %v1569
    %v1620 = vmul.f32 %v1570, %v1570
    %v1621 = vmul.f32 %v1571, %v1571
    %v1622 = vmul.f32 %v1572, %v1572
    %v1623 = vmul.f32 %v1573, %v1573
    %v1624 = vmul.f32 %v1574, %v1574
    %v1625 = vmul.f32 %v1575, %v1575
    %v1626 = vmul.f32 %v1576, %v1576
    %v1627 = vmul.f32 %v1577, %v1577
    %v1628 = vmul.f32 %v1578, %v1578
    %v1629 = vmul.f32 %v1579, %v1579
    %v1630 = vmul.f32 %v1580, %v1580
    %v1631 = vmul.f32 %v1581, %v1581
    %v1632 = vmul.f32 %v1582, %v1582
    %v1633 = vmul.f32 %v1583, %v1583
    %v1634 = vmul.f32 %v1584, %v1584
    %1635 = vmatprep.subr.mxu0 0.0
    %1636 = vmatpush1.msra.mxu0 %v1585
    %1637 = vmatprep.subr.mxu0 0.0
    %1638 = vmatpush1.msra.mxu0 %v1586
    %1639 = vmatprep.subr.mxu0 0.0
    %1640 = vmatpush1.msra.mxu0 %v1587
    %1641 = vmatprep.subr.mxu0 0.0
    %1642 = vmatpush1.msra.mxu0 %v1588
    %1643 = vmatprep.subr.mxu0 0.0
    %1644 = vmatpush1.msra.mxu0 %v1589
    %1645 = vmatprep.subr.mxu0 0.0
    %1646 = vmatpush1.msra.mxu0 %v1590
    %1647 = vmatprep.subr.mxu0 0.0
    %1648 = vmatpush1.msra.mxu0 %v1591
    %1649 = vmatprep.subr.mxu0 0.0
    %1650 = vmatpush1.msra.mxu0 %v1592
    %1651 = vmatprep.subr.mxu0 0.0
    %1652 = vmatpush1.msra.mxu0 %v1593
    %1653 = vmatprep.subr.mxu0 0.0
    %1654 = vmatpush1.msra.mxu0 %v1594
    %1655 = vmatprep.subr.mxu0 0.0
    %1656 = vmatpush1.msra.mxu0 %v1595
    %1657 = vmatprep.subr.mxu0 0.0
    %1658 = vmatpush1.msra.mxu0 %v1596
    %1659 = vmatprep.subr.mxu0 0.0
    %1660 = vmatpush1.msra.mxu0 %v1597
    %1661 = vmatprep.subr.mxu0 0.0
    %1662 = vmatpush1.msra.mxu0 %v1598
    %1663 = vmatprep.subr.mxu0 0.0
    %1664 = vmatpush1.msra.mxu0 %v1599
    %1665 = vmatprep.subr.mxu0 0.0
    %1666 = vmatpush1.msra.mxu0 %v1600
    %1667 = vmatprep.subr.mxu0 0.0
    %1668 = vmatpush1.msra.mxu0 %v1601
    %1669 = vmatprep.subr.mxu0 0.0
    %1670 = vmatpush1.msra.mxu0 %v1602
    %1671 = vmatprep.subr.mxu0 0.0
    %1672 = vmatpush1.msra.mxu0 %v1603
    %1673 = vmatprep.subr.mxu0 0.0
    %1674 = vmatpush1.msra.mxu0 %v1604
    %1675 = vmatprep.subr.mxu0 0.0
    %1676 = vmatpush1.msra.mxu0 %v1605
    %1677 = vmatprep.subr.mxu0 0.0
    %1678 = vmatpush1.msra.mxu0 %v1606
    %1679 = vmatprep.subr.mxu0 0.0
    %1680 = vmatpush1.msra.mxu0 %v1607
    %1681 = vmatprep.subr.mxu0 0.0
    %1682 = vmatpush1.msra.mxu0 %v1608
    %1683 = vmatprep.subr.mxu0 0.0
    %1684 = vmatpush1.msra.mxu0 %v1609
    %1685 = vmatprep.subr.mxu0 0.0
    %1686 = vmatpush1.msra.mxu0 %v1610
    %1687 = vmatprep.subr.mxu0 0.0
    %1688 = vmatpush1.msra.mxu0 %v1611
    %1689 = vmatprep.subr.mxu0 0.0
    %1690 = vmatpush1.msra.mxu0 %v1612
    %1691 = vmatprep.subr.mxu0 0.0
    %1692 = vmatpush1.msra.mxu0 %v1613
    %1693 = vmatprep.subr.mxu0 0.0
    %1694 = vmatpush1.msra.mxu0 %v1614
    %1695 = vmatprep.subr.mxu0 0.0
    %1696 = vmatpush1.msra.mxu0 %v1615
    %1697 = vmatprep.subr.mxu0 0.0
    %1698 = vmatpush1.msra.mxu0 %v1616
    %1699 = vmatprep.mubr.f32.mxu0 %v1348
    %1700 = vmatmul.mubr.f32.gmra.mrb[0].mxu0 %v1344
    %v1701 = vpop.f32.mrb[0].mxu0
    %v1702 = vadd.f32 0.0, %v1701
    %v1703 = vpop.f32.mrb[0].mxu0
    %1704 = vdwg.mxu0
    %1705 = vmatprep.subr.mxu0 0.0
    %1706 = vmatpush1.msra.mxu0 %v1617
    %1707 = vmatprep.subr.mxu0 0.0
    %1708 = vmatpush1.msra.mxu0 %v1618
    %1709 = vmatprep.subr.mxu0 0.0
    %1710 = vmatpush1.msra.mxu0 %v1619
    %1711 = vmatprep.subr.mxu0 0.0
    %1712 = vmatpush1.msra.mxu0 %v1620
    %1713 = vmatprep.subr.mxu0 0.0
    %1714 = vmatpush1.msra.mxu0 %v1621
    %1715 = vmatprep.subr.mxu0 0.0
    %1716 = vmatpush1.msra.mxu0 %v1622
    %1717 = vmatprep.subr.mxu0 0.0
    %1718 = vmatpush1.msra.mxu0 %v1623
    %1719 = vmatprep.subr.mxu0 0.0
    %1720 = vmatpush1.msra.mxu0 %v1624
    %1721 = vmatprep.subr.mxu0 0.0
    %1722 = vmatpush1.msra.mxu0 %v1625
    %1723 = vmatprep.subr.mxu0 0.0
    %1724 = vmatpush1.msra.mxu0 %v1626
    %1725 = vmatprep.subr.mxu0 0.0
    %1726 = vmatpush1.msra.mxu0 %v1627
    %1727 = vmatprep.subr.mxu0 0.0
    %1728 = vmatpush1.msra.mxu0 %v1628
    %1729 = vmatprep.subr.mxu0 0.0
    %1730 = vmatpush1.msra.mxu0 %v1629
    %1731 = vmatprep.subr.mxu0 0.0
    %1732 = vmatpush1.msra.mxu0 %v1630
    %1733 = vmatprep.subr.mxu0 0.0
    %1734 = vmatpush1.msra.mxu0 %v1631
    %1735 = vmatprep.subr.mxu0 0.0
    %1736 = vmatpush1.msra.mxu0 %v1632
    %1737 = vmatprep.subr.mxu0 0.0
    %1738 = vmatpush1.msra.mxu0 %v1633
    %1739 = vmatprep.subr.mxu0 0.0
    %1740 = vmatpush1.msra.mxu0 %v1634
    %1741 = vmatprep.subr.mxu0 0.0
    %1742 = vmatpush1.msra.mxu0 0.0
    %1743 = vmatprep.subr.mxu0 0.0
    %1744 = vmatpush1.msra.mxu0 0.0
    %1745 = vmatprep.subr.mxu0 0.0
    %1746 = vmatpush1.msra.mxu0 0.0
    %1747 = vmatprep.subr.mxu0 0.0
    %1748 = vmatpush1.msra.mxu0 0.0
    %1749 = vmatprep.subr.mxu0 0.0
    %1750 = vmatpush1.msra.mxu0 0.0
    %1751 = vmatprep.subr.mxu0 0.0
    %1752 = vmatpush1.msra.mxu0 0.0
    %1753 = vmatprep.subr.mxu0 0.0
    %1754 = vmatpush1.msra.mxu0 0.0
    %1755 = vmatprep.subr.mxu0 0.0
    %1756 = vmatpush1.msra.mxu0 0.0
    %1757 = vmatprep.subr.mxu0 0.0
    %1758 = vmatpush1.msra.mxu0 0.0
    %1759 = vmatprep.subr.mxu0 0.0
    %1760 = vmatpush1.msra.mxu0 0.0
    %1761 = vmatprep.subr.mxu0 0.0
    %1762 = vmatpush1.msra.mxu0 0.0
    %1763 = vmatprep.subr.mxu0 0.0
    %1764 = vmatpush1.msra.mxu0 0.0
    %1765 = vmatprep.subr.mxu0 0.0
    %1766 = vmatpush1.msra.mxu0 0.0
    %1767 = vmatprep.subr.mxu0 0.0
    %1768 = vmatpush1.msra.mxu0 0.0
    %1769 = vmatprep.mubr.f32.mxu0 %v1360
    %1770 = vmatmul.mubr.f32.gmra.mrb[0].mxu0 %v1352
    %v1771 = vpop.f32.mrb[0].mxu0
    %v1772 = vadd.f32 %v1702, %v1771
    %v1773 = vpop.f32.mrb[0].mxu0
    %1774 = vdwg.mxu0
    %v1775 = vadd.f32 %v1772, 0.0
    %1777 = vrot.lane.b32.xlu0 %v1772, 112
    %v1778 = vpop.permute.xlu0 %1777
    %v1780 = vadd.f32 %v1775, %v1778
    %1781 = vrot.lane.b32.xlu0 %v1772, 96
    %v1782 = vpop.permute.xlu0 %1781
    %v1784 = vadd.f32 %v1780, %v1782
    %1785 = vrot.lane.b32.xlu0 %v1772, 80
    %v1786 = vpop.permute.xlu0 %1785
    %v1788 = vadd.f32 %v1784, %v1786
    %1790 = vrot.lane.b32.xlu0 %v1788, 16
    %v1791 = vpop.permute.xlu0 %1790
    %1793 = vrot.lane.b32.xlu0 %v1788, 32
    %v1794 = vpop.permute.xlu0 %1793
    %1796 = vrot.lane.b32.xlu0 %v1788, 48
    %v1797 = vpop.permute.xlu0 %1796
    %v1799 = vsel %vm906, %v1788, %v1791
    %v1800 = vsel %vm1527, %v1799, %v1794
    %v1801 = vsel %vm779, %v1800, %v1797
    %v1802 = vmul.f32 %v1801, 0.00073099416
    %v1803 = vadd.f32 %v1802, 1e-05
    %v1804 = vrsqrt.pop %v1803
    %v1805 = vlaneseq
    %v1806 = vshrl.u32 %v1805, 7
    %v1807 = vsub.s32 0, %v1806
    %v1808 = vrot.slane %v1804, %v1807
    %v1809 = vmul.f32 %v1535, %v1808
    %v1810 = vmul.f32 %v1536, %v1808
    %v1811 = vmul.f32 %v1537, %v1808
    %v1812 = vmul.f32 %v1538, %v1808
    %v1813 = vmul.f32 %v1539, %v1808
    %v1814 = vmul.f32 %v1540, %v1808
    %v1815 = vmul.f32 %v1541, %v1808
    %v1816 = vmul.f32 %v1542, %v1808
    %v1817 = vmul.f32 %v1543, %v1808
    %v1818 = vmul.f32 %v1544, %v1808
    %v1819 = vmul.f32 %v1545, %v1808
    %v1820 = vmul.f32 %v1546, %v1808
    %v1821 = vmul.f32 %v1547, %v1808
    %v1822 = vmul.f32 %v1548, %v1808
    %v1823 = vmul.f32 %v1549, %v1808
    %v1824 = vmul.f32 %v1550, %v1808
    %v1825 = vmul.f32 %v1551, %v1808
    %v1826 = vmul.f32 %v1552, %v1808
    %v1827 = vmul.f32 %v1553, %v1808
    %v1828 = vmul.f32 %v1554, %v1808
    %v1829 = vmul.f32 %v1555, %v1808
    %v1830 = vmul.f32 %v1556, %v1808
    %v1831 = vmul.f32 %v1557, %v1808
    %v1832 = vmul.f32 %v1558, %v1808
    %v1833 = vmul.f32 %v1559, %v1808
    %v1834 = vmul.f32 %v1560, %v1808
    %v1835 = vmul.f32 %v1561, %v1808
    %v1836 = vmul.f32 %v1562, %v1808
    %v1837 = vmul.f32 %v1563, %v1808
    %v1838 = vmul.f32 %v1564, %v1808
    %v1839 = vmul.f32 %v1565, %v1808
    %v1840 = vmul.f32 %v1566, %v1808
    %v1841 = vmul.f32 %v1567, %v1808
    %v1842 = vmul.f32 %v1568, %v1808
    %v1843 = vmul.f32 %v1569, %v1808
    %v1844 = vmul.f32 %v1570, %v1808
    %v1845 = vmul.f32 %v1571, %v1808
    %v1846 = vmul.f32 %v1572, %v1808
    %v1847 = vmul.f32 %v1573, %v1808
    %v1848 = vmul.f32 %v1574, %v1808
    %v1849 = vmul.f32 %v1575, %v1808
    %v1850 = vmul.f32 %v1576, %v1808
    %v1851 = vmul.f32 %v1577, %v1808
    %v1852 = vmul.f32 %v1578, %v1808
    %v1853 = vmul.f32 %v1579, %v1808
    %v1854 = vmul.f32 %v1580, %v1808
    %v1855 = vmul.f32 %v1581, %v1808
    %v1856 = vmul.f32 %v1582, %v1808
    %v1857 = vmul.f32 %v1583, %v1808
    %v1858 = vmul.f32 %v1584, %v1808
    %v1860 = vlaneseq
    %v1861 = vshrl.u32 %v1860, 7
    %v1862 = vsub.s32 0, %v1861
    %v1863 = vrot.slane %v1338, %v1862
    %v1865 = vmul.f32 %v1809, %v1863
    %v1866 = vmul.f32 %v1810, %v1863
    %v1867 = vmul.f32 %v1811, %v1863
    %v1868 = vmul.f32 %v1812, %v1863
    %v1869 = vmul.f32 %v1813, %v1863
    %v1870 = vmul.f32 %v1814, %v1863
    %v1871 = vmul.f32 %v1815, %v1863
    %v1872 = vmul.f32 %v1816, %v1863
    %v1873 = vmul.f32 %v1817, %v1863
    %v1874 = vmul.f32 %v1818, %v1863
    %v1875 = vmul.f32 %v1819, %v1863
    %v1876 = vmul.f32 %v1820, %v1863
    %v1877 = vmul.f32 %v1821, %v1863
    %v1878 = vmul.f32 %v1822, %v1863
    %v1879 = vmul.f32 %v1823, %v1863
    %v1880 = vmul.f32 %v1824, %v1863
    %v1881 = vmul.f32 %v1825, %v1863
    %v1882 = vmul.f32 %v1826, %v1863
    %v1883 = vmul.f32 %v1827, %v1863
    %v1884 = vmul.f32 %v1828, %v1863
    %v1885 = vmul.f32 %v1829, %v1863
    %v1886 = vmul.f32 %v1830, %v1863
    %v1887 = vmul.f32 %v1831, %v1863
    %v1888 = vmul.f32 %v1832, %v1863
    %v1889 = vmul.f32 %v1833, %v1863
    %v1890 = vmul.f32 %v1834, %v1863
    %v1891 = vmul.f32 %v1835, %v1863
    %v1892 = vmul.f32 %v1836, %v1863
    %v1893 = vmul.f32 %v1837, %v1863
    %v1894 = vmul.f32 %v1838, %v1863
    %v1895 = vmul.f32 %v1839, %v1863
    %v1896 = vmul.f32 %v1840, %v1863
    %v1897 = vmul.f32 %v1841, %v1863
    %v1898 = vmul.f32 %v1842, %v1863
    %v1899 = vmul.f32 %v1843, %v1863
    %v1900 = vmul.f32 %v1844, %v1863
    %v1901 = vmul.f32 %v1845, %v1863
    %v1902 = vmul.f32 %v1846, %v1863
    %v1903 = vmul.f32 %v1847, %v1863
    %v1904 = vmul.f32 %v1848, %v1863
    %v1905 = vmul.f32 %v1849, %v1863
    %v1906 = vmul.f32 %v1850, %v1863
    %v1907 = vmul.f32 %v1851, %v1863
    %v1908 = vmul.f32 %v1852, %v1863
    %v1909 = vmul.f32 %v1853, %v1863
    %v1910 = vmul.f32 %v1854, %v1863
    %v1911 = vmul.f32 %v1855, %v1863
    %v1912 = vmul.f32 %v1856, %v1863
    %v1913 = vmul.f32 %v1857, %v1863
    %v1914 = vmul.f32 %v1858, %v1863
    %v1916 = vlaneseq
    %v1917 = vshrl.u32 %v1916, 7
    %v1918 = vsub.s32 0, %v1917
    %v1919 = vrot.slane %v1339, %v1918
    %v1921 = vadd.f32 %v1865, %v1919
    %v1922 = vadd.f32 %v1866, %v1919
    %v1923 = vadd.f32 %v1867, %v1919
    %v1924 = vadd.f32 %v1868, %v1919
    %v1925 = vadd.f32 %v1869, %v1919
    %v1926 = vadd.f32 %v1870, %v1919
    %v1927 = vadd.f32 %v1871, %v1919
    %v1928 = vadd.f32 %v1872, %v1919
    %v1929 = vadd.f32 %v1873, %v1919
    %v1930 = vadd.f32 %v1874, %v1919
    %v1931 = vadd.f32 %v1875, %v1919
    %v1932 = vadd.f32 %v1876, %v1919
    %v1933 = vadd.f32 %v1877, %v1919
    %v1934 = vadd.f32 %v1878, %v1919
    %v1935 = vadd.f32 %v1879, %v1919
    %v1936 = vadd.f32 %v1880, %v1919
    %v1937 = vadd.f32 %v1881, %v1919
    %v1938 = vadd.f32 %v1882, %v1919
    %v1939 = vadd.f32 %v1883, %v1919
    %v1940 = vadd.f32 %v1884, %v1919
    %v1941 = vadd.f32 %v1885, %v1919
    %v1942 = vadd.f32 %v1886, %v1919
    %v1943 = vadd.f32 %v1887, %v1919
    %v1944 = vadd.f32 %v1888, %v1919
    %v1945 = vadd.f32 %v1889, %v1919
    %v1946 = vadd.f32 %v1890, %v1919
    %v1947 = vadd.f32 %v1891, %v1919
    %v1948 = vadd.f32 %v1892, %v1919
    %v1949 = vadd.f32 %v1893, %v1919
    %v1950 = vadd.f32 %v1894, %v1919
    %v1951 = vadd.f32 %v1895, %v1919
    %v1952 = vadd.f32 %v1896, %v1919
    %v1953 = vadd.f32 %v1897, %v1919
    %v1954 = vadd.f32 %v1898, %v1919
    %v1955 = vadd.f32 %v1899, %v1919
    %v1956 = vadd.f32 %v1900, %v1919
    %v1957 = vadd.f32 %v1901, %v1919
    %v1958 = vadd.f32 %v1902, %v1919
    %v1959 = vadd.f32 %v1903, %v1919
    %v1960 = vadd.f32 %v1904, %v1919
    %v1961 = vadd.f32 %v1905, %v1919
    %v1962 = vadd.f32 %v1906, %v1919
    %v1963 = vadd.f32 %v1907, %v1919
    %v1964 = vadd.f32 %v1908, %v1919
    %v1965 = vadd.f32 %v1909, %v1919
    %v1966 = vadd.f32 %v1910, %v1919
    %v1967 = vadd.f32 %v1911, %v1919
    %v1968 = vadd.f32 %v1912, %v1919
    %v1969 = vadd.f32 %v1913, %v1919
    %v1970 = vadd.f32 %v1914, %v1919
    %v1971 = vmax.f32 %v1921, 0.0
    %v1972 = vmax.f32 %v1922, 0.0
    %v1973 = vmax.f32 %v1923, 0.0
    %v1974 = vmax.f32 %v1924, 0.0
    %v1975 = vmax.f32 %v1925, 0.0
    %v1976 = vmax.f32 %v1926, 0.0
    %v1977 = vmax.f32 %v1927, 0.0
    %v1978 = vmax.f32 %v1928, 0.0
    %v1979 = vmax.f32 %v1929, 0.0
    %v1980 = vmax.f32 %v1930, 0.0
    %v1981 = vmax.f32 %v1931, 0.0
    %v1982 = vmax.f32 %v1932, 0.0
    %v1983 = vmax.f32 %v1933, 0.0
    %v1984 = vmax.f32 %v1934, 0.0
    %v1985 = vmax.f32 %v1935, 0.0
    %v1986 = vmax.f32 %v1936, 0.0
    %v1987 = vmax.f32 %v1937, 0.0
    %v1988 = vmax.f32 %v1938, 0.0
    %v1989 = vmax.f32 %v1939, 0.0
    %v1990 = vmax.f32 %v1940, 0.0
    %v1991 = vmax.f32 %v1941, 0.0
    %v1992 = vmax.f32 %v1942, 0.0
    %v1993 = vmax.f32 %v1943, 0.0
    %v1994 = vmax.f32 %v1944, 0.0
    %v1995 = vmax.f32 %v1945, 0.0
    %v1996 = vmax.f32 %v1946, 0.0
    %v1997 = vmax.f32 %v1947, 0.0
    %v1998 = vmax.f32 %v1948, 0.0
    %v1999 = vmax.f32 %v1949, 0.0
    %v2000 = vmax.f32 %v1950, 0.0
    %v2001 = vmax.f32 %v1951, 0.0
    %v2002 = vmax.f32 %v1952, 0.0
    %v2003 = vmax.f32 %v1953, 0.0
    %v2004 = vmax.f32 %v1954, 0.0
    %v2005 = vmax.f32 %v1955, 0.0
    %v2006 = vmax.f32 %v1956, 0.0
    %v2007 = vmax.f32 %v1957, 0.0
    %v2008 = vmax.f32 %v1958, 0.0
    %v2009 = vmax.f32 %v1959, 0.0
    %v2010 = vmax.f32 %v1960, 0.0
    %v2011 = vmax.f32 %v1961, 0.0
    %v2012 = vmax.f32 %v1962, 0.0
    %v2013 = vmax.f32 %v1963, 0.0
    %v2014 = vmax.f32 %v1964, 0.0
    %v2015 = vmax.f32 %v1965, 0.0
    %v2016 = vmax.f32 %v1966, 0.0
    %v2017 = vmax.f32 %v1967, 0.0
    %v2018 = vmax.f32 %v1968, 0.0
    %v2019 = vmax.f32 %v1969, 0.0
    %v2020 = vmax.f32 %v1970, 0.0
    %v2021 = vpack.c.bf16 %v1972, %v1971
    %v2022 = vpack.c.bf16 %v1974, %v1973
    %v2023 = vpack.c.bf16 %v1976, %v1975
    %v2024 = vpack.c.bf16 %v1978, %v1977
    %v2025 = vpack.c.bf16 %v1980, %v1979
    %v2026 = vpack.c.bf16 %v1982, %v1981
    %v2027 = vpack.c.bf16 %v1984, %v1983
    %v2028 = vpack.c.bf16 %v1986, %v1985
    %v2029 = vpack.c.bf16 %v1988, %v1987
    %v2030 = vpack.c.bf16 %v1990, %v1989
    %v2031 = vpack.c.bf16 %v1992, %v1991
    %v2032 = vpack.c.bf16 %v1994, %v1993
    %v2033 = vpack.c.bf16 %v1996, %v1995
    %v2034 = vpack.c.bf16 %v1998, %v1997
    %v2035 = vpack.c.bf16 %v2000, %v1999
    %v2036 = vpack.c.bf16 %v2002, %v2001
    %v2037 = vpack.c.bf16 %v2004, %v2003
    %v2038 = vpack.c.bf16 %v2006, %v2005
    %v2039 = vpack.c.bf16 %v2008, %v2007
    %v2040 = vpack.c.bf16 %v2010, %v2009
    %v2041 = vpack.c.bf16 %v2012, %v2011
    %v2042 = vpack.c.bf16 %v2014, %v2013
    %v2043 = vpack.c.bf16 %v2016, %v2015
    %v2044 = vpack.c.bf16 %v2018, %v2017
    %v2045 = vpack.c.bf16 %v2020, %v2019
    %2046 = vst.msk [vmem:[#allocation2] sm:$0xff] %vm1053, %v2021
    %2047 = vst.msk [vmem:[#allocation2 + $0x8] sm:$0xff] %vm1053, %v2022
    %2048 = vst.msk [vmem:[#allocation2 + $0x10] sm:$0xff] %vm1053, %v2023
    %2049 = vst.msk [vmem:[#allocation2 + $0x18] sm:$0xff] %vm1053, %v2024
    %2050 = vst.msk [vmem:[#allocation2 + $0x20] sm:$0xff] %vm1053, %v2025
    %2051 = vst.msk [vmem:[#allocation2 + $0x28] sm:$0xff] %vm1053, %v2026
    %2052 = vst.msk [vmem:[#allocation2 + $0x30] sm:$0xff] %vm1053, %v2027
    %2053 = vst.msk [vmem:[#allocation2 + $0x38] sm:$0xff] %vm1053, %v2028
    %2054 = vst.msk [vmem:[#allocation2 + $0x40] sm:$0xff] %vm1053, %v2029
    %2055 = vst.msk [vmem:[#allocation2 + $0x48] sm:$0xff] %vm1053, %v2030
    %2056 = vst.msk [vmem:[#allocation2 + $0x50] sm:$0xff] %vm1053, %v2031
    %2057 = vst.msk [vmem:[#allocation2 + $0x58] sm:$0xff] %vm1053, %v2032
    %2058 = vst.msk [vmem:[#allocation2 + $0x60] sm:$0xff] %vm1053, %v2033
    %2059 = vst.msk [vmem:[#allocation2 + $0x68] sm:$0xff] %vm1053, %v2034
    %2060 = vst.msk [vmem:[#allocation2 + $0x70] sm:$0xff] %vm1053, %v2035
    %2061 = vst.msk [vmem:[#allocation2 + $0x78] sm:$0xff] %vm1053, %v2036
    %2062 = vst.msk [vmem:[#allocation2 + $0x80] sm:$0xff] %vm1053, %v2037
    %2063 = vst.msk [vmem:[#allocation2 + $0x88] sm:$0xff] %vm1053, %v2038
    %2064 = vst.msk [vmem:[#allocation2 + $0x90] sm:$0xff] %vm1053, %v2039
    %2065 = vst.msk [vmem:[#allocation2 + $0x98] sm:$0xff] %vm1053, %v2040
    %2066 = vst.msk [vmem:[#allocation2 + $0xa0] sm:$0xff] %vm1053, %v2041
    %2067 = vst.msk [vmem:[#allocation2 + $0xa8] sm:$0xff] %vm1053, %v2042
    %2068 = vst.msk [vmem:[#allocation2 + $0xb0] sm:$0xff] %vm1053, %v2043
    %2069 = vst.msk [vmem:[#allocation2 + $0xb8] sm:$0xff] %vm1053, %v2044
    %2070 = vst.msk [vmem:[#allocation2 + $0xc0] sm:$0xff] %vm1053, %v2045
    %v2071 = vld [vmem:[#allocation2] sm:$0xff]
    %v2072 = vld [vmem:[#allocation2 + $0x8] sm:$0xff]
    %v2073 = vld [vmem:[#allocation2 + $0x10] sm:$0xff]
    %v2074 = vld [vmem:[#allocation2 + $0x18] sm:$0xff]
    %v2075 = vld [vmem:[#allocation2 + $0x20] sm:$0xff]
    %v2076 = vld [vmem:[#allocation2 + $0x28] sm:$0xff]
    %v2077 = vld [vmem:[#allocation2 + $0x30] sm:$0xff]
    %v2078 = vld [vmem:[#allocation2 + $0x38] sm:$0xff]
    %v2079 = vld [vmem:[#allocation2 + $0x40] sm:$0xff]
    %v2080 = vld [vmem:[#allocation2 + $0x48] sm:$0xff]
    %v2081 = vld [vmem:[#allocation2 + $0x50] sm:$0xff]
    %v2082 = vld [vmem:[#allocation2 + $0x58] sm:$0xff]
    %v2083 = vld [vmem:[#allocation2 + $0x60] sm:$0xff]
    %v2084 = vld [vmem:[#allocation2 + $0x68] sm:$0xff]
    %v2085 = vld [vmem:[#allocation2 + $0x70] sm:$0xff]
    %v2086 = vld [vmem:[#allocation2 + $0x78] sm:$0xff]
    %v2087 = vld [vmem:[#allocation2 + $0x80] sm:$0xff]
    %v2088 = vld [vmem:[#allocation2 + $0x88] sm:$0xff]
    %v2089 = vld [vmem:[#allocation2 + $0x90] sm:$0xff]
    %v2090 = vld [vmem:[#allocation2 + $0x98] sm:$0xff]
    %v2091 = vld [vmem:[#allocation2 + $0xa0] sm:$0xff]
    %v2092 = vld [vmem:[#allocation2 + $0xa8] sm:$0xf]
    %v2093 = vld [vmem:[#allocation2 + $0xa8] sm:$0x1f]
    %v2094 = vld [vmem:[#allocation2] sm:$0xfe]
    %v2095 = vld [vmem:[#allocation2 + $0x8] sm:$0xfc]
    %v2096 = vld [vmem:[#allocation2 + $0xa8] sm:$0xff]
    %v2097 = vld [vmem:[#allocation2 + $0xb0] sm:$0x3f]
    %v2098 = vld [vmem:[#allocation2 + $0xb0] sm:$0x7f]
    %v2099 = vld [vmem:[#allocation2 + $0x8] sm:$0xf8]
    %v2100 = vld [vmem:[#allocation2 + $0x10] sm:$0xf0]
    %v2101 = vld [vmem:[#allocation2 + $0xb0] sm:$0xff]
    %v2102 = vld [vmem:[#allocation2 + $0xb8] sm:$0xff]
    %v2103 = vld [vmem:[#allocation2 + $0xc0] sm:$0x1]
    %v2104 = vld [vmem:[#allocation2 + $0x10] sm:$0xe0]
    %v2106 = vshrl.u32 %v2071, 16
    %v2108 = vshll.u32 %v2071, 16
    %v2110 = vrot.slane %v2108, 1
    %v2111 = vor.u32 %v2106, %v2110
    %v2113 = vshll.u32 %v2072, 16
    %v2115 = vrot.slane %v2113, 1
    %v2116 = vsel %vm239, %v2111, %v2115
    %v2117 = vshrl.u32 %v2072, 16
    %v2119 = vor.u32 %v2117, %v2115
    %v2121 = vshll.u32 %v2073, 16
    %v2123 = vrot.slane %v2121, 1
    %v2124 = vsel %vm239, %v2119, %v2123
    %v2125 = vshrl.u32 %v2073, 16
    %v2127 = vor.u32 %v2125, %v2123
    %v2129 = vshll.u32 %v2074, 16
    %v2131 = vrot.slane %v2129, 1
    %v2132 = vsel %vm239, %v2127, %v2131
    %v2133 = vshrl.u32 %v2074, 16
    %v2135 = vor.u32 %v2133, %v2131
    %v2137 = vshll.u32 %v2075, 16
    %v2139 = vrot.slane %v2137, 1
    %v2140 = vsel %vm239, %v2135, %v2139
    %v2141 = vshrl.u32 %v2075, 16
    %v2143 = vor.u32 %v2141, %v2139
    %v2145 = vshll.u32 %v2076, 16
    %v2147 = vrot.slane %v2145, 1
    %v2148 = vsel %vm239, %v2143, %v2147
    %v2149 = vshrl.u32 %v2076, 16
    %v2151 = vor.u32 %v2149, %v2147
    %v2153 = vshll.u32 %v2077, 16
    %v2155 = vrot.slane %v2153, 1
    %v2156 = vsel %vm239, %v2151, %v2155
    %v2157 = vshrl.u32 %v2077, 16
    %v2159 = vor.u32 %v2157, %v2155
    %v2161 = vshll.u32 %v2078, 16
    %v2163 = vrot.slane %v2161, 1
    %v2164 = vsel %vm239, %v2159, %v2163
    %v2165 = vshrl.u32 %v2078, 16
    %v2167 = vor.u32 %v2165, %v2163
    %v2169 = vshll.u32 %v2079, 16
    %v2171 = vrot.slane %v2169, 1
    %v2172 = vsel %vm239, %v2167, %v2171
    %v2173 = vshrl.u32 %v2079, 16
    %v2175 = vor.u32 %v2173, %v2171
    %v2177 = vshll.u32 %v2080, 16
    %v2179 = vrot.slane %v2177, 1
    %v2180 = vsel %vm239, %v2175, %v2179
    %v2181 = vshrl.u32 %v2080, 16
    %v2183 = vor.u32 %v2181, %v2179
    %v2185 = vshll.u32 %v2081, 16
    %v2187 = vrot.slane %v2185, 1
    %v2188 = vsel %vm239, %v2183, %v2187
    %v2189 = vshrl.u32 %v2081, 16
    %v2191 = vor.u32 %v2189, %v2187
    %v2193 = vshll.u32 %v2082, 16
    %v2195 = vrot.slane %v2193, 1
    %v2196 = vsel %vm239, %v2191, %v2195
    %v2197 = vshrl.u32 %v2082, 16
    %v2199 = vor.u32 %v2197, %v2195
    %v2201 = vshll.u32 %v2083, 16
    %v2203 = vrot.slane %v2201, 1
    %v2204 = vsel %vm239, %v2199, %v2203
    %v2205 = vshrl.u32 %v2083, 16
    %v2207 = vor.u32 %v2205, %v2203
    %v2209 = vshll.u32 %v2084, 16
    %v2211 = vrot.slane %v2209, 1
    %v2212 = vsel %vm239, %v2207, %v2211
    %v2213 = vshrl.u32 %v2084, 16
    %v2215 = vor.u32 %v2213, %v2211
    %v2217 = vshll.u32 %v2085, 16
    %v2219 = vrot.slane %v2217, 1
    %v2220 = vsel %vm239, %v2215, %v2219
    %v2221 = vshrl.u32 %v2085, 16
    %v2223 = vor.u32 %v2221, %v2219
    %v2225 = vshll.u32 %v2086, 16
    %v2227 = vrot.slane %v2225, 1
    %v2228 = vsel %vm239, %v2223, %v2227
    %v2229 = vshrl.u32 %v2086, 16
    %v2231 = vor.u32 %v2229, %v2227
    %v2233 = vshll.u32 %v2087, 16
    %v2235 = vrot.slane %v2233, 1
    %v2236 = vsel %vm239, %v2231, %v2235
    %v2237 = vshrl.u32 %v2087, 16
    %v2239 = vor.u32 %v2237, %v2235
    %v2241 = vshll.u32 %v2088, 16
    %v2243 = vrot.slane %v2241, 1
    %v2244 = vsel %vm239, %v2239, %v2243
    %v2245 = vshrl.u32 %v2088, 16
    %v2247 = vor.u32 %v2245, %v2243
    %v2249 = vshll.u32 %v2089, 16
    %v2251 = vrot.slane %v2249, 1
    %v2252 = vsel %vm239, %v2247, %v2251
    %v2253 = vshrl.u32 %v2089, 16
    %v2255 = vor.u32 %v2253, %v2251
    %v2257 = vshll.u32 %v2090, 16
    %v2259 = vrot.slane %v2257, 1
    %v2260 = vsel %vm239, %v2255, %v2259
    %v2261 = vshrl.u32 %v2090, 16
    %v2263 = vor.u32 %v2261, %v2259
    %v2265 = vshll.u32 %v2091, 16
    %v2267 = vrot.slane %v2265, 1
    %v2268 = vsel %vm239, %v2263, %v2267
    %v2269 = vshrl.u32 %v2091, 16
    %v2271 = vor.u32 %v2269, %v2267
    %v2273 = vshll.u32 %v2093, 16
    %v2275 = vrot.slane %v2273, 1
    %v2276 = vsel %vm239, %v2271, %v2275
    %v2277 = vshrl.u32 %v2093, 16
    %v2279 = vor.u32 %v2277, %v2275
    %2280 = vrot.lane.b32.xlu0 %v2116, 64
    %v2281 = vpop.permute.xlu0 %2280
    %2282 = vrot.lane.b32.xlu0 %v2124, 64
    %v2283 = vpop.permute.xlu0 %2282
    %2284 = vrot.lane.b32.xlu0 %v2132, 64
    %v2285 = vpop.permute.xlu0 %2284
    %2286 = vrot.lane.b32.xlu0 %v2140, 64
    %v2287 = vpop.permute.xlu0 %2286
    %2288 = vrot.lane.b32.xlu0 %v2148, 64
    %v2289 = vpop.permute.xlu0 %2288
    %2290 = vrot.lane.b32.xlu0 %v2156, 64
    %v2291 = vpop.permute.xlu0 %2290
    %2292 = vrot.lane.b32.xlu0 %v2164, 64
    %v2293 = vpop.permute.xlu0 %2292
    %2294 = vrot.lane.b32.xlu0 %v2172, 64
    %v2295 = vpop.permute.xlu0 %2294
    %2296 = vrot.lane.b32.xlu0 %v2180, 64
    %v2297 = vpop.permute.xlu0 %2296
    %2298 = vrot.lane.b32.xlu0 %v2188, 64
    %v2299 = vpop.permute.xlu0 %2298
    %2300 = vrot.lane.b32.xlu0 %v2196, 64
    %v2301 = vpop.permute.xlu0 %2300
    %2302 = vrot.lane.b32.xlu0 %v2204, 64
    %v2303 = vpop.permute.xlu0 %2302
    %2304 = vrot.lane.b32.xlu0 %v2212, 64
    %v2305 = vpop.permute.xlu0 %2304
    %2306 = vrot.lane.b32.xlu0 %v2220, 64
    %v2307 = vpop.permute.xlu0 %2306
    %2308 = vrot.lane.b32.xlu0 %v2228, 64
    %v2309 = vpop.permute.xlu0 %2308
    %2310 = vrot.lane.b32.xlu0 %v2236, 64
    %v2311 = vpop.permute.xlu0 %2310
    %2312 = vrot.lane.b32.xlu0 %v2244, 64
    %v2313 = vpop.permute.xlu0 %2312
    %2314 = vrot.lane.b32.xlu0 %v2252, 64
    %v2315 = vpop.permute.xlu0 %2314
    %2316 = vrot.lane.b32.xlu0 %v2260, 64
    %v2317 = vpop.permute.xlu0 %2316
    %2318 = vrot.lane.b32.xlu0 %v2268, 64
    %v2319 = vpop.permute.xlu0 %2318
    %2320 = vrot.lane.b32.xlu0 %v2276, 64
    %v2321 = vpop.permute.xlu0 %2320
    %2322 = vrot.lane.b32.xlu0 %v2279, 64
    %v2323 = vpop.permute.xlu0 %2322
    %vm2346 = vcmask 1046528
    %v2347 = vrot.slane %v2094, 1
    %v2348 = vrot.slane %v2072, 1
    %v2349 = vsel %vm2346, %v2347, %v2348
    %v2350 = vrot.slane %v2073, 1
    %v2351 = vsel %vm2346, %v2348, %v2350
    %v2352 = vrot.slane %v2074, 1
    %v2353 = vsel %vm2346, %v2350, %v2352
    %v2354 = vrot.slane %v2075, 1
    %v2355 = vsel %vm2346, %v2352, %v2354
    %v2356 = vrot.slane %v2076, 1
    %v2357 = vsel %vm2346, %v2354, %v2356
    %v2358 = vrot.slane %v2077, 1
    %v2359 = vsel %vm2346, %v2356, %v2358
    %v2360 = vrot.slane %v2078, 1
    %v2361 = vsel %vm2346, %v2358, %v2360
    %v2362 = vrot.slane %v2079, 1
    %v2363 = vsel %vm2346, %v2360, %v2362
    %v2364 = vrot.slane %v2080, 1
    %v2365 = vsel %vm2346, %v2362, %v2364
    %v2366 = vrot.slane %v2081, 1
    %v2367 = vsel %vm2346, %v2364, %v2366
    %v2368 = vrot.slane %v2082, 1
    %v2369 = vsel %vm2346, %v2366, %v2368
    %v2370 = vrot.slane %v2083, 1
    %v2371 = vsel %vm2346, %v2368, %v2370
    %v2372 = vrot.slane %v2084, 1
    %v2373 = vsel %vm2346, %v2370, %v2372
    %v2374 = vrot.slane %v2085, 1
    %v2375 = vsel %vm2346, %v2372, %v2374
    %v2376 = vrot.slane %v2086, 1
    %v2377 = vsel %vm2346, %v2374, %v2376
    %v2378 = vrot.slane %v2087, 1
    %v2379 = vsel %vm2346, %v2376, %v2378
    %v2380 = vrot.slane %v2088, 1
    %v2381 = vsel %vm2346, %v2378, %v2380
    %v2382 = vrot.slane %v2089, 1
    %v2383 = vsel %vm2346, %v2380, %v2382
    %v2384 = vrot.slane %v2090, 1
    %v2385 = vsel %vm2346, %v2382, %v2384
    %v2386 = vrot.slane %v2091, 1
    %v2387 = vsel %vm2346, %v2384, %v2386
    %v2388 = vrot.slane %v2093, 1
    %v2389 = vsel %vm2346, %v2386, %v2388
    %v2393 = vrot.slane %v2095, 2
    %v2394 = vrot.slane %v2073, 2
    %v2395 = vsel %vm505, %v2393, %v2394
    %v2396 = vrot.slane %v2074, 2
    %v2397 = vsel %vm505, %v2394, %v2396
    %v2398 = vrot.slane %v2075, 2
    %v2399 = vsel %vm505, %v2396, %v2398
    %v2400 = vrot.slane %v2076, 2
    %v2401 = vsel %vm505, %v2398, %v2400
    %v2402 = vrot.slane %v2077, 2
    %v2403 = vsel %vm505, %v2400, %v2402
    %v2404 = vrot.slane %v2078, 2
    %v2405 = vsel %vm505, %v2402, %v2404
    %v2406 = vrot.slane %v2079, 2
    %v2407 = vsel %vm505, %v2404, %v2406
    %v2408 = vrot.slane %v2080, 2
    %v2409 = vsel %vm505, %v2406, %v2408
    %v2410 = vrot.slane %v2081, 2
    %v2411 = vsel %vm505, %v2408, %v2410
    %v2412 = vrot.slane %v2082, 2
    %v2413 = vsel %vm505, %v2410, %v2412
    %v2414 = vrot.slane %v2083, 2
    %v2415 = vsel %vm505, %v2412, %v2414
    %v2416 = vrot.slane %v2084, 2
    %v2417 = vsel %vm505, %v2414, %v2416
    %v2418 = vrot.slane %v2085, 2
    %v2419 = vsel %vm505, %v2416, %v2418
    %v2420 = vrot.slane %v2086, 2
    %v2421 = vsel %vm505, %v2418, %v2420
    %v2422 = vrot.slane %v2087, 2
    %v2423 = vsel %vm505, %v2420, %v2422
    %v2424 = vrot.slane %v2088, 2
    %v2425 = vsel %vm505, %v2422, %v2424
    %v2426 = vrot.slane %v2089, 2
    %v2427 = vsel %vm505, %v2424, %v2426
    %v2428 = vrot.slane %v2090, 2
    %v2429 = vsel %vm505, %v2426, %v2428
    %v2430 = vrot.slane %v2091, 2
    %v2431 = vsel %vm505, %v2428, %v2430
    %v2432 = vrot.slane %v2096, 2
    %v2433 = vsel %vm505, %v2430, %v2432
    %v2434 = vrot.slane %v2097, 2
    %v2435 = vsel %vm505, %v2432, %v2434
    %2436 = vrot.lane.b32.xlu0 %v2395, 64
    %v2437 = vpop.permute.xlu0 %2436
    %2438 = vrot.lane.b32.xlu0 %v2397, 64
    %v2439 = vpop.permute.xlu0 %2438
    %2440 = vrot.lane.b32.xlu0 %v2399, 64
    %v2441 = vpop.permute.xlu0 %2440
    %2442 = vrot.lane.b32.xlu0 %v2401, 64
    %v2443 = vpop.permute.xlu0 %2442
    %2444 = vrot.lane.b32.xlu0 %v2403, 64
    %v2445 = vpop.permute.xlu0 %2444
    %2446 = vrot.lane.b32.xlu0 %v2405, 64
    %v2447 = vpop.permute.xlu0 %2446
    %2448 = vrot.lane.b32.xlu0 %v2407, 64
    %v2449 = vpop.permute.xlu0 %2448
    %2450 = vrot.lane.b32.xlu0 %v2409, 64
    %v2451 = vpop.permute.xlu0 %2450
    %2452 = vrot.lane.b32.xlu0 %v2411, 64
    %v2453 = vpop.permute.xlu0 %2452
    %2454 = vrot.lane.b32.xlu0 %v2413, 64
    %v2455 = vpop.permute.xlu0 %2454
    %2456 = vrot.lane.b32.xlu0 %v2415, 64
    %v2457 = vpop.permute.xlu0 %2456
    %2458 = vrot.lane.b32.xlu0 %v2417, 64
    %v2459 = vpop.permute.xlu0 %2458
    %2460 = vrot.lane.b32.xlu0 %v2419, 64
    %v2461 = vpop.permute.xlu0 %2460
    %2462 = vrot.lane.b32.xlu0 %v2421, 64
    %v2463 = vpop.permute.xlu0 %2462
    %2464 = vrot.lane.b32.xlu0 %v2423, 64
    %v2465 = vpop.permute.xlu0 %2464
    %2466 = vrot.lane.b32.xlu0 %v2425, 64
    %v2467 = vpop.permute.xlu0 %2466
    %2468 = vrot.lane.b32.xlu0 %v2427, 64
    %v2469 = vpop.permute.xlu0 %2468
    %2470 = vrot.lane.b32.xlu0 %v2429, 64
    %v2471 = vpop.permute.xlu0 %2470
    %2472 = vrot.lane.b32.xlu0 %v2431, 64
    %v2473 = vpop.permute.xlu0 %2472
    %2474 = vrot.lane.b32.xlu0 %v2433, 64
    %v2475 = vpop.permute.xlu0 %2474
    %2476 = vrot.lane.b32.xlu0 %v2435, 64
    %v2477 = vpop.permute.xlu0 %2476
    %2478 = vrot.lane.b32.xlu0 %v2434, 64
    %v2479 = vpop.permute.xlu0 %2478
    %v2481 = vshrl.u32 %v2095, 16
    %v2483 = vrot.slane %v2481, 2
    %v2484 = vshll.u32 %v2095, 16
    %v2486 = vrot.slane %v2484, 3
    %v2487 = vor.u32 %v2483, %v2486
    %v2488 = vrot.slane %v2125, 2
    %v2489 = vrot.slane %v2121, 3
    %v2490 = vor.u32 %v2488, %v2489
    %v2491 = vsel %vm610, %v2487, %v2490
    %v2492 = vrot.slane %v2133, 2
    %v2493 = vrot.slane %v2129, 3
    %v2494 = vor.u32 %v2492, %v2493
    %v2495 = vsel %vm610, %v2490, %v2494
    %v2496 = vrot.slane %v2141, 2
    %v2497 = vrot.slane %v2137, 3
    %v2498 = vor.u32 %v2496, %v2497
    %v2499 = vsel %vm610, %v2494, %v2498
    %v2500 = vrot.slane %v2149, 2
    %v2501 = vrot.slane %v2145, 3
    %v2502 = vor.u32 %v2500, %v2501
    %v2503 = vsel %vm610, %v2498, %v2502
    %v2504 = vrot.slane %v2157, 2
    %v2505 = vrot.slane %v2153, 3
    %v2506 = vor.u32 %v2504, %v2505
    %v2507 = vsel %vm610, %v2502, %v2506
    %v2508 = vrot.slane %v2165, 2
    %v2509 = vrot.slane %v2161, 3
    %v2510 = vor.u32 %v2508, %v2509
    %v2511 = vsel %vm610, %v2506, %v2510
    %v2512 = vrot.slane %v2173, 2
    %v2513 = vrot.slane %v2169, 3
    %v2514 = vor.u32 %v2512, %v2513
    %v2515 = vsel %vm610, %v2510, %v2514
    %v2516 = vrot.slane %v2181, 2
    %v2517 = vrot.slane %v2177, 3
    %v2518 = vor.u32 %v2516, %v2517
    %v2519 = vsel %vm610, %v2514, %v2518
    %v2520 = vrot.slane %v2189, 2
    %v2521 = vrot.slane %v2185, 3
    %v2522 = vor.u32 %v2520, %v2521
    %v2523 = vsel %vm610, %v2518, %v2522
    %v2524 = vrot.slane %v2197, 2
    %v2525 = vrot.slane %v2193, 3
    %v2526 = vor.u32 %v2524, %v2525
    %v2527 = vsel %vm610, %v2522, %v2526
    %v2528 = vrot.slane %v2205, 2
    %v2529 = vrot.slane %v2201, 3
    %v2530 = vor.u32 %v2528, %v2529
    %v2531 = vsel %vm610, %v2526, %v2530
    %v2532 = vrot.slane %v2213, 2
    %v2533 = vrot.slane %v2209, 3
    %v2534 = vor.u32 %v2532, %v2533
    %v2535 = vsel %vm610, %v2530, %v2534
    %v2536 = vrot.slane %v2221, 2
    %v2537 = vrot.slane %v2217, 3
    %v2538 = vor.u32 %v2536, %v2537
    %v2539 = vsel %vm610, %v2534, %v2538
    %v2540 = vrot.slane %v2229, 2
    %v2541 = vrot.slane %v2225, 3
    %v2542 = vor.u32 %v2540, %v2541
    %v2543 = vsel %vm610, %v2538, %v2542
    %v2544 = vrot.slane %v2237, 2
    %v2545 = vrot.slane %v2233, 3
    %v2546 = vor.u32 %v2544, %v2545
    %v2547 = vsel %vm610, %v2542, %v2546
    %v2548 = vrot.slane %v2245, 2
    %v2549 = vrot.slane %v2241, 3
    %v2550 = vor.u32 %v2548, %v2549
    %v2551 = vsel %vm610, %v2546, %v2550
    %v2552 = vrot.slane %v2253, 2
    %v2553 = vrot.slane %v2249, 3
    %v2554 = vor.u32 %v2552, %v2553
    %v2555 = vsel %vm610, %v2550, %v2554
    %v2556 = vrot.slane %v2261, 2
    %v2557 = vrot.slane %v2257, 3
    %v2558 = vor.u32 %v2556, %v2557
    %v2559 = vsel %vm610, %v2554, %v2558
    %v2560 = vrot.slane %v2269, 2
    %v2561 = vrot.slane %v2265, 3
    %v2562 = vor.u32 %v2560, %v2561
    %v2563 = vsel %vm610, %v2558, %v2562
    %v2565 = vshrl.u32 %v2096, 16
    %v2567 = vrot.slane %v2565, 2
    %v2568 = vshll.u32 %v2096, 16
    %v2570 = vrot.slane %v2568, 3
    %v2571 = vor.u32 %v2567, %v2570
    %v2572 = vsel %vm610, %v2562, %v2571
    %v2574 = vshrl.u32 %v2098, 16
    %v2576 = vrot.slane %v2574, 2
    %v2577 = vshll.u32 %v2098, 16
    %v2579 = vrot.slane %v2577, 3
    %v2580 = vor.u32 %v2576, %v2579
    %v2581 = vsel %vm610, %v2571, %v2580
    %vm2584 = vcmask 1044480
    %v2585 = vrot.slane %v2099, 3
    %v2586 = vrot.slane %v2073, 3
    %v2587 = vsel %vm2584, %v2585, %v2586
    %v2588 = vrot.slane %v2074, 3
    %v2589 = vsel %vm2584, %v2586, %v2588
    %v2590 = vrot.slane %v2075, 3
    %v2591 = vsel %vm2584, %v2588, %v2590
    %v2592 = vrot.slane %v2076, 3
    %v2593 = vsel %vm2584, %v2590, %v2592
    %v2594 = vrot.slane %v2077, 3
    %v2595 = vsel %vm2584, %v2592, %v2594
    %v2596 = vrot.slane %v2078, 3
    %v2597 = vsel %vm2584, %v2594, %v2596
    %v2598 = vrot.slane %v2079, 3
    %v2599 = vsel %vm2584, %v2596, %v2598
    %v2600 = vrot.slane %v2080, 3
    %v2601 = vsel %vm2584, %v2598, %v2600
    %v2602 = vrot.slane %v2081, 3
    %v2603 = vsel %vm2584, %v2600, %v2602
    %v2604 = vrot.slane %v2082, 3
    %v2605 = vsel %vm2584, %v2602, %v2604
    %v2606 = vrot.slane %v2083, 3
    %v2607 = vsel %vm2584, %v2604, %v2606
    %v2608 = vrot.slane %v2084, 3
    %v2609 = vsel %vm2584, %v2606, %v2608
    %v2610 = vrot.slane %v2085, 3
    %v2611 = vsel %vm2584, %v2608, %v2610
    %v2612 = vrot.slane %v2086, 3
    %v2613 = vsel %vm2584, %v2610, %v2612
    %v2614 = vrot.slane %v2087, 3
    %v2615 = vsel %vm2584, %v2612, %v2614
    %v2616 = vrot.slane %v2088, 3
    %v2617 = vsel %vm2584, %v2614, %v2616
    %v2618 = vrot.slane %v2089, 3
    %v2619 = vsel %vm2584, %v2616, %v2618
    %v2620 = vrot.slane %v2090, 3
    %v2621 = vsel %vm2584, %v2618, %v2620
    %v2622 = vrot.slane %v2091, 3
    %v2623 = vsel %vm2584, %v2620, %v2622
    %v2624 = vrot.slane %v2096, 3
    %v2625 = vsel %vm2584, %v2622, %v2624
    %v2626 = vrot.slane %v2098, 3
    %v2627 = vsel %vm2584, %v2624, %v2626
    %2628 = vrot.lane.b32.xlu0 %v2587, 64
    %v2629 = vpop.permute.xlu0 %2628
    %2630 = vrot.lane.b32.xlu0 %v2589, 64
    %v2631 = vpop.permute.xlu0 %2630
    %2632 = vrot.lane.b32.xlu0 %v2591, 64
    %v2633 = vpop.permute.xlu0 %2632
    %2634 = vrot.lane.b32.xlu0 %v2593, 64
    %v2635 = vpop.permute.xlu0 %2634
    %2636 = vrot.lane.b32.xlu0 %v2595, 64
    %v2637 = vpop.permute.xlu0 %2636
    %2638 = vrot.lane.b32.xlu0 %v2597, 64
    %v2639 = vpop.permute.xlu0 %2638
    %2640 = vrot.lane.b32.xlu0 %v2599, 64
    %v2641 = vpop.permute.xlu0 %2640
    %2642 = vrot.lane.b32.xlu0 %v2601, 64
    %v2643 = vpop.permute.xlu0 %2642
    %2644 = vrot.lane.b32.xlu0 %v2603, 64
    %v2645 = vpop.permute.xlu0 %2644
    %2646 = vrot.lane.b32.xlu0 %v2605, 64
    %v2647 = vpop.permute.xlu0 %2646
    %2648 = vrot.lane.b32.xlu0 %v2607, 64
    %v2649 = vpop.permute.xlu0 %2648
    %2650 = vrot.lane.b32.xlu0 %v2609, 64
    %v2651 = vpop.permute.xlu0 %2650
    %2652 = vrot.lane.b32.xlu0 %v2611, 64
    %v2653 = vpop.permute.xlu0 %2652
    %2654 = vrot.lane.b32.xlu0 %v2613, 64
    %v2655 = vpop.permute.xlu0 %2654
    %2656 = vrot.lane.b32.xlu0 %v2615, 64
    %v2657 = vpop.permute.xlu0 %2656
    %2658 = vrot.lane.b32.xlu0 %v2617, 64
    %v2659 = vpop.permute.xlu0 %2658
    %2660 = vrot.lane.b32.xlu0 %v2619, 64
    %v2661 = vpop.permute.xlu0 %2660
    %2662 = vrot.lane.b32.xlu0 %v2621, 64
    %v2663 = vpop.permute.xlu0 %2662
    %2664 = vrot.lane.b32.xlu0 %v2623, 64
    %v2665 = vpop.permute.xlu0 %2664
    %2666 = vrot.lane.b32.xlu0 %v2625, 64
    %v2667 = vpop.permute.xlu0 %2666
    %2668 = vrot.lane.b32.xlu0 %v2627, 64
    %v2669 = vpop.permute.xlu0 %2668
    %2670 = vrot.lane.b32.xlu0 %v2626, 64
    %v2671 = vpop.permute.xlu0 %2670
    %vm2675 = vcmask 1043456
    %v2676 = vrot.slane %v2100, 4
    %v2677 = vrot.slane %v2074, 4
    %v2678 = vsel %vm2675, %v2676, %v2677
    %v2679 = vrot.slane %v2075, 4
    %v2680 = vsel %vm2675, %v2677, %v2679
    %v2681 = vrot.slane %v2076, 4
    %v2682 = vsel %vm2675, %v2679, %v2681
    %v2683 = vrot.slane %v2077, 4
    %v2684 = vsel %vm2675, %v2681, %v2683
    %v2685 = vrot.slane %v2078, 4
    %v2686 = vsel %vm2675, %v2683, %v2685
    %v2687 = vrot.slane %v2079, 4
    %v2688 = vsel %vm2675, %v2685, %v2687
    %v2689 = vrot.slane %v2080, 4
    %v2690 = vsel %vm2675, %v2687, %v2689
    %v2691 = vrot.slane %v2081, 4
    %v2692 = vsel %vm2675, %v2689, %v2691
    %v2693 = vrot.slane %v2082, 4
    %v2694 = vsel %vm2675, %v2691, %v2693
    %v2695 = vrot.slane %v2083, 4
    %v2696 = vsel %vm2675, %v2693, %v2695
    %v2697 = vrot.slane %v2084, 4
    %v2698 = vsel %vm2675, %v2695, %v2697
    %v2699 = vrot.slane %v2085, 4
    %v2700 = vsel %vm2675, %v2697, %v2699
    %v2701 = vrot.slane %v2086, 4
    %v2702 = vsel %vm2675, %v2699, %v2701
    %v2703 = vrot.slane %v2087, 4
    %v2704 = vsel %vm2675, %v2701, %v2703
    %v2705 = vrot.slane %v2088, 4
    %v2706 = vsel %vm2675, %v2703, %v2705
    %v2707 = vrot.slane %v2089, 4
    %v2708 = vsel %vm2675, %v2705, %v2707
    %v2709 = vrot.slane %v2090, 4
    %v2710 = vsel %vm2675, %v2707, %v2709
    %v2711 = vrot.slane %v2091, 4
    %v2712 = vsel %vm2675, %v2709, %v2711
    %v2713 = vrot.slane %v2096, 4
    %v2714 = vsel %vm2675, %v2711, %v2713
    %v2715 = vrot.slane %v2101, 4
    %v2716 = vsel %vm2675, %v2713, %v2715
    %v2717 = vrot.slane %v2102, 4
    %v2718 = vsel %vm2675, %v2715, %v2717
    %vm2719 = vsmask.f32 3328
    %v2721 = vshrl.u32 %v2100, 16
    %v2723 = vrot.slane %v2721, 4
    %v2724 = vshll.u32 %v2100, 16
    %v2726 = vrot.slane %v2724, 5
    %v2727 = vor.u32 %v2723, %v2726
    %v2728 = vrot.slane %v2133, 4
    %v2729 = vrot.slane %v2129, 5
    %v2730 = vor.u32 %v2728, %v2729
    %v2731 = vsel %vm2719, %v2727, %v2730
    %v2732 = vrot.slane %v2141, 4
    %v2733 = vrot.slane %v2137, 5
    %v2734 = vor.u32 %v2732, %v2733
    %v2735 = vsel %vm2719, %v2730, %v2734
    %v2736 = vrot.slane %v2149, 4
    %v2737 = vrot.slane %v2145, 5
    %v2738 = vor.u32 %v2736, %v2737
    %v2739 = vsel %vm2719, %v2734, %v2738
    %v2740 = vrot.slane %v2157, 4
    %v2741 = vrot.slane %v2153, 5
    %v2742 = vor.u32 %v2740, %v2741
    %v2743 = vsel %vm2719, %v2738, %v2742
    %v2744 = vrot.slane %v2165, 4
    %v2745 = vrot.slane %v2161, 5
    %v2746 = vor.u32 %v2744, %v2745
    %v2747 = vsel %vm2719, %v2742, %v2746
    %v2748 = vrot.slane %v2173, 4
    %v2749 = vrot.slane %v2169, 5
    %v2750 = vor.u32 %v2748, %v2749
    %v2751 = vsel %vm2719, %v2746, %v2750
    %v2752 = vrot.slane %v2181, 4
    %v2753 = vrot.slane %v2177, 5
    %v2754 = vor.u32 %v2752, %v2753
    %v2755 = vsel %vm2719, %v2750, %v2754
    %v2756 = vrot.slane %v2189, 4
    %v2757 = vrot.slane %v2185, 5
    %v2758 = vor.u32 %v2756, %v2757
    %v2759 = vsel %vm2719, %v2754, %v2758
    %v2760 = vrot.slane %v2197, 4
    %v2761 = vrot.slane %v2193, 5
    %v2762 = vor.u32 %v2760, %v2761
    %v2763 = vsel %vm2719, %v2758, %v2762
    %v2764 = vrot.slane %v2205, 4
    %v2765 = vrot.slane %v2201, 5
    %v2766 = vor.u32 %v2764, %v2765
    %v2767 = vsel %vm2719, %v2762, %v2766
    %v2768 = vrot.slane %v2213, 4
    %v2769 = vrot.slane %v2209, 5
    %v2770 = vor.u32 %v2768, %v2769
    %v2771 = vsel %vm2719, %v2766, %v2770
    %v2772 = vrot.slane %v2221, 4
    %v2773 = vrot.slane %v2217, 5
    %v2774 = vor.u32 %v2772, %v2773
    %v2775 = vsel %vm2719, %v2770, %v2774
    %v2776 = vrot.slane %v2229, 4
    %v2777 = vrot.slane %v2225, 5
    %v2778 = vor.u32 %v2776, %v2777
    %v2779 = vsel %vm2719, %v2774, %v2778
    %v2780 = vrot.slane %v2237, 4
    %v2781 = vrot.slane %v2233, 5
    %v2782 = vor.u32 %v2780, %v2781
    %v2783 = vsel %vm2719, %v2778, %v2782
    %v2784 = vrot.slane %v2245, 4
    %v2785 = vrot.slane %v2241, 5
    %v2786 = vor.u32 %v2784, %v2785
    %v2787 = vsel %vm2719, %v2782, %v2786
    %v2788 = vrot.slane %v2253, 4
    %v2789 = vrot.slane %v2249, 5
    %v2790 = vor.u32 %v2788, %v2789
    %v2791 = vsel %vm2719, %v2786, %v2790
    %v2792 = vrot.slane %v2261, 4
    %v2793 = vrot.slane %v2257, 5
    %v2794 = vor.u32 %v2792, %v2793
    %v2795 = vsel %vm2719, %v2790, %v2794
    %v2796 = vrot.slane %v2269, 4
    %v2797 = vrot.slane %v2265, 5
    %v2798 = vor.u32 %v2796, %v2797
    %v2799 = vsel %vm2719, %v2794, %v2798
    %v2800 = vrot.slane %v2565, 4
    %v2801 = vrot.slane %v2568, 5
    %v2802 = vor.u32 %v2800, %v2801
    %v2803 = vsel %vm2719, %v2798, %v2802
    %v2805 = vshrl.u32 %v2101, 16
    %v2807 = vrot.slane %v2805, 4
    %v2808 = vshll.u32 %v2101, 16
    %v2810 = vrot.slane %v2808, 5
    %v2811 = vor.u32 %v2807, %v2810
    %v2812 = vsel %vm2719, %v2802, %v2811
    %v2814 = vshrl.u32 %v2102, 16
    %v2816 = vrot.slane %v2814, 4
    %v2817 = vshll.u32 %v2102, 16
    %v2819 = vrot.slane %v2817, 5
    %v2820 = vor.u32 %v2816, %v2819
    %v2821 = vsel %vm2719, %v2811, %v2820
    %v2823 = vshll.u32 %v2103, 16
    %v2825 = vrot.slane %v2823, 5
    %v2826 = vsel %vm2719, %v2820, %v2825
    %2827 = vrot.lane.b32.xlu0 %v2731, 64
    %v2828 = vpop.permute.xlu0 %2827
    %2829 = vrot.lane.b32.xlu0 %v2735, 64
    %v2830 = vpop.permute.xlu0 %2829
    %2831 = vrot.lane.b32.xlu0 %v2739, 64
    %v2832 = vpop.permute.xlu0 %2831
    %2833 = vrot.lane.b32.xlu0 %v2743, 64
    %v2834 = vpop.permute.xlu0 %2833
    %2835 = vrot.lane.b32.xlu0 %v2747, 64
    %v2836 = vpop.permute.xlu0 %2835
    %2837 = vrot.lane.b32.xlu0 %v2751, 64
    %v2838 = vpop.permute.xlu0 %2837
    %2839 = vrot.lane.b32.xlu0 %v2755, 64
    %v2840 = vpop.permute.xlu0 %2839
    %2841 = vrot.lane.b32.xlu0 %v2759, 64
    %v2842 = vpop.permute.xlu0 %2841
    %2843 = vrot.lane.b32.xlu0 %v2763, 64
    %v2844 = vpop.permute.xlu0 %2843
    %2845 = vrot.lane.b32.xlu0 %v2767, 64
    %v2846 = vpop.permute.xlu0 %2845
    %2847 = vrot.lane.b32.xlu0 %v2771, 64
    %v2848 = vpop.permute.xlu0 %2847
    %2849 = vrot.lane.b32.xlu0 %v2775, 64
    %v2850 = vpop.permute.xlu0 %2849
    %2851 = vrot.lane.b32.xlu0 %v2779, 64
    %v2852 = vpop.permute.xlu0 %2851
    %2853 = vrot.lane.b32.xlu0 %v2783, 64
    %v2854 = vpop.permute.xlu0 %2853
    %2855 = vrot.lane.b32.xlu0 %v2787, 64
    %v2856 = vpop.permute.xlu0 %2855
    %2857 = vrot.lane.b32.xlu0 %v2791, 64
    %v2858 = vpop.permute.xlu0 %2857
    %2859 = vrot.lane.b32.xlu0 %v2795, 64
    %v2860 = vpop.permute.xlu0 %2859
    %2861 = vrot.lane.b32.xlu0 %v2799, 64
    %v2862 = vpop.permute.xlu0 %2861
    %2863 = vrot.lane.b32.xlu0 %v2803, 64
    %v2864 = vpop.permute.xlu0 %2863
    %2865 = vrot.lane.b32.xlu0 %v2812, 64
    %v2866 = vpop.permute.xlu0 %2865
    %2867 = vrot.lane.b32.xlu0 %v2821, 64
    %v2868 = vpop.permute.xlu0 %2867
    %2869 = vrot.lane.b32.xlu0 %v2826, 64
    %v2870 = vpop.permute.xlu0 %2869
    %vm2873 = vcmask 1042432
    %v2874 = vrot.slane %v2104, 5
    %v2875 = vrot.slane %v2074, 5
    %v2876 = vsel %vm2873, %v2874, %v2875
    %v2877 = vrot.slane %v2075, 5
    %v2878 = vsel %vm2873, %v2875, %v2877
    %v2879 = vrot.slane %v2076, 5
    %v2880 = vsel %vm2873, %v2877, %v2879
    %v2881 = vrot.slane %v2077, 5
    %v2882 = vsel %vm2873, %v2879, %v2881
    %v2883 = vrot.slane %v2078, 5
    %v2884 = vsel %vm2873, %v2881, %v2883
    %v2885 = vrot.slane %v2079, 5
    %v2886 = vsel %vm2873, %v2883, %v2885
    %v2887 = vrot.slane %v2080, 5
    %v2888 = vsel %vm2873, %v2885, %v2887
    %v2889 = vrot.slane %v2081, 5
    %v2890 = vsel %vm2873, %v2887, %v2889
    %v2891 = vrot.slane %v2082, 5
    %v2892 = vsel %vm2873, %v2889, %v2891
    %v2893 = vrot.slane %v2083, 5
    %v2894 = vsel %vm2873, %v2891, %v2893
    %v2895 = vrot.slane %v2084, 5
    %v2896 = vsel %vm2873, %v2893, %v2895
    %v2897 = vrot.slane %v2085, 5
    %v2898 = vsel %vm2873, %v2895, %v2897
    %v2899 = vrot.slane %v2086, 5
    %v2900 = vsel %vm2873, %v2897, %v2899
    %v2901 = vrot.slane %v2087, 5
    %v2902 = vsel %vm2873, %v2899, %v2901
    %v2903 = vrot.slane %v2088, 5
    %v2904 = vsel %vm2873, %v2901, %v2903
    %v2905 = vrot.slane %v2089, 5
    %v2906 = vsel %vm2873, %v2903, %v2905
    %v2907 = vrot.slane %v2090, 5
    %v2908 = vsel %vm2873, %v2905, %v2907
    %v2909 = vrot.slane %v2091, 5
    %v2910 = vsel %vm2873, %v2907, %v2909
    %v2911 = vrot.slane %v2096, 5
    %v2912 = vsel %vm2873, %v2909, %v2911
    %v2913 = vrot.slane %v2101, 5
    %v2914 = vsel %vm2873, %v2911, %v2913
    %v2915 = vrot.slane %v2102, 5
    %v2916 = vsel %vm2873, %v2913, %v2915
    %v2917 = vrot.slane %v2103, 5
    %v2918 = vsel %vm2873, %v2915, %v2917
    %v2920 = vsel %vm1053, %v2071, %v2281
    %v2923 = vsel %vm1053, %v2072, %v2283
    %v2926 = vsel %vm1053, %v2073, %v2285
    %v2929 = vsel %vm1053, %v2074, %v2287
    %v2932 = vsel %vm1053, %v2075, %v2289
    %v2935 = vsel %vm1053, %v2076, %v2291
    %v2938 = vsel %vm1053, %v2077, %v2293
    %v2941 = vsel %vm1053, %v2078, %v2295
    %v2944 = vsel %vm1053, %v2079, %v2297
    %v2947 = vsel %vm1053, %v2080, %v2299
    %v2950 = vsel %vm1053, %v2081, %v2301
    %v2953 = vsel %vm1053, %v2082, %v2303
    %v2956 = vsel %vm1053, %v2083, %v2305
    %v2959 = vsel %vm1053, %v2084, %v2307
    %v2962 = vsel %vm1053, %v2085, %v2309
    %v2965 = vsel %vm1053, %v2086, %v2311
    %v2968 = vsel %vm1053, %v2087, %v2313
    %v2971 = vsel %vm1053, %v2088, %v2315
    %v2974 = vsel %vm1053, %v2089, %v2317
    %v2977 = vsel %vm1053, %v2090, %v2319
    %v2980 = vsel %vm1053, %v2091, %v2321
    %v2984 = vsel %vm1053, %v2092, %v2323
    %v2988 = vsel %vm1053, %v2349, %v2437
    %v2992 = vsel %vm1053, %v2351, %v2439
    %v2996 = vsel %vm1053, %v2353, %v2441
    %v3000 = vsel %vm1053, %v2355, %v2443
    %v3004 = vsel %vm1053, %v2357, %v2445
    %v3008 = vsel %vm1053, %v2359, %v2447
    %v3012 = vsel %vm1053, %v2361, %v2449
    %v3016 = vsel %vm1053, %v2363, %v2451
    %v3020 = vsel %vm1053, %v2365, %v2453
    %v3024 = vsel %vm1053, %v2367, %v2455
    %v3028 = vsel %vm1053, %v2369, %v2457
    %v3032 = vsel %vm1053, %v2371, %v2459
    %v3036 = vsel %vm1053, %v2373, %v2461
    %v3040 = vsel %vm1053, %v2375, %v2463
    %v3044 = vsel %vm1053, %v2377, %v2465
    %v3048 = vsel %vm1053, %v2379, %v2467
    %v3052 = vsel %vm1053, %v2381, %v2469
    %v3056 = vsel %vm1053, %v2383, %v2471
    %v3060 = vsel %vm1053, %v2385, %v2473
    %v3064 = vsel %vm1053, %v2387, %v2475
    %v3068 = vsel %vm1053, %v2389, %v2477
    %v3072 = vsel %vm1053, %v2388, %v2479
    %v3076 = vsel %vm1053, %v2491, %v2629
    %v3080 = vsel %vm1053, %v2495, %v2631
    %v3084 = vsel %vm1053, %v2499, %v2633
    %v3088 = vsel %vm1053, %v2503, %v2635
    %v3092 = vsel %vm1053, %v2507, %v2637
    %v3096 = vsel %vm1053, %v2511, %v2639
    %v3100 = vsel %vm1053, %v2515, %v2641
    %v3104 = vsel %vm1053, %v2519, %v2643
    %v3108 = vsel %vm1053, %v2523, %v2645
    %v3112 = vsel %vm1053, %v2527, %v2647
    %v3116 = vsel %vm1053, %v2531, %v2649
    %v3120 = vsel %vm1053, %v2535, %v2651
    %v3124 = vsel %vm1053, %v2539, %v2653
    %v3128 = vsel %vm1053, %v2543, %v2655
    %v3132 = vsel %vm1053, %v2547, %v2657
    %v3136 = vsel %vm1053, %v2551, %v2659
    %v3140 = vsel %vm1053, %v2555, %v2661
    %v3144 = vsel %vm1053, %v2559, %v2663
    %v3148 = vsel %vm1053, %v2563, %v2665
    %v3152 = vsel %vm1053, %v2572, %v2667
    %v3156 = vsel %vm1053, %v2581, %v2669
    %v3160 = vsel %vm1053, %v2580, %v2671
    %v3164 = vsel %vm1053, %v2678, %v2828
    %v3168 = vsel %vm1053, %v2680, %v2830
    %v3172 = vsel %vm1053, %v2682, %v2832
    %v3176 = vsel %vm1053, %v2684, %v2834
    %v3180 = vsel %vm1053, %v2686, %v2836
    %v3184 = vsel %vm1053, %v2688, %v2838
    %v3188 = vsel %vm1053, %v2690, %v2840
    %v3192 = vsel %vm1053, %v2692, %v2842
    %v3196 = vsel %vm1053, %v2694, %v2844
    %v3200 = vsel %vm1053, %v2696, %v2846
    %v3204 = vsel %vm1053, %v2698, %v2848
    %v3208 = vsel %vm1053, %v2700, %v2850
    %v3212 = vsel %vm1053, %v2702, %v2852
    %v3216 = vsel %vm1053, %v2704, %v2854
    %v3220 = vsel %vm1053, %v2706, %v2856
    %v3224 = vsel %vm1053, %v2708, %v2858
    %v3228 = vsel %vm1053, %v2710, %v2860
    %v3232 = vsel %vm1053, %v2712, %v2862
    %v3236 = vsel %vm1053, %v2714, %v2864
    %v3240 = vsel %vm1053, %v2716, %v2866
    %v3244 = vsel %vm1053, %v2718, %v2868
    %v3248 = vsel %vm1053, %v2717, %v2870
    %v3250 = vld [vmem:[%s5] sm:$0xf]
    %v3251 = vld [vmem:[%s5 + $0x4] sm:$0xf]
    %v3252 = vld [vmem:[%s5 + $0x8] sm:$0xf]
    %v3253 = vld [vmem:[%s5 + $0xc] sm:$0xf]
    %v3254 = vld [vmem:[%s5 + $0x10] sm:$0xf]
    %v3255 = vld [vmem:[%s5 + $0x14] sm:$0xf]
    %v3256 = vld [vmem:[%s5 + $0x18] sm:$0xf]
    %v3257 = vld [vmem:[%s5 + $0x1c] sm:$0xf]
    %v3258 = vld [vmem:[%s5 + $0x20] sm:$0xf]
    %v3259 = vld [vmem:[%s5 + $0x24] sm:$0xf]
    %v3260 = vld [vmem:[%s5 + $0x28] sm:$0xf]
    %v3261 = vld [vmem:[%s5 + $0x2c] sm:$0xf]
    %v3262 = vld [vmem:[%s5 + $0x30] sm:$0xf]
    %v3263 = vld [vmem:[%s5 + $0x34] sm:$0xf]
    %v3264 = vld [vmem:[%s5 + $0x38] sm:$0xf]
    %v3265 = vld [vmem:[%s5 + $0x3c] sm:$0xf]
    %v3266 = vld [vmem:[%s5 + $0x40] sm:$0xf]
    %v3267 = vld [vmem:[%s5 + $0x44] sm:$0xf]
    %v3268 = vld [vmem:[%s5 + $0x48] sm:$0xf]
    %v3269 = vld [vmem:[%s5 + $0x4c] sm:$0xf]
    %v3270 = vld [vmem:[%s5 + $0x50] sm:$0xf]
    %v3271 = vld [vmem:[%s5 + $0x54] sm:$0xf]
    %v3272 = vld [vmem:[%s5 + $0x58] sm:$0xf]
    %v3273 = vld [vmem:[%s5 + $0x5c] sm:$0xf]
    %v3274 = vld [vmem:[%s5 + $0x60] sm:$0xf]
    %v3275 = vld [vmem:[%s5 + $0x64] sm:$0xf]
    %v3276 = vld [vmem:[%s5 + $0x68] sm:$0xf]
    %v3277 = vld [vmem:[%s5 + $0x6c] sm:$0xf]
    %v3278 = vld [vmem:[%s5 + $0x70] sm:$0xf]
    %v3279 = vld [vmem:[%s5 + $0x74] sm:$0xf]
    %v3280 = vld [vmem:[%s5 + $0x78] sm:$0xf]
    %v3281 = vld [vmem:[%s5 + $0x7c] sm:$0xf]
    %v3282 = vld [vmem:[%s5 + $0x80] sm:$0xf]
    %v3283 = vld [vmem:[%s5 + $0x84] sm:$0xf]
    %v3284 = vld [vmem:[%s5 + $0x88] sm:$0xf]
    %v3285 = vld [vmem:[%s5 + $0x8c] sm:$0xf]
    %v3286 = vld [vmem:[%s5 + $0x90] sm:$0xf]
    %v3287 = vld [vmem:[%s5 + $0x94] sm:$0xf]
    %v3288 = vld [vmem:[%s5 + $0x98] sm:$0xf]
    %v3289 = vld [vmem:[%s5 + $0x9c] sm:$0xf]
    %v3290 = vld [vmem:[%s5 + $0xa0] sm:$0xf]
    %v3291 = vld [vmem:[%s5 + $0xa4] sm:$0xf]
    %v3292 = vld [vmem:[%s5 + $0xa8] sm:$0xf]
    %v3293 = vld [vmem:[%s5 + $0xac] sm:$0xf]
    %v3294 = vld [vmem:[%s5 + $0xb0] sm:$0xf]
    %v3295 = vld [vmem:[%s5 + $0xb4] sm:$0xf]
    %v3296 = vld [vmem:[%s5 + $0xb8] sm:$0xf]
    %v3297 = vld [vmem:[%s5 + $0xbc] sm:$0xf]
    %v3298 = vld [vmem:[%s5 + $0xc0] sm:$0xf]
    %v3299 = vld [vmem:[%s5 + $0xc4] sm:$0xf]
    %v3300 = vld [vmem:[%s5 + $0xc8] sm:$0xf]
    %v3301 = vld [vmem:[%s5 + $0xcc] sm:$0xf]
    %v3302 = vld [vmem:[%s5 + $0xd0] sm:$0xf]
    %v3303 = vld [vmem:[%s5 + $0xd4] sm:$0xf]
    %v3304 = vld [vmem:[%s5 + $0xd8] sm:$0xf]
    %v3305 = vld [vmem:[%s5 + $0xdc] sm:$0xf]
    %v3306 = vld [vmem:[%s5 + $0xe0] sm:$0xf]
    %v3307 = vld [vmem:[%s5 + $0xe4] sm:$0xf]
    %v3308 = vld [vmem:[%s5 + $0xe8] sm:$0xf]
    %v3309 = vld [vmem:[%s5 + $0xec] sm:$0xf]
    %v3310 = vld [vmem:[%s5 + $0xf0] sm:$0xf]
    %v3311 = vld [vmem:[%s5 + $0xf4] sm:$0xf]
    %v3312 = vld [vmem:[%s5 + $0xf8] sm:$0xf]
    %v3313 = vld [vmem:[%s5 + $0xfc] sm:$0xf]
    %v3314 = vld [vmem:[%s5 + $0x100] sm:$0xf]
    %v3315 = vld [vmem:[%s5 + $0x104] sm:$0xf]
    %v3316 = vld [vmem:[%s5 + $0x108] sm:$0xf]
    %v3317 = vld [vmem:[%s5 + $0x10c] sm:$0xf]
    %v3318 = vld [vmem:[%s5 + $0x110] sm:$0xf]
    %v3319 = vld [vmem:[%s5 + $0x114] sm:$0xf]
    %v3320 = vld [vmem:[%s5 + $0x118] sm:$0xf]
    %v3321 = vld [vmem:[%s5 + $0x11c] sm:$0xf]
    %v3394 = vunpack.c.l.b16 %v3250
    %v3395 = vunpack.c.l.b16 %v3251
    %v3396 = vunpack.c.l.b16 %v3252
    %v3397 = vunpack.c.l.b16 %v3253
    %v3398 = vunpack.c.l.b16 %v3254
    %v3399 = vunpack.c.l.b16 %v3255
    %v3400 = vunpack.c.l.b16 %v3256
    %v3401 = vunpack.c.l.b16 %v3257
    %v3402 = vunpack.c.l.b16 %v3258
    %v3403 = vunpack.c.l.b16 %v3259
    %v3404 = vunpack.c.l.b16 %v3260
    %v3405 = vunpack.c.l.b16 %v3261
    %v3406 = vunpack.c.l.b16 %v3262
    %v3407 = vunpack.c.l.b16 %v3263
    %v3408 = vunpack.c.l.b16 %v3264
    %v3409 = vunpack.c.l.b16 %v3265
    %v3410 = vunpack.c.l.b16 %v3266
    %v3411 = vunpack.c.l.b16 %v3267
    %v3412 = vunpack.c.l.b16 %v3268
    %v3413 = vunpack.c.l.b16 %v3269
    %v3414 = vunpack.c.l.b16 %v3270
    %v3415 = vunpack.c.l.b16 %v3271
    %v3416 = vunpack.c.l.b16 %v3272
    %v3417 = vunpack.c.l.b16 %v3273
    %v3418 = vunpack.c.l.b16 %v3274
    %v3419 = vunpack.c.l.b16 %v3275
    %v3420 = vunpack.c.l.b16 %v3276
    %v3421 = vunpack.c.l.b16 %v3277
    %v3422 = vunpack.c.l.b16 %v3278
    %v3423 = vunpack.c.l.b16 %v3279
    %v3424 = vunpack.c.l.b16 %v3280
    %v3425 = vunpack.c.l.b16 %v3281
    %v3426 = vunpack.c.l.b16 %v3282
    %v3427 = vunpack.c.l.b16 %v3283
    %v3428 = vunpack.c.l.b16 %v3284
    %v3429 = vunpack.c.l.b16 %v3285
    %v3430 = vunpack.c.l.b16 %v3286
    %v3431 = vunpack.c.l.b16 %v3287
    %v3432 = vunpack.c.l.b16 %v3288
    %v3433 = vunpack.c.l.b16 %v3289
    %v3434 = vunpack.c.l.b16 %v3290
    %v3435 = vunpack.c.l.b16 %v3291
    %v3436 = vunpack.c.l.b16 %v3292
    %v3437 = vunpack.c.l.b16 %v3293
    %v3438 = vunpack.c.l.b16 %v3294
    %v3439 = vunpack.c.l.b16 %v3295
    %v3440 = vunpack.c.l.b16 %v3296
    %v3441 = vunpack.c.l.b16 %v3297
    %v3442 = vunpack.c.l.b16 %v3298
    %v3443 = vunpack.c.l.b16 %v3299
    %v3444 = vunpack.c.l.b16 %v3300
    %v3445 = vunpack.c.l.b16 %v3301
    %v3446 = vunpack.c.l.b16 %v3302
    %v3447 = vunpack.c.l.b16 %v3303
    %v3448 = vunpack.c.l.b16 %v3304
    %v3449 = vunpack.c.l.b16 %v3305
    %v3450 = vunpack.c.l.b16 %v3306
    %v3451 = vunpack.c.l.b16 %v3307
    %v3452 = vunpack.c.l.b16 %v3308
    %v3453 = vunpack.c.l.b16 %v3309
    %v3454 = vunpack.c.l.b16 %v3310
    %v3455 = vunpack.c.l.b16 %v3311
    %v3456 = vunpack.c.l.b16 %v3312
    %v3457 = vunpack.c.l.b16 %v3313
    %v3458 = vunpack.c.l.b16 %v3314
    %v3459 = vunpack.c.l.b16 %v3315
    %v3460 = vunpack.c.l.b16 %v3316
    %v3461 = vunpack.c.l.b16 %v3317
    %v3462 = vunpack.c.l.b16 %v3318
    %v3463 = vunpack.c.l.b16 %v3319
    %v3464 = vunpack.c.l.b16 %v3320
    %v3465 = vunpack.c.l.b16 %v3321
    %v3466 = vpack.c.b16 %v3395, %v3394
    %v3467 = vpack.c.b16 %v3397, %v3396
    %v3468 = vpack.c.b16 %v3399, %v3398
    %v3469 = vpack.c.b16 %v3401, %v3400
    %v3470 = vpack.c.b16 %v3403, %v3402
    %v3471 = vpack.c.b16 %v3405, %v3404
    %v3472 = vpack.c.b16 %v3407, %v3406
    %v3473 = vpack.c.b16 %v3409, %v3408
    %v3474 = vpack.c.b16 %v3411, %v3410
    %v3475 = vpack.c.b16 %v3413, %v3412
    %v3476 = vpack.c.b16 %v3415, %v3414
    %v3477 = vpack.c.b16 %v3417, %v3416
    %v3478 = vpack.c.b16 %v3419, %v3418
    %v3479 = vpack.c.b16 %v3421, %v3420
    %v3480 = vpack.c.b16 %v3423, %v3422
    %v3481 = vpack.c.b16 %v3425, %v3424
    %v3482 = vpack.c.b16 %v3427, %v3426
    %v3483 = vpack.c.b16 %v3429, %v3428
    %v3484 = vpack.c.b16 %v3431, %v3430
    %v3485 = vpack.c.b16 %v3433, %v3432
    %v3486 = vpack.c.b16 %v3435, %v3434
    %v3487 = vpack.c.b16 %v3437, %v3436
    %v3488 = vpack.c.b16 %v3439, %v3438
    %v3489 = vpack.c.b16 %v3441, %v3440
    %v3490 = vpack.c.b16 %v3443, %v3442
    %v3491 = vpack.c.b16 %v3445, %v3444
    %v3492 = vpack.c.b16 %v3447, %v3446
    %v3493 = vpack.c.b16 %v3449, %v3448
    %v3494 = vpack.c.b16 %v3451, %v3450
    %v3495 = vpack.c.b16 %v3453, %v3452
    %v3496 = vpack.c.b16 %v3455, %v3454
    %v3497 = vpack.c.b16 %v3457, %v3456
    %v3498 = vpack.c.b16 %v3459, %v3458
    %v3499 = vpack.c.b16 %v3461, %v3460
    %v3500 = vpack.c.b16 %v3463, %v3462
    %v3501 = vpack.c.b16 %v3465, %v3464
    %v3539 = vsel %vm1053, %v2876, 0
    %v3542 = vsel %vm1053, %v2878, 0
    %v3545 = vsel %vm1053, %v2880, 0
    %v3548 = vsel %vm1053, %v2882, 0
    %v3551 = vsel %vm1053, %v2884, 0
    %v3554 = vsel %vm1053, %v2886, 0
    %v3557 = vsel %vm1053, %v2888, 0
    %v3560 = vsel %vm1053, %v2890, 0
    %v3563 = vsel %vm1053, %v2892, 0
    %v3566 = vsel %vm1053, %v2894, 0
    %v3569 = vsel %vm1053, %v2896, 0
    %v3572 = vsel %vm1053, %v2898, 0
    %v3575 = vsel %vm1053, %v2900, 0
    %v3578 = vsel %vm1053, %v2902, 0
    %v3581 = vsel %vm1053, %v2904, 0
    %v3584 = vsel %vm1053, %v2906, 0
    %v3587 = vsel %vm1053, %v2908, 0
    %v3590 = vsel %vm1053, %v2910, 0
    %v3593 = vsel %vm1053, %v2912, 0
    %v3596 = vsel %vm1053, %v2914, 0
    %v3599 = vsel %vm1053, %v2916, 0
    %v3602 = vsel %vm1053, %v2918, 0
    %3604 = vmatprep.subr.bf16.mxu0 0
    %3605 = vmatpush1.bf16.msra.mxu0 %v3466
    %3606 = vmatprep.subr.bf16.mxu0 0
    %3607 = vmatpush1.bf16.msra.mxu0 %v3467
    %3608 = vmatprep.subr.bf16.mxu0 0
    %3609 = vmatpush1.bf16.msra.mxu0 %v3468
    %3610 = vmatprep.subr.bf16.mxu0 0
    %3611 = vmatpush1.bf16.msra.mxu0 %v3469
    %3612 = vmatprep.subr.bf16.mxu0 0
    %3613 = vmatpush1.bf16.msra.mxu0 %v3470
    %3614 = vmatprep.subr.bf16.mxu0 0
    %3615 = vmatpush1.bf16.msra.mxu0 %v3471
    %3616 = vmatprep.subr.bf16.mxu0 0
    %3617 = vmatpush1.bf16.msra.mxu0 %v3472
    %3618 = vmatprep.subr.bf16.mxu0 0
    %3619 = vmatpush1.bf16.msra.mxu0 %v3473
    %3620 = vmatprep.subr.bf16.mxu0 0
    %3621 = vmatpush1.bf16.msra.mxu0 %v3474
    %3622 = vmatprep.subr.bf16.mxu0 0
    %3623 = vmatpush1.bf16.msra.mxu0 %v3475
    %3624 = vmatprep.subr.bf16.mxu0 0
    %3625 = vmatpush1.bf16.msra.mxu0 %v3476
    %3626 = vmatprep.subr.bf16.mxu0 0
    %3627 = vmatpush1.bf16.msra.mxu0 %v3477
    %3628 = vmatprep.subr.bf16.mxu0 0
    %3629 = vmatpush1.bf16.msra.mxu0 %v3478
    %3630 = vmatprep.subr.bf16.mxu0 0
    %3631 = vmatpush1.bf16.msra.mxu0 %v3479
    %3632 = vmatprep.subr.bf16.mxu0 0
    %3633 = vmatpush1.bf16.msra.mxu0 %v3480
    %3634 = vmatprep.subr.bf16.mxu0 0
    %3635 = vmatpush1.bf16.msra.mxu0 %v3481
    %3636 = vmatprep.mubr.bf16.mxu0 %v2988
    %3637 = vmatmul.mubr.bf16.gmra.mrb[0].mxu0 %v2920
    %v3638 = vpop.f32.mrb[0].mxu0
    %v3639 = vadd.f32 0.0, %v3638
    %v3640 = vpop.f32.mrb[0].mxu0
    %v3641 = vpop.f32.mrb[0].mxu0
    %v3642 = vadd.f32 0.0, %v3641
    %v3643 = vpop.f32.mrb[0].mxu0
    %3644 = vmatprep.mubr.bf16.mxu0 %v2992
    %3645 = vmatmul.mubr.bf16.gmra.mrb[0].mxu0 %v2923
    %v3646 = vpop.f32.mrb[0].mxu0
    %v3647 = vadd.f32 0.0, %v3646
    %v3648 = vpop.f32.mrb[0].mxu0
    %v3649 = vpop.f32.mrb[0].mxu0
    %v3650 = vadd.f32 0.0, %v3649
    %v3651 = vpop.f32.mrb[0].mxu0
    %3652 = vmatprep.mubr.bf16.mxu0 %v2996
    %3653 = vmatmul.mubr.bf16.gmra.mrb[0].mxu0 %v2926
    %v3654 = vpop.f32.mrb[0].mxu0
    %v3655 = vadd.f32 0.0, %v3654
    %v3656 = vpop.f32.mrb[0].mxu0
    %v3657 = vpop.f32.mrb[0].mxu0
    %v3658 = vadd.f32 0.0, %v3657
    %v3659 = vpop.f32.mrb[0].mxu0
    %3660 = vmatprep.mubr.bf16.mxu0 %v3000
    %3661 = vmatmul.mubr.bf16.gmra.mrb[0].mxu0 %v2929
    %v3662 = vpop.f32.mrb[0].mxu0
    %v3663 = vadd.f32 0.0, %v3662
    %v3664 = vpop.f32.mrb[0].mxu0
    %v3665 = vpop.f32.mrb[0].mxu0
    %v3666 = vadd.f32 0.0, %v3665
    %v3667 = vpop.f32.mrb[0].mxu0
    %3668 = vmatprep.mubr.bf16.mxu0 %v3004
    %3669 = vmatmul.mubr.bf16.gmra.mrb[0].mxu0 %v2932
    %v3670 = vpop.f32.mrb[0].mxu0
    %v3671 = vadd.f32 0.0, %v3670
    %v3672 = vpop.f32.mrb[0].mxu0
    %v3673 = vpop.f32.mrb[0].mxu0
    %v3674 = vadd.f32 0.0, %v3673
    %v3675 = vpop.f32.mrb[0].mxu0
    %3676 = vmatprep.mubr.bf16.mxu0 %v3008
    %3677 = vmatmul.mubr.bf16.gmra.mrb[0].mxu0 %v2935
    %v3678 = vpop.f32.mrb[0].mxu0
    %v3679 = vadd.f32 0.0, %v3678
    %v3680 = vpop.f32.mrb[0].mxu0
    %v3681 = vpop.f32.mrb[0].mxu0
    %v3682 = vadd.f32 0.0, %v3681
    %v3683 = vpop.f32.mrb[0].mxu0
    %3684 = vmatprep.mubr.bf16.mxu0 %v3012
    %3685 = vmatmul.mubr.bf16.gmra.mrb[0].mxu0 %v2938
    %v3686 = vpop.f32.mrb[0].mxu0
    %v3687 = vadd.f32 0.0, %v3686
    %v3688 = vpop.f32.mrb[0].mxu0
    %v3689 = vpop.f32.mrb[0].mxu0
    %v3690 = vadd.f32 0.0, %v3689
    %v3691 = vpop.f32.mrb[0].mxu0
    %3692 = vmatprep.mubr.bf16.mxu0 %v3016
    %3693 = vmatmul.mubr.bf16.gmra.mrb[0].mxu0 %v2941
    %v3694 = vpop.f32.mrb[0].mxu0
    %v3695 = vadd.f32 0.0, %v3694
    %v3696 = vpop.f32.mrb[0].mxu0
    %v3697 = vpop.f32.mrb[0].mxu0
    %v3698 = vadd.f32 0.0, %v3697
    %v3699 = vpop.f32.mrb[0].mxu0
    %3700 = vmatprep.mubr.bf16.mxu0 %v3020
    %3701 = vmatmul.mubr.bf16.gmra.mrb[0].mxu0 %v2944
    %v3702 = vpop.f32.mrb[0].mxu0
    %v3703 = vadd.f32 0.0, %v3702
    %v3704 = vpop.f32.mrb[0].mxu0
    %v3705 = vpop.f32.mrb[0].mxu0
    %v3706 = vadd.f32 0.0, %v3705
    %v3707 = vpop.f32.mrb[0].mxu0
    %3708 = vmatprep.mubr.bf16.mxu0 %v3024
    %3709 = vmatmul.mubr.bf16.gmra.mrb[0].mxu0 %v2947
    %v3710 = vpop.f32.mrb[0].mxu0
    %v3711 = vadd.f32 0.0, %v3710
    %v3712 = vpop.f32.mrb[0].mxu0
    %v3713 = vpop.f32.mrb[0].mxu0
    %v3714 = vadd.f32 0.0, %v3713
    %v3715 = vpop.f32.mrb[0].mxu0
    %3716 = vmatprep.mubr.bf16.mxu0 %v3028
    %3717 = vmatmul.mubr.bf16.gmra.mrb[0].mxu0 %v2950
    %v3718 = vpop.f32.mrb[0].mxu0
    %v3719 = vadd.f32 0.0, %v3718
    %v3720 = vpop.f32.mrb[0].mxu0
    %v3721 = vpop.f32.mrb[0].mxu0
    %v3722 = vadd.f32 0.0, %v3721
    %v3723 = vpop.f32.mrb[0].mxu0
    %3724 = vmatprep.mubr.bf16.mxu0 %v3032
    %3725 = vmatmul.mubr.bf16.gmra.mrb[0].mxu0 %v2953
    %v3726 = vpop.f32.mrb[0].mxu0
    %v3727 = vadd.f32 0.0, %v3726
    %v3728 = vpop.f32.mrb[0].mxu0
    %v3729 = vpop.f32.mrb[0].mxu0
    %v3730 = vadd.f32 0.0, %v3729
    %v3731 = vpop.f32.mrb[0].mxu0
    %3732 = vmatprep.mubr.bf16.mxu0 %v3036
    %3733 = vmatmul.mubr.bf16.gmra.mrb[0].mxu0 %v2956
    %v3734 = vpop.f32.mrb[0].mxu0
    %v3735 = vadd.f32 0.0, %v3734
    %v3736 = vpop.f32.mrb[0].mxu0
    %v3737 = vpop.f32.mrb[0].mxu0
    %v3738 = vadd.f32 0.0, %v3737
    %v3739 = vpop.f32.mrb[0].mxu0
    %3740 = vmatprep.mubr.bf16.mxu0 %v3040
    %3741 = vmatmul.mubr.bf16.gmra.mrb[0].mxu0 %v2959
    %v3742 = vpop.f32.mrb[0].mxu0
    %v3743 = vadd.f32 0.0, %v3742
    %v3744 = vpop.f32.mrb[0].mxu0
    %v3745 = vpop.f32.mrb[0].mxu0
    %v3746 = vadd.f32 0.0, %v3745
    %v3747 = vpop.f32.mrb[0].mxu0
    %3748 = vmatprep.mubr.bf16.mxu0 %v3044
    %3749 = vmatmul.mubr.bf16.gmra.mrb[0].mxu0 %v2962
    %v3750 = vpop.f32.mrb[0].mxu0
    %v3751 = vadd.f32 0.0, %v3750
    %v3752 = vpop.f32.mrb[0].mxu0
    %v3753 = vpop.f32.mrb[0].mxu0
    %v3754 = vadd.f32 0.0, %v3753
    %v3755 = vpop.f32.mrb[0].mxu0
    %3756 = vmatprep.mubr.bf16.mxu0 %v3048
    %3757 = vmatmul.mubr.bf16.gmra.mrb[0].mxu0 %v2965
    %v3758 = vpop.f32.mrb[0].mxu0
    %v3759 = vadd.f32 0.0, %v3758
    %v3760 = vpop.f32.mrb[0].mxu0
    %v3761 = vpop.f32.mrb[0].mxu0
    %v3762 = vadd.f32 0.0, %v3761
    %v3763 = vpop.f32.mrb[0].mxu0
    %3764 = vmatprep.mubr.bf16.mxu0 %v3052
    %3765 = vmatmul.mubr.bf16.gmra.mrb[0].mxu0 %v2968
    %v3766 = vpop.f32.mrb[0].mxu0
    %v3767 = vadd.f32 0.0, %v3766
    %v3768 = vpop.f32.mrb[0].mxu0
    %v3769 = vpop.f32.mrb[0].mxu0
    %v3770 = vadd.f32 0.0, %v3769
    %v3771 = vpop.f32.mrb[0].mxu0
    %3772 = vmatprep.mubr.bf16.mxu0 %v3056
    %3773 = vmatmul.mubr.bf16.gmra.mrb[0].mxu0 %v2971
    %v3774 = vpop.f32.mrb[0].mxu0
    %v3775 = vadd.f32 0.0, %v3774
    %v3776 = vpop.f32.mrb[0].mxu0
    %v3777 = vpop.f32.mrb[0].mxu0
    %v3778 = vadd.f32 0.0, %v3777
    %v3779 = vpop.f32.mrb[0].mxu0
    %3780 = vmatprep.mubr.bf16.mxu0 %v3060
    %3781 = vmatmul.mubr.bf16.gmra.mrb[0].mxu0 %v2974
    %v3782 = vpop.f32.mrb[0].mxu0
    %v3783 = vadd.f32 0.0, %v3782
    %v3784 = vpop.f32.mrb[0].mxu0
    %v3785 = vpop.f32.mrb[0].mxu0
    %v3786 = vadd.f32 0.0, %v3785
    %v3787 = vpop.f32.mrb[0].mxu0
    %3788 = vmatprep.mubr.bf16.mxu0 %v3064
    %3789 = vmatmul.mubr.bf16.gmra.mrb[0].mxu0 %v2977
    %v3790 = vpop.f32.mrb[0].mxu0
    %v3791 = vadd.f32 0.0, %v3790
    %v3792 = vpop.f32.mrb[0].mxu0
    %v3793 = vpop.f32.mrb[0].mxu0
    %v3794 = vadd.f32 0.0, %v3793
    %v3795 = vpop.f32.mrb[0].mxu0
    %3796 = vmatprep.mubr.bf16.mxu0 %v3068
    %3797 = vmatmul.mubr.bf16.gmra.mrb[0].mxu0 %v2980
    %v3798 = vpop.f32.mrb[0].mxu0
    %v3799 = vadd.f32 0.0, %v3798
    %v3800 = vpop.f32.mrb[0].mxu0
    %v3801 = vpop.f32.mrb[0].mxu0
    %v3802 = vadd.f32 0.0, %v3801
    %v3803 = vpop.f32.mrb[0].mxu0
    %3804 = vmatprep.mubr.bf16.mxu0 %v3072
    %3805 = vmatmul.mubr.bf16.gmra.mrb[0].mxu0 %v2984
    %v3806 = vpop.f32.mrb[0].mxu0
    %v3807 = vadd.f32 0.0, %v3806
    %v3808 = vpop.f32.mrb[0].mxu0
    %v3809 = vpop.f32.mrb[0].mxu0
    %v3810 = vpop.f32.mrb[0].mxu0
    %3811 = vdwg.mxu0
    %3812 = vmatprep.subr.bf16.mxu0 0
    %3813 = vmatpush1.bf16.msra.mxu0 %v3482
    %3814 = vmatprep.subr.bf16.mxu0 0
    %3815 = vmatpush1.bf16.msra.mxu0 %v3483
    %3816 = vmatprep.subr.bf16.mxu0 0
    %3817 = vmatpush1.bf16.msra.mxu0 %v3484
    %3818 = vmatprep.subr.bf16.mxu0 0
    %3819 = vmatpush1.bf16.msra.mxu0 %v3485
    %3820 = vmatprep.subr.bf16.mxu0 0
    %3821 = vmatpush1.bf16.msra.mxu0 %v3486
    %3822 = vmatprep.subr.bf16.mxu0 0
    %3823 = vmatpush1.bf16.msra.mxu0 %v3487
    %3824 = vmatprep.subr.bf16.mxu0 0
    %3825 = vmatpush1.bf16.msra.mxu0 %v3488
    %3826 = vmatprep.subr.bf16.mxu0 0
    %3827 = vmatpush1.bf16.msra.mxu0 %v3489
    %3828 = vmatprep.subr.bf16.mxu0 0
    %3829 = vmatpush1.bf16.msra.mxu0 %v3490
    %3830 = vmatprep.subr.bf16.mxu0 0
    %3831 = vmatpush1.bf16.msra.mxu0 %v3491
    %3832 = vmatprep.subr.bf16.mxu0 0
    %3833 = vmatpush1.bf16.msra.mxu0 %v3492
    %3834 = vmatprep.subr.bf16.mxu0 0
    %3835 = vmatpush1.bf16.msra.mxu0 %v3493
    %3836 = vmatprep.subr.bf16.mxu0 0
    %3837 = vmatpush1.bf16.msra.mxu0 %v3494
    %3838 = vmatprep.subr.bf16.mxu0 0
    %3839 = vmatpush1.bf16.msra.mxu0 %v3495
    %3840 = vmatprep.subr.bf16.mxu0 0
    %3841 = vmatpush1.bf16.msra.mxu0 %v3496
    %3842 = vmatprep.subr.bf16.mxu0 0
    %3843 = vmatpush1.bf16.msra.mxu0 %v3497
    %3844 = vmatprep.mubr.bf16.mxu0 %v3164
    %3845 = vmatmul.mubr.bf16.gmra.mrb[0].mxu0 %v3076
    %v3846 = vpop.f32.mrb[0].mxu0
    %v3847 = vadd.f32 %v3639, %v3846
    %v3848 = vpop.f32.mrb[0].mxu0
    %v3849 = vpop.f32.mrb[0].mxu0
    %v3850 = vadd.f32 %v3642, %v3849
    %v3851 = vpop.f32.mrb[0].mxu0
    %3852 = vmatprep.mubr.bf16.mxu0 %v3168
    %3853 = vmatmul.mubr.bf16.gmra.mrb[0].mxu0 %v3080
    %v3854 = vpop.f32.mrb[0].mxu0
    %v3855 = vadd.f32 %v3647, %v3854
    %v3856 = vpop.f32.mrb[0].mxu0
    %v3857 = vpop.f32.mrb[0].mxu0
    %v3858 = vadd.f32 %v3650, %v3857
    %v3859 = vpop.f32.mrb[0].mxu0
    %3860 = vmatprep.mubr.bf16.mxu0 %v3172
    %3861 = vmatmul.mubr.bf16.gmra.mrb[0].mxu0 %v3084
    %v3862 = vpop.f32.mrb[0].mxu0
    %v3863 = vadd.f32 %v3655, %v3862
    %v3864 = vpop.f32.mrb[0].mxu0
    %v3865 = vpop.f32.mrb[0].mxu0
    %v3866 = vadd.f32 %v3658, %v3865
    %v3867 = vpop.f32.mrb[0].mxu0
    %3868 = vmatprep.mubr.bf16.mxu0 %v3176
    %3869 = vmatmul.mubr.bf16.gmra.mrb[0].mxu0 %v3088
    %v3870 = vpop.f32.mrb[0].mxu0
    %v3871 = vadd.f32 %v3663, %v3870
    %v3872 = vpop.f32.mrb[0].mxu0
    %v3873 = vpop.f32.mrb[0].mxu0
    %v3874 = vadd.f32 %v3666, %v3873
    %v3875 = vpop.f32.mrb[0].mxu0
    %3876 = vmatprep.mubr.bf16.mxu0 %v3180
    %3877 = vmatmul.mubr.bf16.gmra.mrb[0].mxu0 %v3092
    %v3878 = vpop.f32.mrb[0].mxu0
    %v3879 = vadd.f32 %v3671, %v3878
    %v3880 = vpop.f32.mrb[0].mxu0
    %v3881 = vpop.f32.mrb[0].mxu0
    %v3882 = vadd.f32 %v3674, %v3881
    %v3883 = vpop.f32.mrb[0].mxu0
    %3884 = vmatprep.mubr.bf16.mxu0 %v3184
    %3885 = vmatmul.mubr.bf16.gmra.mrb[0].mxu0 %v3096
    %v3886 = vpop.f32.mrb[0].mxu0
    %v3887 = vadd.f32 %v3679, %v3886
    %v3888 = vpop.f32.mrb[0].mxu0
    %v3889 = vpop.f32.mrb[0].mxu0
    %v3890 = vadd.f32 %v3682, %v3889
    %v3891 = vpop.f32.mrb[0].mxu0
    %3892 = vmatprep.mubr.bf16.mxu0 %v3188
    %3893 = vmatmul.mubr.bf16.gmra.mrb[0].mxu0 %v3100
    %v3894 = vpop.f32.mrb[0].mxu0
    %v3895 = vadd.f32 %v3687, %v3894
    %v3896 = vpop.f32.mrb[0].mxu0
    %v3897 = vpop.f32.mrb[0].mxu0
    %v3898 = vadd.f32 %v3690, %v3897
    %v3899 = vpop.f32.mrb[0].mxu0
    %3900 = vmatprep.mubr.bf16.mxu0 %v3192
    %3901 = vmatmul.mubr.bf16.gmra.mrb[0].mxu0 %v3104
    %v3902 = vpop.f32.mrb[0].mxu0
    %v3903 = vadd.f32 %v3695, %v3902
    %v3904 = vpop.f32.mrb[0].mxu0
    %v3905 = vpop.f32.mrb[0].mxu0
    %v3906 = vadd.f32 %v3698, %v3905
    %v3907 = vpop.f32.mrb[0].mxu0
    %3908 = vmatprep.mubr.bf16.mxu0 %v3196
    %3909 = vmatmul.mubr.bf16.gmra.mrb[0].mxu0 %v3108
    %v3910 = vpop.f32.mrb[0].mxu0
    %v3911 = vadd.f32 %v3703, %v3910
    %v3912 = vpop.f32.mrb[0].mxu0
    %v3913 = vpop.f32.mrb[0].mxu0
    %v3914 = vadd.f32 %v3706, %v3913
    %v3915 = vpop.f32.mrb[0].mxu0
    %3916 = vmatprep.mubr.bf16.mxu0 %v3200
    %3917 = vmatmul.mubr.bf16.gmra.mrb[0].mxu0 %v3112
    %v3918 = vpop.f32.mrb[0].mxu0
    %v3919 = vadd.f32 %v3711, %v3918
    %v3920 = vpop.f32.mrb[0].mxu0
    %v3921 = vpop.f32.mrb[0].mxu0
    %v3922 = vadd.f32 %v3714, %v3921
    %v3923 = vpop.f32.mrb[0].mxu0
    %3924 = vmatprep.mubr.bf16.mxu0 %v3204
    %3925 = vmatmul.mubr.bf16.gmra.mrb[0].mxu0 %v3116
    %v3926 = vpop.f32.mrb[0].mxu0
    %v3927 = vadd.f32 %v3719, %v3926
    %v3928 = vpop.f32.mrb[0].mxu0
    %v3929 = vpop.f32.mrb[0].mxu0
    %v3930 = vadd.f32 %v3722, %v3929
    %v3931 = vpop.f32.mrb[0].mxu0
    %3932 = vmatprep.mubr.bf16.mxu0 %v3208
    %3933 = vmatmul.mubr.bf16.gmra.mrb[0].mxu0 %v3120
    %v3934 = vpop.f32.mrb[0].mxu0
    %v3935 = vadd.f32 %v3727, %v3934
    %v3936 = vpop.f32.mrb[0].mxu0
    %v3937 = vpop.f32.mrb[0].mxu0
    %v3938 = vadd.f32 %v3730, %v3937
    %v3939 = vpop.f32.mrb[0].mxu0
    %3940 = vmatprep.mubr.bf16.mxu0 %v3212
    %3941 = vmatmul.mubr.bf16.gmra.mrb[0].mxu0 %v3124
    %v3942 = vpop.f32.mrb[0].mxu0
    %v3943 = vadd.f32 %v3735, %v3942
    %v3944 = vpop.f32.mrb[0].mxu0
    %v3945 = vpop.f32.mrb[0].mxu0
    %v3946 = vadd.f32 %v3738, %v3945
    %v3947 = vpop.f32.mrb[0].mxu0
    %3948 = vmatprep.mubr.bf16.mxu0 %v3216
    %3949 = vmatmul.mubr.bf16.gmra.mrb[0].mxu0 %v3128
    %v3950 = vpop.f32.mrb[0].mxu0
    %v3951 = vadd.f32 %v3743, %v3950
    %v3952 = vpop.f32.mrb[0].mxu0
    %v3953 = vpop.f32.mrb[0].mxu0
    %v3954 = vadd.f32 %v3746, %v3953
    %v3955 = vpop.f32.mrb[0].mxu0
    %3956 = vmatprep.mubr.bf16.mxu0 %v3220
    %3957 = vmatmul.mubr.bf16.gmra.mrb[0].mxu0 %v3132
    %v3958 = vpop.f32.mrb[0].mxu0
    %v3959 = vadd.f32 %v3751, %v3958
    %v3960 = vpop.f32.mrb[0].mxu0
    %v3961 = vpop.f32.mrb[0].mxu0
    %v3962 = vadd.f32 %v3754, %v3961
    %v3963 = vpop.f32.mrb[0].mxu0
    %3964 = vmatprep.mubr.bf16.mxu0 %v3224
    %3965 = vmatmul.mubr.bf16.gmra.mrb[0].mxu0 %v3136
    %v3966 = vpop.f32.mrb[0].mxu0
    %v3967 = vadd.f32 %v3759, %v3966
    %v3968 = vpop.f32.mrb[0].mxu0
    %v3969 = vpop.f32.mrb[0].mxu0
    %v3970 = vadd.f32 %v3762, %v3969
    %v3971 = vpop.f32.mrb[0].mxu0
    %3972 = vmatprep.mubr.bf16.mxu0 %v3228
    %3973 = vmatmul.mubr.bf16.gmra.mrb[0].mxu0 %v3140
    %v3974 = vpop.f32.mrb[0].mxu0
    %v3975 = vadd.f32 %v3767, %v3974
    %v3976 = vpop.f32.mrb[0].mxu0
    %v3977 = vpop.f32.mrb[0].mxu0
    %v3978 = vadd.f32 %v3770, %v3977
    %v3979 = vpop.f32.mrb[0].mxu0
    %3980 = vmatprep.mubr.bf16.mxu0 %v3232
    %3981 = vmatmul.mubr.bf16.gmra.mrb[0].mxu0 %v3144
    %v3982 = vpop.f32.mrb[0].mxu0
    %v3983 = vadd.f32 %v3775, %v3982
    %v3984 = vpop.f32.mrb[0].mxu0
    %v3985 = vpop.f32.mrb[0].mxu0
    %v3986 = vadd.f32 %v3778, %v3985
    %v3987 = vpop.f32.mrb[0].mxu0
    %3988 = vmatprep.mubr.bf16.mxu0 %v3236
    %3989 = vmatmul.mubr.bf16.gmra.mrb[0].mxu0 %v3148
    %v3990 = vpop.f32.mrb[0].mxu0
    %v3991 = vadd.f32 %v3783, %v3990
    %v3992 = vpop.f32.mrb[0].mxu0
    %v3993 = vpop.f32.mrb[0].mxu0
    %v3994 = vadd.f32 %v3786, %v3993
    %v3995 = vpop.f32.mrb[0].mxu0
    %3996 = vmatprep.mubr.bf16.mxu0 %v3240
    %3997 = vmatmul.mubr.bf16.gmra.mrb[0].mxu0 %v3152
    %v3998 = vpop.f32.mrb[0].mxu0
    %v3999 = vadd.f32 %v3791, %v3998
    %v4000 = vpop.f32.mrb[0].mxu0
    %v4001 = vpop.f32.mrb[0].mxu0
    %v4002 = vadd.f32 %v3794, %v4001
    %v4003 = vpop.f32.mrb[0].mxu0
    %4004 = vmatprep.mubr.bf16.mxu0 %v3244
    %4005 = vmatmul.mubr.bf16.gmra.mrb[0].mxu0 %v3156
    %v4006 = vpop.f32.mrb[0].mxu0
    %v4007 = vadd.f32 %v3799, %v4006
    %v4008 = vpop.f32.mrb[0].mxu0
    %v4009 = vpop.f32.mrb[0].mxu0
    %v4010 = vadd.f32 %v3802, %v4009
    %v4011 = vpop.f32.mrb[0].mxu0
    %4012 = vmatprep.mubr.bf16.mxu0 %v3248
    %4013 = vmatmul.mubr.bf16.gmra.mrb[0].mxu0 %v3160
    %v4014 = vpop.f32.mrb[0].mxu0
    %v4015 = vadd.f32 %v3807, %v4014
    %v4016 = vpop.f32.mrb[0].mxu0
    %v4017 = vpop.f32.mrb[0].mxu0
    %v4018 = vpop.f32.mrb[0].mxu0
    %4019 = vdwg.mxu0
    %4020 = vmatprep.subr.bf16.mxu0 0
    %4021 = vmatpush1.bf16.msra.mxu0 %v3498
    %4022 = vmatprep.subr.bf16.mxu0 0
    %4023 = vmatpush1.bf16.msra.mxu0 %v3499
    %4024 = vmatprep.subr.bf16.mxu0 0
    %4025 = vmatpush1.bf16.msra.mxu0 %v3500
    %4026 = vmatprep.subr.bf16.mxu0 0
    %4027 = vmatpush1.bf16.msra.mxu0 %v3501
    %4028 = vmatprep.subr.bf16.mxu0 0
    %4029 = vmatpush1.bf16.msra.mxu0 0
    %4030 = vmatprep.subr.bf16.mxu0 0
    %4031 = vmatpush1.bf16.msra.mxu0 0
    %4032 = vmatprep.subr.bf16.mxu0 0
    %4033 = vmatpush1.bf16.msra.mxu0 0
    %4034 = vmatprep.subr.bf16.mxu0 0
    %4035 = vmatpush1.bf16.msra.mxu0 0
    %4036 = vmatprep.subr.bf16.mxu0 0
    %4037 = vmatpush1.bf16.msra.mxu0 0
    %4038 = vmatprep.subr.bf16.mxu0 0
    %4039 = vmatpush1.bf16.msra.mxu0 0
    %4040 = vmatprep.subr.bf16.mxu0 0
    %4041 = vmatpush1.bf16.msra.mxu0 0
    %4042 = vmatprep.subr.bf16.mxu0 0
    %4043 = vmatpush1.bf16.msra.mxu0 0
    %4044 = vmatprep.subr.bf16.mxu0 0
    %4045 = vmatpush1.bf16.msra.mxu0 0
    %4046 = vmatprep.subr.bf16.mxu0 0
    %4047 = vmatpush1.bf16.msra.mxu0 0
    %4048 = vmatprep.subr.bf16.mxu0 0
    %4049 = vmatpush1.bf16.msra.mxu0 0
    %4050 = vmatprep.subr.bf16.mxu0 0
    %4051 = vmatpush1.bf16.msra.mxu0 0
    %4052 = vmatprep.mubr.bf16.mxu0 0
    %4053 = vmatmul.mubr.bf16.gmra.mrb[0].mxu0 %v3539
    %v4054 = vpop.f32.mrb[0].mxu0
    %v4055 = vadd.f32 %v3847, %v4054
    %v4056 = vpop.f32.mrb[0].mxu0
    %v4057 = vpop.f32.mrb[0].mxu0
    %v4058 = vadd.f32 %v3850, %v4057
    %v4059 = vpop.f32.mrb[0].mxu0
    %4060 = vmatprep.mubr.bf16.mxu0 0
    %4061 = vmatmul.mubr.bf16.gmra.mrb[0].mxu0 %v3542
    %v4062 = vpop.f32.mrb[0].mxu0
    %v4063 = vadd.f32 %v3855, %v4062
    %v4064 = vpop.f32.mrb[0].mxu0
    %v4065 = vpop.f32.mrb[0].mxu0
    %v4066 = vadd.f32 %v3858, %v4065
    %v4067 = vpop.f32.mrb[0].mxu0
    %4068 = vmatprep.mubr.bf16.mxu0 0
    %4069 = vmatmul.mubr.bf16.gmra.mrb[0].mxu0 %v3545
    %v4070 = vpop.f32.mrb[0].mxu0
    %v4071 = vadd.f32 %v3863, %v4070
    %v4072 = vpop.f32.mrb[0].mxu0
    %v4073 = vpop.f32.mrb[0].mxu0
    %v4074 = vadd.f32 %v3866, %v4073
    %v4075 = vpop.f32.mrb[0].mxu0
    %4076 = vmatprep.mubr.bf16.mxu0 0
    %4077 = vmatmul.mubr.bf16.gmra.mrb[0].mxu0 %v3548
    %v4078 = vpop.f32.mrb[0].mxu0
    %v4079 = vadd.f32 %v3871, %v4078
    %v4080 = vpop.f32.mrb[0].mxu0
    %v4081 = vpop.f32.mrb[0].mxu0
    %v4082 = vadd.f32 %v3874, %v4081
    %v4083 = vpop.f32.mrb[0].mxu0
    %4084 = vmatprep.mubr.bf16.mxu0 0
    %4085 = vmatmul.mubr.bf16.gmra.mrb[0].mxu0 %v3551
    %v4086 = vpop.f32.mrb[0].mxu0
    %v4087 = vadd.f32 %v3879, %v4086
    %v4088 = vpop.f32.mrb[0].mxu0
    %v4089 = vpop.f32.mrb[0].mxu0
    %v4090 = vadd.f32 %v3882, %v4089
    %v4091 = vpop.f32.mrb[0].mxu0
    %4092 = vmatprep.mubr.bf16.mxu0 0
    %4093 = vmatmul.mubr.bf16.gmra.mrb[0].mxu0 %v3554
    %v4094 = vpop.f32.mrb[0].mxu0
    %v4095 = vadd.f32 %v3887, %v4094
    %v4096 = vpop.f32.mrb[0].mxu0
    %v4097 = vpop.f32.mrb[0].mxu0
    %v4098 = vadd.f32 %v3890, %v4097
    %v4099 = vpop.f32.mrb[0].mxu0
    %4100 = vmatprep.mubr.bf16.mxu0 0
    %4101 = vmatmul.mubr.bf16.gmra.mrb[0].mxu0 %v3557
    %v4102 = vpop.f32.mrb[0].mxu0
    %v4103 = vadd.f32 %v3895, %v4102
    %v4104 = vpop.f32.mrb[0].mxu0
    %v4105 = vpop.f32.mrb[0].mxu0
    %v4106 = vadd.f32 %v3898, %v4105
    %v4107 = vpop.f32.mrb[0].mxu0
    %4108 = vmatprep.mubr.bf16.mxu0 0
    %4109 = vmatmul.mubr.bf16.gmra.mrb[0].mxu0 %v3560
    %v4110 = vpop.f32.mrb[0].mxu0
    %v4111 = vadd.f32 %v3903, %v4110
    %v4112 = vpop.f32.mrb[0].mxu0
    %v4113 = vpop.f32.mrb[0].mxu0
    %v4114 = vadd.f32 %v3906, %v4113
    %v4115 = vpop.f32.mrb[0].mxu0
    %4116 = vmatprep.mubr.bf16.mxu0 0
    %4117 = vmatmul.mubr.bf16.gmra.mrb[0].mxu0 %v3563
    %v4118 = vpop.f32.mrb[0].mxu0
    %v4119 = vadd.f32 %v3911, %v4118
    %v4120 = vpop.f32.mrb[0].mxu0
    %v4121 = vpop.f32.mrb[0].mxu0
    %v4122 = vadd.f32 %v3914, %v4121
    %v4123 = vpop.f32.mrb[0].mxu0
    %4124 = vmatprep.mubr.bf16.mxu0 0
    %4125 = vmatmul.mubr.bf16.gmra.mrb[0].mxu0 %v3566
    %v4126 = vpop.f32.mrb[0].mxu0
    %v4127 = vadd.f32 %v3919, %v4126
    %v4128 = vpop.f32.mrb[0].mxu0
    %v4129 = vpop.f32.mrb[0].mxu0
    %v4130 = vadd.f32 %v3922, %v4129
    %v4131 = vpop.f32.mrb[0].mxu0
    %4132 = vmatprep.mubr.bf16.mxu0 0
    %4133 = vmatmul.mubr.bf16.gmra.mrb[0].mxu0 %v3569
    %v4134 = vpop.f32.mrb[0].mxu0
    %v4135 = vadd.f32 %v3927, %v4134
    %v4136 = vpop.f32.mrb[0].mxu0
    %v4137 = vpop.f32.mrb[0].mxu0
    %v4138 = vadd.f32 %v3930, %v4137
    %v4139 = vpop.f32.mrb[0].mxu0
    %4140 = vmatprep.mubr.bf16.mxu0 0
    %4141 = vmatmul.mubr.bf16.gmra.mrb[0].mxu0 %v3572
    %v4142 = vpop.f32.mrb[0].mxu0
    %v4143 = vadd.f32 %v3935, %v4142
    %v4144 = vpop.f32.mrb[0].mxu0
    %v4145 = vpop.f32.mrb[0].mxu0
    %v4146 = vadd.f32 %v3938, %v4145
    %v4147 = vpop.f32.mrb[0].mxu0
    %4148 = vmatprep.mubr.bf16.mxu0 0
    %4149 = vmatmul.mubr.bf16.gmra.mrb[0].mxu0 %v3575
    %v4150 = vpop.f32.mrb[0].mxu0
    %v4151 = vadd.f32 %v3943, %v4150
    %v4152 = vpop.f32.mrb[0].mxu0
    %v4153 = vpop.f32.mrb[0].mxu0
    %v4154 = vadd.f32 %v3946, %v4153
    %v4155 = vpop.f32.mrb[0].mxu0
    %4156 = vmatprep.mubr.bf16.mxu0 0
    %4157 = vmatmul.mubr.bf16.gmra.mrb[0].mxu0 %v3578
    %v4158 = vpop.f32.mrb[0].mxu0
    %v4159 = vadd.f32 %v3951, %v4158
    %v4160 = vpop.f32.mrb[0].mxu0
    %v4161 = vpop.f32.mrb[0].mxu0
    %v4162 = vadd.f32 %v3954, %v4161
    %v4163 = vpop.f32.mrb[0].mxu0
    %4164 = vmatprep.mubr.bf16.mxu0 0
    %4165 = vmatmul.mubr.bf16.gmra.mrb[0].mxu0 %v3581
    %v4166 = vpop.f32.mrb[0].mxu0
    %v4167 = vadd.f32 %v3959, %v4166
    %v4168 = vpop.f32.mrb[0].mxu0
    %v4169 = vpop.f32.mrb[0].mxu0
    %v4170 = vadd.f32 %v3962, %v4169
    %v4171 = vpop.f32.mrb[0].mxu0
    %4172 = vmatprep.mubr.bf16.mxu0 0
    %4173 = vmatmul.mubr.bf16.gmra.mrb[0].mxu0 %v3584
    %v4174 = vpop.f32.mrb[0].mxu0
    %v4175 = vadd.f32 %v3967, %v4174
    %v4176 = vpop.f32.mrb[0].mxu0
    %v4177 = vpop.f32.mrb[0].mxu0
    %v4178 = vadd.f32 %v3970, %v4177
    %v4179 = vpop.f32.mrb[0].mxu0
    %4180 = vmatprep.mubr.bf16.mxu0 0
    %4181 = vmatmul.mubr.bf16.gmra.mrb[0].mxu0 %v3587
    %v4182 = vpop.f32.mrb[0].mxu0
    %v4183 = vadd.f32 %v3975, %v4182
    %v4184 = vpop.f32.mrb[0].mxu0
    %v4185 = vpop.f32.mrb[0].mxu0
    %v4186 = vadd.f32 %v3978, %v4185
    %v4187 = vpop.f32.mrb[0].mxu0
    %4188 = vmatprep.mubr.bf16.mxu0 0
    %4189 = vmatmul.mubr.bf16.gmra.mrb[0].mxu0 %v3590
    %v4190 = vpop.f32.mrb[0].mxu0
    %v4191 = vadd.f32 %v3983, %v4190
    %v4192 = vpop.f32.mrb[0].mxu0
    %v4193 = vpop.f32.mrb[0].mxu0
    %v4194 = vadd.f32 %v3986, %v4193
    %v4195 = vpop.f32.mrb[0].mxu0
    %4196 = vmatprep.mubr.bf16.mxu0 0
    %4197 = vmatmul.mubr.bf16.gmra.mrb[0].mxu0 %v3593
    %v4198 = vpop.f32.mrb[0].mxu0
    %v4199 = vadd.f32 %v3991, %v4198
    %v4200 = vpop.f32.mrb[0].mxu0
    %v4201 = vpop.f32.mrb[0].mxu0
    %v4202 = vadd.f32 %v3994, %v4201
    %v4203 = vpop.f32.mrb[0].mxu0
    %4204 = vmatprep.mubr.bf16.mxu0 0
    %4205 = vmatmul.mubr.bf16.gmra.mrb[0].mxu0 %v3596
    %v4206 = vpop.f32.mrb[0].mxu0
    %v4207 = vadd.f32 %v3999, %v4206
    %v4208 = vpop.f32.mrb[0].mxu0
    %v4209 = vpop.f32.mrb[0].mxu0
    %v4210 = vadd.f32 %v4002, %v4209
    %v4211 = vpop.f32.mrb[0].mxu0
    %4212 = vmatprep.mubr.bf16.mxu0 0
    %4213 = vmatmul.mubr.bf16.gmra.mrb[0].mxu0 %v3599
    %v4214 = vpop.f32.mrb[0].mxu0
    %v4215 = vadd.f32 %v4007, %v4214
    %v4216 = vpop.f32.mrb[0].mxu0
    %v4217 = vpop.f32.mrb[0].mxu0
    %v4218 = vadd.f32 %v4010, %v4217
    %v4219 = vpop.f32.mrb[0].mxu0
    %4220 = vmatprep.mubr.bf16.mxu0 0
    %4221 = vmatmul.mubr.bf16.gmra.mrb[0].mxu0 %v3602
    %v4222 = vpop.f32.mrb[0].mxu0
    %v4223 = vadd.f32 %v4015, %v4222
    %v4224 = vpop.f32.mrb[0].mxu0
    %v4225 = vpop.f32.mrb[0].mxu0
    %v4226 = vpop.f32.mrb[0].mxu0
    %4227 = vdwg.mxu0
    %v4228 = vld [vmem:[%s8] sm:$0x7]
    %v4229 = vld [vmem:[%s6] sm:$0x1]
    %v4230 = vld [vmem:[%s7] sm:$0x1]
    %v4232 = vlaneseq
    %v4233 = vshrl.u32 %v4232, 7
    %v4234 = vsub.s32 0, %v4233
    %v4235 = vrot.slane %v4228, %v4234
    %v4236 = vlaneseq
    %v4237 = vshrl.u32 %v4236, 7
    %v4238 = vsub.s32 1, %v4237
    %v4239 = vrot.slane %v4228, %v4238
    %v4240 = vlaneseq
    %v4241 = vshrl.u32 %v4240, 7
    %v4242 = vsub.s32 2, %v4241
    %v4243 = vrot.slane %v4228, %v4242
    %vm4246 = vcmask 719872
    %v4247 = vsel %vm4246, %v4243, 0
    %4249 = vmatprep.subr.mxu0 0.0
    %4250 = vmatpush1.msra.mxu0 %v4055
    %4251 = vmatprep.subr.mxu0 0.0
    %4252 = vmatpush1.msra.mxu0 %v4058
    %4253 = vmatprep.subr.mxu0 0.0
    %4254 = vmatpush1.msra.mxu0 %v4063
    %4255 = vmatprep.subr.mxu0 0.0
    %4256 = vmatpush1.msra.mxu0 %v4066
    %4257 = vmatprep.subr.mxu0 0.0
    %4258 = vmatpush1.msra.mxu0 %v4071
    %4259 = vmatprep.subr.mxu0 0.0
    %4260 = vmatpush1.msra.mxu0 %v4074
    %4261 = vmatprep.subr.mxu0 0.0
    %4262 = vmatpush1.msra.mxu0 %v4079
    %4263 = vmatprep.subr.mxu0 0.0
    %4264 = vmatpush1.msra.mxu0 %v4082
    %4265 = vmatprep.subr.mxu0 0.0
    %4266 = vmatpush1.msra.mxu0 %v4087
    %4267 = vmatprep.subr.mxu0 0.0
    %4268 = vmatpush1.msra.mxu0 %v4090
    %4269 = vmatprep.subr.mxu0 0.0
    %4270 = vmatpush1.msra.mxu0 %v4095
    %4271 = vmatprep.subr.mxu0 0.0
    %4272 = vmatpush1.msra.mxu0 %v4098
    %4273 = vmatprep.subr.mxu0 0.0
    %4274 = vmatpush1.msra.mxu0 %v4103
    %4275 = vmatprep.subr.mxu0 0.0
    %4276 = vmatpush1.msra.mxu0 %v4106
    %4277 = vmatprep.subr.mxu0 0.0
    %4278 = vmatpush1.msra.mxu0 %v4111
    %4279 = vmatprep.subr.mxu0 0.0
    %4280 = vmatpush1.msra.mxu0 %v4114
    %4281 = vmatprep.subr.mxu0 0.0
    %4282 = vmatpush1.msra.mxu0 %v4119
    %4283 = vmatprep.subr.mxu0 0.0
    %4284 = vmatpush1.msra.mxu0 %v4122
    %4285 = vmatprep.subr.mxu0 0.0
    %4286 = vmatpush1.msra.mxu0 %v4127
    %4287 = vmatprep.subr.mxu0 0.0
    %4288 = vmatpush1.msra.mxu0 %v4130
    %4289 = vmatprep.subr.mxu0 0.0
    %4290 = vmatpush1.msra.mxu0 %v4135
    %4291 = vmatprep.subr.mxu0 0.0
    %4292 = vmatpush1.msra.mxu0 %v4138
    %4293 = vmatprep.subr.mxu0 0.0
    %4294 = vmatpush1.msra.mxu0 %v4143
    %4295 = vmatprep.subr.mxu0 0.0
    %4296 = vmatpush1.msra.mxu0 %v4146
    %4297 = vmatprep.subr.mxu0 0.0
    %4298 = vmatpush1.msra.mxu0 %v4151
    %4299 = vmatprep.subr.mxu0 0.0
    %4300 = vmatpush1.msra.mxu0 %v4154
    %4301 = vmatprep.subr.mxu0 0.0
    %4302 = vmatpush1.msra.mxu0 %v4159
    %4303 = vmatprep.subr.mxu0 0.0
    %4304 = vmatpush1.msra.mxu0 %v4162
    %4305 = vmatprep.subr.mxu0 0.0
    %4306 = vmatpush1.msra.mxu0 %v4167
    %4307 = vmatprep.subr.mxu0 0.0
    %4308 = vmatpush1.msra.mxu0 %v4170
    %4309 = vmatprep.subr.mxu0 0.0
    %4310 = vmatpush1.msra.mxu0 %v4175
    %4311 = vmatprep.subr.mxu0 0.0
    %4312 = vmatpush1.msra.mxu0 %v4178
    %4313 = vmatprep.mubr.f32.mxu0 %v4239
    %4314 = vmatmul.mubr.f32.gmra.mrb[0].mxu0 %v4235
    %v4315 = vpop.f32.mrb[0].mxu0
    %v4316 = vadd.f32 0.0, %v4315
    %v4317 = vpop.f32.mrb[0].mxu0
    %4318 = vdwg.mxu0
    %4319 = vmatprep.subr.mxu0 0.0
    %4320 = vmatpush1.msra.mxu0 %v4183
    %4321 = vmatprep.subr.mxu0 0.0
    %4322 = vmatpush1.msra.mxu0 %v4186
    %4323 = vmatprep.subr.mxu0 0.0
    %4324 = vmatpush1.msra.mxu0 %v4191
    %4325 = vmatprep.subr.mxu0 0.0
    %4326 = vmatpush1.msra.mxu0 %v4194
    %4327 = vmatprep.subr.mxu0 0.0
    %4328 = vmatpush1.msra.mxu0 %v4199
    %4329 = vmatprep.subr.mxu0 0.0
    %4330 = vmatpush1.msra.mxu0 %v4202
    %4331 = vmatprep.subr.mxu0 0.0
    %4332 = vmatpush1.msra.mxu0 %v4207
    %4333 = vmatprep.subr.mxu0 0.0
    %4334 = vmatpush1.msra.mxu0 %v4210
    %4335 = vmatprep.subr.mxu0 0.0
    %4336 = vmatpush1.msra.mxu0 %v4215
    %4337 = vmatprep.subr.mxu0 0.0
    %4338 = vmatpush1.msra.mxu0 %v4218
    %4339 = vmatprep.subr.mxu0 0.0
    %4340 = vmatpush1.msra.mxu0 %v4223
    %4341 = vmatprep.subr.mxu0 0.0
    %4342 = vmatpush1.msra.mxu0 0.0
    %4343 = vmatprep.subr.mxu0 0.0
    %4344 = vmatpush1.msra.mxu0 0.0
    %4345 = vmatprep.subr.mxu0 0.0
    %4346 = vmatpush1.msra.mxu0 0.0
    %4347 = vmatprep.subr.mxu0 0.0
    %4348 = vmatpush1.msra.mxu0 0.0
    %4349 = vmatprep.subr.mxu0 0.0
    %4350 = vmatpush1.msra.mxu0 0.0
    %4351 = vmatprep.subr.mxu0 0.0
    %4352 = vmatpush1.msra.mxu0 0.0
    %4353 = vmatprep.subr.mxu0 0.0
    %4354 = vmatpush1.msra.mxu0 0.0
    %4355 = vmatprep.subr.mxu0 0.0
    %4356 = vmatpush1.msra.mxu0 0.0
    %4357 = vmatprep.subr.mxu0 0.0
    %4358 = vmatpush1.msra.mxu0 0.0
    %4359 = vmatprep.subr.mxu0 0.0
    %4360 = vmatpush1.msra.mxu0 0.0
    %4361 = vmatprep.subr.mxu0 0.0
    %4362 = vmatpush1.msra.mxu0 0.0
    %4363 = vmatprep.subr.mxu0 0.0
    %4364 = vmatpush1.msra.mxu0 0.0
    %4365 = vmatprep.subr.mxu0 0.0
    %4366 = vmatpush1.msra.mxu0 0.0
    %4367 = vmatprep.subr.mxu0 0.0
    %4368 = vmatpush1.msra.mxu0 0.0
    %4369 = vmatprep.subr.mxu0 0.0
    %4370 = vmatpush1.msra.mxu0 0.0
    %4371 = vmatprep.subr.mxu0 0.0
    %4372 = vmatpush1.msra.mxu0 0.0
    %4373 = vmatprep.subr.mxu0 0.0
    %4374 = vmatpush1.msra.mxu0 0.0
    %4375 = vmatprep.subr.mxu0 0.0
    %4376 = vmatpush1.msra.mxu0 0.0
    %4377 = vmatprep.subr.mxu0 0.0
    %4378 = vmatpush1.msra.mxu0 0.0
    %4379 = vmatprep.subr.mxu0 0.0
    %4380 = vmatpush1.msra.mxu0 0.0
    %4381 = vmatprep.subr.mxu0 0.0
    %4382 = vmatpush1.msra.mxu0 0.0
    %4383 = vmatprep.mubr.f32.mxu0 0.0
    %4384 = vmatmul.mubr.f32.gmra.mrb[0].mxu0 %v4247
    %v4385 = vpop.f32.mrb[0].mxu0
    %v4386 = vadd.f32 %v4316, %v4385
    %v4387 = vpop.f32.mrb[0].mxu0
    %4388 = vdwg.mxu0
    %v4389 = vmul.f32 %v4386, 0.004201681
    %v4390 = vlaneseq
    %v4391 = vshrl.u32 %v4390, 7
    %v4392 = vsub.s32 0, %v4391
    %v4393 = vrot.slane %v4389, %v4392
    %v4394 = vsub.f32 %v4055, %v4393
    %v4395 = vsub.f32 %v4058, %v4393
    %v4396 = vsub.f32 %v4063, %v4393
    %v4397 = vsub.f32 %v4066, %v4393
    %v4398 = vsub.f32 %v4071, %v4393
    %v4399 = vsub.f32 %v4074, %v4393
    %v4400 = vsub.f32 %v4079, %v4393
    %v4401 = vsub.f32 %v4082, %v4393
    %v4402 = vsub.f32 %v4087, %v4393
    %v4403 = vsub.f32 %v4090, %v4393
    %v4404 = vsub.f32 %v4095, %v4393
    %v4405 = vsub.f32 %v4098, %v4393
    %v4406 = vsub.f32 %v4103, %v4393
    %v4407 = vsub.f32 %v4106, %v4393
    %v4408 = vsub.f32 %v4111, %v4393
    %v4409 = vsub.f32 %v4114, %v4393
    %v4410 = vsub.f32 %v4119, %v4393
    %v4411 = vsub.f32 %v4122, %v4393
    %v4412 = vsub.f32 %v4127, %v4393
    %v4413 = vsub.f32 %v4130, %v4393
    %v4414 = vsub.f32 %v4135, %v4393
    %v4415 = vsub.f32 %v4138, %v4393
    %v4416 = vsub.f32 %v4143, %v4393
    %v4417 = vsub.f32 %v4146, %v4393
    %v4418 = vsub.f32 %v4151, %v4393
    %v4419 = vsub.f32 %v4154, %v4393
    %v4420 = vsub.f32 %v4159, %v4393
    %v4421 = vsub.f32 %v4162, %v4393
    %v4422 = vsub.f32 %v4167, %v4393
    %v4423 = vsub.f32 %v4170, %v4393
    %v4424 = vsub.f32 %v4175, %v4393
    %v4425 = vsub.f32 %v4178, %v4393
    %v4426 = vsub.f32 %v4183, %v4393
    %v4427 = vsub.f32 %v4186, %v4393
    %v4428 = vsub.f32 %v4191, %v4393
    %v4429 = vsub.f32 %v4194, %v4393
    %v4430 = vsub.f32 %v4199, %v4393
    %v4431 = vsub.f32 %v4202, %v4393
    %v4432 = vsub.f32 %v4207, %v4393
    %v4433 = vsub.f32 %v4210, %v4393
    %v4434 = vsub.f32 %v4215, %v4393
    %v4435 = vsub.f32 %v4218, %v4393
    %v4436 = vsub.f32 %v4223, %v4393
    %v4437 = vmul.f32 %v4394, %v4394
    %v4438 = vmul.f32 %v4395, %v4395
    %v4439 = vmul.f32 %v4396, %v4396
    %v4440 = vmul.f32 %v4397, %v4397
    %v4441 = vmul.f32 %v4398, %v4398
    %v4442 = vmul.f32 %v4399, %v4399
    %v4443 = vmul.f32 %v4400, %v4400
    %v4444 = vmul.f32 %v4401, %v4401
    %v4445 = vmul.f32 %v4402, %v4402
    %v4446 = vmul.f32 %v4403, %v4403
    %v4447 = vmul.f32 %v4404, %v4404
    %v4448 = vmul.f32 %v4405, %v4405
    %v4449 = vmul.f32 %v4406, %v4406
    %v4450 = vmul.f32 %v4407, %v4407
    %v4451 = vmul.f32 %v4408, %v4408
    %v4452 = vmul.f32 %v4409, %v4409
    %v4453 = vmul.f32 %v4410, %v4410
    %v4454 = vmul.f32 %v4411, %v4411
    %v4455 = vmul.f32 %v4412, %v4412
    %v4456 = vmul.f32 %v4413, %v4413
    %v4457 = vmul.f32 %v4414, %v4414
    %v4458 = vmul.f32 %v4415, %v4415
    %v4459 = vmul.f32 %v4416, %v4416
    %v4460 = vmul.f32 %v4417, %v4417
    %v4461 = vmul.f32 %v4418, %v4418
    %v4462 = vmul.f32 %v4419, %v4419
    %v4463 = vmul.f32 %v4420, %v4420
    %v4464 = vmul.f32 %v4421, %v4421
    %v4465 = vmul.f32 %v4422, %v4422
    %v4466 = vmul.f32 %v4423, %v4423
    %v4467 = vmul.f32 %v4424, %v4424
    %v4468 = vmul.f32 %v4425, %v4425
    %v4469 = vmul.f32 %v4426, %v4426
    %v4470 = vmul.f32 %v4427, %v4427
    %v4471 = vmul.f32 %v4428, %v4428
    %v4472 = vmul.f32 %v4429, %v4429
    %v4473 = vmul.f32 %v4430, %v4430
    %v4474 = vmul.f32 %v4431, %v4431
    %v4475 = vmul.f32 %v4432, %v4432
    %v4476 = vmul.f32 %v4433, %v4433
    %v4477 = vmul.f32 %v4434, %v4434
    %v4478 = vmul.f32 %v4435, %v4435
    %v4479 = vmul.f32 %v4436, %v4436
    %4480 = vmatprep.subr.mxu0 0.0
    %4481 = vmatpush1.msra.mxu0 %v4437
    %4482 = vmatprep.subr.mxu0 0.0
    %4483 = vmatpush1.msra.mxu0 %v4438
    %4484 = vmatprep.subr.mxu0 0.0
    %4485 = vmatpush1.msra.mxu0 %v4439
    %4486 = vmatprep.subr.mxu0 0.0
    %4487 = vmatpush1.msra.mxu0 %v4440
    %4488 = vmatprep.subr.mxu0 0.0
    %4489 = vmatpush1.msra.mxu0 %v4441
    %4490 = vmatprep.subr.mxu0 0.0
    %4491 = vmatpush1.msra.mxu0 %v4442
    %4492 = vmatprep.subr.mxu0 0.0
    %4493 = vmatpush1.msra.mxu0 %v4443
    %4494 = vmatprep.subr.mxu0 0.0
    %4495 = vmatpush1.msra.mxu0 %v4444
    %4496 = vmatprep.subr.mxu0 0.0
    %4497 = vmatpush1.msra.mxu0 %v4445
    %4498 = vmatprep.subr.mxu0 0.0
    %4499 = vmatpush1.msra.mxu0 %v4446
    %4500 = vmatprep.subr.mxu0 0.0
    %4501 = vmatpush1.msra.mxu0 %v4447
    %4502 = vmatprep.subr.mxu0 0.0
    %4503 = vmatpush1.msra.mxu0 %v4448
    %4504 = vmatprep.subr.mxu0 0.0
    %4505 = vmatpush1.msra.mxu0 %v4449
    %4506 = vmatprep.subr.mxu0 0.0
    %4507 = vmatpush1.msra.mxu0 %v4450
    %4508 = vmatprep.subr.mxu0 0.0
    %4509 = vmatpush1.msra.mxu0 %v4451
    %4510 = vmatprep.subr.mxu0 0.0
    %4511 = vmatpush1.msra.mxu0 %v4452
    %4512 = vmatprep.subr.mxu0 0.0
    %4513 = vmatpush1.msra.mxu0 %v4453
    %4514 = vmatprep.subr.mxu0 0.0
    %4515 = vmatpush1.msra.mxu0 %v4454
    %4516 = vmatprep.subr.mxu0 0.0
    %4517 = vmatpush1.msra.mxu0 %v4455
    %4518 = vmatprep.subr.mxu0 0.0
    %4519 = vmatpush1.msra.mxu0 %v4456
    %4520 = vmatprep.subr.mxu0 0.0
    %4521 = vmatpush1.msra.mxu0 %v4457
    %4522 = vmatprep.subr.mxu0 0.0
    %4523 = vmatpush1.msra.mxu0 %v4458
    %4524 = vmatprep.subr.mxu0 0.0
    %4525 = vmatpush1.msra.mxu0 %v4459
    %4526 = vmatprep.subr.mxu0 0.0
    %4527 = vmatpush1.msra.mxu0 %v4460
    %4528 = vmatprep.subr.mxu0 0.0
    %4529 = vmatpush1.msra.mxu0 %v4461
    %4530 = vmatprep.subr.mxu0 0.0
    %4531 = vmatpush1.msra.mxu0 %v4462
    %4532 = vmatprep.subr.mxu0 0.0
    %4533 = vmatpush1.msra.mxu0 %v4463
    %4534 = vmatprep.subr.mxu0 0.0
    %4535 = vmatpush1.msra.mxu0 %v4464
    %4536 = vmatprep.subr.mxu0 0.0
    %4537 = vmatpush1.msra.mxu0 %v4465
    %4538 = vmatprep.subr.mxu0 0.0
    %4539 = vmatpush1.msra.mxu0 %v4466
    %4540 = vmatprep.subr.mxu0 0.0
    %4541 = vmatpush1.msra.mxu0 %v4467
    %4542 = vmatprep.subr.mxu0 0.0
    %4543 = vmatpush1.msra.mxu0 %v4468
    %4544 = vmatprep.mubr.f32.mxu0 %v4239
    %4545 = vmatmul.mubr.f32.gmra.mrb[0].mxu0 %v4235
    %v4546 = vpop.f32.mrb[0].mxu0
    %v4547 = vadd.f32 0.0, %v4546
    %v4548 = vpop.f32.mrb[0].mxu0
    %4549 = vdwg.mxu0
    %4550 = vmatprep.subr.mxu0 0.0
    %4551 = vmatpush1.msra.mxu0 %v4469
    %4552 = vmatprep.subr.mxu0 0.0
    %4553 = vmatpush1.msra.mxu0 %v4470
    %4554 = vmatprep.subr.mxu0 0.0
    %4555 = vmatpush1.msra.mxu0 %v4471
    %4556 = vmatprep.subr.mxu0 0.0
    %4557 = vmatpush1.msra.mxu0 %v4472
    %4558 = vmatprep.subr.mxu0 0.0
    %4559 = vmatpush1.msra.mxu0 %v4473
    %4560 = vmatprep.subr.mxu0 0.0
    %4561 = vmatpush1.msra.mxu0 %v4474
    %4562 = vmatprep.subr.mxu0 0.0
    %4563 = vmatpush1.msra.mxu0 %v4475
    %4564 = vmatprep.subr.mxu0 0.0
    %4565 = vmatpush1.msra.mxu0 %v4476
    %4566 = vmatprep.subr.mxu0 0.0
    %4567 = vmatpush1.msra.mxu0 %v4477
    %4568 = vmatprep.subr.mxu0 0.0
    %4569 = vmatpush1.msra.mxu0 %v4478
    %4570 = vmatprep.subr.mxu0 0.0
    %4571 = vmatpush1.msra.mxu0 %v4479
    %4572 = vmatprep.subr.mxu0 0.0
    %4573 = vmatpush1.msra.mxu0 0.0
    %4574 = vmatprep.subr.mxu0 0.0
    %4575 = vmatpush1.msra.mxu0 0.0
    %4576 = vmatprep.subr.mxu0 0.0
    %4577 = vmatpush1.msra.mxu0 0.0
    %4578 = vmatprep.subr.mxu0 0.0
    %4579 = vmatpush1.msra.mxu0 0.0
    %4580 = vmatprep.subr.mxu0 0.0
    %4581 = vmatpush1.msra.mxu0 0.0
    %4582 = vmatprep.subr.mxu0 0.0
    %4583 = vmatpush1.msra.mxu0 0.0
    %4584 = vmatprep.subr.mxu0 0.0
    %4585 = vmatpush1.msra.mxu0 0.0
    %4586 = vmatprep.subr.mxu0 0.0
    %4587 = vmatpush1.msra.mxu0 0.0
    %4588 = vmatprep.subr.mxu0 0.0
    %4589 = vmatpush1.msra.mxu0 0.0
    %4590 = vmatprep.subr.mxu0 0.0
    %4591 = vmatpush1.msra.mxu0 0.0
    %4592 = vmatprep.subr.mxu0 0.0
    %4593 = vmatpush1.msra.mxu0 0.0
    %4594 = vmatprep.subr.mxu0 0.0
    %4595 = vmatpush1.msra.mxu0 0.0
    %4596 = vmatprep.subr.mxu0 0.0
    %4597 = vmatpush1.msra.mxu0 0.0
    %4598 = vmatprep.subr.mxu0 0.0
    %4599 = vmatpush1.msra.mxu0 0.0
    %4600 = vmatprep.subr.mxu0 0.0
    %4601 = vmatpush1.msra.mxu0 0.0
    %4602 = vmatprep.subr.mxu0 0.0
    %4603 = vmatpush1.msra.mxu0 0.0
    %4604 = vmatprep.subr.mxu0 0.0
    %4605 = vmatpush1.msra.mxu0 0.0
    %4606 = vmatprep.subr.mxu0 0.0
    %4607 = vmatpush1.msra.mxu0 0.0
    %4608 = vmatprep.subr.mxu0 0.0
    %4609 = vmatpush1.msra.mxu0 0.0
    %4610 = vmatprep.subr.mxu0 0.0
    %4611 = vmatpush1.msra.mxu0 0.0
    %4612 = vmatprep.subr.mxu0 0.0
    %4613 = vmatpush1.msra.mxu0 0.0
    %4614 = vmatprep.mubr.f32.mxu0 0.0
    %4615 = vmatmul.mubr.f32.gmra.mrb[0].mxu0 %v4247
    %v4616 = vpop.f32.mrb[0].mxu0
    %v4617 = vadd.f32 %v4547, %v4616
    %v4618 = vpop.f32.mrb[0].mxu0
    %4619 = vdwg.mxu0
    %v4620 = vmul.f32 %v4617, 0.004201681
    %v4621 = vadd.f32 %v4620, 1e-05
    %v4622 = vrsqrt.pop %v4621
    %v4623 = vlaneseq
    %v4624 = vshrl.u32 %v4623, 7
    %v4625 = vsub.s32 0, %v4624
    %v4626 = vrot.slane %v4622, %v4625
    %v4627 = vmul.f32 %v4394, %v4626
    %v4628 = vmul.f32 %v4395, %v4626
    %v4629 = vmul.f32 %v4396, %v4626
    %v4630 = vmul.f32 %v4397, %v4626
    %v4631 = vmul.f32 %v4398, %v4626
    %v4632 = vmul.f32 %v4399, %v4626
    %v4633 = vmul.f32 %v4400, %v4626
    %v4634 = vmul.f32 %v4401, %v4626
    %v4635 = vmul.f32 %v4402, %v4626
    %v4636 = vmul.f32 %v4403, %v4626
    %v4637 = vmul.f32 %v4404, %v4626
    %v4638 = vmul.f32 %v4405, %v4626
    %v4639 = vmul.f32 %v4406, %v4626
    %v4640 = vmul.f32 %v4407, %v4626
    %v4641 = vmul.f32 %v4408, %v4626
    %v4642 = vmul.f32 %v4409, %v4626
    %v4643 = vmul.f32 %v4410, %v4626
    %v4644 = vmul.f32 %v4411, %v4626
    %v4645 = vmul.f32 %v4412, %v4626
    %v4646 = vmul.f32 %v4413, %v4626
    %v4647 = vmul.f32 %v4414, %v4626
    %v4648 = vmul.f32 %v4415, %v4626
    %v4649 = vmul.f32 %v4416, %v4626
    %v4650 = vmul.f32 %v4417, %v4626
    %v4651 = vmul.f32 %v4418, %v4626
    %v4652 = vmul.f32 %v4419, %v4626
    %v4653 = vmul.f32 %v4420, %v4626
    %v4654 = vmul.f32 %v4421, %v4626
    %v4655 = vmul.f32 %v4422, %v4626
    %v4656 = vmul.f32 %v4423, %v4626
    %v4657 = vmul.f32 %v4424, %v4626
    %v4658 = vmul.f32 %v4425, %v4626
    %v4659 = vmul.f32 %v4426, %v4626
    %v4660 = vmul.f32 %v4427, %v4626
    %v4661 = vmul.f32 %v4428, %v4626
    %v4662 = vmul.f32 %v4429, %v4626
    %v4663 = vmul.f32 %v4430, %v4626
    %v4664 = vmul.f32 %v4431, %v4626
    %v4665 = vmul.f32 %v4432, %v4626
    %v4666 = vmul.f32 %v4433, %v4626
    %v4667 = vmul.f32 %v4434, %v4626
    %v4668 = vmul.f32 %v4435, %v4626
    %v4669 = vmul.f32 %v4436, %v4626
    %v4671 = vlaneseq
    %v4672 = vshrl.u32 %v4671, 7
    %v4673 = vsub.s32 0, %v4672
    %v4674 = vrot.slane %v4229, %v4673
    %v4676 = vmul.f32 %v4627, %v4674
    %v4677 = vmul.f32 %v4628, %v4674
    %v4678 = vmul.f32 %v4629, %v4674
    %v4679 = vmul.f32 %v4630, %v4674
    %v4680 = vmul.f32 %v4631, %v4674
    %v4681 = vmul.f32 %v4632, %v4674
    %v4682 = vmul.f32 %v4633, %v4674
    %v4683 = vmul.f32 %v4634, %v4674
    %v4684 = vmul.f32 %v4635, %v4674
    %v4685 = vmul.f32 %v4636, %v4674
    %v4686 = vmul.f32 %v4637, %v4674
    %v4687 = vmul.f32 %v4638, %v4674
    %v4688 = vmul.f32 %v4639, %v4674
    %v4689 = vmul.f32 %v4640, %v4674
    %v4690 = vmul.f32 %v4641, %v4674
    %v4691 = vmul.f32 %v4642, %v4674
    %v4692 = vmul.f32 %v4643, %v4674
    %v4693 = vmul.f32 %v4644, %v4674
    %v4694 = vmul.f32 %v4645, %v4674
    %v4695 = vmul.f32 %v4646, %v4674
    %v4696 = vmul.f32 %v4647, %v4674
    %v4697 = vmul.f32 %v4648, %v4674
    %v4698 = vmul.f32 %v4649, %v4674
    %v4699 = vmul.f32 %v4650, %v4674
    %v4700 = vmul.f32 %v4651, %v4674
    %v4701 = vmul.f32 %v4652, %v4674
    %v4702 = vmul.f32 %v4653, %v4674
    %v4703 = vmul.f32 %v4654, %v4674
    %v4704 = vmul.f32 %v4655, %v4674
    %v4705 = vmul.f32 %v4656, %v4674
    %v4706 = vmul.f32 %v4657, %v4674
    %v4707 = vmul.f32 %v4658, %v4674
    %v4708 = vmul.f32 %v4659, %v4674
    %v4709 = vmul.f32 %v4660, %v4674
    %v4710 = vmul.f32 %v4661, %v4674
    %v4711 = vmul.f32 %v4662, %v4674
    %v4712 = vmul.f32 %v4663, %v4674
    %v4713 = vmul.f32 %v4664, %v4674
    %v4714 = vmul.f32 %v4665, %v4674
    %v4715 = vmul.f32 %v4666, %v4674
    %v4716 = vmul.f32 %v4667, %v4674
    %v4717 = vmul.f32 %v4668, %v4674
    %v4718 = vmul.f32 %v4669, %v4674
    %v4720 = vlaneseq
    %v4721 = vshrl.u32 %v4720, 7
    %v4722 = vsub.s32 0, %v4721
    %v4723 = vrot.slane %v4230, %v4722
    %v4725 = vadd.f32 %v4676, %v4723
    %v4726 = vadd.f32 %v4677, %v4723
    %v4727 = vadd.f32 %v4678, %v4723
    %v4728 = vadd.f32 %v4679, %v4723
    %v4729 = vadd.f32 %v4680, %v4723
    %v4730 = vadd.f32 %v4681, %v4723
    %v4731 = vadd.f32 %v4682, %v4723
    %v4732 = vadd.f32 %v4683, %v4723
    %v4733 = vadd.f32 %v4684, %v4723
    %v4734 = vadd.f32 %v4685, %v4723
    %v4735 = vadd.f32 %v4686, %v4723
    %v4736 = vadd.f32 %v4687, %v4723
    %v4737 = vadd.f32 %v4688, %v4723
    %v4738 = vadd.f32 %v4689, %v4723
    %v4739 = vadd.f32 %v4690, %v4723
    %v4740 = vadd.f32 %v4691, %v4723
    %v4741 = vadd.f32 %v4692, %v4723
    %v4742 = vadd.f32 %v4693, %v4723
    %v4743 = vadd.f32 %v4694, %v4723
    %v4744 = vadd.f32 %v4695, %v4723
    %v4745 = vadd.f32 %v4696, %v4723
    %v4746 = vadd.f32 %v4697, %v4723
    %v4747 = vadd.f32 %v4698, %v4723
    %v4748 = vadd.f32 %v4699, %v4723
    %v4749 = vadd.f32 %v4700, %v4723
    %v4750 = vadd.f32 %v4701, %v4723
    %v4751 = vadd.f32 %v4702, %v4723
    %v4752 = vadd.f32 %v4703, %v4723
    %v4753 = vadd.f32 %v4704, %v4723
    %v4754 = vadd.f32 %v4705, %v4723
    %v4755 = vadd.f32 %v4706, %v4723
    %v4756 = vadd.f32 %v4707, %v4723
    %v4757 = vadd.f32 %v4708, %v4723
    %v4758 = vadd.f32 %v4709, %v4723
    %v4759 = vadd.f32 %v4710, %v4723
    %v4760 = vadd.f32 %v4711, %v4723
    %v4761 = vadd.f32 %v4712, %v4723
    %v4762 = vadd.f32 %v4713, %v4723
    %v4763 = vadd.f32 %v4714, %v4723
    %v4764 = vadd.f32 %v4715, %v4723
    %v4765 = vadd.f32 %v4716, %v4723
    %v4766 = vadd.f32 %v4717, %v4723
    %v4767 = vadd.f32 %v4718, %v4723
    %v4768 = vmax.f32 %v4725, 0.0
    %v4769 = vmax.f32 %v4726, 0.0
    %v4770 = vmax.f32 %v4727, 0.0
    %v4771 = vmax.f32 %v4728, 0.0
    %v4772 = vmax.f32 %v4729, 0.0
    %v4773 = vmax.f32 %v4730, 0.0
    %v4774 = vmax.f32 %v4731, 0.0
    %v4775 = vmax.f32 %v4732, 0.0
    %v4776 = vmax.f32 %v4733, 0.0
    %v4777 = vmax.f32 %v4734, 0.0
    %v4778 = vmax.f32 %v4735, 0.0
    %v4779 = vmax.f32 %v4736, 0.0
    %v4780 = vmax.f32 %v4737, 0.0
    %v4781 = vmax.f32 %v4738, 0.0
    %v4782 = vmax.f32 %v4739, 0.0
    %v4783 = vmax.f32 %v4740, 0.0
    %v4784 = vmax.f32 %v4741, 0.0
    %v4785 = vmax.f32 %v4742, 0.0
    %v4786 = vmax.f32 %v4743, 0.0
    %v4787 = vmax.f32 %v4744, 0.0
    %v4788 = vmax.f32 %v4745, 0.0
    %v4789 = vmax.f32 %v4746, 0.0
    %v4790 = vmax.f32 %v4747, 0.0
    %v4791 = vmax.f32 %v4748, 0.0
    %v4792 = vmax.f32 %v4749, 0.0
    %v4793 = vmax.f32 %v4750, 0.0
    %v4794 = vmax.f32 %v4751, 0.0
    %v4795 = vmax.f32 %v4752, 0.0
    %v4796 = vmax.f32 %v4753, 0.0
    %v4797 = vmax.f32 %v4754, 0.0
    %v4798 = vmax.f32 %v4755, 0.0
    %v4799 = vmax.f32 %v4756, 0.0
    %v4800 = vmax.f32 %v4757, 0.0
    %v4801 = vmax.f32 %v4758, 0.0
    %v4802 = vmax.f32 %v4759, 0.0
    %v4803 = vmax.f32 %v4760, 0.0
    %v4804 = vmax.f32 %v4761, 0.0
    %v4805 = vmax.f32 %v4762, 0.0
    %v4806 = vmax.f32 %v4763, 0.0
    %v4807 = vmax.f32 %v4764, 0.0
    %v4808 = vmax.f32 %v4765, 0.0
    %v4809 = vmax.f32 %v4766, 0.0
    %v4810 = vmax.f32 %v4767, 0.0
    %v4811 = vpack.c.bf16 %v4769, %v4768
    %v4812 = vpack.c.bf16 %v4771, %v4770
    %v4813 = vpack.c.bf16 %v4773, %v4772
    %v4814 = vpack.c.bf16 %v4775, %v4774
    %v4815 = vpack.c.bf16 %v4777, %v4776
    %v4816 = vpack.c.bf16 %v4779, %v4778
    %v4817 = vpack.c.bf16 %v4781, %v4780
    %v4818 = vpack.c.bf16 %v4783, %v4782
    %v4819 = vpack.c.bf16 %v4785, %v4784
    %v4820 = vpack.c.bf16 %v4787, %v4786
    %v4821 = vpack.c.bf16 %v4789, %v4788
    %v4822 = vpack.c.bf16 %v4791, %v4790
    %v4823 = vpack.c.bf16 %v4793, %v4792
    %v4824 = vpack.c.bf16 %v4795, %v4794
    %v4825 = vpack.c.bf16 %v4797, %v4796
    %v4826 = vpack.c.bf16 %v4799, %v4798
    %v4827 = vpack.c.bf16 %v4801, %v4800
    %v4828 = vpack.c.bf16 %v4803, %v4802
    %v4829 = vpack.c.bf16 %v4805, %v4804
    %v4830 = vpack.c.bf16 %v4807, %v4806
    %v4831 = vpack.c.bf16 %v4809, %v4808
    %v4832 = vpack.c.bf16 %v4810, %v4810
    %v4855 = vunpack.c.l.b16 %v4811
    %v4856 = vunpack.c.h.b16 %v4811
    %v4857 = vunpack.c.l.b16 %v4812
    %v4858 = vunpack.c.h.b16 %v4812
    %v4859 = vunpack.c.l.b16 %v4813
    %v4860 = vunpack.c.h.b16 %v4813
    %v4861 = vunpack.c.l.b16 %v4814
    %v4862 = vunpack.c.h.b16 %v4814
    %v4863 = vunpack.c.l.b16 %v4815
    %v4864 = vunpack.c.h.b16 %v4815
    %v4865 = vunpack.c.l.b16 %v4816
    %v4866 = vunpack.c.h.b16 %v4816
    %v4867 = vunpack.c.l.b16 %v4817
    %v4868 = vunpack.c.h.b16 %v4817
    %v4869 = vunpack.c.l.b16 %v4818
    %v4870 = vunpack.c.h.b16 %v4818
    %v4871 = vunpack.c.l.b16 %v4819
    %v4872 = vunpack.c.h.b16 %v4819
    %v4873 = vunpack.c.l.b16 %v4820
    %v4874 = vunpack.c.h.b16 %v4820
    %v4875 = vunpack.c.l.b16 %v4821
    %v4876 = vunpack.c.h.b16 %v4821
    %v4877 = vunpack.c.l.b16 %v4822
    %v4878 = vunpack.c.h.b16 %v4822
    %v4879 = vunpack.c.l.b16 %v4823
    %v4880 = vunpack.c.h.b16 %v4823
    %v4881 = vunpack.c.l.b16 %v4824
    %v4882 = vunpack.c.h.b16 %v4824
    %v4883 = vunpack.c.l.b16 %v4825
    %v4884 = vunpack.c.h.b16 %v4825
    %v4885 = vunpack.c.l.b16 %v4826
    %v4886 = vunpack.c.h.b16 %v4826
    %v4887 = vunpack.c.l.b16 %v4827
    %v4888 = vunpack.c.h.b16 %v4827
    %v4889 = vunpack.c.l.b16 %v4828
    %v4890 = vunpack.c.h.b16 %v4828
    %v4891 = vunpack.c.l.b16 %v4829
    %v4892 = vunpack.c.h.b16 %v4829
    %v4893 = vunpack.c.l.b16 %v4830
    %v4894 = vunpack.c.h.b16 %v4830
    %v4895 = vunpack.c.l.b16 %v4831
    %v4896 = vunpack.c.h.b16 %v4831
    %v4897 = vunpack.c.l.b16 %v4832
    %v4898 = vpack.c.b16 %v4855, %v4855
    %v4899 = vpack.c.b16 %v4856, %v4856
    %v4900 = vpack.c.b16 %v4857, %v4857
    %v4901 = vpack.c.b16 %v4858, %v4858
    %v4902 = vpack.c.b16 %v4859, %v4859
    %v4903 = vpack.c.b16 %v4860, %v4860
    %v4904 = vpack.c.b16 %v4861, %v4861
    %v4905 = vpack.c.b16 %v4862, %v4862
    %v4906 = vpack.c.b16 %v4863, %v4863
    %v4907 = vpack.c.b16 %v4864, %v4864
    %v4908 = vpack.c.b16 %v4865, %v4865
    %v4909 = vpack.c.b16 %v4866, %v4866
    %v4910 = vpack.c.b16 %v4867, %v4867
    %v4911 = vpack.c.b16 %v4868, %v4868
    %v4912 = vpack.c.b16 %v4869, %v4869
    %v4913 = vpack.c.b16 %v4870, %v4870
    %v4914 = vpack.c.b16 %v4871, %v4871
    %v4915 = vpack.c.b16 %v4872, %v4872
    %v4916 = vpack.c.b16 %v4873, %v4873
    %v4917 = vpack.c.b16 %v4874, %v4874
    %v4918 = vpack.c.b16 %v4875, %v4875
    %v4919 = vpack.c.b16 %v4876, %v4876
    %v4920 = vpack.c.b16 %v4877, %v4877
    %v4921 = vpack.c.b16 %v4878, %v4878
    %v4922 = vpack.c.b16 %v4879, %v4879
    %v4923 = vpack.c.b16 %v4880, %v4880
    %v4924 = vpack.c.b16 %v4881, %v4881
    %v4925 = vpack.c.b16 %v4882, %v4882
    %v4926 = vpack.c.b16 %v4883, %v4883
    %v4927 = vpack.c.b16 %v4884, %v4884
    %v4928 = vpack.c.b16 %v4885, %v4885
    %v4929 = vpack.c.b16 %v4886, %v4886
    %v4930 = vpack.c.b16 %v4887, %v4887
    %v4931 = vpack.c.b16 %v4888, %v4888
    %v4932 = vpack.c.b16 %v4889, %v4889
    %v4933 = vpack.c.b16 %v4890, %v4890
    %v4934 = vpack.c.b16 %v4891, %v4891
    %v4935 = vpack.c.b16 %v4892, %v4892
    %v4936 = vpack.c.b16 %v4893, %v4893
    %v4937 = vpack.c.b16 %v4894, %v4894
    %v4938 = vpack.c.b16 %v4895, %v4895
    %v4939 = vpack.c.b16 %v4896, %v4896
    %v4940 = vpack.c.b16 %v4897, %v4897
    %vm4984 = vcmask 257024
    %4985 = vst.msk [vmem:[#allocation3] sm:$0xf] %vm4984, %v4898
    %4986 = vst.msk [vmem:[#allocation3 + $0x4] sm:$0xf] %vm4984, %v4899
    %4987 = vst.msk [vmem:[#allocation3 + $0x8] sm:$0xf] %vm4984, %v4900
    %4988 = vst.msk [vmem:[#allocation3 + $0xc] sm:$0xf] %vm4984, %v4901
    %4989 = vst.msk [vmem:[#allocation3 + $0x10] sm:$0xf] %vm4984, %v4902
    %4990 = vst.msk [vmem:[#allocation3 + $0x14] sm:$0xf] %vm4984, %v4903
    %4991 = vst.msk [vmem:[#allocation3 + $0x18] sm:$0xf] %vm4984, %v4904
    %4992 = vst.msk [vmem:[#allocation3 + $0x1c] sm:$0xf] %vm4984, %v4905
    %4993 = vst.msk [vmem:[#allocation3 + $0x20] sm:$0xf] %vm4984, %v4906
    %4994 = vst.msk [vmem:[#allocation3 + $0x24] sm:$0xf] %vm4984, %v4907
    %4995 = vst.msk [vmem:[#allocation3 + $0x28] sm:$0xf] %vm4984, %v4908
    %4996 = vst.msk [vmem:[#allocation3 + $0x2c] sm:$0xf] %vm4984, %v4909
    %4997 = vst.msk [vmem:[#allocation3 + $0x30] sm:$0xf] %vm4984, %v4910
    %4998 = vst.msk [vmem:[#allocation3 + $0x34] sm:$0xf] %vm4984, %v4911
    %4999 = vst.msk [vmem:[#allocation3 + $0x38] sm:$0xf] %vm4984, %v4912
    %5000 = vst.msk [vmem:[#allocation3 + $0x3c] sm:$0xf] %vm4984, %v4913
    %5001 = vst.msk [vmem:[#allocation3 + $0x40] sm:$0xf] %vm4984, %v4914
    %5002 = vst.msk [vmem:[#allocation3 + $0x44] sm:$0xf] %vm4984, %v4915
    %5003 = vst.msk [vmem:[#allocation3 + $0x48] sm:$0xf] %vm4984, %v4916
    %5004 = vst.msk [vmem:[#allocation3 + $0x4c] sm:$0xf] %vm4984, %v4917
    %5005 = vst.msk [vmem:[#allocation3 + $0x50] sm:$0xf] %vm4984, %v4918
    %5006 = vst.msk [vmem:[#allocation3 + $0x54] sm:$0xf] %vm4984, %v4919
    %5007 = vst.msk [vmem:[#allocation3 + $0x58] sm:$0xf] %vm4984, %v4920
    %5008 = vst.msk [vmem:[#allocation3 + $0x5c] sm:$0xf] %vm4984, %v4921
    %5009 = vst.msk [vmem:[#allocation3 + $0x60] sm:$0xf] %vm4984, %v4922
    %5010 = vst.msk [vmem:[#allocation3 + $0x64] sm:$0xf] %vm4984, %v4923
    %5011 = vst.msk [vmem:[#allocation3 + $0x68] sm:$0xf] %vm4984, %v4924
    %5012 = vst.msk [vmem:[#allocation3 + $0x6c] sm:$0xf] %vm4984, %v4925
    %5013 = vst.msk [vmem:[#allocation3 + $0x70] sm:$0xf] %vm4984, %v4926
    %5014 = vst.msk [vmem:[#allocation3 + $0x74] sm:$0xf] %vm4984, %v4927
    %5015 = vst.msk [vmem:[#allocation3 + $0x78] sm:$0xf] %vm4984, %v4928
    %5016 = vst.msk [vmem:[#allocation3 + $0x7c] sm:$0xf] %vm4984, %v4929
    %5017 = vst.msk [vmem:[#allocation3 + $0x80] sm:$0xf] %vm4984, %v4930
    %5018 = vst.msk [vmem:[#allocation3 + $0x84] sm:$0xf] %vm4984, %v4931
    %5019 = vst.msk [vmem:[#allocation3 + $0x88] sm:$0xf] %vm4984, %v4932
    %5020 = vst.msk [vmem:[#allocation3 + $0x8c] sm:$0xf] %vm4984, %v4933
    %5021 = vst.msk [vmem:[#allocation3 + $0x90] sm:$0xf] %vm4984, %v4934
    %5022 = vst.msk [vmem:[#allocation3 + $0x94] sm:$0xf] %vm4984, %v4935
    %5023 = vst.msk [vmem:[#allocation3 + $0x98] sm:$0xf] %vm4984, %v4936
    %5024 = vst.msk [vmem:[#allocation3 + $0x9c] sm:$0xf] %vm4984, %v4937
    %5025 = vst.msk [vmem:[#allocation3 + $0xa0] sm:$0xf] %vm4984, %v4938
    %5026 = vst.msk [vmem:[#allocation3 + $0xa4] sm:$0xf] %vm4984, %v4939
    %5027 = vst.msk [vmem:[#allocation3 + $0xa8] sm:$0xf] %vm4984, %v4940
    %v5028 = vld [vmem:[#allocation3] sm:$0xf]
    %v5029 = vld [vmem:[#allocation3 + $0x4] sm:$0xf]
    %v5030 = vld [vmem:[#allocation3 + $0x8] sm:$0xf]
    %v5031 = vld [vmem:[#allocation3 + $0xc] sm:$0xf]
    %v5032 = vld [vmem:[#allocation3 + $0x10] sm:$0xf]
    %v5033 = vld [vmem:[#allocation3 + $0x14] sm:$0xf]
    %v5034 = vld [vmem:[#allocation3 + $0x18] sm:$0xf]
    %v5035 = vld [vmem:[#allocation3 + $0x1c] sm:$0xf]
    %v5036 = vld [vmem:[#allocation3 + $0x20] sm:$0xf]
    %v5037 = vld [vmem:[#allocation3 + $0x24] sm:$0xf]
    %v5038 = vld [vmem:[#allocation3 + $0x28] sm:$0xf]
    %v5039 = vld [vmem:[#allocation3 + $0x2c] sm:$0xf]
    %v5040 = vld [vmem:[#allocation3 + $0x30] sm:$0xf]
    %v5041 = vld [vmem:[#allocation3 + $0x34] sm:$0xf]
    %v5042 = vld [vmem:[#allocation3 + $0x38] sm:$0xf]
    %v5043 = vld [vmem:[#allocation3 + $0x3c] sm:$0xf]
    %v5044 = vld [vmem:[#allocation3 + $0x40] sm:$0xf]
    %v5045 = vld [vmem:[#allocation3 + $0x44] sm:$0xf]
    %v5046 = vld [vmem:[#allocation3 + $0x48] sm:$0xf]
    %v5047 = vld [vmem:[#allocation3 + $0x4c] sm:$0xf]
    %v5048 = vld [vmem:[#allocation3 + $0x50] sm:$0xf]
    %v5049 = vld [vmem:[#allocation3 + $0x54] sm:$0xf]
    %v5050 = vld [vmem:[#allocation3 + $0x58] sm:$0xf]
    %v5051 = vld [vmem:[#allocation3 + $0x5c] sm:$0xf]
    %v5052 = vld [vmem:[#allocation3 + $0x60] sm:$0xf]
    %v5053 = vld [vmem:[#allocation3 + $0x64] sm:$0xf]
    %v5054 = vld [vmem:[#allocation3 + $0x68] sm:$0xf]
    %v5055 = vld [vmem:[#allocation3 + $0x6c] sm:$0xf]
    %v5056 = vld [vmem:[#allocation3 + $0x70] sm:$0xf]
    %v5057 = vld [vmem:[#allocation3 + $0x74] sm:$0xf]
    %v5058 = vld [vmem:[#allocation3 + $0x78] sm:$0xf]
    %v5059 = vld [vmem:[#allocation3 + $0x7c] sm:$0xf]
    %v5060 = vld [vmem:[#allocation3 + $0x80] sm:$0x1]
    %v5061 = vld [vmem:[#allocation3] sm:$0xe]
    %v5062 = vld [vmem:[#allocation3 + $0x80] sm:$0x3]
    %v5063 = vld [vmem:[#allocation3] sm:$0xc]
    %v5064 = vld [vmem:[#allocation3 + $0x8] sm:$0xc]
    %v5065 = vld [vmem:[#allocation3 + $0x80] sm:$0xf]
    %v5066 = vld [vmem:[#allocation3 + $0x84] sm:$0xf]
    %v5067 = vld [vmem:[#allocation3 + $0x88] sm:$0x3]
    %v5068 = vld [vmem:[#allocation3 + $0x88] sm:$0x7]
    %v5069 = vld [vmem:[#allocation3 + $0x8] sm:$0x8]
    %v5070 = vld [vmem:[#allocation3 + $0x88] sm:$0xf]
    %v5071 = vld [vmem:[#allocation3 + $0x8c] sm:$0xf]
    %v5072 = vld [vmem:[#allocation3 + $0x90] sm:$0xf]
    %v5073 = vld [vmem:[#allocation3 + $0x94] sm:$0x1]
    %v5074 = vld [vmem:[#allocation3 + $0x14] sm:$0xe]
    %v5075 = vld [vmem:[#allocation3 + $0x94] sm:$0x3]
    %v5076 = vld [vmem:[#allocation3 + $0x14] sm:$0xc]
    %v5077 = vld [vmem:[#allocation3 + $0x1c] sm:$0xc]
    %v5078 = vld [vmem:[#allocation3 + $0x94] sm:$0xf]
    %v5079 = vld [vmem:[#allocation3 + $0x98] sm:$0xf]
    %v5080 = vld [vmem:[#allocation3 + $0x9c] sm:$0x3]
    %v5081 = vld [vmem:[#allocation3 + $0x9c] sm:$0x7]
    %v5082 = vld [vmem:[#allocation3 + $0x1c] sm:$0x8]
    %v5083 = vld [vmem:[#allocation3 + $0x9c] sm:$0xf]
    %v5084 = vld [vmem:[#allocation3 + $0xa0] sm:$0xf]
    %v5085 = vld [vmem:[#allocation3 + $0xa4] sm:$0xf]
    %v5086 = vld [vmem:[#allocation3 + $0xa8] sm:$0x1]
    %v5087 = vld [vmem:[#allocation3 + $0x28] sm:$0xe]
    %v5088 = vld [vmem:[#allocation3 + $0xa8] sm:$0x3]
    %v5089 = vld [vmem:[#allocation3 + $0x28] sm:$0xc]
    %v5122 = vunpack.c.l.b16 %v5028
    %v5123 = vunpack.c.l.b16 %v5029
    %v5124 = vunpack.c.l.b16 %v5030
    %v5125 = vunpack.c.l.b16 %v5031
    %v5126 = vunpack.c.l.b16 %v5032
    %v5127 = vunpack.c.l.b16 %v5033
    %v5128 = vunpack.c.l.b16 %v5034
    %v5129 = vunpack.c.l.b16 %v5035
    %v5130 = vunpack.c.l.b16 %v5036
    %v5131 = vunpack.c.l.b16 %v5037
    %v5132 = vunpack.c.l.b16 %v5038
    %v5133 = vunpack.c.l.b16 %v5039
    %v5134 = vunpack.c.l.b16 %v5040
    %v5135 = vunpack.c.l.b16 %v5041
    %v5136 = vunpack.c.l.b16 %v5042
    %v5137 = vunpack.c.l.b16 %v5043
    %v5138 = vunpack.c.l.b16 %v5044
    %v5139 = vunpack.c.l.b16 %v5045
    %v5140 = vunpack.c.l.b16 %v5046
    %v5141 = vunpack.c.l.b16 %v5047
    %v5142 = vunpack.c.l.b16 %v5048
    %v5143 = vunpack.c.l.b16 %v5049
    %v5144 = vunpack.c.l.b16 %v5050
    %v5145 = vunpack.c.l.b16 %v5051
    %v5146 = vunpack.c.l.b16 %v5052
    %v5147 = vunpack.c.l.b16 %v5053
    %v5148 = vunpack.c.l.b16 %v5054
    %v5149 = vunpack.c.l.b16 %v5055
    %v5150 = vunpack.c.l.b16 %v5056
    %v5151 = vunpack.c.l.b16 %v5057
    %v5152 = vunpack.c.l.b16 %v5058
    %v5153 = vunpack.c.l.b16 %v5059
    %v5154 = vpack.c.b16 %v5123, %v5122
    %v5155 = vpack.c.b16 %v5125, %v5124
    %v5156 = vpack.c.b16 %v5127, %v5126
    %v5157 = vpack.c.b16 %v5129, %v5128
    %v5158 = vpack.c.b16 %v5131, %v5130
    %v5159 = vpack.c.b16 %v5133, %v5132
    %v5160 = vpack.c.b16 %v5135, %v5134
    %v5161 = vpack.c.b16 %v5137, %v5136
    %v5162 = vpack.c.b16 %v5139, %v5138
    %v5163 = vpack.c.b16 %v5141, %v5140
    %v5164 = vpack.c.b16 %v5143, %v5142
    %v5165 = vpack.c.b16 %v5145, %v5144
    %v5166 = vpack.c.b16 %v5147, %v5146
    %v5167 = vpack.c.b16 %v5149, %v5148
    %v5168 = vpack.c.b16 %v5151, %v5150
    %v5169 = vpack.c.b16 %v5153, %v5152
    %v5171 = vunpack.c.l.b16 %v5060
    %v5172 = vpack.c.b16 %v5171, %v5171
    %v5174 = vshrl.u32 %v5154, 16
    %v5176 = vshll.u32 %v5154, 16
    %v5178 = vrot.slane %v5176, 1
    %v5179 = vor.u32 %v5174, %v5178
    %v5181 = vshll.u32 %v5155, 16
    %v5183 = vrot.slane %v5181, 1
    %v5184 = vsel %vm239, %v5179, %v5183
    %v5185 = vshrl.u32 %v5155, 16
    %v5187 = vor.u32 %v5185, %v5183
    %v5189 = vshll.u32 %v5156, 16
    %v5191 = vrot.slane %v5189, 1
    %v5192 = vsel %vm239, %v5187, %v5191
    %v5193 = vshrl.u32 %v5156, 16
    %v5195 = vor.u32 %v5193, %v5191
    %v5197 = vshll.u32 %v5157, 16
    %v5199 = vrot.slane %v5197, 1
    %v5200 = vsel %vm239, %v5195, %v5199
    %v5201 = vshrl.u32 %v5157, 16
    %v5203 = vor.u32 %v5201, %v5199
    %v5205 = vshll.u32 %v5158, 16
    %v5207 = vrot.slane %v5205, 1
    %v5208 = vsel %vm239, %v5203, %v5207
    %v5209 = vshrl.u32 %v5158, 16
    %v5211 = vor.u32 %v5209, %v5207
    %v5213 = vshll.u32 %v5159, 16
    %v5215 = vrot.slane %v5213, 1
    %v5216 = vsel %vm239, %v5211, %v5215
    %v5217 = vshrl.u32 %v5159, 16
    %v5219 = vor.u32 %v5217, %v5215
    %v5221 = vshll.u32 %v5160, 16
    %v5223 = vrot.slane %v5221, 1
    %v5224 = vsel %vm239, %v5219, %v5223
    %v5225 = vshrl.u32 %v5160, 16
    %v5227 = vor.u32 %v5225, %v5223
    %v5229 = vshll.u32 %v5161, 16
    %v5231 = vrot.slane %v5229, 1
    %v5232 = vsel %vm239, %v5227, %v5231
    %v5233 = vshrl.u32 %v5161, 16
    %v5235 = vor.u32 %v5233, %v5231
    %v5237 = vshll.u32 %v5162, 16
    %v5239 = vrot.slane %v5237, 1
    %v5240 = vsel %vm239, %v5235, %v5239
    %v5241 = vshrl.u32 %v5162, 16
    %v5243 = vor.u32 %v5241, %v5239
    %v5245 = vshll.u32 %v5163, 16
    %v5247 = vrot.slane %v5245, 1
    %v5248 = vsel %vm239, %v5243, %v5247
    %v5249 = vshrl.u32 %v5163, 16
    %v5251 = vor.u32 %v5249, %v5247
    %v5253 = vshll.u32 %v5164, 16
    %v5255 = vrot.slane %v5253, 1
    %v5256 = vsel %vm239, %v5251, %v5255
    %v5257 = vshrl.u32 %v5164, 16
    %v5259 = vor.u32 %v5257, %v5255
    %v5261 = vshll.u32 %v5165, 16
    %v5263 = vrot.slane %v5261, 1
    %v5264 = vsel %vm239, %v5259, %v5263
    %v5265 = vshrl.u32 %v5165, 16
    %v5267 = vor.u32 %v5265, %v5263
    %v5269 = vshll.u32 %v5166, 16
    %v5271 = vrot.slane %v5269, 1
    %v5272 = vsel %vm239, %v5267, %v5271
    %v5273 = vshrl.u32 %v5166, 16
    %v5275 = vor.u32 %v5273, %v5271
    %v5277 = vshll.u32 %v5167, 16
    %v5279 = vrot.slane %v5277, 1
    %v5280 = vsel %vm239, %v5275, %v5279
    %v5281 = vshrl.u32 %v5167, 16
    %v5283 = vor.u32 %v5281, %v5279
    %v5285 = vshll.u32 %v5168, 16
    %v5287 = vrot.slane %v5285, 1
    %v5288 = vsel %vm239, %v5283, %v5287
    %v5289 = vshrl.u32 %v5168, 16
    %v5291 = vor.u32 %v5289, %v5287
    %v5293 = vshll.u32 %v5169, 16
    %v5295 = vrot.slane %v5293, 1
    %v5296 = vsel %vm239, %v5291, %v5295
    %v5297 = vshrl.u32 %v5169, 16
    %v5299 = vor.u32 %v5297, %v5295
    %v5301 = vshll.u32 %v5172, 16
    %v5303 = vrot.slane %v5301, 1
    %v5304 = vsel %vm239, %v5299, %v5303
    %5305 = vrot.lane.b32.xlu0 %v5184, 32
    %v5306 = vpop.permute.xlu0 %5305
    %5307 = vrot.lane.b32.xlu0 %v5192, 32
    %v5308 = vpop.permute.xlu0 %5307
    %5309 = vrot.lane.b32.xlu0 %v5200, 32
    %v5310 = vpop.permute.xlu0 %5309
    %5311 = vrot.lane.b32.xlu0 %v5208, 32
    %v5312 = vpop.permute.xlu0 %5311
    %5313 = vrot.lane.b32.xlu0 %v5216, 32
    %v5314 = vpop.permute.xlu0 %5313
    %5315 = vrot.lane.b32.xlu0 %v5224, 32
    %v5316 = vpop.permute.xlu0 %5315
    %5317 = vrot.lane.b32.xlu0 %v5232, 32
    %v5318 = vpop.permute.xlu0 %5317
    %5319 = vrot.lane.b32.xlu0 %v5240, 32
    %v5320 = vpop.permute.xlu0 %5319
    %5321 = vrot.lane.b32.xlu0 %v5248, 32
    %v5322 = vpop.permute.xlu0 %5321
    %5323 = vrot.lane.b32.xlu0 %v5256, 32
    %v5324 = vpop.permute.xlu0 %5323
    %5325 = vrot.lane.b32.xlu0 %v5264, 32
    %v5326 = vpop.permute.xlu0 %5325
    %5327 = vrot.lane.b32.xlu0 %v5272, 32
    %v5328 = vpop.permute.xlu0 %5327
    %5329 = vrot.lane.b32.xlu0 %v5280, 32
    %v5330 = vpop.permute.xlu0 %5329
    %5331 = vrot.lane.b32.xlu0 %v5288, 32
    %v5332 = vpop.permute.xlu0 %5331
    %5333 = vrot.lane.b32.xlu0 %v5296, 32
    %v5334 = vpop.permute.xlu0 %5333
    %5335 = vrot.lane.b32.xlu0 %v5304, 32
    %v5336 = vpop.permute.xlu0 %5335
    %v5338 = vunpack.c.l.b16 %v5061
    %v5339 = vpack.c.b16 %v5123, %v5338
    %v5340 = vrot.slane %v5339, 1
    %v5341 = vrot.slane %v5155, 1
    %v5342 = vsel %vm2346, %v5340, %v5341
    %v5343 = vrot.slane %v5156, 1
    %v5344 = vsel %vm2346, %v5341, %v5343
    %v5345 = vrot.slane %v5157, 1
    %v5346 = vsel %vm2346, %v5343, %v5345
    %v5347 = vrot.slane %v5158, 1
    %v5348 = vsel %vm2346, %v5345, %v5347
    %v5349 = vrot.slane %v5159, 1
    %v5350 = vsel %vm2346, %v5347, %v5349
    %v5351 = vrot.slane %v5160, 1
    %v5352 = vsel %vm2346, %v5349, %v5351
    %v5353 = vrot.slane %v5161, 1
    %v5354 = vsel %vm2346, %v5351, %v5353
    %v5355 = vrot.slane %v5162, 1
    %v5356 = vsel %vm2346, %v5353, %v5355
    %v5357 = vrot.slane %v5163, 1
    %v5358 = vsel %vm2346, %v5355, %v5357
    %v5359 = vrot.slane %v5164, 1
    %v5360 = vsel %vm2346, %v5357, %v5359
    %v5361 = vrot.slane %v5165, 1
    %v5362 = vsel %vm2346, %v5359, %v5361
    %v5363 = vrot.slane %v5166, 1
    %v5364 = vsel %vm2346, %v5361, %v5363
    %v5365 = vrot.slane %v5167, 1
    %v5366 = vsel %vm2346, %v5363, %v5365
    %v5367 = vrot.slane %v5168, 1
    %v5368 = vsel %vm2346, %v5365, %v5367
    %v5369 = vrot.slane %v5169, 1
    %v5370 = vsel %vm2346, %v5367, %v5369
    %v5371 = vrot.slane %v5172, 1
    %v5372 = vsel %vm2346, %v5369, %v5371
    %5373 = vrot.lane.b32.xlu0 %v5342, 64
    %v5374 = vpop.permute.xlu0 %5373
    %5375 = vrot.lane.b32.xlu0 %v5344, 64
    %v5376 = vpop.permute.xlu0 %5375
    %5377 = vrot.lane.b32.xlu0 %v5346, 64
    %v5378 = vpop.permute.xlu0 %5377
    %5379 = vrot.lane.b32.xlu0 %v5348, 64
    %v5380 = vpop.permute.xlu0 %5379
    %5381 = vrot.lane.b32.xlu0 %v5350, 64
    %v5382 = vpop.permute.xlu0 %5381
    %5383 = vrot.lane.b32.xlu0 %v5352, 64
    %v5384 = vpop.permute.xlu0 %5383
    %5385 = vrot.lane.b32.xlu0 %v5354, 64
    %v5386 = vpop.permute.xlu0 %5385
    %5387 = vrot.lane.b32.xlu0 %v5356, 64
    %v5388 = vpop.permute.xlu0 %5387
    %5389 = vrot.lane.b32.xlu0 %v5358, 64
    %v5390 = vpop.permute.xlu0 %5389
    %5391 = vrot.lane.b32.xlu0 %v5360, 64
    %v5392 = vpop.permute.xlu0 %5391
    %5393 = vrot.lane.b32.xlu0 %v5362, 64
    %v5394 = vpop.permute.xlu0 %5393
    %5395 = vrot.lane.b32.xlu0 %v5364, 64
    %v5396 = vpop.permute.xlu0 %5395
    %5397 = vrot.lane.b32.xlu0 %v5366, 64
    %v5398 = vpop.permute.xlu0 %5397
    %5399 = vrot.lane.b32.xlu0 %v5368, 64
    %v5400 = vpop.permute.xlu0 %5399
    %5401 = vrot.lane.b32.xlu0 %v5370, 64
    %v5402 = vpop.permute.xlu0 %5401
    %5403 = vrot.lane.b32.xlu0 %v5372, 64
    %v5404 = vpop.permute.xlu0 %5403
    %v5406 = vunpack.c.l.b16 %v5062
    %v5407 = vpack.c.b16 %v5406, %v5406
    %vm5408 = vsmask.f32 6400
    %v5410 = vshrl.u32 %v5339, 16
    %v5412 = vrot.slane %v5410, 1
    %v5413 = vshll.u32 %v5339, 16
    %v5415 = vrot.slane %v5413, 2
    %v5416 = vor.u32 %v5412, %v5415
    %v5417 = vrot.slane %v5185, 1
    %v5418 = vrot.slane %v5181, 2
    %v5419 = vor.u32 %v5417, %v5418
    %v5420 = vsel %vm5408, %v5416, %v5419
    %v5421 = vrot.slane %v5193, 1
    %v5422 = vrot.slane %v5189, 2
    %v5423 = vor.u32 %v5421, %v5422
    %v5424 = vsel %vm5408, %v5419, %v5423
    %v5425 = vrot.slane %v5201, 1
    %v5426 = vrot.slane %v5197, 2
    %v5427 = vor.u32 %v5425, %v5426
    %v5428 = vsel %vm5408, %v5423, %v5427
    %v5429 = vrot.slane %v5209, 1
    %v5430 = vrot.slane %v5205, 2
    %v5431 = vor.u32 %v5429, %v5430
    %v5432 = vsel %vm5408, %v5427, %v5431
    %v5433 = vrot.slane %v5217, 1
    %v5434 = vrot.slane %v5213, 2
    %v5435 = vor.u32 %v5433, %v5434
    %v5436 = vsel %vm5408, %v5431, %v5435
    %v5437 = vrot.slane %v5225, 1
    %v5438 = vrot.slane %v5221, 2
    %v5439 = vor.u32 %v5437, %v5438
    %v5440 = vsel %vm5408, %v5435, %v5439
    %v5441 = vrot.slane %v5233, 1
    %v5442 = vrot.slane %v5229, 2
    %v5443 = vor.u32 %v5441, %v5442
    %v5444 = vsel %vm5408, %v5439, %v5443
    %v5445 = vrot.slane %v5241, 1
    %v5446 = vrot.slane %v5237, 2
    %v5447 = vor.u32 %v5445, %v5446
    %v5448 = vsel %vm5408, %v5443, %v5447
    %v5449 = vrot.slane %v5249, 1
    %v5450 = vrot.slane %v5245, 2
    %v5451 = vor.u32 %v5449, %v5450
    %v5452 = vsel %vm5408, %v5447, %v5451
    %v5453 = vrot.slane %v5257, 1
    %v5454 = vrot.slane %v5253, 2
    %v5455 = vor.u32 %v5453, %v5454
    %v5456 = vsel %vm5408, %v5451, %v5455
    %v5457 = vrot.slane %v5265, 1
    %v5458 = vrot.slane %v5261, 2
    %v5459 = vor.u32 %v5457, %v5458
    %v5460 = vsel %vm5408, %v5455, %v5459
    %v5461 = vrot.slane %v5273, 1
    %v5462 = vrot.slane %v5269, 2
    %v5463 = vor.u32 %v5461, %v5462
    %v5464 = vsel %vm5408, %v5459, %v5463
    %v5465 = vrot.slane %v5281, 1
    %v5466 = vrot.slane %v5277, 2
    %v5467 = vor.u32 %v5465, %v5466
    %v5468 = vsel %vm5408, %v5463, %v5467
    %v5469 = vrot.slane %v5289, 1
    %v5470 = vrot.slane %v5285, 2
    %v5471 = vor.u32 %v5469, %v5470
    %v5472 = vsel %vm5408, %v5467, %v5471
    %v5473 = vrot.slane %v5297, 1
    %v5474 = vrot.slane %v5293, 2
    %v5475 = vor.u32 %v5473, %v5474
    %v5476 = vsel %vm5408, %v5471, %v5475
    %v5478 = vshrl.u32 %v5407, 16
    %v5480 = vrot.slane %v5478, 1
    %v5481 = vshll.u32 %v5407, 16
    %v5483 = vrot.slane %v5481, 2
    %v5484 = vor.u32 %v5480, %v5483
    %v5485 = vsel %vm5408, %v5475, %v5484
    %5486 = vrot.lane.b32.xlu0 %v5420, 96
    %v5487 = vpop.permute.xlu0 %5486
    %5488 = vrot.lane.b32.xlu0 %v5424, 96
    %v5489 = vpop.permute.xlu0 %5488
    %5490 = vrot.lane.b32.xlu0 %v5428, 96
    %v5491 = vpop.permute.xlu0 %5490
    %5492 = vrot.lane.b32.xlu0 %v5432, 96
    %v5493 = vpop.permute.xlu0 %5492
    %5494 = vrot.lane.b32.xlu0 %v5436, 96
    %v5495 = vpop.permute.xlu0 %5494
    %5496 = vrot.lane.b32.xlu0 %v5440, 96
    %v5497 = vpop.permute.xlu0 %5496
    %5498 = vrot.lane.b32.xlu0 %v5444, 96
    %v5499 = vpop.permute.xlu0 %5498
    %5500 = vrot.lane.b32.xlu0 %v5448, 96
    %v5501 = vpop.permute.xlu0 %5500
    %5502 = vrot.lane.b32.xlu0 %v5452, 96
    %v5503 = vpop.permute.xlu0 %5502
    %5504 = vrot.lane.b32.xlu0 %v5456, 96
    %v5505 = vpop.permute.xlu0 %5504
    %5506 = vrot.lane.b32.xlu0 %v5460, 96
    %v5507 = vpop.permute.xlu0 %5506
    %5508 = vrot.lane.b32.xlu0 %v5464, 96
    %v5509 = vpop.permute.xlu0 %5508
    %5510 = vrot.lane.b32.xlu0 %v5468, 96
    %v5511 = vpop.permute.xlu0 %5510
    %5512 = vrot.lane.b32.xlu0 %v5472, 96
    %v5513 = vpop.permute.xlu0 %5512
    %5514 = vrot.lane.b32.xlu0 %v5476, 96
    %v5515 = vpop.permute.xlu0 %5514
    %5516 = vrot.lane.b32.xlu0 %v5485, 96
    %v5517 = vpop.permute.xlu0 %5516
    %v5519 = vunpack.c.l.b16 %v5063
    %v5520 = vpack.c.b16 %v5123, %v5519
    %v5521 = vrot.slane %v5520, 2
    %v5522 = vrot.slane %v5155, 2
    %v5523 = vsel %vm505, %v5521, %v5522
    %v5524 = vrot.slane %v5156, 2
    %v5525 = vsel %vm505, %v5522, %v5524
    %v5526 = vrot.slane %v5157, 2
    %v5527 = vsel %vm505, %v5524, %v5526
    %v5528 = vrot.slane %v5158, 2
    %v5529 = vsel %vm505, %v5526, %v5528
    %v5530 = vrot.slane %v5159, 2
    %v5531 = vsel %vm505, %v5528, %v5530
    %v5532 = vrot.slane %v5160, 2
    %v5533 = vsel %vm505, %v5530, %v5532
    %v5534 = vrot.slane %v5161, 2
    %v5535 = vsel %vm505, %v5532, %v5534
    %v5536 = vrot.slane %v5162, 2
    %v5537 = vsel %vm505, %v5534, %v5536
    %v5538 = vrot.slane %v5163, 2
    %v5539 = vsel %vm505, %v5536, %v5538
    %v5540 = vrot.slane %v5164, 2
    %v5541 = vsel %vm505, %v5538, %v5540
    %v5542 = vrot.slane %v5165, 2
    %v5543 = vsel %vm505, %v5540, %v5542
    %v5544 = vrot.slane %v5166, 2
    %v5545 = vsel %vm505, %v5542, %v5544
    %v5546 = vrot.slane %v5167, 2
    %v5547 = vsel %vm505, %v5544, %v5546
    %v5548 = vrot.slane %v5168, 2
    %v5549 = vsel %vm505, %v5546, %v5548
    %v5550 = vrot.slane %v5169, 2
    %v5551 = vsel %vm505, %v5548, %v5550
    %v5552 = vrot.slane %v5407, 2
    %v5553 = vsel %vm505, %v5550, %v5552
    %v5558 = vunpack.c.l.b16 %v5064
    %v5559 = vunpack.c.l.b16 %v5065
    %v5560 = vunpack.c.l.b16 %v5066
    %v5561 = vunpack.c.l.b16 %v5067
    %v5562 = vpack.c.b16 %v5125, %v5558
    %v5563 = vpack.c.b16 %v5560, %v5559
    %v5564 = vpack.c.b16 %v5561, %v5561
    %v5565 = vrot.slane %v5562, 2
    %v5566 = vsel %vm505, %v5565, %v5524
    %v5567 = vrot.slane %v5563, 2
    %v5568 = vsel %vm505, %v5550, %v5567
    %v5569 = vrot.slane %v5564, 2
    %v5570 = vsel %vm505, %v5567, %v5569
    %5571 = vrot.lane.b32.xlu0 %v5566, 32
    %v5572 = vpop.permute.xlu0 %5571
    %5573 = vrot.lane.b32.xlu0 %v5527, 32
    %v5574 = vpop.permute.xlu0 %5573
    %5575 = vrot.lane.b32.xlu0 %v5529, 32
    %v5576 = vpop.permute.xlu0 %5575
    %5577 = vrot.lane.b32.xlu0 %v5531, 32
    %v5578 = vpop.permute.xlu0 %5577
    %5579 = vrot.lane.b32.xlu0 %v5533, 32
    %v5580 = vpop.permute.xlu0 %5579
    %5581 = vrot.lane.b32.xlu0 %v5535, 32
    %v5582 = vpop.permute.xlu0 %5581
    %5583 = vrot.lane.b32.xlu0 %v5537, 32
    %v5584 = vpop.permute.xlu0 %5583
    %5585 = vrot.lane.b32.xlu0 %v5539, 32
    %v5586 = vpop.permute.xlu0 %5585
    %5587 = vrot.lane.b32.xlu0 %v5541, 32
    %v5588 = vpop.permute.xlu0 %5587
    %5589 = vrot.lane.b32.xlu0 %v5543, 32
    %v5590 = vpop.permute.xlu0 %5589
    %5591 = vrot.lane.b32.xlu0 %v5545, 32
    %v5592 = vpop.permute.xlu0 %5591
    %5593 = vrot.lane.b32.xlu0 %v5547, 32
    %v5594 = vpop.permute.xlu0 %5593
    %5595 = vrot.lane.b32.xlu0 %v5549, 32
    %v5596 = vpop.permute.xlu0 %5595
    %5597 = vrot.lane.b32.xlu0 %v5551, 32
    %v5598 = vpop.permute.xlu0 %5597
    %5599 = vrot.lane.b32.xlu0 %v5568, 32
    %v5600 = vpop.permute.xlu0 %5599
    %5601 = vrot.lane.b32.xlu0 %v5570, 32
    %v5602 = vpop.permute.xlu0 %5601
    %v5604 = vunpack.c.l.b16 %v5068
    %v5605 = vpack.c.b16 %v5604, %v5604
    %v5607 = vshrl.u32 %v5562, 16
    %v5609 = vrot.slane %v5607, 2
    %v5610 = vshll.u32 %v5562, 16
    %v5612 = vrot.slane %v5610, 3
    %v5613 = vor.u32 %v5609, %v5612
    %v5614 = vrot.slane %v5193, 2
    %v5615 = vrot.slane %v5189, 3
    %v5616 = vor.u32 %v5614, %v5615
    %v5617 = vsel %vm610, %v5613, %v5616
    %v5618 = vrot.slane %v5201, 2
    %v5619 = vrot.slane %v5197, 3
    %v5620 = vor.u32 %v5618, %v5619
    %v5621 = vsel %vm610, %v5616, %v5620
    %v5622 = vrot.slane %v5209, 2
    %v5623 = vrot.slane %v5205, 3
    %v5624 = vor.u32 %v5622, %v5623
    %v5625 = vsel %vm610, %v5620, %v5624
    %v5626 = vrot.slane %v5217, 2
    %v5627 = vrot.slane %v5213, 3
    %v5628 = vor.u32 %v5626, %v5627
    %v5629 = vsel %vm610, %v5624, %v5628
    %v5630 = vrot.slane %v5225, 2
    %v5631 = vrot.slane %v5221, 3
    %v5632 = vor.u32 %v5630, %v5631
    %v5633 = vsel %vm610, %v5628, %v5632
    %v5634 = vrot.slane %v5233, 2
    %v5635 = vrot.slane %v5229, 3
    %v5636 = vor.u32 %v5634, %v5635
    %v5637 = vsel %vm610, %v5632, %v5636
    %v5638 = vrot.slane %v5241, 2
    %v5639 = vrot.slane %v5237, 3
    %v5640 = vor.u32 %v5638, %v5639
    %v5641 = vsel %vm610, %v5636, %v5640
    %v5642 = vrot.slane %v5249, 2
    %v5643 = vrot.slane %v5245, 3
    %v5644 = vor.u32 %v5642, %v5643
    %v5645 = vsel %vm610, %v5640, %v5644
    %v5646 = vrot.slane %v5257, 2
    %v5647 = vrot.slane %v5253, 3
    %v5648 = vor.u32 %v5646, %v5647
    %v5649 = vsel %vm610, %v5644, %v5648
    %v5650 = vrot.slane %v5265, 2
    %v5651 = vrot.slane %v5261, 3
    %v5652 = vor.u32 %v5650, %v5651
    %v5653 = vsel %vm610, %v5648, %v5652
    %v5654 = vrot.slane %v5273, 2
    %v5655 = vrot.slane %v5269, 3
    %v5656 = vor.u32 %v5654, %v5655
    %v5657 = vsel %vm610, %v5652, %v5656
    %v5658 = vrot.slane %v5281, 2
    %v5659 = vrot.slane %v5277, 3
    %v5660 = vor.u32 %v5658, %v5659
    %v5661 = vsel %vm610, %v5656, %v5660
    %v5662 = vrot.slane %v5289, 2
    %v5663 = vrot.slane %v5285, 3
    %v5664 = vor.u32 %v5662, %v5663
    %v5665 = vsel %vm610, %v5660, %v5664
    %v5666 = vrot.slane %v5297, 2
    %v5667 = vrot.slane %v5293, 3
    %v5668 = vor.u32 %v5666, %v5667
    %v5669 = vsel %vm610, %v5664, %v5668
    %v5671 = vshrl.u32 %v5563, 16
    %v5673 = vrot.slane %v5671, 2
    %v5674 = vshll.u32 %v5563, 16
    %v5676 = vrot.slane %v5674, 3
    %v5677 = vor.u32 %v5673, %v5676
    %v5678 = vsel %vm610, %v5668, %v5677
    %v5680 = vshrl.u32 %v5605, 16
    %v5682 = vrot.slane %v5680, 2
    %v5683 = vshll.u32 %v5605, 16
    %v5685 = vrot.slane %v5683, 3
    %v5686 = vor.u32 %v5682, %v5685
    %v5687 = vsel %vm610, %v5677, %v5686
    %5688 = vrot.lane.b32.xlu0 %v5617, 64
    %v5689 = vpop.permute.xlu0 %5688
    %5690 = vrot.lane.b32.xlu0 %v5621, 64
    %v5691 = vpop.permute.xlu0 %5690
    %5692 = vrot.lane.b32.xlu0 %v5625, 64
    %v5693 = vpop.permute.xlu0 %5692
    %5694 = vrot.lane.b32.xlu0 %v5629, 64
    %v5695 = vpop.permute.xlu0 %5694
    %5696 = vrot.lane.b32.xlu0 %v5633, 64
    %v5697 = vpop.permute.xlu0 %5696
    %5698 = vrot.lane.b32.xlu0 %v5637, 64
    %v5699 = vpop.permute.xlu0 %5698
    %5700 = vrot.lane.b32.xlu0 %v5641, 64
    %v5701 = vpop.permute.xlu0 %5700
    %5702 = vrot.lane.b32.xlu0 %v5645, 64
    %v5703 = vpop.permute.xlu0 %5702
    %5704 = vrot.lane.b32.xlu0 %v5649, 64
    %v5705 = vpop.permute.xlu0 %5704
    %5706 = vrot.lane.b32.xlu0 %v5653, 64
    %v5707 = vpop.permute.xlu0 %5706
    %5708 = vrot.lane.b32.xlu0 %v5657, 64
    %v5709 = vpop.permute.xlu0 %5708
    %5710 = vrot.lane.b32.xlu0 %v5661, 64
    %v5711 = vpop.permute.xlu0 %5710
    %5712 = vrot.lane.b32.xlu0 %v5665, 64
    %v5713 = vpop.permute.xlu0 %5712
    %5714 = vrot.lane.b32.xlu0 %v5669, 64
    %v5715 = vpop.permute.xlu0 %5714
    %5716 = vrot.lane.b32.xlu0 %v5678, 64
    %v5717 = vpop.permute.xlu0 %5716
    %5718 = vrot.lane.b32.xlu0 %v5687, 64
    %v5719 = vpop.permute.xlu0 %5718
    %v5721 = vunpack.c.l.b16 %v5069
    %v5722 = vpack.c.b16 %v5125, %v5721
    %v5723 = vrot.slane %v5722, 3
    %v5724 = vrot.slane %v5156, 3
    %v5725 = vsel %vm2584, %v5723, %v5724
    %v5726 = vrot.slane %v5157, 3
    %v5727 = vsel %vm2584, %v5724, %v5726
    %v5728 = vrot.slane %v5158, 3
    %v5729 = vsel %vm2584, %v5726, %v5728
    %v5730 = vrot.slane %v5159, 3
    %v5731 = vsel %vm2584, %v5728, %v5730
    %v5732 = vrot.slane %v5160, 3
    %v5733 = vsel %vm2584, %v5730, %v5732
    %v5734 = vrot.slane %v5161, 3
    %v5735 = vsel %vm2584, %v5732, %v5734
    %v5736 = vrot.slane %v5162, 3
    %v5737 = vsel %vm2584, %v5734, %v5736
    %v5738 = vrot.slane %v5163, 3
    %v5739 = vsel %vm2584, %v5736, %v5738
    %v5740 = vrot.slane %v5164, 3
    %v5741 = vsel %vm2584, %v5738, %v5740
    %v5742 = vrot.slane %v5165, 3
    %v5743 = vsel %vm2584, %v5740, %v5742
    %v5744 = vrot.slane %v5166, 3
    %v5745 = vsel %vm2584, %v5742, %v5744
    %v5746 = vrot.slane %v5167, 3
    %v5747 = vsel %vm2584, %v5744, %v5746
    %v5748 = vrot.slane %v5168, 3
    %v5749 = vsel %vm2584, %v5746, %v5748
    %v5750 = vrot.slane %v5169, 3
    %v5751 = vsel %vm2584, %v5748, %v5750
    %v5752 = vrot.slane %v5563, 3
    %v5753 = vsel %vm2584, %v5750, %v5752
    %v5754 = vrot.slane %v5605, 3
    %v5755 = vsel %vm2584, %v5752, %v5754
    %5756 = vrot.lane.b32.xlu0 %v5725, 96
    %v5757 = vpop.permute.xlu0 %5756
    %5758 = vrot.lane.b32.xlu0 %v5727, 96
    %v5759 = vpop.permute.xlu0 %5758
    %5760 = vrot.lane.b32.xlu0 %v5729, 96
    %v5761 = vpop.permute.xlu0 %5760
    %5762 = vrot.lane.b32.xlu0 %v5731, 96
    %v5763 = vpop.permute.xlu0 %5762
    %5764 = vrot.lane.b32.xlu0 %v5733, 96
    %v5765 = vpop.permute.xlu0 %5764
    %5766 = vrot.lane.b32.xlu0 %v5735, 96
    %v5767 = vpop.permute.xlu0 %5766
    %5768 = vrot.lane.b32.xlu0 %v5737, 96
    %v5769 = vpop.permute.xlu0 %5768
    %5770 = vrot.lane.b32.xlu0 %v5739, 96
    %v5771 = vpop.permute.xlu0 %5770
    %5772 = vrot.lane.b32.xlu0 %v5741, 96
    %v5773 = vpop.permute.xlu0 %5772
    %5774 = vrot.lane.b32.xlu0 %v5743, 96
    %v5775 = vpop.permute.xlu0 %5774
    %5776 = vrot.lane.b32.xlu0 %v5745, 96
    %v5777 = vpop.permute.xlu0 %5776
    %5778 = vrot.lane.b32.xlu0 %v5747, 96
    %v5779 = vpop.permute.xlu0 %5778
    %5780 = vrot.lane.b32.xlu0 %v5749, 96
    %v5781 = vpop.permute.xlu0 %5780
    %5782 = vrot.lane.b32.xlu0 %v5751, 96
    %v5783 = vpop.permute.xlu0 %5782
    %5784 = vrot.lane.b32.xlu0 %v5753, 96
    %v5785 = vpop.permute.xlu0 %5784
    %5786 = vrot.lane.b32.xlu0 %v5755, 96
    %v5787 = vpop.permute.xlu0 %5786
    %v5789 = vunpack.c.l.b16 %v5070
    %v5790 = vpack.c.b16 %v5789, %v5789
    %vm5791 = vsmask.f32 4352
    %v5793 = vshrl.u32 %v5722, 16
    %v5795 = vrot.slane %v5793, 3
    %v5796 = vshll.u32 %v5722, 16
    %v5798 = vrot.slane %v5796, 4
    %v5799 = vor.u32 %v5795, %v5798
    %v5800 = vrot.slane %v5193, 3
    %v5801 = vrot.slane %v5189, 4
    %v5802 = vor.u32 %v5800, %v5801
    %v5803 = vsel %vm5791, %v5799, %v5802
    %v5804 = vrot.slane %v5201, 3
    %v5805 = vrot.slane %v5197, 4
    %v5806 = vor.u32 %v5804, %v5805
    %v5807 = vsel %vm5791, %v5802, %v5806
    %v5808 = vrot.slane %v5209, 3
    %v5809 = vrot.slane %v5205, 4
    %v5810 = vor.u32 %v5808, %v5809
    %v5811 = vsel %vm5791, %v5806, %v5810
    %v5812 = vrot.slane %v5217, 3
    %v5813 = vrot.slane %v5213, 4
    %v5814 = vor.u32 %v5812, %v5813
    %v5815 = vsel %vm5791, %v5810, %v5814
    %v5816 = vrot.slane %v5225, 3
    %v5817 = vrot.slane %v5221, 4
    %v5818 = vor.u32 %v5816, %v5817
    %v5819 = vsel %vm5791, %v5814, %v5818
    %v5820 = vrot.slane %v5233, 3
    %v5821 = vrot.slane %v5229, 4
    %v5822 = vor.u32 %v5820, %v5821
    %v5823 = vsel %vm5791, %v5818, %v5822
    %v5824 = vrot.slane %v5241, 3
    %v5825 = vrot.slane %v5237, 4
    %v5826 = vor.u32 %v5824, %v5825
    %v5827 = vsel %vm5791, %v5822, %v5826
    %v5828 = vrot.slane %v5249, 3
    %v5829 = vrot.slane %v5245, 4
    %v5830 = vor.u32 %v5828, %v5829
    %v5831 = vsel %vm5791, %v5826, %v5830
    %v5832 = vrot.slane %v5257, 3
    %v5833 = vrot.slane %v5253, 4
    %v5834 = vor.u32 %v5832, %v5833
    %v5835 = vsel %vm5791, %v5830, %v5834
    %v5836 = vrot.slane %v5265, 3
    %v5837 = vrot.slane %v5261, 4
    %v5838 = vor.u32 %v5836, %v5837
    %v5839 = vsel %vm5791, %v5834, %v5838
    %v5840 = vrot.slane %v5273, 3
    %v5841 = vrot.slane %v5269, 4
    %v5842 = vor.u32 %v5840, %v5841
    %v5843 = vsel %vm5791, %v5838, %v5842
    %v5844 = vrot.slane %v5281, 3
    %v5845 = vrot.slane %v5277, 4
    %v5846 = vor.u32 %v5844, %v5845
    %v5847 = vsel %vm5791, %v5842, %v5846
    %v5848 = vrot.slane %v5289, 3
    %v5849 = vrot.slane %v5285, 4
    %v5850 = vor.u32 %v5848, %v5849
    %v5851 = vsel %vm5791, %v5846, %v5850
    %v5852 = vrot.slane %v5297, 3
    %v5853 = vrot.slane %v5293, 4
    %v5854 = vor.u32 %v5852, %v5853
    %v5855 = vsel %vm5791, %v5850, %v5854
    %v5856 = vrot.slane %v5671, 3
    %v5857 = vrot.slane %v5674, 4
    %v5858 = vor.u32 %v5856, %v5857
    %v5859 = vsel %vm5791, %v5854, %v5858
    %v5861 = vshrl.u32 %v5790, 16
    %v5863 = vrot.slane %v5861, 3
    %v5864 = vshll.u32 %v5790, 16
    %v5866 = vrot.slane %v5864, 4
    %v5867 = vor.u32 %v5863, %v5866
    %v5868 = vsel %vm5791, %v5858, %v5867
    %v5869 = vpack.c.b16 %v5126, %v5125
    %v5870 = vpack.c.b16 %v5128, %v5127
    %v5871 = vpack.c.b16 %v5130, %v5129
    %v5872 = vpack.c.b16 %v5132, %v5131
    %v5873 = vpack.c.b16 %v5134, %v5133
    %v5874 = vpack.c.b16 %v5136, %v5135
    %v5875 = vpack.c.b16 %v5138, %v5137
    %v5876 = vpack.c.b16 %v5140, %v5139
    %v5877 = vpack.c.b16 %v5142, %v5141
    %v5878 = vpack.c.b16 %v5144, %v5143
    %v5879 = vpack.c.b16 %v5146, %v5145
    %v5880 = vpack.c.b16 %v5148, %v5147
    %v5881 = vpack.c.b16 %v5150, %v5149
    %v5882 = vpack.c.b16 %v5152, %v5151
    %v5883 = vpack.c.b16 %v5559, %v5153
    %v5884 = vpack.c.b16 %v5789, %v5560
    %5885 = vrot.lane.b32.xlu0 %v5869, 32
    %v5886 = vpop.permute.xlu0 %5885
    %5887 = vrot.lane.b32.xlu0 %v5870, 32
    %v5888 = vpop.permute.xlu0 %5887
    %5889 = vrot.lane.b32.xlu0 %v5871, 32
    %v5890 = vpop.permute.xlu0 %5889
    %5891 = vrot.lane.b32.xlu0 %v5872, 32
    %v5892 = vpop.permute.xlu0 %5891
    %5893 = vrot.lane.b32.xlu0 %v5873, 32
    %v5894 = vpop.permute.xlu0 %5893
    %5895 = vrot.lane.b32.xlu0 %v5874, 32
    %v5896 = vpop.permute.xlu0 %5895
    %5897 = vrot.lane.b32.xlu0 %v5875, 32
    %v5898 = vpop.permute.xlu0 %5897
    %5899 = vrot.lane.b32.xlu0 %v5876, 32
    %v5900 = vpop.permute.xlu0 %5899
    %5901 = vrot.lane.b32.xlu0 %v5877, 32
    %v5902 = vpop.permute.xlu0 %5901
    %5903 = vrot.lane.b32.xlu0 %v5878, 32
    %v5904 = vpop.permute.xlu0 %5903
    %5905 = vrot.lane.b32.xlu0 %v5879, 32
    %v5906 = vpop.permute.xlu0 %5905
    %5907 = vrot.lane.b32.xlu0 %v5880, 32
    %v5908 = vpop.permute.xlu0 %5907
    %5909 = vrot.lane.b32.xlu0 %v5881, 32
    %v5910 = vpop.permute.xlu0 %5909
    %5911 = vrot.lane.b32.xlu0 %v5882, 32
    %v5912 = vpop.permute.xlu0 %5911
    %5913 = vrot.lane.b32.xlu0 %v5883, 32
    %v5914 = vpop.permute.xlu0 %5913
    %5915 = vrot.lane.b32.xlu0 %v5884, 32
    %v5916 = vpop.permute.xlu0 %5915
    %v5919 = vunpack.c.l.b16 %v5071
    %v5920 = vunpack.c.l.b16 %v5072
    %v5921 = vpack.c.b16 %v5920, %v5919
    %5922 = vrot.lane.b32.xlu0 %v5870, 64
    %v5923 = vpop.permute.xlu0 %5922
    %5924 = vrot.lane.b32.xlu0 %v5871, 64
    %v5925 = vpop.permute.xlu0 %5924
    %5926 = vrot.lane.b32.xlu0 %v5872, 64
    %v5927 = vpop.permute.xlu0 %5926
    %5928 = vrot.lane.b32.xlu0 %v5873, 64
    %v5929 = vpop.permute.xlu0 %5928
    %5930 = vrot.lane.b32.xlu0 %v5874, 64
    %v5931 = vpop.permute.xlu0 %5930
    %5932 = vrot.lane.b32.xlu0 %v5875, 64
    %v5933 = vpop.permute.xlu0 %5932
    %5934 = vrot.lane.b32.xlu0 %v5876, 64
    %v5935 = vpop.permute.xlu0 %5934
    %5936 = vrot.lane.b32.xlu0 %v5877, 64
    %v5937 = vpop.permute.xlu0 %5936
    %5938 = vrot.lane.b32.xlu0 %v5878, 64
    %v5939 = vpop.permute.xlu0 %5938
    %5940 = vrot.lane.b32.xlu0 %v5879, 64
    %v5941 = vpop.permute.xlu0 %5940
    %5942 = vrot.lane.b32.xlu0 %v5880, 64
    %v5943 = vpop.permute.xlu0 %5942
    %5944 = vrot.lane.b32.xlu0 %v5881, 64
    %v5945 = vpop.permute.xlu0 %5944
    %5946 = vrot.lane.b32.xlu0 %v5882, 64
    %v5947 = vpop.permute.xlu0 %5946
    %5948 = vrot.lane.b32.xlu0 %v5883, 64
    %v5949 = vpop.permute.xlu0 %5948
    %5950 = vrot.lane.b32.xlu0 %v5884, 64
    %v5951 = vpop.permute.xlu0 %5950
    %5952 = vrot.lane.b32.xlu0 %v5921, 64
    %v5953 = vpop.permute.xlu0 %5952
    %v5955 = vunpack.c.l.b16 %v5073
    %v5956 = vpack.c.b16 %v5955, %v5955
    %v5958 = vshrl.u32 %v5870, 16
    %v5960 = vshll.u32 %v5870, 16
    %v5962 = vrot.slane %v5960, 1
    %v5963 = vor.u32 %v5958, %v5962
    %v5965 = vshll.u32 %v5871, 16
    %v5967 = vrot.slane %v5965, 1
    %v5968 = vsel %vm239, %v5963, %v5967
    %v5969 = vshrl.u32 %v5871, 16
    %v5971 = vor.u32 %v5969, %v5967
    %v5973 = vshll.u32 %v5872, 16
    %v5975 = vrot.slane %v5973, 1
    %v5976 = vsel %vm239, %v5971, %v5975
    %v5977 = vshrl.u32 %v5872, 16
    %v5979 = vor.u32 %v5977, %v5975
    %v5981 = vshll.u32 %v5873, 16
    %v5983 = vrot.slane %v5981, 1
    %v5984 = vsel %vm239, %v5979, %v5983
    %v5985 = vshrl.u32 %v5873, 16
    %v5987 = vor.u32 %v5985, %v5983
    %v5989 = vshll.u32 %v5874, 16
    %v5991 = vrot.slane %v5989, 1
    %v5992 = vsel %vm239, %v5987, %v5991
    %v5993 = vshrl.u32 %v5874, 16
    %v5995 = vor.u32 %v5993, %v5991
    %v5997 = vshll.u32 %v5875, 16
    %v5999 = vrot.slane %v5997, 1
    %v6000 = vsel %vm239, %v5995, %v5999
    %v6001 = vshrl.u32 %v5875, 16
    %v6003 = vor.u32 %v6001, %v5999
    %v6005 = vshll.u32 %v5876, 16
    %v6007 = vrot.slane %v6005, 1
    %v6008 = vsel %vm239, %v6003, %v6007
    %v6009 = vshrl.u32 %v5876, 16
    %v6011 = vor.u32 %v6009, %v6007
    %v6013 = vshll.u32 %v5877, 16
    %v6015 = vrot.slane %v6013, 1
    %v6016 = vsel %vm239, %v6011, %v6015
    %v6017 = vshrl.u32 %v5877, 16
    %v6019 = vor.u32 %v6017, %v6015
    %v6021 = vshll.u32 %v5878, 16
    %v6023 = vrot.slane %v6021, 1
    %v6024 = vsel %vm239, %v6019, %v6023
    %v6025 = vshrl.u32 %v5878, 16
    %v6027 = vor.u32 %v6025, %v6023
    %v6029 = vshll.u32 %v5879, 16
    %v6031 = vrot.slane %v6029, 1
    %v6032 = vsel %vm239, %v6027, %v6031
    %v6033 = vshrl.u32 %v5879, 16
    %v6035 = vor.u32 %v6033, %v6031
    %v6037 = vshll.u32 %v5880, 16
    %v6039 = vrot.slane %v6037, 1
    %v6040 = vsel %vm239, %v6035, %v6039
    %v6041 = vshrl.u32 %v5880, 16
    %v6043 = vor.u32 %v6041, %v6039
    %v6045 = vshll.u32 %v5881, 16
    %v6047 = vrot.slane %v6045, 1
    %v6048 = vsel %vm239, %v6043, %v6047
    %v6049 = vshrl.u32 %v5881, 16
    %v6051 = vor.u32 %v6049, %v6047
    %v6053 = vshll.u32 %v5882, 16
    %v6055 = vrot.slane %v6053, 1
    %v6056 = vsel %vm239, %v6051, %v6055
    %v6057 = vshrl.u32 %v5882, 16
    %v6059 = vor.u32 %v6057, %v6055
    %v6061 = vshll.u32 %v5883, 16
    %v6063 = vrot.slane %v6061, 1
    %v6064 = vsel %vm239, %v6059, %v6063
    %v6065 = vshrl.u32 %v5883, 16
    %v6067 = vor.u32 %v6065, %v6063
    %v6069 = vshll.u32 %v5884, 16
    %v6071 = vrot.slane %v6069, 1
    %v6072 = vsel %vm239, %v6067, %v6071
    %v6073 = vshrl.u32 %v5884, 16
    %v6075 = vor.u32 %v6073, %v6071
    %v6077 = vshll.u32 %v5921, 16
    %v6079 = vrot.slane %v6077, 1
    %v6080 = vsel %vm239, %v6075, %v6079
    %v6081 = vshrl.u32 %v5921, 16
    %v6083 = vor.u32 %v6081, %v6079
    %v6085 = vshll.u32 %v5956, 16
    %v6087 = vrot.slane %v6085, 1
    %v6088 = vsel %vm239, %v6083, %v6087
    %6089 = vrot.lane.b32.xlu0 %v5968, 96
    %v6090 = vpop.permute.xlu0 %6089
    %6091 = vrot.lane.b32.xlu0 %v5976, 96
    %v6092 = vpop.permute.xlu0 %6091
    %6093 = vrot.lane.b32.xlu0 %v5984, 96
    %v6094 = vpop.permute.xlu0 %6093
    %6095 = vrot.lane.b32.xlu0 %v5992, 96
    %v6096 = vpop.permute.xlu0 %6095
    %6097 = vrot.lane.b32.xlu0 %v6000, 96
    %v6098 = vpop.permute.xlu0 %6097
    %6099 = vrot.lane.b32.xlu0 %v6008, 96
    %v6100 = vpop.permute.xlu0 %6099
    %6101 = vrot.lane.b32.xlu0 %v6016, 96
    %v6102 = vpop.permute.xlu0 %6101
    %6103 = vrot.lane.b32.xlu0 %v6024, 96
    %v6104 = vpop.permute.xlu0 %6103
    %6105 = vrot.lane.b32.xlu0 %v6032, 96
    %v6106 = vpop.permute.xlu0 %6105
    %6107 = vrot.lane.b32.xlu0 %v6040, 96
    %v6108 = vpop.permute.xlu0 %6107
    %6109 = vrot.lane.b32.xlu0 %v6048, 96
    %v6110 = vpop.permute.xlu0 %6109
    %6111 = vrot.lane.b32.xlu0 %v6056, 96
    %v6112 = vpop.permute.xlu0 %6111
    %6113 = vrot.lane.b32.xlu0 %v6064, 96
    %v6114 = vpop.permute.xlu0 %6113
    %6115 = vrot.lane.b32.xlu0 %v6072, 96
    %v6116 = vpop.permute.xlu0 %6115
    %6117 = vrot.lane.b32.xlu0 %v6080, 96
    %v6118 = vpop.permute.xlu0 %6117
    %6119 = vrot.lane.b32.xlu0 %v6088, 96
    %v6120 = vpop.permute.xlu0 %6119
    %v6122 = vunpack.c.l.b16 %v5074
    %v6123 = vpack.c.b16 %v5128, %v6122
    %v6124 = vrot.slane %v6123, 1
    %v6125 = vrot.slane %v5871, 1
    %v6126 = vsel %vm2346, %v6124, %v6125
    %v6127 = vrot.slane %v5872, 1
    %v6128 = vsel %vm2346, %v6125, %v6127
    %v6129 = vrot.slane %v5873, 1
    %v6130 = vsel %vm2346, %v6127, %v6129
    %v6131 = vrot.slane %v5874, 1
    %v6132 = vsel %vm2346, %v6129, %v6131
    %v6133 = vrot.slane %v5875, 1
    %v6134 = vsel %vm2346, %v6131, %v6133
    %v6135 = vrot.slane %v5876, 1
    %v6136 = vsel %vm2346, %v6133, %v6135
    %v6137 = vrot.slane %v5877, 1
    %v6138 = vsel %vm2346, %v6135, %v6137
    %v6139 = vrot.slane %v5878, 1
    %v6140 = vsel %vm2346, %v6137, %v6139
    %v6141 = vrot.slane %v5879, 1
    %v6142 = vsel %vm2346, %v6139, %v6141
    %v6143 = vrot.slane %v5880, 1
    %v6144 = vsel %vm2346, %v6141, %v6143
    %v6145 = vrot.slane %v5881, 1
    %v6146 = vsel %vm2346, %v6143, %v6145
    %v6147 = vrot.slane %v5882, 1
    %v6148 = vsel %vm2346, %v6145, %v6147
    %v6149 = vrot.slane %v5883, 1
    %v6150 = vsel %vm2346, %v6147, %v6149
    %v6151 = vrot.slane %v5884, 1
    %v6152 = vsel %vm2346, %v6149, %v6151
    %v6153 = vrot.slane %v5921, 1
    %v6154 = vsel %vm2346, %v6151, %v6153
    %v6155 = vrot.slane %v5956, 1
    %v6156 = vsel %vm2346, %v6153, %v6155
    %v6158 = vunpack.c.l.b16 %v5075
    %v6159 = vpack.c.b16 %v6158, %v6158
    %v6161 = vshrl.u32 %v6123, 16
    %v6163 = vrot.slane %v6161, 1
    %v6164 = vshll.u32 %v6123, 16
    %v6166 = vrot.slane %v6164, 2
    %v6167 = vor.u32 %v6163, %v6166
    %v6168 = vrot.slane %v5969, 1
    %v6169 = vrot.slane %v5965, 2
    %v6170 = vor.u32 %v6168, %v6169
    %v6171 = vsel %vm5408, %v6167, %v6170
    %v6172 = vrot.slane %v5977, 1
    %v6173 = vrot.slane %v5973, 2
    %v6174 = vor.u32 %v6172, %v6173
    %v6175 = vsel %vm5408, %v6170, %v6174
    %v6176 = vrot.slane %v5985, 1
    %v6177 = vrot.slane %v5981, 2
    %v6178 = vor.u32 %v6176, %v6177
    %v6179 = vsel %vm5408, %v6174, %v6178
    %v6180 = vrot.slane %v5993, 1
    %v6181 = vrot.slane %v5989, 2
    %v6182 = vor.u32 %v6180, %v6181
    %v6183 = vsel %vm5408, %v6178, %v6182
    %v6184 = vrot.slane %v6001, 1
    %v6185 = vrot.slane %v5997, 2
    %v6186 = vor.u32 %v6184, %v6185
    %v6187 = vsel %vm5408, %v6182, %v6186
    %v6188 = vrot.slane %v6009, 1
    %v6189 = vrot.slane %v6005, 2
    %v6190 = vor.u32 %v6188, %v6189
    %v6191 = vsel %vm5408, %v6186, %v6190
    %v6192 = vrot.slane %v6017, 1
    %v6193 = vrot.slane %v6013, 2
    %v6194 = vor.u32 %v6192, %v6193
    %v6195 = vsel %vm5408, %v6190, %v6194
    %v6196 = vrot.slane %v6025, 1
    %v6197 = vrot.slane %v6021, 2
    %v6198 = vor.u32 %v6196, %v6197
    %v6199 = vsel %vm5408, %v6194, %v6198
    %v6200 = vrot.slane %v6033, 1
    %v6201 = vrot.slane %v6029, 2
    %v6202 = vor.u32 %v6200, %v6201
    %v6203 = vsel %vm5408, %v6198, %v6202
    %v6204 = vrot.slane %v6041, 1
    %v6205 = vrot.slane %v6037, 2
    %v6206 = vor.u32 %v6204, %v6205
    %v6207 = vsel %vm5408, %v6202, %v6206
    %v6208 = vrot.slane %v6049, 1
    %v6209 = vrot.slane %v6045, 2
    %v6210 = vor.u32 %v6208, %v6209
    %v6211 = vsel %vm5408, %v6206, %v6210
    %v6212 = vrot.slane %v6057, 1
    %v6213 = vrot.slane %v6053, 2
    %v6214 = vor.u32 %v6212, %v6213
    %v6215 = vsel %vm5408, %v6210, %v6214
    %v6216 = vrot.slane %v6065, 1
    %v6217 = vrot.slane %v6061, 2
    %v6218 = vor.u32 %v6216, %v6217
    %v6219 = vsel %vm5408, %v6214, %v6218
    %v6220 = vrot.slane %v6073, 1
    %v6221 = vrot.slane %v6069, 2
    %v6222 = vor.u32 %v6220, %v6221
    %v6223 = vsel %vm5408, %v6218, %v6222
    %v6224 = vrot.slane %v6081, 1
    %v6225 = vrot.slane %v6077, 2
    %v6226 = vor.u32 %v6224, %v6225
    %v6227 = vsel %vm5408, %v6222, %v6226
    %v6229 = vshrl.u32 %v6159, 16
    %v6231 = vrot.slane %v6229, 1
    %v6232 = vshll.u32 %v6159, 16
    %v6234 = vrot.slane %v6232, 2
    %v6235 = vor.u32 %v6231, %v6234
    %v6236 = vsel %vm5408, %v6226, %v6235
    %6237 = vrot.lane.b32.xlu0 %v6171, 32
    %v6238 = vpop.permute.xlu0 %6237
    %6239 = vrot.lane.b32.xlu0 %v6175, 32
    %v6240 = vpop.permute.xlu0 %6239
    %6241 = vrot.lane.b32.xlu0 %v6179, 32
    %v6242 = vpop.permute.xlu0 %6241
    %6243 = vrot.lane.b32.xlu0 %v6183, 32
    %v6244 = vpop.permute.xlu0 %6243
    %6245 = vrot.lane.b32.xlu0 %v6187, 32
    %v6246 = vpop.permute.xlu0 %6245
    %6247 = vrot.lane.b32.xlu0 %v6191, 32
    %v6248 = vpop.permute.xlu0 %6247
    %6249 = vrot.lane.b32.xlu0 %v6195, 32
    %v6250 = vpop.permute.xlu0 %6249
    %6251 = vrot.lane.b32.xlu0 %v6199, 32
    %v6252 = vpop.permute.xlu0 %6251
    %6253 = vrot.lane.b32.xlu0 %v6203, 32
    %v6254 = vpop.permute.xlu0 %6253
    %6255 = vrot.lane.b32.xlu0 %v6207, 32
    %v6256 = vpop.permute.xlu0 %6255
    %6257 = vrot.lane.b32.xlu0 %v6211, 32
    %v6258 = vpop.permute.xlu0 %6257
    %6259 = vrot.lane.b32.xlu0 %v6215, 32
    %v6260 = vpop.permute.xlu0 %6259
    %6261 = vrot.lane.b32.xlu0 %v6219, 32
    %v6262 = vpop.permute.xlu0 %6261
    %6263 = vrot.lane.b32.xlu0 %v6223, 32
    %v6264 = vpop.permute.xlu0 %6263
    %6265 = vrot.lane.b32.xlu0 %v6227, 32
    %v6266 = vpop.permute.xlu0 %6265
    %6267 = vrot.lane.b32.xlu0 %v6236, 32
    %v6268 = vpop.permute.xlu0 %6267
    %v6270 = vunpack.c.l.b16 %v5076
    %v6271 = vpack.c.b16 %v5128, %v6270
    %v6272 = vrot.slane %v6271, 2
    %v6273 = vrot.slane %v5871, 2
    %v6274 = vsel %vm505, %v6272, %v6273
    %v6275 = vrot.slane %v5872, 2
    %v6276 = vsel %vm505, %v6273, %v6275
    %v6277 = vrot.slane %v5873, 2
    %v6278 = vsel %vm505, %v6275, %v6277
    %v6279 = vrot.slane %v5874, 2
    %v6280 = vsel %vm505, %v6277, %v6279
    %v6281 = vrot.slane %v5875, 2
    %v6282 = vsel %vm505, %v6279, %v6281
    %v6283 = vrot.slane %v5876, 2
    %v6284 = vsel %vm505, %v6281, %v6283
    %v6285 = vrot.slane %v5877, 2
    %v6286 = vsel %vm505, %v6283, %v6285
    %v6287 = vrot.slane %v5878, 2
    %v6288 = vsel %vm505, %v6285, %v6287
    %v6289 = vrot.slane %v5879, 2
    %v6290 = vsel %vm505, %v6287, %v6289
    %v6291 = vrot.slane %v5880, 2
    %v6292 = vsel %vm505, %v6289, %v6291
    %v6293 = vrot.slane %v5881, 2
    %v6294 = vsel %vm505, %v6291, %v6293
    %v6295 = vrot.slane %v5882, 2
    %v6296 = vsel %vm505, %v6293, %v6295
    %v6297 = vrot.slane %v5883, 2
    %v6298 = vsel %vm505, %v6295, %v6297
    %v6299 = vrot.slane %v5884, 2
    %v6300 = vsel %vm505, %v6297, %v6299
    %v6301 = vrot.slane %v5921, 2
    %v6302 = vsel %vm505, %v6299, %v6301
    %v6303 = vrot.slane %v6159, 2
    %v6304 = vsel %vm505, %v6301, %v6303
    %6305 = vrot.lane.b32.xlu0 %v6274, 64
    %v6306 = vpop.permute.xlu0 %6305
    %6307 = vrot.lane.b32.xlu0 %v6276, 64
    %v6308 = vpop.permute.xlu0 %6307
    %6309 = vrot.lane.b32.xlu0 %v6278, 64
    %v6310 = vpop.permute.xlu0 %6309
    %6311 = vrot.lane.b32.xlu0 %v6280, 64
    %v6312 = vpop.permute.xlu0 %6311
    %6313 = vrot.lane.b32.xlu0 %v6282, 64
    %v6314 = vpop.permute.xlu0 %6313
    %6315 = vrot.lane.b32.xlu0 %v6284, 64
    %v6316 = vpop.permute.xlu0 %6315
    %6317 = vrot.lane.b32.xlu0 %v6286, 64
    %v6318 = vpop.permute.xlu0 %6317
    %6319 = vrot.lane.b32.xlu0 %v6288, 64
    %v6320 = vpop.permute.xlu0 %6319
    %6321 = vrot.lane.b32.xlu0 %v6290, 64
    %v6322 = vpop.permute.xlu0 %6321
    %6323 = vrot.lane.b32.xlu0 %v6292, 64
    %v6324 = vpop.permute.xlu0 %6323
    %6325 = vrot.lane.b32.xlu0 %v6294, 64
    %v6326 = vpop.permute.xlu0 %6325
    %6327 = vrot.lane.b32.xlu0 %v6296, 64
    %v6328 = vpop.permute.xlu0 %6327
    %6329 = vrot.lane.b32.xlu0 %v6298, 64
    %v6330 = vpop.permute.xlu0 %6329
    %6331 = vrot.lane.b32.xlu0 %v6300, 64
    %v6332 = vpop.permute.xlu0 %6331
    %6333 = vrot.lane.b32.xlu0 %v6302, 64
    %v6334 = vpop.permute.xlu0 %6333
    %6335 = vrot.lane.b32.xlu0 %v6304, 64
    %v6336 = vpop.permute.xlu0 %6335
    %v6341 = vunpack.c.l.b16 %v5077
    %v6342 = vunpack.c.l.b16 %v5078
    %v6343 = vunpack.c.l.b16 %v5079
    %v6344 = vunpack.c.l.b16 %v5080
    %v6345 = vpack.c.b16 %v5130, %v6341
    %v6346 = vpack.c.b16 %v6343, %v6342
    %v6347 = vpack.c.b16 %v6344, %v6344
    %v6348 = vrot.slane %v6345, 2
    %v6349 = vsel %vm505, %v6348, %v6275
    %v6350 = vrot.slane %v6346, 2
    %v6351 = vsel %vm505, %v6301, %v6350
    %v6352 = vrot.slane %v6347, 2
    %v6353 = vsel %vm505, %v6350, %v6352
    %6354 = vrot.lane.b32.xlu0 %v6349, 96
    %v6355 = vpop.permute.xlu0 %6354
    %6356 = vrot.lane.b32.xlu0 %v6278, 96
    %v6357 = vpop.permute.xlu0 %6356
    %6358 = vrot.lane.b32.xlu0 %v6280, 96
    %v6359 = vpop.permute.xlu0 %6358
    %6360 = vrot.lane.b32.xlu0 %v6282, 96
    %v6361 = vpop.permute.xlu0 %6360
    %6362 = vrot.lane.b32.xlu0 %v6284, 96
    %v6363 = vpop.permute.xlu0 %6362
    %6364 = vrot.lane.b32.xlu0 %v6286, 96
    %v6365 = vpop.permute.xlu0 %6364
    %6366 = vrot.lane.b32.xlu0 %v6288, 96
    %v6367 = vpop.permute.xlu0 %6366
    %6368 = vrot.lane.b32.xlu0 %v6290, 96
    %v6369 = vpop.permute.xlu0 %6368
    %6370 = vrot.lane.b32.xlu0 %v6292, 96
    %v6371 = vpop.permute.xlu0 %6370
    %6372 = vrot.lane.b32.xlu0 %v6294, 96
    %v6373 = vpop.permute.xlu0 %6372
    %6374 = vrot.lane.b32.xlu0 %v6296, 96
    %v6375 = vpop.permute.xlu0 %6374
    %6376 = vrot.lane.b32.xlu0 %v6298, 96
    %v6377 = vpop.permute.xlu0 %6376
    %6378 = vrot.lane.b32.xlu0 %v6300, 96
    %v6379 = vpop.permute.xlu0 %6378
    %6380 = vrot.lane.b32.xlu0 %v6302, 96
    %v6381 = vpop.permute.xlu0 %6380
    %6382 = vrot.lane.b32.xlu0 %v6351, 96
    %v6383 = vpop.permute.xlu0 %6382
    %6384 = vrot.lane.b32.xlu0 %v6353, 96
    %v6385 = vpop.permute.xlu0 %6384
    %v6387 = vsel %vm1527, %v5154, %v5306
    %v6389 = vsel %vm1527, %v5155, %v5308
    %v6391 = vsel %vm1527, %v5156, %v5310
    %v6393 = vsel %vm1527, %v5157, %v5312
    %v6395 = vsel %vm1527, %v5158, %v5314
    %v6397 = vsel %vm1527, %v5159, %v5316
    %v6399 = vsel %vm1527, %v5160, %v5318
    %v6401 = vsel %vm1527, %v5161, %v5320
    %v6403 = vsel %vm1527, %v5162, %v5322
    %v6405 = vsel %vm1527, %v5163, %v5324
    %v6407 = vsel %vm1527, %v5164, %v5326
    %v6409 = vsel %vm1527, %v5165, %v5328
    %v6411 = vsel %vm1527, %v5166, %v5330
    %v6413 = vsel %vm1527, %v5167, %v5332
    %v6415 = vsel %vm1527, %v5168, %v5334
    %v6417 = vsel %vm1527, %v5169, %v5336
    %v6419 = vsel %vm1053, %v6387, %v5374
    %v6421 = vsel %vm1053, %v6389, %v5376
    %v6423 = vsel %vm1053, %v6391, %v5378
    %v6425 = vsel %vm1053, %v6393, %v5380
    %v6427 = vsel %vm1053, %v6395, %v5382
    %v6429 = vsel %vm1053, %v6397, %v5384
    %v6431 = vsel %vm1053, %v6399, %v5386
    %v6433 = vsel %vm1053, %v6401, %v5388
    %v6435 = vsel %vm1053, %v6403, %v5390
    %v6437 = vsel %vm1053, %v6405, %v5392
    %v6439 = vsel %vm1053, %v6407, %v5394
    %v6441 = vsel %vm1053, %v6409, %v5396
    %v6443 = vsel %vm1053, %v6411, %v5398
    %v6445 = vsel %vm1053, %v6413, %v5400
    %v6447 = vsel %vm1053, %v6415, %v5402
    %v6449 = vsel %vm1053, %v6417, %v5404
    %v6451 = vsel %vm830, %v6419, %v5487
    %v6454 = vsel %vm830, %v6421, %v5489
    %v6457 = vsel %vm830, %v6423, %v5491
    %v6460 = vsel %vm830, %v6425, %v5493
    %v6463 = vsel %vm830, %v6427, %v5495
    %v6466 = vsel %vm830, %v6429, %v5497
    %v6469 = vsel %vm830, %v6431, %v5499
    %v6472 = vsel %vm830, %v6433, %v5501
    %v6475 = vsel %vm830, %v6435, %v5503
    %v6478 = vsel %vm830, %v6437, %v5505
    %v6481 = vsel %vm830, %v6439, %v5507
    %v6484 = vsel %vm830, %v6441, %v5509
    %v6487 = vsel %vm830, %v6443, %v5511
    %v6490 = vsel %vm830, %v6445, %v5513
    %v6493 = vsel %vm830, %v6447, %v5515
    %v6496 = vsel %vm830, %v6449, %v5517
    %v6500 = vsel %vm1527, %v5523, %v5572
    %v6503 = vsel %vm1527, %v5525, %v5574
    %v6506 = vsel %vm1527, %v5527, %v5576
    %v6509 = vsel %vm1527, %v5529, %v5578
    %v6512 = vsel %vm1527, %v5531, %v5580
    %v6515 = vsel %vm1527, %v5533, %v5582
    %v6518 = vsel %vm1527, %v5535, %v5584
    %v6521 = vsel %vm1527, %v5537, %v5586
    %v6524 = vsel %vm1527, %v5539, %v5588
    %v6527 = vsel %vm1527, %v5541, %v5590
    %v6530 = vsel %vm1527, %v5543, %v5592
    %v6533 = vsel %vm1527, %v5545, %v5594
    %v6536 = vsel %vm1527, %v5547, %v5596
    %v6539 = vsel %vm1527, %v5549, %v5598
    %v6542 = vsel %vm1527, %v5551, %v5600
    %v6545 = vsel %vm1527, %v5553, %v5602
    %v6547 = vsel %vm1053, %v6500, %v5689
    %v6549 = vsel %vm1053, %v6503, %v5691
    %v6551 = vsel %vm1053, %v6506, %v5693
    %v6553 = vsel %vm1053, %v6509, %v5695
    %v6555 = vsel %vm1053, %v6512, %v5697
    %v6557 = vsel %vm1053, %v6515, %v5699
    %v6559 = vsel %vm1053, %v6518, %v5701
    %v6561 = vsel %vm1053, %v6521, %v5703
    %v6563 = vsel %vm1053, %v6524, %v5705
    %v6565 = vsel %vm1053, %v6527, %v5707
    %v6567 = vsel %vm1053, %v6530, %v5709
    %v6569 = vsel %vm1053, %v6533, %v5711
    %v6571 = vsel %vm1053, %v6536, %v5713
    %v6573 = vsel %vm1053, %v6539, %v5715
    %v6575 = vsel %vm1053, %v6542, %v5717
    %v6577 = vsel %vm1053, %v6545, %v5719
    %v6579 = vsel %vm830, %v6547, %v5757
    %v6582 = vsel %vm830, %v6549, %v5759
    %v6585 = vsel %vm830, %v6551, %v5761
    %v6588 = vsel %vm830, %v6553, %v5763
    %v6591 = vsel %vm830, %v6555, %v5765
    %v6594 = vsel %vm830, %v6557, %v5767
    %v6597 = vsel %vm830, %v6559, %v5769
    %v6600 = vsel %vm830, %v6561, %v5771
    %v6603 = vsel %vm830, %v6563, %v5773
    %v6606 = vsel %vm830, %v6565, %v5775
    %v6609 = vsel %vm830, %v6567, %v5777
    %v6612 = vsel %vm830, %v6569, %v5779
    %v6615 = vsel %vm830, %v6571, %v5781
    %v6618 = vsel %vm830, %v6573, %v5783
    %v6621 = vsel %vm830, %v6575, %v5785
    %v6624 = vsel %vm830, %v6577, %v5787
    %v6628 = vsel %vm1527, %v5803, %v5886
    %v6631 = vsel %vm1527, %v5807, %v5888
    %v6634 = vsel %vm1527, %v5811, %v5890
    %v6637 = vsel %vm1527, %v5815, %v5892
    %v6640 = vsel %vm1527, %v5819, %v5894
    %v6643 = vsel %vm1527, %v5823, %v5896
    %v6646 = vsel %vm1527, %v5827, %v5898
    %v6649 = vsel %vm1527, %v5831, %v5900
    %v6652 = vsel %vm1527, %v5835, %v5902
    %v6655 = vsel %vm1527, %v5839, %v5904
    %v6658 = vsel %vm1527, %v5843, %v5906
    %v6661 = vsel %vm1527, %v5847, %v5908
    %v6664 = vsel %vm1527, %v5851, %v5910
    %v6667 = vsel %vm1527, %v5855, %v5912
    %v6670 = vsel %vm1527, %v5859, %v5914
    %v6673 = vsel %vm1527, %v5868, %v5916
    %v6675 = vsel %vm1053, %v6628, %v5923
    %v6677 = vsel %vm1053, %v6631, %v5925
    %v6679 = vsel %vm1053, %v6634, %v5927
    %v6681 = vsel %vm1053, %v6637, %v5929
    %v6683 = vsel %vm1053, %v6640, %v5931
    %v6685 = vsel %vm1053, %v6643, %v5933
    %v6687 = vsel %vm1053, %v6646, %v5935
    %v6689 = vsel %vm1053, %v6649, %v5937
    %v6691 = vsel %vm1053, %v6652, %v5939
    %v6693 = vsel %vm1053, %v6655, %v5941
    %v6695 = vsel %vm1053, %v6658, %v5943
    %v6697 = vsel %vm1053, %v6661, %v5945
    %v6699 = vsel %vm1053, %v6664, %v5947
    %v6701 = vsel %vm1053, %v6667, %v5949
    %v6703 = vsel %vm1053, %v6670, %v5951
    %v6705 = vsel %vm1053, %v6673, %v5953
    %v6707 = vsel %vm830, %v6675, %v6090
    %v6710 = vsel %vm830, %v6677, %v6092
    %v6713 = vsel %vm830, %v6679, %v6094
    %v6716 = vsel %vm830, %v6681, %v6096
    %v6719 = vsel %vm830, %v6683, %v6098
    %v6722 = vsel %vm830, %v6685, %v6100
    %v6725 = vsel %vm830, %v6687, %v6102
    %v6728 = vsel %vm830, %v6689, %v6104
    %v6731 = vsel %vm830, %v6691, %v6106
    %v6734 = vsel %vm830, %v6693, %v6108
    %v6737 = vsel %vm830, %v6695, %v6110
    %v6740 = vsel %vm830, %v6697, %v6112
    %v6743 = vsel %vm830, %v6699, %v6114
    %v6746 = vsel %vm830, %v6701, %v6116
    %v6749 = vsel %vm830, %v6703, %v6118
    %v6752 = vsel %vm830, %v6705, %v6120
    %v6756 = vsel %vm1527, %v6126, %v6238
    %v6759 = vsel %vm1527, %v6128, %v6240
    %v6762 = vsel %vm1527, %v6130, %v6242
    %v6765 = vsel %vm1527, %v6132, %v6244
    %v6768 = vsel %vm1527, %v6134, %v6246
    %v6771 = vsel %vm1527, %v6136, %v6248
    %v6774 = vsel %vm1527, %v6138, %v6250
    %v6777 = vsel %vm1527, %v6140, %v6252
    %v6780 = vsel %vm1527, %v6142, %v6254
    %v6783 = vsel %vm1527, %v6144, %v6256
    %v6786 = vsel %vm1527, %v6146, %v6258
    %v6789 = vsel %vm1527, %v6148, %v6260
    %v6792 = vsel %vm1527, %v6150, %v6262
    %v6795 = vsel %vm1527, %v6152, %v6264
    %v6798 = vsel %vm1527, %v6154, %v6266
    %v6801 = vsel %vm1527, %v6156, %v6268
    %v6803 = vsel %vm1053, %v6756, %v6306
    %v6805 = vsel %vm1053, %v6759, %v6308
    %v6807 = vsel %vm1053, %v6762, %v6310
    %v6809 = vsel %vm1053, %v6765, %v6312
    %v6811 = vsel %vm1053, %v6768, %v6314
    %v6813 = vsel %vm1053, %v6771, %v6316
    %v6815 = vsel %vm1053, %v6774, %v6318
    %v6817 = vsel %vm1053, %v6777, %v6320
    %v6819 = vsel %vm1053, %v6780, %v6322
    %v6821 = vsel %vm1053, %v6783, %v6324
    %v6823 = vsel %vm1053, %v6786, %v6326
    %v6825 = vsel %vm1053, %v6789, %v6328
    %v6827 = vsel %vm1053, %v6792, %v6330
    %v6829 = vsel %vm1053, %v6795, %v6332
    %v6831 = vsel %vm1053, %v6798, %v6334
    %v6833 = vsel %vm1053, %v6801, %v6336
    %v6835 = vsel %vm830, %v6803, %v6355
    %v6838 = vsel %vm830, %v6805, %v6357
    %v6841 = vsel %vm830, %v6807, %v6359
    %v6844 = vsel %vm830, %v6809, %v6361
    %v6847 = vsel %vm830, %v6811, %v6363
    %v6850 = vsel %vm830, %v6813, %v6365
    %v6853 = vsel %vm830, %v6815, %v6367
    %v6856 = vsel %vm830, %v6817, %v6369
    %v6859 = vsel %vm830, %v6819, %v6371
    %v6862 = vsel %vm830, %v6821, %v6373
    %v6865 = vsel %vm830, %v6823, %v6375
    %v6868 = vsel %vm830, %v6825, %v6377
    %v6871 = vsel %vm830, %v6827, %v6379
    %v6874 = vsel %vm830, %v6829, %v6381
    %v6877 = vsel %vm830, %v6831, %v6383
    %v6880 = vsel %vm830, %v6833, %v6385
    %v6883 = vunpack.c.l.b16 %v5081
    %v6884 = vpack.c.b16 %v6883, %v6883
    %v6886 = vunpack.c.l.b16 %v5082
    %v6887 = vpack.c.b16 %v5130, %v6886
    %v6889 = vshrl.u32 %v6887, 16
    %v6891 = vshll.u32 %v6887, 16
    %v6893 = vrot.slane %v6891, 1
    %v6894 = vor.u32 %v6889, %v6893
    %v6895 = vsel %vm239, %v6894, %v5975
    %v6897 = vshll.u32 %v6346, 16
    %v6899 = vrot.slane %v6897, 1
    %v6900 = vsel %vm239, %v6083, %v6899
    %v6901 = vshrl.u32 %v6346, 16
    %v6903 = vor.u32 %v6901, %v6899
    %v6905 = vshll.u32 %v6884, 16
    %v6907 = vrot.slane %v6905, 1
    %v6908 = vsel %vm239, %v6903, %v6907
    %v6909 = vshrl.u32 %v6884, 16
    %v6911 = vor.u32 %v6909, %v6907
    %6912 = vrot.lane.b32.xlu0 %v6895, 32
    %v6913 = vpop.permute.xlu0 %6912
    %6914 = vrot.lane.b32.xlu0 %v5984, 32
    %v6915 = vpop.permute.xlu0 %6914
    %6916 = vrot.lane.b32.xlu0 %v5992, 32
    %v6917 = vpop.permute.xlu0 %6916
    %6918 = vrot.lane.b32.xlu0 %v6000, 32
    %v6919 = vpop.permute.xlu0 %6918
    %6920 = vrot.lane.b32.xlu0 %v6008, 32
    %v6921 = vpop.permute.xlu0 %6920
    %6922 = vrot.lane.b32.xlu0 %v6016, 32
    %v6923 = vpop.permute.xlu0 %6922
    %6924 = vrot.lane.b32.xlu0 %v6024, 32
    %v6925 = vpop.permute.xlu0 %6924
    %6926 = vrot.lane.b32.xlu0 %v6032, 32
    %v6927 = vpop.permute.xlu0 %6926
    %6928 = vrot.lane.b32.xlu0 %v6040, 32
    %v6929 = vpop.permute.xlu0 %6928
    %6930 = vrot.lane.b32.xlu0 %v6048, 32
    %v6931 = vpop.permute.xlu0 %6930
    %6932 = vrot.lane.b32.xlu0 %v6056, 32
    %v6933 = vpop.permute.xlu0 %6932
    %6934 = vrot.lane.b32.xlu0 %v6064, 32
    %v6935 = vpop.permute.xlu0 %6934
    %6936 = vrot.lane.b32.xlu0 %v6072, 32
    %v6937 = vpop.permute.xlu0 %6936
    %6938 = vrot.lane.b32.xlu0 %v6080, 32
    %v6939 = vpop.permute.xlu0 %6938
    %6940 = vrot.lane.b32.xlu0 %v6900, 32
    %v6941 = vpop.permute.xlu0 %6940
    %6942 = vrot.lane.b32.xlu0 %v6908, 32
    %v6943 = vpop.permute.xlu0 %6942
    %6944 = vrot.lane.b32.xlu0 %v6911, 32
    %v6945 = vpop.permute.xlu0 %6944
    %v6947 = vunpack.c.l.b16 %v5083
    %v6948 = vpack.c.b16 %v6947, %v6947
    %v6949 = vrot.slane %v6887, 1
    %v6950 = vsel %vm2346, %v6949, %v6127
    %v6951 = vrot.slane %v6346, 1
    %v6952 = vsel %vm2346, %v6153, %v6951
    %v6953 = vrot.slane %v6948, 1
    %v6954 = vsel %vm2346, %v6951, %v6953
    %6955 = vrot.lane.b32.xlu0 %v6950, 64
    %v6956 = vpop.permute.xlu0 %6955
    %6957 = vrot.lane.b32.xlu0 %v6130, 64
    %v6958 = vpop.permute.xlu0 %6957
    %6959 = vrot.lane.b32.xlu0 %v6132, 64
    %v6960 = vpop.permute.xlu0 %6959
    %6961 = vrot.lane.b32.xlu0 %v6134, 64
    %v6962 = vpop.permute.xlu0 %6961
    %6963 = vrot.lane.b32.xlu0 %v6136, 64
    %v6964 = vpop.permute.xlu0 %6963
    %6965 = vrot.lane.b32.xlu0 %v6138, 64
    %v6966 = vpop.permute.xlu0 %6965
    %6967 = vrot.lane.b32.xlu0 %v6140, 64
    %v6968 = vpop.permute.xlu0 %6967
    %6969 = vrot.lane.b32.xlu0 %v6142, 64
    %v6970 = vpop.permute.xlu0 %6969
    %6971 = vrot.lane.b32.xlu0 %v6144, 64
    %v6972 = vpop.permute.xlu0 %6971
    %6973 = vrot.lane.b32.xlu0 %v6146, 64
    %v6974 = vpop.permute.xlu0 %6973
    %6975 = vrot.lane.b32.xlu0 %v6148, 64
    %v6976 = vpop.permute.xlu0 %6975
    %6977 = vrot.lane.b32.xlu0 %v6150, 64
    %v6978 = vpop.permute.xlu0 %6977
    %6979 = vrot.lane.b32.xlu0 %v6152, 64
    %v6980 = vpop.permute.xlu0 %6979
    %6981 = vrot.lane.b32.xlu0 %v6154, 64
    %v6982 = vpop.permute.xlu0 %6981
    %6983 = vrot.lane.b32.xlu0 %v6952, 64
    %v6984 = vpop.permute.xlu0 %6983
    %6985 = vrot.lane.b32.xlu0 %v6954, 64
    %v6986 = vpop.permute.xlu0 %6985
    %6987 = vrot.lane.b32.xlu0 %v6953, 64
    %v6988 = vpop.permute.xlu0 %6987
    %v6989 = vpack.c.b16 %v5919, %v5789
    %v6990 = vpack.c.b16 %v6342, %v5920
    %v6991 = vpack.c.b16 %v6947, %v6343
    %vm6992 = vsmask.f32 2304
    %v6993 = vrot.slane %v5209, 5
    %v6994 = vrot.slane %v5205, 6
    %v6995 = vor.u32 %v6993, %v6994
    %v6996 = vrot.slane %v5217, 5
    %v6997 = vrot.slane %v5213, 6
    %v6998 = vor.u32 %v6996, %v6997
    %v6999 = vsel %vm6992, %v6995, %v6998
    %v7000 = vrot.slane %v5225, 5
    %v7001 = vrot.slane %v5221, 6
    %v7002 = vor.u32 %v7000, %v7001
    %v7003 = vsel %vm6992, %v6998, %v7002
    %v7004 = vrot.slane %v5233, 5
    %v7005 = vrot.slane %v5229, 6
    %v7006 = vor.u32 %v7004, %v7005
    %v7007 = vsel %vm6992, %v7002, %v7006
    %v7008 = vrot.slane %v5241, 5
    %v7009 = vrot.slane %v5237, 6
    %v7010 = vor.u32 %v7008, %v7009
    %v7011 = vsel %vm6992, %v7006, %v7010
    %v7012 = vrot.slane %v5249, 5
    %v7013 = vrot.slane %v5245, 6
    %v7014 = vor.u32 %v7012, %v7013
    %v7015 = vsel %vm6992, %v7010, %v7014
    %v7016 = vrot.slane %v5257, 5
    %v7017 = vrot.slane %v5253, 6
    %v7018 = vor.u32 %v7016, %v7017
    %v7019 = vsel %vm6992, %v7014, %v7018
    %v7020 = vrot.slane %v5265, 5
    %v7021 = vrot.slane %v5261, 6
    %v7022 = vor.u32 %v7020, %v7021
    %v7023 = vsel %vm6992, %v7018, %v7022
    %v7024 = vrot.slane %v5273, 5
    %v7025 = vrot.slane %v5269, 6
    %v7026 = vor.u32 %v7024, %v7025
    %v7027 = vsel %vm6992, %v7022, %v7026
    %v7028 = vrot.slane %v5281, 5
    %v7029 = vrot.slane %v5277, 6
    %v7030 = vor.u32 %v7028, %v7029
    %v7031 = vsel %vm6992, %v7026, %v7030
    %v7032 = vrot.slane %v5289, 5
    %v7033 = vrot.slane %v5285, 6
    %v7034 = vor.u32 %v7032, %v7033
    %v7035 = vsel %vm6992, %v7030, %v7034
    %v7036 = vrot.slane %v5297, 5
    %v7037 = vrot.slane %v5293, 6
    %v7038 = vor.u32 %v7036, %v7037
    %v7039 = vsel %vm6992, %v7034, %v7038
    %v7040 = vrot.slane %v5671, 5
    %v7041 = vrot.slane %v5674, 6
    %v7042 = vor.u32 %v7040, %v7041
    %v7043 = vsel %vm6992, %v7038, %v7042
    %v7045 = vshrl.u32 %v6989, 16
    %v7047 = vrot.slane %v7045, 5
    %v7048 = vshll.u32 %v6989, 16
    %v7050 = vrot.slane %v7048, 6
    %v7051 = vor.u32 %v7047, %v7050
    %v7052 = vsel %vm6992, %v7042, %v7051
    %v7054 = vshrl.u32 %v6990, 16
    %v7056 = vrot.slane %v7054, 5
    %v7057 = vshll.u32 %v6990, 16
    %v7059 = vrot.slane %v7057, 6
    %v7060 = vor.u32 %v7056, %v7059
    %v7061 = vsel %vm6992, %v7051, %v7060
    %v7063 = vshrl.u32 %v6991, 16
    %v7065 = vrot.slane %v7063, 5
    %v7066 = vshll.u32 %v6991, 16
    %v7068 = vrot.slane %v7066, 6
    %v7069 = vor.u32 %v7065, %v7068
    %v7070 = vsel %vm6992, %v7060, %v7069
    %7071 = vrot.lane.b32.xlu0 %v6995, 96
    %v7072 = vpop.permute.xlu0 %7071
    %7073 = vrot.lane.b32.xlu0 %v6999, 96
    %v7074 = vpop.permute.xlu0 %7073
    %7075 = vrot.lane.b32.xlu0 %v7003, 96
    %v7076 = vpop.permute.xlu0 %7075
    %7077 = vrot.lane.b32.xlu0 %v7007, 96
    %v7078 = vpop.permute.xlu0 %7077
    %7079 = vrot.lane.b32.xlu0 %v7011, 96
    %v7080 = vpop.permute.xlu0 %7079
    %7081 = vrot.lane.b32.xlu0 %v7015, 96
    %v7082 = vpop.permute.xlu0 %7081
    %7083 = vrot.lane.b32.xlu0 %v7019, 96
    %v7084 = vpop.permute.xlu0 %7083
    %7085 = vrot.lane.b32.xlu0 %v7023, 96
    %v7086 = vpop.permute.xlu0 %7085
    %7087 = vrot.lane.b32.xlu0 %v7027, 96
    %v7088 = vpop.permute.xlu0 %7087
    %7089 = vrot.lane.b32.xlu0 %v7031, 96
    %v7090 = vpop.permute.xlu0 %7089
    %7091 = vrot.lane.b32.xlu0 %v7035, 96
    %v7092 = vpop.permute.xlu0 %7091
    %7093 = vrot.lane.b32.xlu0 %v7039, 96
    %v7094 = vpop.permute.xlu0 %7093
    %7095 = vrot.lane.b32.xlu0 %v7043, 96
    %v7096 = vpop.permute.xlu0 %7095
    %7097 = vrot.lane.b32.xlu0 %v7052, 96
    %v7098 = vpop.permute.xlu0 %7097
    %7099 = vrot.lane.b32.xlu0 %v7061, 96
    %v7100 = vpop.permute.xlu0 %7099
    %7101 = vrot.lane.b32.xlu0 %v7070, 96
    %v7102 = vpop.permute.xlu0 %7101
    %7103 = vrot.lane.b32.xlu0 %v7069, 96
    %v7104 = vpop.permute.xlu0 %7103
    %v7107 = vunpack.c.l.b16 %v5084
    %v7108 = vunpack.c.l.b16 %v5085
    %v7109 = vpack.c.b16 %v7108, %v7107
    %v7111 = vshrl.u32 %v7109, 16
    %v7113 = vrot.slane %v7111, 5
    %v7114 = vshll.u32 %v7109, 16
    %v7116 = vrot.slane %v7114, 6
    %v7117 = vor.u32 %v7113, %v7116
    %v7118 = vsel %vm6992, %v7069, %v7117
    %v7120 = vunpack.c.l.b16 %v5086
    %v7121 = vpack.c.b16 %v7120, %v7120
    %vm7122 = vcmask 1041408
    %v7123 = vrot.slane %v5159, 6
    %v7124 = vrot.slane %v5160, 6
    %v7125 = vsel %vm7122, %v7123, %v7124
    %v7126 = vrot.slane %v5161, 6
    %v7127 = vsel %vm7122, %v7124, %v7126
    %v7128 = vrot.slane %v5162, 6
    %v7129 = vsel %vm7122, %v7126, %v7128
    %v7130 = vrot.slane %v5163, 6
    %v7131 = vsel %vm7122, %v7128, %v7130
    %v7132 = vrot.slane %v5164, 6
    %v7133 = vsel %vm7122, %v7130, %v7132
    %v7134 = vrot.slane %v5165, 6
    %v7135 = vsel %vm7122, %v7132, %v7134
    %v7136 = vrot.slane %v5166, 6
    %v7137 = vsel %vm7122, %v7134, %v7136
    %v7138 = vrot.slane %v5167, 6
    %v7139 = vsel %vm7122, %v7136, %v7138
    %v7140 = vrot.slane %v5168, 6
    %v7141 = vsel %vm7122, %v7138, %v7140
    %v7142 = vrot.slane %v5169, 6
    %v7143 = vsel %vm7122, %v7140, %v7142
    %v7144 = vrot.slane %v5563, 6
    %v7145 = vsel %vm7122, %v7142, %v7144
    %v7146 = vrot.slane %v6989, 6
    %v7147 = vsel %vm7122, %v7144, %v7146
    %v7148 = vrot.slane %v6990, 6
    %v7149 = vsel %vm7122, %v7146, %v7148
    %v7150 = vrot.slane %v6991, 6
    %v7151 = vsel %vm7122, %v7148, %v7150
    %v7152 = vrot.slane %v7109, 6
    %v7153 = vsel %vm7122, %v7150, %v7152
    %v7154 = vrot.slane %v7121, 6
    %v7155 = vsel %vm7122, %v7152, %v7154
    %7156 = vrot.lane.b32.xlu0 %v7123, 32
    %v7157 = vpop.permute.xlu0 %7156
    %7158 = vrot.lane.b32.xlu0 %v7125, 32
    %v7159 = vpop.permute.xlu0 %7158
    %7160 = vrot.lane.b32.xlu0 %v7127, 32
    %v7161 = vpop.permute.xlu0 %7160
    %7162 = vrot.lane.b32.xlu0 %v7129, 32
    %v7163 = vpop.permute.xlu0 %7162
    %7164 = vrot.lane.b32.xlu0 %v7131, 32
    %v7165 = vpop.permute.xlu0 %7164
    %7166 = vrot.lane.b32.xlu0 %v7133, 32
    %v7167 = vpop.permute.xlu0 %7166
    %7168 = vrot.lane.b32.xlu0 %v7135, 32
    %v7169 = vpop.permute.xlu0 %7168
    %7170 = vrot.lane.b32.xlu0 %v7137, 32
    %v7171 = vpop.permute.xlu0 %7170
    %7172 = vrot.lane.b32.xlu0 %v7139, 32
    %v7173 = vpop.permute.xlu0 %7172
    %7174 = vrot.lane.b32.xlu0 %v7141, 32
    %v7175 = vpop.permute.xlu0 %7174
    %7176 = vrot.lane.b32.xlu0 %v7143, 32
    %v7177 = vpop.permute.xlu0 %7176
    %7178 = vrot.lane.b32.xlu0 %v7145, 32
    %v7179 = vpop.permute.xlu0 %7178
    %7180 = vrot.lane.b32.xlu0 %v7147, 32
    %v7181 = vpop.permute.xlu0 %7180
    %7182 = vrot.lane.b32.xlu0 %v7149, 32
    %v7183 = vpop.permute.xlu0 %7182
    %7184 = vrot.lane.b32.xlu0 %v7151, 32
    %v7185 = vpop.permute.xlu0 %7184
    %7186 = vrot.lane.b32.xlu0 %v7153, 32
    %v7187 = vpop.permute.xlu0 %7186
    %7188 = vrot.lane.b32.xlu0 %v7155, 32
    %v7189 = vpop.permute.xlu0 %7188
    %v7191 = vunpack.c.l.b16 %v5087
    %v7192 = vpack.c.b16 %v5133, %v7191
    %vm7193 = vsmask.f32 1280
    %v7195 = vshrl.u32 %v7192, 16
    %v7197 = vrot.slane %v7195, 6
    %v7198 = vshll.u32 %v7192, 16
    %v7200 = vrot.slane %v7198, 7
    %v7201 = vor.u32 %v7197, %v7200
    %v7202 = vrot.slane %v5225, 6
    %v7203 = vrot.slane %v5221, 7
    %v7204 = vor.u32 %v7202, %v7203
    %v7205 = vsel %vm7193, %v7201, %v7204
    %v7206 = vrot.slane %v5233, 6
    %v7207 = vrot.slane %v5229, 7
    %v7208 = vor.u32 %v7206, %v7207
    %v7209 = vsel %vm7193, %v7204, %v7208
    %v7210 = vrot.slane %v5241, 6
    %v7211 = vrot.slane %v5237, 7
    %v7212 = vor.u32 %v7210, %v7211
    %v7213 = vsel %vm7193, %v7208, %v7212
    %v7214 = vrot.slane %v5249, 6
    %v7215 = vrot.slane %v5245, 7
    %v7216 = vor.u32 %v7214, %v7215
    %v7217 = vsel %vm7193, %v7212, %v7216
    %v7218 = vrot.slane %v5257, 6
    %v7219 = vrot.slane %v5253, 7
    %v7220 = vor.u32 %v7218, %v7219
    %v7221 = vsel %vm7193, %v7216, %v7220
    %v7222 = vrot.slane %v5265, 6
    %v7223 = vrot.slane %v5261, 7
    %v7224 = vor.u32 %v7222, %v7223
    %v7225 = vsel %vm7193, %v7220, %v7224
    %v7226 = vrot.slane %v5273, 6
    %v7227 = vrot.slane %v5269, 7
    %v7228 = vor.u32 %v7226, %v7227
    %v7229 = vsel %vm7193, %v7224, %v7228
    %v7230 = vrot.slane %v5281, 6
    %v7231 = vrot.slane %v5277, 7
    %v7232 = vor.u32 %v7230, %v7231
    %v7233 = vsel %vm7193, %v7228, %v7232
    %v7234 = vrot.slane %v5289, 6
    %v7235 = vrot.slane %v5285, 7
    %v7236 = vor.u32 %v7234, %v7235
    %v7237 = vsel %vm7193, %v7232, %v7236
    %v7238 = vrot.slane %v5297, 6
    %v7239 = vrot.slane %v5293, 7
    %v7240 = vor.u32 %v7238, %v7239
    %v7241 = vsel %vm7193, %v7236, %v7240
    %v7242 = vrot.slane %v5671, 6
    %v7243 = vrot.slane %v5674, 7
    %v7244 = vor.u32 %v7242, %v7243
    %v7245 = vsel %vm7193, %v7240, %v7244
    %v7246 = vrot.slane %v7045, 6
    %v7247 = vrot.slane %v7048, 7
    %v7248 = vor.u32 %v7246, %v7247
    %v7249 = vsel %vm7193, %v7244, %v7248
    %v7250 = vrot.slane %v7054, 6
    %v7251 = vrot.slane %v7057, 7
    %v7252 = vor.u32 %v7250, %v7251
    %v7253 = vsel %vm7193, %v7248, %v7252
    %v7254 = vrot.slane %v7063, 6
    %v7255 = vrot.slane %v7066, 7
    %v7256 = vor.u32 %v7254, %v7255
    %v7257 = vsel %vm7193, %v7252, %v7256
    %v7258 = vrot.slane %v7111, 6
    %v7259 = vrot.slane %v7114, 7
    %v7260 = vor.u32 %v7258, %v7259
    %v7261 = vsel %vm7193, %v7256, %v7260
    %v7263 = vshrl.u32 %v7121, 16
    %v7265 = vrot.slane %v7263, 6
    %v7266 = vshll.u32 %v7121, 16
    %v7268 = vrot.slane %v7266, 7
    %v7269 = vor.u32 %v7265, %v7268
    %v7270 = vsel %vm7193, %v7260, %v7269
    %7271 = vrot.lane.b32.xlu0 %v7201, 64
    %v7272 = vpop.permute.xlu0 %7271
    %7273 = vrot.lane.b32.xlu0 %v7205, 64
    %v7274 = vpop.permute.xlu0 %7273
    %7275 = vrot.lane.b32.xlu0 %v7209, 64
    %v7276 = vpop.permute.xlu0 %7275
    %7277 = vrot.lane.b32.xlu0 %v7213, 64
    %v7278 = vpop.permute.xlu0 %7277
    %7279 = vrot.lane.b32.xlu0 %v7217, 64
    %v7280 = vpop.permute.xlu0 %7279
    %7281 = vrot.lane.b32.xlu0 %v7221, 64
    %v7282 = vpop.permute.xlu0 %7281
    %7283 = vrot.lane.b32.xlu0 %v7225, 64
    %v7284 = vpop.permute.xlu0 %7283
    %7285 = vrot.lane.b32.xlu0 %v7229, 64
    %v7286 = vpop.permute.xlu0 %7285
    %7287 = vrot.lane.b32.xlu0 %v7233, 64
    %v7288 = vpop.permute.xlu0 %7287
    %7289 = vrot.lane.b32.xlu0 %v7237, 64
    %v7290 = vpop.permute.xlu0 %7289
    %7291 = vrot.lane.b32.xlu0 %v7241, 64
    %v7292 = vpop.permute.xlu0 %7291
    %7293 = vrot.lane.b32.xlu0 %v7245, 64
    %v7294 = vpop.permute.xlu0 %7293
    %7295 = vrot.lane.b32.xlu0 %v7249, 64
    %v7296 = vpop.permute.xlu0 %7295
    %7297 = vrot.lane.b32.xlu0 %v7253, 64
    %v7298 = vpop.permute.xlu0 %7297
    %7299 = vrot.lane.b32.xlu0 %v7257, 64
    %v7300 = vpop.permute.xlu0 %7299
    %7301 = vrot.lane.b32.xlu0 %v7261, 64
    %v7302 = vpop.permute.xlu0 %7301
    %7303 = vrot.lane.b32.xlu0 %v7270, 64
    %v7304 = vpop.permute.xlu0 %7303
    %v7306 = vunpack.c.l.b16 %v5088
    %v7307 = vpack.c.b16 %v7306, %v7306
    %vm7308 = vcmask 1040384
    %v7309 = vrot.slane %v7192, 7
    %v7310 = vrot.slane %v5160, 7
    %v7311 = vsel %vm7308, %v7309, %v7310
    %v7312 = vrot.slane %v5161, 7
    %v7313 = vsel %vm7308, %v7310, %v7312
    %v7314 = vrot.slane %v5162, 7
    %v7315 = vsel %vm7308, %v7312, %v7314
    %v7316 = vrot.slane %v5163, 7
    %v7317 = vsel %vm7308, %v7314, %v7316
    %v7318 = vrot.slane %v5164, 7
    %v7319 = vsel %vm7308, %v7316, %v7318
    %v7320 = vrot.slane %v5165, 7
    %v7321 = vsel %vm7308, %v7318, %v7320
    %v7322 = vrot.slane %v5166, 7
    %v7323 = vsel %vm7308, %v7320, %v7322
    %v7324 = vrot.slane %v5167, 7
    %v7325 = vsel %vm7308, %v7322, %v7324
    %v7326 = vrot.slane %v5168, 7
    %v7327 = vsel %vm7308, %v7324, %v7326
    %v7328 = vrot.slane %v5169, 7
    %v7329 = vsel %vm7308, %v7326, %v7328
    %v7330 = vrot.slane %v5563, 7
    %v7331 = vsel %vm7308, %v7328, %v7330
    %v7332 = vrot.slane %v6989, 7
    %v7333 = vsel %vm7308, %v7330, %v7332
    %v7334 = vrot.slane %v6990, 7
    %v7335 = vsel %vm7308, %v7332, %v7334
    %v7336 = vrot.slane %v6991, 7
    %v7337 = vsel %vm7308, %v7334, %v7336
    %v7338 = vrot.slane %v7109, 7
    %v7339 = vsel %vm7308, %v7336, %v7338
    %v7340 = vrot.slane %v7307, 7
    %v7341 = vsel %vm7308, %v7338, %v7340
    %7342 = vrot.lane.b32.xlu0 %v7309, 96
    %v7343 = vpop.permute.xlu0 %7342
    %7344 = vrot.lane.b32.xlu0 %v7311, 96
    %v7345 = vpop.permute.xlu0 %7344
    %7346 = vrot.lane.b32.xlu0 %v7313, 96
    %v7347 = vpop.permute.xlu0 %7346
    %7348 = vrot.lane.b32.xlu0 %v7315, 96
    %v7349 = vpop.permute.xlu0 %7348
    %7350 = vrot.lane.b32.xlu0 %v7317, 96
    %v7351 = vpop.permute.xlu0 %7350
    %7352 = vrot.lane.b32.xlu0 %v7319, 96
    %v7353 = vpop.permute.xlu0 %7352
    %7354 = vrot.lane.b32.xlu0 %v7321, 96
    %v7355 = vpop.permute.xlu0 %7354
    %7356 = vrot.lane.b32.xlu0 %v7323, 96
    %v7357 = vpop.permute.xlu0 %7356
    %7358 = vrot.lane.b32.xlu0 %v7325, 96
    %v7359 = vpop.permute.xlu0 %7358
    %7360 = vrot.lane.b32.xlu0 %v7327, 96
    %v7361 = vpop.permute.xlu0 %7360
    %7362 = vrot.lane.b32.xlu0 %v7329, 96
    %v7363 = vpop.permute.xlu0 %7362
    %7364 = vrot.lane.b32.xlu0 %v7331, 96
    %v7365 = vpop.permute.xlu0 %7364
    %7366 = vrot.lane.b32.xlu0 %v7333, 96
    %v7367 = vpop.permute.xlu0 %7366
    %7368 = vrot.lane.b32.xlu0 %v7335, 96
    %v7369 = vpop.permute.xlu0 %7368
    %7370 = vrot.lane.b32.xlu0 %v7337, 96
    %v7371 = vpop.permute.xlu0 %7370
    %7372 = vrot.lane.b32.xlu0 %v7339, 96
    %v7373 = vpop.permute.xlu0 %7372
    %7374 = vrot.lane.b32.xlu0 %v7341, 96
    %v7375 = vpop.permute.xlu0 %7374
    %v7377 = vunpack.c.l.b16 %v5089
    %v7378 = vpack.c.b16 %v5133, %v7377
    %vm7379 = vsmask.f32 256
    %v7381 = vshrl.u32 %v7378, 16
    %v7383 = vrot.slane %v7381, 7
    %v7384 = vshll.u32 %v7378, 16
    %v7386 = vor.u32 %v7383, %v7384
    %v7387 = vrot.slane %v5225, 7
    %v7388 = vor.u32 %v7387, %v5221
    %v7389 = vsel %vm7379, %v7383, %v7388
    %v7390 = vrot.slane %v5233, 7
    %v7391 = vor.u32 %v7390, %v5229
    %v7392 = vsel %vm7379, %v7387, %v7391
    %v7393 = vrot.slane %v5241, 7
    %v7394 = vor.u32 %v7393, %v5237
    %v7395 = vsel %vm7379, %v7390, %v7394
    %v7396 = vrot.slane %v5249, 7
    %v7397 = vor.u32 %v7396, %v5245
    %v7398 = vsel %vm7379, %v7393, %v7397
    %v7399 = vrot.slane %v5257, 7
    %v7400 = vor.u32 %v7399, %v5253
    %v7401 = vsel %vm7379, %v7396, %v7400
    %v7402 = vrot.slane %v5265, 7
    %v7403 = vor.u32 %v7402, %v5261
    %v7404 = vsel %vm7379, %v7399, %v7403
    %v7405 = vrot.slane %v5273, 7
    %v7406 = vor.u32 %v7405, %v5269
    %v7407 = vsel %vm7379, %v7402, %v7406
    %v7408 = vrot.slane %v5281, 7
    %v7409 = vor.u32 %v7408, %v5277
    %v7410 = vsel %vm7379, %v7405, %v7409
    %v7411 = vrot.slane %v5289, 7
    %v7412 = vor.u32 %v7411, %v5285
    %v7413 = vsel %vm7379, %v7408, %v7412
    %v7414 = vrot.slane %v5297, 7
    %v7415 = vor.u32 %v7414, %v5293
    %v7416 = vsel %vm7379, %v7411, %v7415
    %v7417 = vrot.slane %v5671, 7
    %v7418 = vor.u32 %v7417, %v5674
    %v7419 = vsel %vm7379, %v7414, %v7418
    %v7420 = vrot.slane %v7045, 7
    %v7421 = vor.u32 %v7420, %v7048
    %v7422 = vsel %vm7379, %v7417, %v7421
    %v7423 = vrot.slane %v7054, 7
    %v7424 = vor.u32 %v7423, %v7057
    %v7425 = vsel %vm7379, %v7420, %v7424
    %v7426 = vrot.slane %v7063, 7
    %v7427 = vor.u32 %v7426, %v7066
    %v7428 = vsel %vm7379, %v7423, %v7427
    %v7429 = vrot.slane %v7111, 7
    %v7430 = vor.u32 %v7429, %v7114
    %v7431 = vsel %vm7379, %v7426, %v7430
    %v7433 = vshrl.u32 %v7307, 16
    %v7435 = vrot.slane %v7433, 7
    %v7436 = vshll.u32 %v7307, 16
    %v7438 = vor.u32 %v7435, %v7436
    %v7439 = vsel %vm7379, %v7429, %v7438
    %v7442 = vsel %vm1527, %v6345, %v6913
    %v7444 = vsel %vm1527, %v5872, %v6915
    %v7446 = vsel %vm1527, %v5873, %v6917
    %v7448 = vsel %vm1527, %v5874, %v6919
    %v7450 = vsel %vm1527, %v5875, %v6921
    %v7452 = vsel %vm1527, %v5876, %v6923
    %v7454 = vsel %vm1527, %v5877, %v6925
    %v7456 = vsel %vm1527, %v5878, %v6927
    %v7458 = vsel %vm1527, %v5879, %v6929
    %v7460 = vsel %vm1527, %v5880, %v6931
    %v7462 = vsel %vm1527, %v5881, %v6933
    %v7464 = vsel %vm1527, %v5882, %v6935
    %v7466 = vsel %vm1527, %v5883, %v6937
    %v7468 = vsel %vm1527, %v5884, %v6939
    %v7470 = vsel %vm1527, %v5921, %v6941
    %v7472 = vsel %vm1527, %v6346, %v6943
    %v7474 = vsel %vm1527, %v6884, %v6945
    %v7476 = vsel %vm1053, %v7442, %v6956
    %v7478 = vsel %vm1053, %v7444, %v6958
    %v7480 = vsel %vm1053, %v7446, %v6960
    %v7482 = vsel %vm1053, %v7448, %v6962
    %v7484 = vsel %vm1053, %v7450, %v6964
    %v7486 = vsel %vm1053, %v7452, %v6966
    %v7488 = vsel %vm1053, %v7454, %v6968
    %v7490 = vsel %vm1053, %v7456, %v6970
    %v7492 = vsel %vm1053, %v7458, %v6972
    %v7494 = vsel %vm1053, %v7460, %v6974
    %v7496 = vsel %vm1053, %v7462, %v6976
    %v7498 = vsel %vm1053, %v7464, %v6978
    %v7500 = vsel %vm1053, %v7466, %v6980
    %v7502 = vsel %vm1053, %v7468, %v6982
    %v7504 = vsel %vm1053, %v7470, %v6984
    %v7506 = vsel %vm1053, %v7472, %v6986
    %v7508 = vsel %vm1053, %v7474, %v6988
    %v7510 = vsel %vm830, %v7476, %v7072
    %v7512 = vsel %vm830, %v7478, %v7074
    %v7514 = vsel %vm830, %v7480, %v7076
    %v7516 = vsel %vm830, %v7482, %v7078
    %v7518 = vsel %vm830, %v7484, %v7080
    %v7520 = vsel %vm830, %v7486, %v7082
    %v7522 = vsel %vm830, %v7488, %v7084
    %v7524 = vsel %vm830, %v7490, %v7086
    %v7526 = vsel %vm830, %v7492, %v7088
    %v7528 = vsel %vm830, %v7494, %v7090
    %v7530 = vsel %vm830, %v7496, %v7092
    %v7532 = vsel %vm830, %v7498, %v7094
    %v7534 = vsel %vm830, %v7500, %v7096
    %v7536 = vsel %vm830, %v7502, %v7098
    %v7538 = vsel %vm830, %v7504, %v7100
    %v7540 = vsel %vm830, %v7506, %v7102
    %v7542 = vsel %vm830, %v7508, %v7104
    %v7545 = vsel %vm1527, %v6998, %v7157
    %v7548 = vsel %vm1527, %v7003, %v7159
    %v7551 = vsel %vm1527, %v7007, %v7161
    %v7554 = vsel %vm1527, %v7011, %v7163
    %v7557 = vsel %vm1527, %v7015, %v7165
    %v7560 = vsel %vm1527, %v7019, %v7167
    %v7563 = vsel %vm1527, %v7023, %v7169
    %v7566 = vsel %vm1527, %v7027, %v7171
    %v7569 = vsel %vm1527, %v7031, %v7173
    %v7572 = vsel %vm1527, %v7035, %v7175
    %v7575 = vsel %vm1527, %v7039, %v7177
    %v7578 = vsel %vm1527, %v7043, %v7179
    %v7581 = vsel %vm1527, %v7052, %v7181
    %v7584 = vsel %vm1527, %v7061, %v7183
    %v7587 = vsel %vm1527, %v7070, %v7185
    %v7590 = vsel %vm1527, %v7118, %v7187
    %v7593 = vsel %vm1527, %v7117, %v7189
    %v7595 = vsel %vm1053, %v7545, %v7272
    %v7597 = vsel %vm1053, %v7548, %v7274
    %v7599 = vsel %vm1053, %v7551, %v7276
    %v7601 = vsel %vm1053, %v7554, %v7278
    %v7603 = vsel %vm1053, %v7557, %v7280
    %v7605 = vsel %vm1053, %v7560, %v7282
    %v7607 = vsel %vm1053, %v7563, %v7284
    %v7609 = vsel %vm1053, %v7566, %v7286
    %v7611 = vsel %vm1053, %v7569, %v7288
    %v7613 = vsel %vm1053, %v7572, %v7290
    %v7615 = vsel %vm1053, %v7575, %v7292
    %v7617 = vsel %vm1053, %v7578, %v7294
    %v7619 = vsel %vm1053, %v7581, %v7296
    %v7621 = vsel %vm1053, %v7584, %v7298
    %v7623 = vsel %vm1053, %v7587, %v7300
    %v7625 = vsel %vm1053, %v7590, %v7302
    %v7627 = vsel %vm1053, %v7593, %v7304
    %v7629 = vsel %vm830, %v7595, %v7343
    %v7631 = vsel %vm830, %v7597, %v7345
    %v7633 = vsel %vm830, %v7599, %v7347
    %v7635 = vsel %vm830, %v7601, %v7349
    %v7637 = vsel %vm830, %v7603, %v7351
    %v7639 = vsel %vm830, %v7605, %v7353
    %v7641 = vsel %vm830, %v7607, %v7355
    %v7643 = vsel %vm830, %v7609, %v7357
    %v7645 = vsel %vm830, %v7611, %v7359
    %v7647 = vsel %vm830, %v7613, %v7361
    %v7649 = vsel %vm830, %v7615, %v7363
    %v7651 = vsel %vm830, %v7617, %v7365
    %v7653 = vsel %vm830, %v7619, %v7367
    %v7655 = vsel %vm830, %v7621, %v7369
    %v7657 = vsel %vm830, %v7623, %v7371
    %v7659 = vsel %vm830, %v7625, %v7373
    %v7661 = vsel %vm830, %v7627, %v7375
    %v7662 = vshrl.u32 %v7510, 16
    %v7664 = vrot.slane %v7662, 2
    %v7665 = vshll.u32 %v7510, 16
    %v7667 = vrot.slane %v7665, 3
    %v7668 = vor.u32 %v7664, %v7667
    %v7669 = vshrl.u32 %v7512, 16
    %v7671 = vrot.slane %v7669, 2
    %v7672 = vshll.u32 %v7512, 16
    %v7674 = vrot.slane %v7672, 3
    %v7675 = vor.u32 %v7671, %v7674
    %v7676 = vsel %vm610, %v7668, %v7675
    %v7677 = vshrl.u32 %v7629, 16
    %v7679 = vrot.slane %v7677, 2
    %v7680 = vshll.u32 %v7629, 16
    %v7682 = vrot.slane %v7680, 3
    %v7683 = vor.u32 %v7679, %v7682
    %v7684 = vshrl.u32 %v7631, 16
    %v7686 = vrot.slane %v7684, 2
    %v7687 = vshll.u32 %v7631, 16
    %v7689 = vrot.slane %v7687, 3
    %v7690 = vor.u32 %v7686, %v7689
    %v7691 = vsel %vm610, %v7683, %v7690
    %v7693 = vshrl.u32 %v7386, 16
    %v7695 = vrot.slane %v7693, 2
    %v7696 = vshll.u32 %v7386, 16
    %v7698 = vrot.slane %v7696, 3
    %v7699 = vor.u32 %v7695, %v7698
    %v7701 = vshrl.u32 %v7389, 16
    %v7703 = vrot.slane %v7701, 2
    %v7704 = vshll.u32 %v7389, 16
    %v7706 = vrot.slane %v7704, 3
    %v7707 = vor.u32 %v7703, %v7706
    %v7708 = vsel %vm610, %v7699, %v7707
    %v7709 = vshrl.u32 %v7514, 16
    %v7711 = vrot.slane %v7709, 2
    %v7712 = vshll.u32 %v7514, 16
    %v7714 = vrot.slane %v7712, 3
    %v7715 = vor.u32 %v7711, %v7714
    %v7716 = vsel %vm610, %v7675, %v7715
    %v7717 = vshrl.u32 %v7633, 16
    %v7719 = vrot.slane %v7717, 2
    %v7720 = vshll.u32 %v7633, 16
    %v7722 = vrot.slane %v7720, 3
    %v7723 = vor.u32 %v7719, %v7722
    %v7724 = vsel %vm610, %v7690, %v7723
    %v7726 = vshrl.u32 %v7392, 16
    %v7728 = vrot.slane %v7726, 2
    %v7729 = vshll.u32 %v7392, 16
    %v7731 = vrot.slane %v7729, 3
    %v7732 = vor.u32 %v7728, %v7731
    %v7733 = vsel %vm610, %v7707, %v7732
    %v7734 = vshrl.u32 %v7516, 16
    %v7736 = vrot.slane %v7734, 2
    %v7737 = vshll.u32 %v7516, 16
    %v7739 = vrot.slane %v7737, 3
    %v7740 = vor.u32 %v7736, %v7739
    %v7741 = vsel %vm610, %v7715, %v7740
    %v7742 = vshrl.u32 %v7635, 16
    %v7744 = vrot.slane %v7742, 2
    %v7745 = vshll.u32 %v7635, 16
    %v7747 = vrot.slane %v7745, 3
    %v7748 = vor.u32 %v7744, %v7747
    %v7749 = vsel %vm610, %v7723, %v7748
    %v7751 = vshrl.u32 %v7395, 16
    %v7753 = vrot.slane %v7751, 2
    %v7754 = vshll.u32 %v7395, 16
    %v7756 = vrot.slane %v7754, 3
    %v7757 = vor.u32 %v7753, %v7756
    %v7758 = vsel %vm610, %v7732, %v7757
    %v7759 = vshrl.u32 %v7518, 16
    %v7761 = vrot.slane %v7759, 2
    %v7762 = vshll.u32 %v7518, 16
    %v7764 = vrot.slane %v7762, 3
    %v7765 = vor.u32 %v7761, %v7764
    %v7766 = vsel %vm610, %v7740, %v7765
    %v7767 = vshrl.u32 %v7637, 16
    %v7769 = vrot.slane %v7767, 2
    %v7770 = vshll.u32 %v7637, 16
    %v7772 = vrot.slane %v7770, 3
    %v7773 = vor.u32 %v7769, %v7772
    %v7774 = vsel %vm610, %v7748, %v7773
    %v7776 = vshrl.u32 %v7398, 16
    %v7778 = vrot.slane %v7776, 2
    %v7779 = vshll.u32 %v7398, 16
    %v7781 = vrot.slane %v7779, 3
    %v7782 = vor.u32 %v7778, %v7781
    %v7783 = vsel %vm610, %v7757, %v7782
    %v7784 = vshrl.u32 %v7520, 16
    %v7786 = vrot.slane %v7784, 2
    %v7787 = vshll.u32 %v7520, 16
    %v7789 = vrot.slane %v7787, 3
    %v7790 = vor.u32 %v7786, %v7789
    %v7791 = vsel %vm610, %v7765, %v7790
    %v7792 = vshrl.u32 %v7639, 16
    %v7794 = vrot.slane %v7792, 2
    %v7795 = vshll.u32 %v7639, 16
    %v7797 = vrot.slane %v7795, 3
    %v7798 = vor.u32 %v7794, %v7797
    %v7799 = vsel %vm610, %v7773, %v7798
    %v7801 = vshrl.u32 %v7401, 16
    %v7803 = vrot.slane %v7801, 2
    %v7804 = vshll.u32 %v7401, 16
    %v7806 = vrot.slane %v7804, 3
    %v7807 = vor.u32 %v7803, %v7806
    %v7808 = vsel %vm610, %v7782, %v7807
    %v7809 = vshrl.u32 %v7522, 16
    %v7811 = vrot.slane %v7809, 2
    %v7812 = vshll.u32 %v7522, 16
    %v7814 = vrot.slane %v7812, 3
    %v7815 = vor.u32 %v7811, %v7814
    %v7816 = vsel %vm610, %v7790, %v7815
    %v7817 = vshrl.u32 %v7641, 16
    %v7819 = vrot.slane %v7817, 2
    %v7820 = vshll.u32 %v7641, 16
    %v7822 = vrot.slane %v7820, 3
    %v7823 = vor.u32 %v7819, %v7822
    %v7824 = vsel %vm610, %v7798, %v7823
    %v7826 = vshrl.u32 %v7404, 16
    %v7828 = vrot.slane %v7826, 2
    %v7829 = vshll.u32 %v7404, 16
    %v7831 = vrot.slane %v7829, 3
    %v7832 = vor.u32 %v7828, %v7831
    %v7833 = vsel %vm610, %v7807, %v7832
    %v7834 = vshrl.u32 %v7524, 16
    %v7836 = vrot.slane %v7834, 2
    %v7837 = vshll.u32 %v7524, 16
    %v7839 = vrot.slane %v7837, 3
    %v7840 = vor.u32 %v7836, %v7839
    %v7841 = vsel %vm610, %v7815, %v7840
    %v7842 = vshrl.u32 %v7643, 16
    %v7844 = vrot.slane %v7842, 2
    %v7845 = vshll.u32 %v7643, 16
    %v7847 = vrot.slane %v7845, 3
    %v7848 = vor.u32 %v7844, %v7847
    %v7849 = vsel %vm610, %v7823, %v7848
    %v7851 = vshrl.u32 %v7407, 16
    %v7853 = vrot.slane %v7851, 2
    %v7854 = vshll.u32 %v7407, 16
    %v7856 = vrot.slane %v7854, 3
    %v7857 = vor.u32 %v7853, %v7856
    %v7858 = vsel %vm610, %v7832, %v7857
    %v7859 = vshrl.u32 %v7526, 16
    %v7861 = vrot.slane %v7859, 2
    %v7862 = vshll.u32 %v7526, 16
    %v7864 = vrot.slane %v7862, 3
    %v7865 = vor.u32 %v7861, %v7864
    %v7866 = vsel %vm610, %v7840, %v7865
    %v7867 = vshrl.u32 %v7645, 16
    %v7869 = vrot.slane %v7867, 2
    %v7870 = vshll.u32 %v7645, 16
    %v7872 = vrot.slane %v7870, 3
    %v7873 = vor.u32 %v7869, %v7872
    %v7874 = vsel %vm610, %v7848, %v7873
    %v7876 = vshrl.u32 %v7410, 16
    %v7878 = vrot.slane %v7876, 2
    %v7879 = vshll.u32 %v7410, 16
    %v7881 = vrot.slane %v7879, 3
    %v7882 = vor.u32 %v7878, %v7881
    %v7883 = vsel %vm610, %v7857, %v7882
    %v7884 = vshrl.u32 %v7528, 16
    %v7886 = vrot.slane %v7884, 2
    %v7887 = vshll.u32 %v7528, 16
    %v7889 = vrot.slane %v7887, 3
    %v7890 = vor.u32 %v7886, %v7889
    %v7891 = vsel %vm610, %v7865, %v7890
    %v7892 = vshrl.u32 %v7647, 16
    %v7894 = vrot.slane %v7892, 2
    %v7895 = vshll.u32 %v7647, 16
    %v7897 = vrot.slane %v7895, 3
    %v7898 = vor.u32 %v7894, %v7897
    %v7899 = vsel %vm610, %v7873, %v7898
    %v7901 = vshrl.u32 %v7413, 16
    %v7903 = vrot.slane %v7901, 2
    %v7904 = vshll.u32 %v7413, 16
    %v7906 = vrot.slane %v7904, 3
    %v7907 = vor.u32 %v7903, %v7906
    %v7908 = vsel %vm610, %v7882, %v7907
    %v7909 = vshrl.u32 %v7530, 16
    %v7911 = vrot.slane %v7909, 2
    %v7912 = vshll.u32 %v7530, 16
    %v7914 = vrot.slane %v7912, 3
    %v7915 = vor.u32 %v7911, %v7914
    %v7916 = vsel %vm610, %v7890, %v7915
    %v7917 = vshrl.u32 %v7649, 16
    %v7919 = vrot.slane %v7917, 2
    %v7920 = vshll.u32 %v7649, 16
    %v7922 = vrot.slane %v7920, 3
    %v7923 = vor.u32 %v7919, %v7922
    %v7924 = vsel %vm610, %v7898, %v7923
    %v7926 = vshrl.u32 %v7416, 16
    %v7928 = vrot.slane %v7926, 2
    %v7929 = vshll.u32 %v7416, 16
    %v7931 = vrot.slane %v7929, 3
    %v7932 = vor.u32 %v7928, %v7931
    %v7933 = vsel %vm610, %v7907, %v7932
    %v7934 = vshrl.u32 %v7532, 16
    %v7936 = vrot.slane %v7934, 2
    %v7937 = vshll.u32 %v7532, 16
    %v7939 = vrot.slane %v7937, 3
    %v7940 = vor.u32 %v7936, %v7939
    %v7941 = vsel %vm610, %v7915, %v7940
    %v7942 = vshrl.u32 %v7651, 16
    %v7944 = vrot.slane %v7942, 2
    %v7945 = vshll.u32 %v7651, 16
    %v7947 = vrot.slane %v7945, 3
    %v7948 = vor.u32 %v7944, %v7947
    %v7949 = vsel %vm610, %v7923, %v7948
    %v7951 = vshrl.u32 %v7419, 16
    %v7953 = vrot.slane %v7951, 2
    %v7954 = vshll.u32 %v7419, 16
    %v7956 = vrot.slane %v7954, 3
    %v7957 = vor.u32 %v7953, %v7956
    %v7958 = vsel %vm610, %v7932, %v7957
    %v7959 = vshrl.u32 %v7534, 16
    %v7961 = vrot.slane %v7959, 2
    %v7962 = vshll.u32 %v7534, 16
    %v7964 = vrot.slane %v7962, 3
    %v7965 = vor.u32 %v7961, %v7964
    %v7966 = vsel %vm610, %v7940, %v7965
    %v7967 = vshrl.u32 %v7653, 16
    %v7969 = vrot.slane %v7967, 2
    %v7970 = vshll.u32 %v7653, 16
    %v7972 = vrot.slane %v7970, 3
    %v7973 = vor.u32 %v7969, %v7972
    %v7974 = vsel %vm610, %v7948, %v7973
    %v7976 = vshrl.u32 %v7422, 16
    %v7978 = vrot.slane %v7976, 2
    %v7979 = vshll.u32 %v7422, 16
    %v7981 = vrot.slane %v7979, 3
    %v7982 = vor.u32 %v7978, %v7981
    %v7983 = vsel %vm610, %v7957, %v7982
    %v7984 = vshrl.u32 %v7536, 16
    %v7986 = vrot.slane %v7984, 2
    %v7987 = vshll.u32 %v7536, 16
    %v7989 = vrot.slane %v7987, 3
    %v7990 = vor.u32 %v7986, %v7989
    %v7991 = vsel %vm610, %v7965, %v7990
    %v7992 = vshrl.u32 %v7655, 16
    %v7994 = vrot.slane %v7992, 2
    %v7995 = vshll.u32 %v7655, 16
    %v7997 = vrot.slane %v7995, 3
    %v7998 = vor.u32 %v7994, %v7997
    %v7999 = vsel %vm610, %v7973, %v7998
    %v8001 = vshrl.u32 %v7425, 16
    %v8003 = vrot.slane %v8001, 2
    %v8004 = vshll.u32 %v7425, 16
    %v8006 = vrot.slane %v8004, 3
    %v8007 = vor.u32 %v8003, %v8006
    %v8008 = vsel %vm610, %v7982, %v8007
    %v8009 = vshrl.u32 %v7538, 16
    %v8011 = vrot.slane %v8009, 2
    %v8012 = vshll.u32 %v7538, 16
    %v8014 = vrot.slane %v8012, 3
    %v8015 = vor.u32 %v8011, %v8014
    %v8016 = vsel %vm610, %v7990, %v8015
    %v8017 = vshrl.u32 %v7657, 16
    %v8019 = vrot.slane %v8017, 2
    %v8020 = vshll.u32 %v7657, 16
    %v8022 = vrot.slane %v8020, 3
    %v8023 = vor.u32 %v8019, %v8022
    %v8024 = vsel %vm610, %v7998, %v8023
    %v8026 = vshrl.u32 %v7428, 16
    %v8028 = vrot.slane %v8026, 2
    %v8029 = vshll.u32 %v7428, 16
    %v8031 = vrot.slane %v8029, 3
    %v8032 = vor.u32 %v8028, %v8031
    %v8033 = vsel %vm610, %v8007, %v8032
    %v8034 = vshrl.u32 %v7540, 16
    %v8036 = vrot.slane %v8034, 2
    %v8037 = vshll.u32 %v7540, 16
    %v8039 = vrot.slane %v8037, 3
    %v8040 = vor.u32 %v8036, %v8039
    %v8041 = vsel %vm610, %v8015, %v8040
    %v8042 = vshrl.u32 %v7659, 16
    %v8044 = vrot.slane %v8042, 2
    %v8045 = vshll.u32 %v7659, 16
    %v8047 = vrot.slane %v8045, 3
    %v8048 = vor.u32 %v8044, %v8047
    %v8049 = vsel %vm610, %v8023, %v8048
    %v8051 = vshrl.u32 %v7431, 16
    %v8053 = vrot.slane %v8051, 2
    %v8054 = vshll.u32 %v7431, 16
    %v8056 = vrot.slane %v8054, 3
    %v8057 = vor.u32 %v8053, %v8056
    %v8058 = vsel %vm610, %v8032, %v8057
    %v8059 = vshrl.u32 %v7542, 16
    %v8061 = vrot.slane %v8059, 2
    %v8062 = vshll.u32 %v7542, 16
    %v8064 = vrot.slane %v8062, 3
    %v8065 = vor.u32 %v8061, %v8064
    %v8066 = vsel %vm610, %v8040, %v8065
    %v8067 = vshrl.u32 %v7661, 16
    %v8069 = vrot.slane %v8067, 2
    %v8070 = vshll.u32 %v7661, 16
    %v8072 = vrot.slane %v8070, 3
    %v8073 = vor.u32 %v8069, %v8072
    %v8074 = vsel %vm610, %v8048, %v8073
    %v8076 = vshrl.u32 %v7439, 16
    %v8078 = vrot.slane %v8076, 2
    %v8079 = vshll.u32 %v7439, 16
    %v8081 = vrot.slane %v8079, 3
    %v8082 = vor.u32 %v8078, %v8081
    %v8083 = vsel %vm610, %v8057, %v8082
    %v8132 = vld [vmem:[%s10] sm:$0xff]
    %v8133 = vld [vmem:[%s10 + $0x8] sm:$0xff]
    %v8134 = vld [vmem:[%s10 + $0x10] sm:$0xff]
    %v8135 = vld [vmem:[%s10 + $0x18] sm:$0xff]
    %v8140 = vunpack.c.l.b16 %v8132
    %v8141 = vunpack.c.h.b16 %v8132
    %v8142 = vunpack.c.l.b16 %v8133
    %v8143 = vunpack.c.h.b16 %v8133
    %v8144 = vunpack.c.l.b16 %v8134
    %v8145 = vunpack.c.h.b16 %v8134
    %v8146 = vunpack.c.l.b16 %v8135
    %v8147 = vunpack.c.h.b16 %v8135
    %v8148 = vpack.c.b16 %v8142, %v8140
    %v8149 = vpack.c.b16 %v8143, %v8141
    %v8150 = vpack.c.b16 %v8146, %v8144
    %v8151 = vpack.c.b16 %v8147, %v8145
    %8156 = vmatprep.subr.bf16.mxu0 %v6579
    %8157 = vmatpush1.bf16.msra.mxu0 %v6451
    %8158 = vmatprep.subr.bf16.mxu0 %v6582
    %8159 = vmatpush1.bf16.msra.mxu0 %v6454
    %8160 = vmatprep.subr.bf16.mxu0 %v6585
    %8161 = vmatpush1.bf16.msra.mxu0 %v6457
    %8162 = vmatprep.subr.bf16.mxu0 %v6588
    %8163 = vmatpush1.bf16.msra.mxu0 %v6460
    %8164 = vmatprep.subr.bf16.mxu0 %v6591
    %8165 = vmatpush1.bf16.msra.mxu0 %v6463
    %8166 = vmatprep.subr.bf16.mxu0 %v6594
    %8167 = vmatpush1.bf16.msra.mxu0 %v6466
    %8168 = vmatprep.subr.bf16.mxu0 %v6597
    %8169 = vmatpush1.bf16.msra.mxu0 %v6469
    %8170 = vmatprep.subr.bf16.mxu0 %v6600
    %8171 = vmatpush1.bf16.msra.mxu0 %v6472
    %8172 = vmatprep.subr.bf16.mxu0 %v6603
    %8173 = vmatpush1.bf16.msra.mxu0 %v6475
    %8174 = vmatprep.subr.bf16.mxu0 %v6606
    %8175 = vmatpush1.bf16.msra.mxu0 %v6478
    %8176 = vmatprep.subr.bf16.mxu0 %v6609
    %8177 = vmatpush1.bf16.msra.mxu0 %v6481
    %8178 = vmatprep.subr.bf16.mxu0 %v6612
    %8179 = vmatpush1.bf16.msra.mxu0 %v6484
    %8180 = vmatprep.subr.bf16.mxu0 %v6615
    %8181 = vmatpush1.bf16.msra.mxu0 %v6487
    %8182 = vmatprep.subr.bf16.mxu0 %v6618
    %8183 = vmatpush1.bf16.msra.mxu0 %v6490
    %8184 = vmatprep.subr.bf16.mxu0 %v6621
    %8185 = vmatpush1.bf16.msra.mxu0 %v6493
    %8186 = vmatprep.subr.bf16.mxu0 %v6624
    %8187 = vmatpush1.bf16.msra.mxu0 %v6496
    %8188 = vmatprep.mubr.bf16.mxu0 %v8149
    %8189 = vmatmul.mubr.bf16.gmra.mrb[0].mxu0 %v8148
    %v8190 = vpop.f32.mrb[0].mxu0
    %v8191 = vadd.f32 0.0, %v8190
    %v8192 = vpop.f32.mrb[0].mxu0
    %v8193 = vadd.f32 0.0, %v8192
    %v8194 = vpop.f32.mrb[0].mxu0
    %v8195 = vadd.f32 0.0, %v8194
    %v8196 = vpop.f32.mrb[0].mxu0
    %v8197 = vadd.f32 0.0, %v8196
    %8198 = vmatprep.mubr.bf16.mxu0 %v8151
    %8199 = vmatmul.mubr.bf16.gmra.mrb[0].mxu0 %v8150
    %v8200 = vpop.f32.mrb[0].mxu0
    %v8201 = vadd.f32 0.0, %v8200
    %v8202 = vpop.f32.mrb[0].mxu0
    %v8203 = vadd.f32 0.0, %v8202
    %v8204 = vpop.f32.mrb[0].mxu0
    %v8205 = vadd.f32 0.0, %v8204
    %v8206 = vpop.f32.mrb[0].mxu0
    %v8207 = vadd.f32 0.0, %v8206
    %8208 = vdwg.mxu0
    %8209 = vmatprep.subr.bf16.mxu0 %v6835
    %8210 = vmatpush1.bf16.msra.mxu0 %v6707
    %8211 = vmatprep.subr.bf16.mxu0 %v6838
    %8212 = vmatpush1.bf16.msra.mxu0 %v6710
    %8213 = vmatprep.subr.bf16.mxu0 %v6841
    %8214 = vmatpush1.bf16.msra.mxu0 %v6713
    %8215 = vmatprep.subr.bf16.mxu0 %v6844
    %8216 = vmatpush1.bf16.msra.mxu0 %v6716
    %8217 = vmatprep.subr.bf16.mxu0 %v6847
    %8218 = vmatpush1.bf16.msra.mxu0 %v6719
    %8219 = vmatprep.subr.bf16.mxu0 %v6850
    %8220 = vmatpush1.bf16.msra.mxu0 %v6722
    %8221 = vmatprep.subr.bf16.mxu0 %v6853
    %8222 = vmatpush1.bf16.msra.mxu0 %v6725
    %8223 = vmatprep.subr.bf16.mxu0 %v6856
    %8224 = vmatpush1.bf16.msra.mxu0 %v6728
    %8225 = vmatprep.subr.bf16.mxu0 %v6859
    %8226 = vmatpush1.bf16.msra.mxu0 %v6731
    %8227 = vmatprep.subr.bf16.mxu0 %v6862
    %8228 = vmatpush1.bf16.msra.mxu0 %v6734
    %8229 = vmatprep.subr.bf16.mxu0 %v6865
    %8230 = vmatpush1.bf16.msra.mxu0 %v6737
    %8231 = vmatprep.subr.bf16.mxu0 %v6868
    %8232 = vmatpush1.bf16.msra.mxu0 %v6740
    %8233 = vmatprep.subr.bf16.mxu0 %v6871
    %8234 = vmatpush1.bf16.msra.mxu0 %v6743
    %8235 = vmatprep.subr.bf16.mxu0 %v6874
    %8236 = vmatpush1.bf16.msra.mxu0 %v6746
    %8237 = vmatprep.subr.bf16.mxu0 %v6877
    %8238 = vmatpush1.bf16.msra.mxu0 %v6749
    %8239 = vmatprep.subr.bf16.mxu0 %v6880
    %8240 = vmatpush1.bf16.msra.mxu0 %v6752
    %8241 = vmatprep.mubr.bf16.mxu0 %v8149
    %8242 = vmatmul.mubr.bf16.gmra.mrb[0].mxu0 %v8148
    %v8243 = vpop.f32.mrb[0].mxu0
    %v8244 = vadd.f32 0.0, %v8243
    %v8245 = vpop.f32.mrb[0].mxu0
    %v8246 = vadd.f32 0.0, %v8245
    %v8247 = vpop.f32.mrb[0].mxu0
    %v8248 = vadd.f32 0.0, %v8247
    %v8249 = vpop.f32.mrb[0].mxu0
    %v8250 = vadd.f32 0.0, %v8249
    %8251 = vmatprep.mubr.bf16.mxu0 %v8151
    %8252 = vmatmul.mubr.bf16.gmra.mrb[0].mxu0 %v8150
    %v8253 = vpop.f32.mrb[0].mxu0
    %v8254 = vadd.f32 0.0, %v8253
    %v8255 = vpop.f32.mrb[0].mxu0
    %v8256 = vadd.f32 0.0, %v8255
    %v8257 = vpop.f32.mrb[0].mxu0
    %v8258 = vadd.f32 0.0, %v8257
    %v8259 = vpop.f32.mrb[0].mxu0
    %v8260 = vadd.f32 0.0, %v8259
    %8261 = vdwg.mxu0
    %8262 = vmatprep.subr.bf16.mxu0 %v7691
    %8263 = vmatpush1.bf16.msra.mxu0 %v7676
    %8264 = vmatprep.subr.bf16.mxu0 %v7724
    %8265 = vmatpush1.bf16.msra.mxu0 %v7716
    %8266 = vmatprep.subr.bf16.mxu0 %v7749
    %8267 = vmatpush1.bf16.msra.mxu0 %v7741
    %8268 = vmatprep.subr.bf16.mxu0 %v7774
    %8269 = vmatpush1.bf16.msra.mxu0 %v7766
    %8270 = vmatprep.subr.bf16.mxu0 %v7799
    %8271 = vmatpush1.bf16.msra.mxu0 %v7791
    %8272 = vmatprep.subr.bf16.mxu0 %v7824
    %8273 = vmatpush1.bf16.msra.mxu0 %v7816
    %8274 = vmatprep.subr.bf16.mxu0 %v7849
    %8275 = vmatpush1.bf16.msra.mxu0 %v7841
    %8276 = vmatprep.subr.bf16.mxu0 %v7874
    %8277 = vmatpush1.bf16.msra.mxu0 %v7866
    %8278 = vmatprep.subr.bf16.mxu0 %v7899
    %8279 = vmatpush1.bf16.msra.mxu0 %v7891
    %8280 = vmatprep.subr.bf16.mxu0 %v7924
    %8281 = vmatpush1.bf16.msra.mxu0 %v7916
    %8282 = vmatprep.subr.bf16.mxu0 %v7949
    %8283 = vmatpush1.bf16.msra.mxu0 %v7941
    %8284 = vmatprep.subr.bf16.mxu0 %v7974
    %8285 = vmatpush1.bf16.msra.mxu0 %v7966
    %8286 = vmatprep.subr.bf16.mxu0 %v7999
    %8287 = vmatpush1.bf16.msra.mxu0 %v7991
    %8288 = vmatprep.subr.bf16.mxu0 %v8024
    %8289 = vmatpush1.bf16.msra.mxu0 %v8016
    %8290 = vmatprep.subr.bf16.mxu0 %v8049
    %8291 = vmatpush1.bf16.msra.mxu0 %v8041
    %8292 = vmatprep.subr.bf16.mxu0 %v8074
    %8293 = vmatpush1.bf16.msra.mxu0 %v8066
    %8294 = vmatprep.mubr.bf16.mxu0 %v8149
    %8295 = vmatmul.mubr.bf16.gmra.mrb[0].mxu0 %v8148
    %v8296 = vpop.f32.mrb[0].mxu0
    %v8297 = vadd.f32 0.0, %v8296
    %v8298 = vpop.f32.mrb[0].mxu0
    %v8299 = vadd.f32 0.0, %v8298
    %v8300 = vpop.f32.mrb[0].mxu0
    %v8301 = vadd.f32 0.0, %v8300
    %v8302 = vpop.f32.mrb[0].mxu0
    %v8303 = vadd.f32 0.0, %v8302
    %8304 = vmatprep.mubr.bf16.mxu0 %v8151
    %8305 = vmatmul.mubr.bf16.gmra.mrb[0].mxu0 %v8150
    %v8306 = vpop.f32.mrb[0].mxu0
    %v8307 = vadd.f32 0.0, %v8306
    %v8308 = vpop.f32.mrb[0].mxu0
    %v8309 = vadd.f32 0.0, %v8308
    %v8310 = vpop.f32.mrb[0].mxu0
    %v8311 = vadd.f32 0.0, %v8310
    %v8312 = vpop.f32.mrb[0].mxu0
    %v8313 = vadd.f32 0.0, %v8312
    %8314 = vdwg.mxu0
    %8315 = vmatprep.subr.bf16.mxu0 0
    %8316 = vmatpush1.bf16.msra.mxu0 %v7708
    %8317 = vmatprep.subr.bf16.mxu0 0
    %8318 = vmatpush1.bf16.msra.mxu0 %v7733
    %8319 = vmatprep.subr.bf16.mxu0 0
    %8320 = vmatpush1.bf16.msra.mxu0 %v7758
    %8321 = vmatprep.subr.bf16.mxu0 0
    %8322 = vmatpush1.bf16.msra.mxu0 %v7783
    %8323 = vmatprep.subr.bf16.mxu0 0
    %8324 = vmatpush1.bf16.msra.mxu0 %v7808
    %8325 = vmatprep.subr.bf16.mxu0 0
    %8326 = vmatpush1.bf16.msra.mxu0 %v7833
    %8327 = vmatprep.subr.bf16.mxu0 0
    %8328 = vmatpush1.bf16.msra.mxu0 %v7858
    %8329 = vmatprep.subr.bf16.mxu0 0
    %8330 = vmatpush1.bf16.msra.mxu0 %v7883
    %8331 = vmatprep.subr.bf16.mxu0 0
    %8332 = vmatpush1.bf16.msra.mxu0 %v7908
    %8333 = vmatprep.subr.bf16.mxu0 0
    %8334 = vmatpush1.bf16.msra.mxu0 %v7933
    %8335 = vmatprep.subr.bf16.mxu0 0
    %8336 = vmatpush1.bf16.msra.mxu0 %v7958
    %8337 = vmatprep.subr.bf16.mxu0 0
    %8338 = vmatpush1.bf16.msra.mxu0 %v7983
    %8339 = vmatprep.subr.bf16.mxu0 0
    %8340 = vmatpush1.bf16.msra.mxu0 %v8008
    %8341 = vmatprep.subr.bf16.mxu0 0
    %8342 = vmatpush1.bf16.msra.mxu0 %v8033
    %8343 = vmatprep.subr.bf16.mxu0 0
    %8344 = vmatpush1.bf16.msra.mxu0 %v8058
    %8345 = vmatprep.subr.bf16.mxu0 0
    %8346 = vmatpush1.bf16.msra.mxu0 %v8083
    %8347 = vmatprep.mubr.bf16.mxu0 %v8149
    %8348 = vmatmul.mubr.bf16.gmra.mrb[0].mxu0 %v8148
    %v8349 = vpop.f32.mrb[0].mxu0
    %v8350 = vadd.f32 0.0, %v8349
    %v8351 = vpop.f32.mrb[0].mxu0
    %v8352 = vpop.f32.mrb[0].mxu0
    %v8353 = vadd.f32 0.0, %v8352
    %v8354 = vpop.f32.mrb[0].mxu0
    %8355 = vmatprep.mubr.bf16.mxu0 %v8151
    %8356 = vmatmul.mubr.bf16.gmra.mrb[0].mxu0 %v8150
    %v8357 = vpop.f32.mrb[0].mxu0
    %v8358 = vadd.f32 0.0, %v8357
    %v8359 = vpop.f32.mrb[0].mxu0
    %v8360 = vpop.f32.mrb[0].mxu0
    %v8361 = vadd.f32 0.0, %v8360
    %v8362 = vpop.f32.mrb[0].mxu0
    %8363 = vdwg.mxu0
    %v8364 = vpack.c.bf16 %v8195, %v8191
    %v8365 = vpack.c.bf16 %v8197, %v8193
    %v8366 = vpack.c.bf16 %v8248, %v8244
    %v8367 = vpack.c.bf16 %v8250, %v8246
    %v8368 = vpack.c.bf16 %v8301, %v8297
    %v8369 = vpack.c.bf16 %v8303, %v8299
    %v8370 = vpack.c.bf16 %v8353, %v8350
    %v8371 = vpack.c.bf16 %v8205, %v8201
    %v8372 = vpack.c.bf16 %v8207, %v8203
    %v8373 = vpack.c.bf16 %v8258, %v8254
    %v8374 = vpack.c.bf16 %v8260, %v8256
    %v8375 = vpack.c.bf16 %v8311, %v8307
    %v8376 = vpack.c.bf16 %v8313, %v8309
    %v8377 = vpack.c.bf16 %v8361, %v8358
    %v8378 = vld [vmem:[%s9] sm:$0xf]
    %v8379 = vld [vmem:[%s9 + $0x4] sm:$0xf]
    %v8380 = vld [vmem:[%s9 + $0x8] sm:$0xf]
    %v8381 = vld [vmem:[%s9 + $0xc] sm:$0xf]
    %v8382 = vld [vmem:[%s9 + $0x10] sm:$0xf]
    %v8383 = vld [vmem:[%s9 + $0x14] sm:$0xf]
    %v8384 = vld [vmem:[%s9 + $0x18] sm:$0xf]
    %v8385 = vld [vmem:[%s9 + $0x1c] sm:$0xf]
    %v8386 = vld [vmem:[%s9 + $0x20] sm:$0xf]
    %v8387 = vld [vmem:[%s9 + $0x24] sm:$0xf]
    %v8388 = vld [vmem:[%s9 + $0x28] sm:$0xf]
    %v8389 = vld [vmem:[%s9 + $0x2c] sm:$0xf]
    %v8390 = vld [vmem:[%s9 + $0x30] sm:$0xf]
    %v8391 = vld [vmem:[%s9 + $0x34] sm:$0xf]
    %v8392 = vld [vmem:[%s9 + $0x38] sm:$0xf]
    %v8393 = vld [vmem:[%s9 + $0x3c] sm:$0xf]
    %v8394 = vld [vmem:[%s9 + $0x40] sm:$0xf]
    %v8395 = vld [vmem:[%s9 + $0x44] sm:$0xf]
    %v8396 = vld [vmem:[%s9 + $0x48] sm:$0xf]
    %v8397 = vld [vmem:[%s9 + $0x4c] sm:$0xf]
    %v8398 = vld [vmem:[%s9 + $0x50] sm:$0xf]
    %v8399 = vld [vmem:[%s9 + $0x54] sm:$0xf]
    %v8400 = vld [vmem:[%s9 + $0x58] sm:$0xf]
    %v8401 = vld [vmem:[%s9 + $0x5c] sm:$0xf]
    %v8402 = vld [vmem:[%s9 + $0x60] sm:$0xf]
    %v8403 = vld [vmem:[%s9 + $0x64] sm:$0xf]
    %v8404 = vld [vmem:[%s9 + $0x68] sm:$0xf]
    %v8405 = vld [vmem:[%s9 + $0x6c] sm:$0xf]
    %v8406 = vld [vmem:[%s9 + $0x70] sm:$0xf]
    %v8407 = vld [vmem:[%s9 + $0x74] sm:$0xf]
    %v8408 = vld [vmem:[%s9 + $0x78] sm:$0xf]
    %v8409 = vld [vmem:[%s9 + $0x7c] sm:$0xf]
    %v8410 = vld [vmem:[%s9 + $0x80] sm:$0xf]
    %v8411 = vld [vmem:[%s9 + $0x84] sm:$0xf]
    %v8412 = vld [vmem:[%s9 + $0x88] sm:$0xf]
    %v8413 = vld [vmem:[%s9 + $0x8c] sm:$0xf]
    %v8414 = vld [vmem:[%s9 + $0x90] sm:$0xf]
    %v8415 = vld [vmem:[%s9 + $0x94] sm:$0xf]
    %v8416 = vld [vmem:[%s9 + $0x98] sm:$0xf]
    %v8417 = vld [vmem:[%s9 + $0x9c] sm:$0xf]
    %v8418 = vld [vmem:[%s9 + $0xa0] sm:$0xf]
    %v8419 = vld [vmem:[%s9 + $0xa4] sm:$0xf]
    %v8420 = vld [vmem:[%s9 + $0xa8] sm:$0xf]
    %v8421 = vld [vmem:[%s9 + $0xac] sm:$0xf]
    %v8422 = vld [vmem:[%s9 + $0xb0] sm:$0xf]
    %v8423 = vld [vmem:[%s9 + $0xb4] sm:$0xf]
    %v8424 = vld [vmem:[%s9 + $0xb8] sm:$0xf]
    %v8425 = vld [vmem:[%s9 + $0xbc] sm:$0xf]
    %v8426 = vld [vmem:[%s9 + $0xc0] sm:$0xf]
    %v8427 = vld [vmem:[%s9 + $0xc4] sm:$0xf]
    %v8428 = vld [vmem:[%s9 + $0xc8] sm:$0xf]
    %v8429 = vld [vmem:[%s9 + $0xcc] sm:$0xf]
    %v8430 = vld [vmem:[%s9 + $0xd0] sm:$0xf]
    %v8431 = vld [vmem:[%s9 + $0xd4] sm:$0xf]
    %v8432 = vld [vmem:[%s9 + $0xd8] sm:$0xf]
    %v8433 = vld [vmem:[%s9 + $0xdc] sm:$0xf]
    %v8434 = vld [vmem:[%s9 + $0xe0] sm:$0xf]
    %v8435 = vld [vmem:[%s9 + $0xe4] sm:$0xf]
    %v8436 = vld [vmem:[%s9 + $0xe8] sm:$0xf]
    %v8437 = vld [vmem:[%s9 + $0xec] sm:$0xf]
    %v8438 = vld [vmem:[%s9 + $0xf0] sm:$0xf]
    %v8439 = vld [vmem:[%s9 + $0xf4] sm:$0xf]
    %v8440 = vld [vmem:[%s9 + $0xf8] sm:$0xf]
    %v8441 = vld [vmem:[%s9 + $0xfc] sm:$0xf]
    %v8442 = vld [vmem:[%s9 + $0x100] sm:$0xf]
    %v8443 = vld [vmem:[%s9 + $0x104] sm:$0xf]
    %v8444 = vld [vmem:[%s9 + $0x108] sm:$0xf]
    %v8445 = vld [vmem:[%s9 + $0x10c] sm:$0xf]
    %v8446 = vld [vmem:[%s9 + $0x110] sm:$0xf]
    %v8447 = vld [vmem:[%s9 + $0x114] sm:$0xf]
    %v8448 = vld [vmem:[%s9 + $0x118] sm:$0xf]
    %v8449 = vld [vmem:[%s9 + $0x11c] sm:$0xf]
    %v8450 = vld [vmem:[%s9 + $0x120] sm:$0xf]
    %v8451 = vld [vmem:[%s9 + $0x124] sm:$0xf]
    %v8452 = vld [vmem:[%s9 + $0x128] sm:$0xf]
    %v8453 = vld [vmem:[%s9 + $0x12c] sm:$0xf]
    %v8454 = vld [vmem:[%s9 + $0x130] sm:$0xf]
    %v8455 = vld [vmem:[%s9 + $0x134] sm:$0xf]
    %v8456 = vld [vmem:[%s9 + $0x138] sm:$0xf]
    %v8457 = vld [vmem:[%s9 + $0x13c] sm:$0xf]
    %v8458 = vld [vmem:[%s9 + $0x140] sm:$0xf]
    %v8459 = vld [vmem:[%s9 + $0x144] sm:$0xf]
    %v8460 = vld [vmem:[%s9 + $0x148] sm:$0xf]
    %v8461 = vld [vmem:[%s9 + $0x14c] sm:$0xf]
    %v8462 = vld [vmem:[%s9 + $0x150] sm:$0xf]
    %v8463 = vld [vmem:[%s9 + $0x154] sm:$0xf]
    %v8464 = vld [vmem:[%s9 + $0x158] sm:$0xf]
    %v8465 = vld [vmem:[%s9 + $0x15c] sm:$0xf]
    %v8466 = vld [vmem:[%s9 + $0x160] sm:$0xf]
    %v8467 = vld [vmem:[%s9 + $0x164] sm:$0xf]
    %v8468 = vld [vmem:[%s9 + $0x168] sm:$0xf]
    %v8469 = vld [vmem:[%s9 + $0x16c] sm:$0xf]
    %v8470 = vld [vmem:[%s9 + $0x170] sm:$0xf]
    %v8471 = vld [vmem:[%s9 + $0x174] sm:$0xf]
    %v8472 = vld [vmem:[%s9 + $0x178] sm:$0xf]
    %v8473 = vld [vmem:[%s9 + $0x17c] sm:$0xf]
    %v8474 = vld [vmem:[%s9 + $0x180] sm:$0xf]
    %v8475 = vld [vmem:[%s9 + $0x184] sm:$0xf]
    %v8476 = vld [vmem:[%s9 + $0x188] sm:$0xf]
    %v8477 = vld [vmem:[%s9 + $0x18c] sm:$0xf]
    %v8578 = vunpack.c.l.b16 %v8378
    %v8579 = vunpack.c.l.b16 %v8379
    %v8580 = vunpack.c.l.b16 %v8380
    %v8581 = vunpack.c.l.b16 %v8381
    %v8582 = vunpack.c.l.b16 %v8382
    %v8583 = vunpack.c.l.b16 %v8383
    %v8584 = vunpack.c.l.b16 %v8384
    %v8585 = vunpack.c.l.b16 %v8385
    %v8586 = vunpack.c.l.b16 %v8386
    %v8587 = vunpack.c.l.b16 %v8387
    %v8588 = vunpack.c.l.b16 %v8388
    %v8589 = vunpack.c.l.b16 %v8389
    %v8590 = vunpack.c.l.b16 %v8390
    %v8591 = vunpack.c.l.b16 %v8391
    %v8592 = vunpack.c.l.b16 %v8392
    %v8593 = vunpack.c.l.b16 %v8393
    %v8594 = vunpack.c.l.b16 %v8394
    %v8595 = vunpack.c.l.b16 %v8395
    %v8596 = vunpack.c.l.b16 %v8396
    %v8597 = vunpack.c.l.b16 %v8397
    %v8598 = vunpack.c.l.b16 %v8398
    %v8599 = vunpack.c.l.b16 %v8399
    %v8600 = vunpack.c.l.b16 %v8400
    %v8601 = vunpack.c.l.b16 %v8401
    %v8602 = vunpack.c.l.b16 %v8402
    %v8603 = vunpack.c.l.b16 %v8403
    %v8604 = vunpack.c.l.b16 %v8404
    %v8605 = vunpack.c.l.b16 %v8405
    %v8606 = vunpack.c.l.b16 %v8406
    %v8607 = vunpack.c.l.b16 %v8407
    %v8608 = vunpack.c.l.b16 %v8408
    %v8609 = vunpack.c.l.b16 %v8409
    %v8610 = vunpack.c.l.b16 %v8410
    %v8611 = vunpack.c.l.b16 %v8411
    %v8612 = vunpack.c.l.b16 %v8412
    %v8613 = vunpack.c.l.b16 %v8413
    %v8614 = vunpack.c.l.b16 %v8414
    %v8615 = vunpack.c.l.b16 %v8415
    %v8616 = vunpack.c.l.b16 %v8416
    %v8617 = vunpack.c.l.b16 %v8417
    %v8618 = vunpack.c.l.b16 %v8418
    %v8619 = vunpack.c.l.b16 %v8419
    %v8620 = vunpack.c.l.b16 %v8420
    %v8621 = vunpack.c.l.b16 %v8421
    %v8622 = vunpack.c.l.b16 %v8422
    %v8623 = vunpack.c.l.b16 %v8423
    %v8624 = vunpack.c.l.b16 %v8424
    %v8625 = vunpack.c.l.b16 %v8425
    %v8626 = vunpack.c.l.b16 %v8426
    %v8627 = vunpack.c.l.b16 %v8427
    %v8628 = vunpack.c.l.b16 %v8428
    %v8629 = vunpack.c.l.b16 %v8429
    %v8630 = vunpack.c.l.b16 %v8430
    %v8631 = vunpack.c.l.b16 %v8431
    %v8632 = vunpack.c.l.b16 %v8432
    %v8633 = vunpack.c.l.b16 %v8433
    %v8634 = vunpack.c.l.b16 %v8434
    %v8635 = vunpack.c.l.b16 %v8435
    %v8636 = vunpack.c.l.b16 %v8436
    %v8637 = vunpack.c.l.b16 %v8437
    %v8638 = vunpack.c.l.b16 %v8438
    %v8639 = vunpack.c.l.b16 %v8439
    %v8640 = vunpack.c.l.b16 %v8440
    %v8641 = vunpack.c.l.b16 %v8441
    %v8642 = vunpack.c.l.b16 %v8442
    %v8643 = vunpack.c.l.b16 %v8443
    %v8644 = vunpack.c.l.b16 %v8444
    %v8645 = vunpack.c.l.b16 %v8445
    %v8646 = vunpack.c.l.b16 %v8446
    %v8647 = vunpack.c.l.b16 %v8447
    %v8648 = vunpack.c.l.b16 %v8448
    %v8649 = vunpack.c.l.b16 %v8449
    %v8650 = vunpack.c.l.b16 %v8450
    %v8651 = vunpack.c.l.b16 %v8451
    %v8652 = vunpack.c.l.b16 %v8452
    %v8653 = vunpack.c.l.b16 %v8453
    %v8654 = vunpack.c.l.b16 %v8454
    %v8655 = vunpack.c.l.b16 %v8455
    %v8656 = vunpack.c.l.b16 %v8456
    %v8657 = vunpack.c.l.b16 %v8457
    %v8658 = vunpack.c.l.b16 %v8458
    %v8659 = vunpack.c.l.b16 %v8459
    %v8660 = vunpack.c.l.b16 %v8460
    %v8661 = vunpack.c.l.b16 %v8461
    %v8662 = vunpack.c.l.b16 %v8462
    %v8663 = vunpack.c.l.b16 %v8463
    %v8664 = vunpack.c.l.b16 %v8464
    %v8665 = vunpack.c.l.b16 %v8465
    %v8666 = vunpack.c.l.b16 %v8466
    %v8667 = vunpack.c.l.b16 %v8467
    %v8668 = vunpack.c.l.b16 %v8468
    %v8669 = vunpack.c.l.b16 %v8469
    %v8670 = vunpack.c.l.b16 %v8470
    %v8671 = vunpack.c.l.b16 %v8471
    %v8672 = vunpack.c.l.b16 %v8472
    %v8673 = vunpack.c.l.b16 %v8473
    %v8674 = vunpack.c.l.b16 %v8474
    %v8675 = vunpack.c.l.b16 %v8475
    %v8676 = vunpack.c.l.b16 %v8476
    %v8677 = vunpack.c.l.b16 %v8477
    %v8678 = vpack.c.b16 %v8579, %v8578
    %v8679 = vpack.c.b16 %v8581, %v8580
    %v8680 = vpack.c.b16 %v8583, %v8582
    %v8681 = vpack.c.b16 %v8585, %v8584
    %v8682 = vpack.c.b16 %v8587, %v8586
    %v8683 = vpack.c.b16 %v8589, %v8588
    %v8684 = vpack.c.b16 %v8591, %v8590
    %v8685 = vpack.c.b16 %v8593, %v8592
    %v8686 = vpack.c.b16 %v8595, %v8594
    %v8687 = vpack.c.b16 %v8597, %v8596
    %v8688 = vpack.c.b16 %v8599, %v8598
    %v8689 = vpack.c.b16 %v8601, %v8600
    %v8690 = vpack.c.b16 %v8603, %v8602
    %v8691 = vpack.c.b16 %v8605, %v8604
    %v8692 = vpack.c.b16 %v8607, %v8606
    %v8693 = vpack.c.b16 %v8609, %v8608
    %v8694 = vpack.c.b16 %v8611, %v8610
    %v8695 = vpack.c.b16 %v8613, %v8612
    %v8696 = vpack.c.b16 %v8615, %v8614
    %v8697 = vpack.c.b16 %v8617, %v8616
    %v8698 = vpack.c.b16 %v8619, %v8618
    %v8699 = vpack.c.b16 %v8621, %v8620
    %v8700 = vpack.c.b16 %v8623, %v8622
    %v8701 = vpack.c.b16 %v8625, %v8624
    %v8702 = vpack.c.b16 %v8627, %v8626
    %v8703 = vpack.c.b16 %v8629, %v8628
    %v8704 = vpack.c.b16 %v8631, %v8630
    %v8705 = vpack.c.b16 %v8633, %v8632
    %v8706 = vpack.c.b16 %v8635, %v8634
    %v8707 = vpack.c.b16 %v8637, %v8636
    %v8708 = vpack.c.b16 %v8639, %v8638
    %v8709 = vpack.c.b16 %v8641, %v8640
    %v8710 = vpack.c.b16 %v8643, %v8642
    %v8711 = vpack.c.b16 %v8645, %v8644
    %v8712 = vpack.c.b16 %v8647, %v8646
    %v8713 = vpack.c.b16 %v8649, %v8648
    %v8714 = vpack.c.b16 %v8651, %v8650
    %v8715 = vpack.c.b16 %v8653, %v8652
    %v8716 = vpack.c.b16 %v8655, %v8654
    %v8717 = vpack.c.b16 %v8657, %v8656
    %v8718 = vpack.c.b16 %v8659, %v8658
    %v8719 = vpack.c.b16 %v8661, %v8660
    %v8720 = vpack.c.b16 %v8663, %v8662
    %v8721 = vpack.c.b16 %v8665, %v8664
    %v8722 = vpack.c.b16 %v8667, %v8666
    %v8723 = vpack.c.b16 %v8669, %v8668
    %v8724 = vpack.c.b16 %v8671, %v8670
    %v8725 = vpack.c.b16 %v8673, %v8672
    %v8726 = vpack.c.b16 %v8675, %v8674
    %v8727 = vpack.c.b16 %v8677, %v8676
    %v8779 = vsel %vm1527, %v8370, 0
    %v8782 = vsel %vm1527, %v8377, 0
    %8784 = vmatprep.subr.bf16.mxu0 0
    %8785 = vmatpush1.bf16.msra.mxu0 %v8678
    %8786 = vmatprep.subr.bf16.mxu0 0
    %8787 = vmatpush1.bf16.msra.mxu0 %v8679
    %8788 = vmatprep.subr.bf16.mxu0 0
    %8789 = vmatpush1.bf16.msra.mxu0 %v8680
    %8790 = vmatprep.subr.bf16.mxu0 0
    %8791 = vmatpush1.bf16.msra.mxu0 %v8681
    %8792 = vmatprep.subr.bf16.mxu0 0
    %8793 = vmatpush1.bf16.msra.mxu0 %v8682
    %8794 = vmatprep.subr.bf16.mxu0 0
    %8795 = vmatpush1.bf16.msra.mxu0 %v8683
    %8796 = vmatprep.subr.bf16.mxu0 0
    %8797 = vmatpush1.bf16.msra.mxu0 %v8684
    %8798 = vmatprep.subr.bf16.mxu0 0
    %8799 = vmatpush1.bf16.msra.mxu0 %v8685
    %8800 = vmatprep.subr.bf16.mxu0 0
    %8801 = vmatpush1.bf16.msra.mxu0 %v8686
    %8802 = vmatprep.subr.bf16.mxu0 0
    %8803 = vmatpush1.bf16.msra.mxu0 %v8687
    %8804 = vmatprep.subr.bf16.mxu0 0
    %8805 = vmatpush1.bf16.msra.mxu0 %v8688
    %8806 = vmatprep.subr.bf16.mxu0 0
    %8807 = vmatpush1.bf16.msra.mxu0 %v8689
    %8808 = vmatprep.subr.bf16.mxu0 0
    %8809 = vmatpush1.bf16.msra.mxu0 %v8690
    %8810 = vmatprep.subr.bf16.mxu0 0
    %8811 = vmatpush1.bf16.msra.mxu0 %v8691
    %8812 = vmatprep.subr.bf16.mxu0 0
    %8813 = vmatpush1.bf16.msra.mxu0 %v8692
    %8814 = vmatprep.subr.bf16.mxu0 0
    %8815 = vmatpush1.bf16.msra.mxu0 %v8693
    %8816 = vmatprep.mubr.bf16.mxu0 %v8365
    %8817 = vmatmul.mubr.bf16.gmra.mrb[0].mxu0 %v8364
    %v8818 = vpop.f32.mrb[0].mxu0
    %v8819 = vadd.f32 0.0, %v8818
    %v8820 = vpop.f32.mrb[0].mxu0
    %v8821 = vpop.f32.mrb[0].mxu0
    %v8822 = vadd.f32 0.0, %v8821
    %v8823 = vpop.f32.mrb[0].mxu0
    %8824 = vmatprep.mubr.bf16.mxu0 %v8372
    %8825 = vmatmul.mubr.bf16.gmra.mrb[0].mxu0 %v8371
    %v8826 = vpop.f32.mrb[0].mxu0
    %v8827 = vadd.f32 0.0, %v8826
    %v8828 = vpop.f32.mrb[0].mxu0
    %v8829 = vpop.f32.mrb[0].mxu0
    %v8830 = vadd.f32 0.0, %v8829
    %v8831 = vpop.f32.mrb[0].mxu0
    %8832 = vdwg.mxu0
    %8833 = vmatprep.subr.bf16.mxu0 0
    %8834 = vmatpush1.bf16.msra.mxu0 %v8694
    %8835 = vmatprep.subr.bf16.mxu0 0
    %8836 = vmatpush1.bf16.msra.mxu0 %v8695
    %8837 = vmatprep.subr.bf16.mxu0 0
    %8838 = vmatpush1.bf16.msra.mxu0 %v8696
    %8839 = vmatprep.subr.bf16.mxu0 0
    %8840 = vmatpush1.bf16.msra.mxu0 %v8697
    %8841 = vmatprep.subr.bf16.mxu0 0
    %8842 = vmatpush1.bf16.msra.mxu0 %v8698
    %8843 = vmatprep.subr.bf16.mxu0 0
    %8844 = vmatpush1.bf16.msra.mxu0 %v8699
    %8845 = vmatprep.subr.bf16.mxu0 0
    %8846 = vmatpush1.bf16.msra.mxu0 %v8700
    %8847 = vmatprep.subr.bf16.mxu0 0
    %8848 = vmatpush1.bf16.msra.mxu0 %v8701
    %8849 = vmatprep.subr.bf16.mxu0 0
    %8850 = vmatpush1.bf16.msra.mxu0 %v8702
    %8851 = vmatprep.subr.bf16.mxu0 0
    %8852 = vmatpush1.bf16.msra.mxu0 %v8703
    %8853 = vmatprep.subr.bf16.mxu0 0
    %8854 = vmatpush1.bf16.msra.mxu0 %v8704
    %8855 = vmatprep.subr.bf16.mxu0 0
    %8856 = vmatpush1.bf16.msra.mxu0 %v8705
    %8857 = vmatprep.subr.bf16.mxu0 0
    %8858 = vmatpush1.bf16.msra.mxu0 %v8706
    %8859 = vmatprep.subr.bf16.mxu0 0
    %8860 = vmatpush1.bf16.msra.mxu0 %v8707
    %8861 = vmatprep.subr.bf16.mxu0 0
    %8862 = vmatpush1.bf16.msra.mxu0 %v8708
    %8863 = vmatprep.subr.bf16.mxu0 0
    %8864 = vmatpush1.bf16.msra.mxu0 %v8709
    %8865 = vmatprep.mubr.bf16.mxu0 %v8367
    %8866 = vmatmul.mubr.bf16.gmra.mrb[0].mxu0 %v8366
    %v8867 = vpop.f32.mrb[0].mxu0
    %v8868 = vadd.f32 %v8819, %v8867
    %v8869 = vpop.f32.mrb[0].mxu0
    %v8870 = vpop.f32.mrb[0].mxu0
    %v8871 = vadd.f32 %v8822, %v8870
    %v8872 = vpop.f32.mrb[0].mxu0
    %8873 = vmatprep.mubr.bf16.mxu0 %v8374
    %8874 = vmatmul.mubr.bf16.gmra.mrb[0].mxu0 %v8373
    %v8875 = vpop.f32.mrb[0].mxu0
    %v8876 = vadd.f32 %v8827, %v8875
    %v8877 = vpop.f32.mrb[0].mxu0
    %v8878 = vpop.f32.mrb[0].mxu0
    %v8879 = vadd.f32 %v8830, %v8878
    %v8880 = vpop.f32.mrb[0].mxu0
    %8881 = vdwg.mxu0
    %8882 = vmatprep.subr.bf16.mxu0 0
    %8883 = vmatpush1.bf16.msra.mxu0 %v8710
    %8884 = vmatprep.subr.bf16.mxu0 0
    %8885 = vmatpush1.bf16.msra.mxu0 %v8711
    %8886 = vmatprep.subr.bf16.mxu0 0
    %8887 = vmatpush1.bf16.msra.mxu0 %v8712
    %8888 = vmatprep.subr.bf16.mxu0 0
    %8889 = vmatpush1.bf16.msra.mxu0 %v8713
    %8890 = vmatprep.subr.bf16.mxu0 0
    %8891 = vmatpush1.bf16.msra.mxu0 %v8714
    %8892 = vmatprep.subr.bf16.mxu0 0
    %8893 = vmatpush1.bf16.msra.mxu0 %v8715
    %8894 = vmatprep.subr.bf16.mxu0 0
    %8895 = vmatpush1.bf16.msra.mxu0 %v8716
    %8896 = vmatprep.subr.bf16.mxu0 0
    %8897 = vmatpush1.bf16.msra.mxu0 %v8717
    %8898 = vmatprep.subr.bf16.mxu0 0
    %8899 = vmatpush1.bf16.msra.mxu0 %v8718
    %8900 = vmatprep.subr.bf16.mxu0 0
    %8901 = vmatpush1.bf16.msra.mxu0 %v8719
    %8902 = vmatprep.subr.bf16.mxu0 0
    %8903 = vmatpush1.bf16.msra.mxu0 %v8720
    %8904 = vmatprep.subr.bf16.mxu0 0
    %8905 = vmatpush1.bf16.msra.mxu0 %v8721
    %8906 = vmatprep.subr.bf16.mxu0 0
    %8907 = vmatpush1.bf16.msra.mxu0 %v8722
    %8908 = vmatprep.subr.bf16.mxu0 0
    %8909 = vmatpush1.bf16.msra.mxu0 %v8723
    %8910 = vmatprep.subr.bf16.mxu0 0
    %8911 = vmatpush1.bf16.msra.mxu0 %v8724
    %8912 = vmatprep.subr.bf16.mxu0 0
    %8913 = vmatpush1.bf16.msra.mxu0 %v8725
    %8914 = vmatprep.mubr.bf16.mxu0 %v8369
    %8915 = vmatmul.mubr.bf16.gmra.mrb[0].mxu0 %v8368
    %v8916 = vpop.f32.mrb[0].mxu0
    %v8917 = vadd.f32 %v8868, %v8916
    %v8918 = vpop.f32.mrb[0].mxu0
    %v8919 = vpop.f32.mrb[0].mxu0
    %v8920 = vadd.f32 %v8871, %v8919
    %v8921 = vpop.f32.mrb[0].mxu0
    %8922 = vmatprep.mubr.bf16.mxu0 %v8376
    %8923 = vmatmul.mubr.bf16.gmra.mrb[0].mxu0 %v8375
    %v8924 = vpop.f32.mrb[0].mxu0
    %v8925 = vadd.f32 %v8876, %v8924
    %v8926 = vpop.f32.mrb[0].mxu0
    %v8927 = vpop.f32.mrb[0].mxu0
    %v8928 = vadd.f32 %v8879, %v8927
    %v8929 = vpop.f32.mrb[0].mxu0
    %8930 = vdwg.mxu0
    %8931 = vmatprep.subr.bf16.mxu0 0
    %8932 = vmatpush1.bf16.msra.mxu0 %v8726
    %8933 = vmatprep.subr.bf16.mxu0 0
    %8934 = vmatpush1.bf16.msra.mxu0 %v8727
    %8935 = vmatprep.subr.bf16.mxu0 0
    %8936 = vmatpush1.bf16.msra.mxu0 0
    %8937 = vmatprep.subr.bf16.mxu0 0
    %8938 = vmatpush1.bf16.msra.mxu0 0
    %8939 = vmatprep.subr.bf16.mxu0 0
    %8940 = vmatpush1.bf16.msra.mxu0 0
    %8941 = vmatprep.subr.bf16.mxu0 0
    %8942 = vmatpush1.bf16.msra.mxu0 0
    %8943 = vmatprep.subr.bf16.mxu0 0
    %8944 = vmatpush1.bf16.msra.mxu0 0
    %8945 = vmatprep.subr.bf16.mxu0 0
    %8946 = vmatpush1.bf16.msra.mxu0 0
    %8947 = vmatprep.subr.bf16.mxu0 0
    %8948 = vmatpush1.bf16.msra.mxu0 0
    %8949 = vmatprep.subr.bf16.mxu0 0
    %8950 = vmatpush1.bf16.msra.mxu0 0
    %8951 = vmatprep.subr.bf16.mxu0 0
    %8952 = vmatpush1.bf16.msra.mxu0 0
    %8953 = vmatprep.subr.bf16.mxu0 0
    %8954 = vmatpush1.bf16.msra.mxu0 0
    %8955 = vmatprep.subr.bf16.mxu0 0
    %8956 = vmatpush1.bf16.msra.mxu0 0
    %8957 = vmatprep.subr.bf16.mxu0 0
    %8958 = vmatpush1.bf16.msra.mxu0 0
    %8959 = vmatprep.subr.bf16.mxu0 0
    %8960 = vmatpush1.bf16.msra.mxu0 0
    %8961 = vmatprep.subr.bf16.mxu0 0
    %8962 = vmatpush1.bf16.msra.mxu0 0
    %8963 = vmatprep.mubr.bf16.mxu0 0
    %8964 = vmatmul.mubr.bf16.gmra.mrb[0].mxu0 %v8779
    %v8965 = vpop.f32.mrb[0].mxu0
    %v8966 = vadd.f32 %v8917, %v8965
    %v8967 = vpop.f32.mrb[0].mxu0
    %v8968 = vpop.f32.mrb[0].mxu0
    %v8969 = vadd.f32 %v8920, %v8968
    %v8970 = vpop.f32.mrb[0].mxu0
    %8971 = vmatprep.mubr.bf16.mxu0 0
    %8972 = vmatmul.mubr.bf16.gmra.mrb[0].mxu0 %v8782
    %v8973 = vpop.f32.mrb[0].mxu0
    %v8974 = vadd.f32 %v8925, %v8973
    %v8975 = vpop.f32.mrb[0].mxu0
    %v8976 = vpop.f32.mrb[0].mxu0
    %v8977 = vadd.f32 %v8928, %v8976
    %v8978 = vpop.f32.mrb[0].mxu0
    %8979 = vdwg.mxu0
    %v8980 = vld [vmem:[%s13] sm:$0x1]
    %v8981 = vld [vmem:[%s11] sm:$0x1]
    %v8982 = vld [vmem:[%s12] sm:$0x1]
    %v8984 = vsel %vm1527, %v8980, 0
    %8986 = vmatprep.subr.mxu0 0.0
    %8987 = vmatpush1.msra.mxu0 %v8966
    %8988 = vmatprep.subr.mxu0 0.0
    %8989 = vmatpush1.msra.mxu0 %v8969
    %8990 = vmatprep.subr.mxu0 0.0
    %8991 = vmatpush1.msra.mxu0 %v8974
    %8992 = vmatprep.subr.mxu0 0.0
    %8993 = vmatpush1.msra.mxu0 %v8977
    %8994 = vmatprep.subr.mxu0 0.0
    %8995 = vmatpush1.msra.mxu0 0.0
    %8996 = vmatprep.subr.mxu0 0.0
    %8997 = vmatpush1.msra.mxu0 0.0
    %8998 = vmatprep.subr.mxu0 0.0
    %8999 = vmatpush1.msra.mxu0 0.0
    %9000 = vmatprep.subr.mxu0 0.0
    %9001 = vmatpush1.msra.mxu0 0.0
    %9002 = vmatprep.subr.mxu0 0.0
    %9003 = vmatpush1.msra.mxu0 0.0
    %9004 = vmatprep.subr.mxu0 0.0
    %9005 = vmatpush1.msra.mxu0 0.0
    %9006 = vmatprep.subr.mxu0 0.0
    %9007 = vmatpush1.msra.mxu0 0.0
    %9008 = vmatprep.subr.mxu0 0.0
    %9009 = vmatpush1.msra.mxu0 0.0
    %9010 = vmatprep.subr.mxu0 0.0
    %9011 = vmatpush1.msra.mxu0 0.0
    %9012 = vmatprep.subr.mxu0 0.0
    %9013 = vmatpush1.msra.mxu0 0.0
    %9014 = vmatprep.subr.mxu0 0.0
    %9015 = vmatpush1.msra.mxu0 0.0
    %9016 = vmatprep.subr.mxu0 0.0
    %9017 = vmatpush1.msra.mxu0 0.0
    %9018 = vmatprep.subr.mxu0 0.0
    %9019 = vmatpush1.msra.mxu0 0.0
    %9020 = vmatprep.subr.mxu0 0.0
    %9021 = vmatpush1.msra.mxu0 0.0
    %9022 = vmatprep.subr.mxu0 0.0
    %9023 = vmatpush1.msra.mxu0 0.0
    %9024 = vmatprep.subr.mxu0 0.0
    %9025 = vmatpush1.msra.mxu0 0.0
    %9026 = vmatprep.subr.mxu0 0.0
    %9027 = vmatpush1.msra.mxu0 0.0
    %9028 = vmatprep.subr.mxu0 0.0
    %9029 = vmatpush1.msra.mxu0 0.0
    %9030 = vmatprep.subr.mxu0 0.0
    %9031 = vmatpush1.msra.mxu0 0.0
    %9032 = vmatprep.subr.mxu0 0.0
    %9033 = vmatpush1.msra.mxu0 0.0
    %9034 = vmatprep.subr.mxu0 0.0
    %9035 = vmatpush1.msra.mxu0 0.0
    %9036 = vmatprep.subr.mxu0 0.0
    %9037 = vmatpush1.msra.mxu0 0.0
    %9038 = vmatprep.subr.mxu0 0.0
    %9039 = vmatpush1.msra.mxu0 0.0
    %9040 = vmatprep.subr.mxu0 0.0
    %9041 = vmatpush1.msra.mxu0 0.0
    %9042 = vmatprep.subr.mxu0 0.0
    %9043 = vmatpush1.msra.mxu0 0.0
    %9044 = vmatprep.subr.mxu0 0.0
    %9045 = vmatpush1.msra.mxu0 0.0
    %9046 = vmatprep.subr.mxu0 0.0
    %9047 = vmatpush1.msra.mxu0 0.0
    %9048 = vmatprep.subr.mxu0 0.0
    %9049 = vmatpush1.msra.mxu0 0.0
    %9050 = vmatprep.mubr.f32.mxu0 0.0
    %9051 = vmatmul.mubr.f32.gmra.mrb[0].mxu0 %v8984
    %v9052 = vpop.f32.mrb[0].mxu0
    %v9053 = vadd.f32 0.0, %v9052
    %v9054 = vpop.f32.mrb[0].mxu0
    %9055 = vdwg.mxu0
    %v9056 = vmul.f32 %v9053, 0.035714287
    %v9057 = vlaneseq
    %v9058 = vshrl.u32 %v9057, 7
    %v9059 = vsub.s32 0, %v9058
    %v9060 = vrot.slane %v9056, %v9059
    %v9061 = vsub.f32 %v8966, %v9060
    %v9062 = vsub.f32 %v8969, %v9060
    %v9063 = vsub.f32 %v8974, %v9060
    %v9064 = vsub.f32 %v8977, %v9060
    %v9065 = vmul.f32 %v9061, %v9061
    %v9066 = vmul.f32 %v9062, %v9062
    %v9067 = vmul.f32 %v9063, %v9063
    %v9068 = vmul.f32 %v9064, %v9064
    %9069 = vmatprep.subr.mxu0 0.0
    %9070 = vmatpush1.msra.mxu0 %v9065
    %9071 = vmatprep.subr.mxu0 0.0
    %9072 = vmatpush1.msra.mxu0 %v9066
    %9073 = vmatprep.subr.mxu0 0.0
    %9074 = vmatpush1.msra.mxu0 %v9067
    %9075 = vmatprep.subr.mxu0 0.0
    %9076 = vmatpush1.msra.mxu0 %v9068
    %9077 = vmatprep.subr.mxu0 0.0
    %9078 = vmatpush1.msra.mxu0 0.0
    %9079 = vmatprep.subr.mxu0 0.0
    %9080 = vmatpush1.msra.mxu0 0.0
    %9081 = vmatprep.subr.mxu0 0.0
    %9082 = vmatpush1.msra.mxu0 0.0
    %9083 = vmatprep.subr.mxu0 0.0
    %9084 = vmatpush1.msra.mxu0 0.0
    %9085 = vmatprep.subr.mxu0 0.0
    %9086 = vmatpush1.msra.mxu0 0.0
    %9087 = vmatprep.subr.mxu0 0.0
    %9088 = vmatpush1.msra.mxu0 0.0
    %9089 = vmatprep.subr.mxu0 0.0
    %9090 = vmatpush1.msra.mxu0 0.0
    %9091 = vmatprep.subr.mxu0 0.0
    %9092 = vmatpush1.msra.mxu0 0.0
    %9093 = vmatprep.subr.mxu0 0.0
    %9094 = vmatpush1.msra.mxu0 0.0
    %9095 = vmatprep.subr.mxu0 0.0
    %9096 = vmatpush1.msra.mxu0 0.0
    %9097 = vmatprep.subr.mxu0 0.0
    %9098 = vmatpush1.msra.mxu0 0.0
    %9099 = vmatprep.subr.mxu0 0.0
    %9100 = vmatpush1.msra.mxu0 0.0
    %9101 = vmatprep.subr.mxu0 0.0
    %9102 = vmatpush1.msra.mxu0 0.0
    %9103 = vmatprep.subr.mxu0 0.0
    %9104 = vmatpush1.msra.mxu0 0.0
    %9105 = vmatprep.subr.mxu0 0.0
    %9106 = vmatpush1.msra.mxu0 0.0
    %9107 = vmatprep.subr.mxu0 0.0
    %9108 = vmatpush1.msra.mxu0 0.0
    %9109 = vmatprep.subr.mxu0 0.0
    %9110 = vmatpush1.msra.mxu0 0.0
    %9111 = vmatprep.subr.mxu0 0.0
    %9112 = vmatpush1.msra.mxu0 0.0
    %9113 = vmatprep.subr.mxu0 0.0
    %9114 = vmatpush1.msra.mxu0 0.0
    %9115 = vmatprep.subr.mxu0 0.0
    %9116 = vmatpush1.msra.mxu0 0.0
    %9117 = vmatprep.subr.mxu0 0.0
    %9118 = vmatpush1.msra.mxu0 0.0
    %9119 = vmatprep.subr.mxu0 0.0
    %9120 = vmatpush1.msra.mxu0 0.0
    %9121 = vmatprep.subr.mxu0 0.0
    %9122 = vmatpush1.msra.mxu0 0.0
    %9123 = vmatprep.subr.mxu0 0.0
    %9124 = vmatpush1.msra.mxu0 0.0
    %9125 = vmatprep.subr.mxu0 0.0
    %9126 = vmatpush1.msra.mxu0 0.0
    %9127 = vmatprep.subr.mxu0 0.0
    %9128 = vmatpush1.msra.mxu0 0.0
    %9129 = vmatprep.subr.mxu0 0.0
    %9130 = vmatpush1.msra.mxu0 0.0
    %9131 = vmatprep.subr.mxu0 0.0
    %9132 = vmatpush1.msra.mxu0 0.0
    %9133 = vmatprep.mubr.f32.mxu0 0.0
    %9134 = vmatmul.mubr.f32.gmra.mrb[0].mxu0 %v8984
    %v9135 = vpop.f32.mrb[0].mxu0
    %v9136 = vadd.f32 0.0, %v9135
    %v9137 = vpop.f32.mrb[0].mxu0
    %9138 = vdwg.mxu0
    %v9139 = vmul.f32 %v9136, 0.035714287
    %v9140 = vadd.f32 %v9139, 1e-05
    %v9141 = vrsqrt.pop %v9140
    %v9142 = vlaneseq
    %v9143 = vshrl.u32 %v9142, 7
    %v9144 = vsub.s32 0, %v9143
    %v9145 = vrot.slane %v9141, %v9144
    %v9146 = vmul.f32 %v9061, %v9145
    %v9147 = vmul.f32 %v9062, %v9145
    %v9148 = vmul.f32 %v9063, %v9145
    %v9149 = vmul.f32 %v9064, %v9145
    %v9151 = vlaneseq
    %v9152 = vshrl.u32 %v9151, 7
    %v9153 = vsub.s32 0, %v9152
    %v9154 = vrot.slane %v8981, %v9153
    %v9156 = vmul.f32 %v9146, %v9154
    %v9157 = vmul.f32 %v9147, %v9154
    %v9158 = vmul.f32 %v9148, %v9154
    %v9159 = vmul.f32 %v9149, %v9154
    %v9161 = vlaneseq
    %v9162 = vshrl.u32 %v9161, 7
    %v9163 = vsub.s32 0, %v9162
    %v9164 = vrot.slane %v8982, %v9163
    %v9166 = vadd.f32 %v9156, %v9164
    %v9167 = vadd.f32 %v9157, %v9164
    %v9168 = vadd.f32 %v9158, %v9164
    %v9169 = vadd.f32 %v9159, %v9164
    %v9170 = vmax.f32 %v9166, 0.0
    %v9171 = vmax.f32 %v9167, 0.0
    %v9172 = vmax.f32 %v9168, 0.0
    %v9173 = vmax.f32 %v9169, 0.0
    %v9175 = vrot.slane %v9170, 2
    %9176 = vrot.lane.b32.xlu0 %v9175, 32
    %v9177 = vpop.permute.xlu0 %9176
    %v9179 = vrot.slane %v9170, 4
    %9180 = vrot.lane.b32.xlu0 %v9179, 64
    %v9181 = vpop.permute.xlu0 %9180
    %v9183 = vrot.slane %v9170, 6
    %9184 = vrot.lane.b32.xlu0 %v9183, 96
    %v9185 = vpop.permute.xlu0 %9184
    %v9188 = vrot.slane %v9171, 2
    %9189 = vrot.lane.b32.xlu0 %v9188, 32
    %v9190 = vpop.permute.xlu0 %9189
    %v9192 = vrot.slane %v9171, 4
    %9193 = vrot.lane.b32.xlu0 %v9192, 64
    %v9194 = vpop.permute.xlu0 %9193
    %v9196 = vrot.slane %v9171, 6
    %9197 = vrot.lane.b32.xlu0 %v9196, 96
    %v9198 = vpop.permute.xlu0 %9197
    %v9201 = vrot.slane %v9172, 2
    %9202 = vrot.lane.b32.xlu0 %v9201, 32
    %v9203 = vpop.permute.xlu0 %9202
    %v9205 = vrot.slane %v9172, 4
    %9206 = vrot.lane.b32.xlu0 %v9205, 64
    %v9207 = vpop.permute.xlu0 %9206
    %v9209 = vrot.slane %v9172, 6
    %9210 = vrot.lane.b32.xlu0 %v9209, 96
    %v9211 = vpop.permute.xlu0 %9210
    %v9214 = vrot.slane %v9173, 2
    %9215 = vrot.lane.b32.xlu0 %v9214, 32
    %v9216 = vpop.permute.xlu0 %9215
    %v9218 = vsel %vm1527, %v9170, %v9177
    %v9219 = vsel %vm1053, %v9218, %v9181
    %v9220 = vsel %vm830, %v9219, %v9185
    %v9221 = vsel %vm1527, %v9171, %v9190
    %v9222 = vsel %vm1053, %v9221, %v9194
    %v9223 = vsel %vm830, %v9222, %v9198
    %v9224 = vsel %vm1527, %v9172, %v9203
    %v9225 = vsel %vm1053, %v9224, %v9207
    %v9226 = vsel %vm830, %v9225, %v9211
    %v9227 = vsel %vm1527, %v9173, %v9216
    %v9228 = vpack.c.bf16 %v9220, %v9220
    %v9229 = vpack.c.bf16 %v9223, %v9223
    %v9230 = vpack.c.bf16 %v9226, %v9226
    %v9231 = vpack.c.bf16 %v9227, %v9227
    %v9232 = vld [vmem:[%s14] sm:$0xf]
    %v9233 = vld [vmem:[%s14 + $0x4] sm:$0xf]
    %v9234 = vld [vmem:[%s14 + $0x8] sm:$0xf]
    %v9235 = vld [vmem:[%s14 + $0xc] sm:$0xf]
    %v9236 = vld [vmem:[%s14 + $0x10] sm:$0xf]
    %v9237 = vld [vmem:[%s14 + $0x14] sm:$0xf]
    %v9238 = vld [vmem:[%s14 + $0x18] sm:$0xf]
    %v9239 = vld [vmem:[%s14 + $0x1c] sm:$0xf]
    %v9240 = vld [vmem:[%s14 + $0x20] sm:$0xf]
    %v9241 = vld [vmem:[%s14 + $0x24] sm:$0xf]
    %v9242 = vld [vmem:[%s14 + $0x28] sm:$0xf]
    %v9243 = vld [vmem:[%s14 + $0x2c] sm:$0xf]
    %v9244 = vld [vmem:[%s14 + $0x30] sm:$0xf]
    %v9245 = vld [vmem:[%s14 + $0x34] sm:$0xf]
    %v9246 = vld [vmem:[%s14 + $0x38] sm:$0xf]
    %v9247 = vld [vmem:[%s14 + $0x3c] sm:$0xf]
    %v9248 = vld [vmem:[%s14 + $0x40] sm:$0xf]
    %v9249 = vld [vmem:[%s14 + $0x44] sm:$0xf]
    %v9250 = vld [vmem:[%s14 + $0x48] sm:$0xf]
    %v9251 = vld [vmem:[%s14 + $0x4c] sm:$0xf]
    %v9252 = vld [vmem:[%s14 + $0x50] sm:$0xf]
    %v9253 = vld [vmem:[%s14 + $0x54] sm:$0xf]
    %v9254 = vld [vmem:[%s14 + $0x58] sm:$0xf]
    %v9255 = vld [vmem:[%s14 + $0x5c] sm:$0xf]
    %v9256 = vld [vmem:[%s14 + $0x60] sm:$0xf]
    %v9257 = vld [vmem:[%s14 + $0x64] sm:$0xf]
    %v9258 = vld [vmem:[%s14 + $0x68] sm:$0xf]
    %v9259 = vld [vmem:[%s14 + $0x6c] sm:$0xf]
    %v9260 = vld [vmem:[%s14 + $0x70] sm:$0xf]
    %v9261 = vld [vmem:[%s14 + $0x74] sm:$0xf]
    %v9262 = vld [vmem:[%s14 + $0x78] sm:$0xf]
    %v9263 = vld [vmem:[%s14 + $0x7c] sm:$0xf]
    %v9264 = vld [vmem:[%s14 + $0x80] sm:$0xf]
    %v9265 = vld [vmem:[%s14 + $0x84] sm:$0xf]
    %v9266 = vld [vmem:[%s14 + $0x88] sm:$0xf]
    %v9267 = vld [vmem:[%s14 + $0x8c] sm:$0xf]
    %v9268 = vld [vmem:[%s14 + $0x90] sm:$0xf]
    %v9269 = vld [vmem:[%s14 + $0x94] sm:$0xf]
    %v9270 = vld [vmem:[%s14 + $0x98] sm:$0xf]
    %v9271 = vld [vmem:[%s14 + $0x9c] sm:$0xf]
    %v9272 = vld [vmem:[%s14 + $0xa0] sm:$0xf]
    %v9273 = vld [vmem:[%s14 + $0xa4] sm:$0xf]
    %v9274 = vld [vmem:[%s14 + $0xa8] sm:$0xf]
    %v9275 = vld [vmem:[%s14 + $0xac] sm:$0xf]
    %v9276 = vld [vmem:[%s14 + $0xb0] sm:$0xf]
    %v9277 = vld [vmem:[%s14 + $0xb4] sm:$0xf]
    %v9278 = vld [vmem:[%s14 + $0xb8] sm:$0xf]
    %v9279 = vld [vmem:[%s14 + $0xbc] sm:$0xf]
    %v9280 = vld [vmem:[%s14 + $0xc0] sm:$0xf]
    %v9281 = vld [vmem:[%s14 + $0xc4] sm:$0xf]
    %v9282 = vld [vmem:[%s14 + $0xc8] sm:$0xf]
    %v9283 = vld [vmem:[%s14 + $0xcc] sm:$0xf]
    %v9284 = vld [vmem:[%s14 + $0xd0] sm:$0xf]
    %v9285 = vld [vmem:[%s14 + $0xd4] sm:$0xf]
    %v9286 = vld [vmem:[%s14 + $0xd8] sm:$0xf]
    %v9287 = vld [vmem:[%s14 + $0xdc] sm:$0xf]
    %v9288 = vld [vmem:[%s15] sm:$0x1]
    %v9290 = vlaneseq
    %v9291 = vshrl.u32 %v9290, 7
    %v9292 = vsub.s32 0, %v9291
    %v9293 = vrot.slane %v9288, %v9292
    %v9351 = vunpack.c.l.b16 %v9232
    %v9352 = vunpack.c.l.b16 %v9233
    %v9353 = vunpack.c.l.b16 %v9234
    %v9354 = vunpack.c.l.b16 %v9235
    %v9355 = vunpack.c.l.b16 %v9236
    %v9356 = vunpack.c.l.b16 %v9237
    %v9357 = vunpack.c.l.b16 %v9238
    %v9358 = vunpack.c.l.b16 %v9239
    %v9359 = vunpack.c.l.b16 %v9240
    %v9360 = vunpack.c.l.b16 %v9241
    %v9361 = vunpack.c.l.b16 %v9242
    %v9362 = vunpack.c.l.b16 %v9243
    %v9363 = vunpack.c.l.b16 %v9244
    %v9364 = vunpack.c.l.b16 %v9245
    %v9365 = vunpack.c.l.b16 %v9246
    %v9366 = vunpack.c.l.b16 %v9247
    %v9367 = vunpack.c.l.b16 %v9248
    %v9368 = vunpack.c.l.b16 %v9249
    %v9369 = vunpack.c.l.b16 %v9250
    %v9370 = vunpack.c.l.b16 %v9251
    %v9371 = vunpack.c.l.b16 %v9252
    %v9372 = vunpack.c.l.b16 %v9253
    %v9373 = vunpack.c.l.b16 %v9254
    %v9374 = vunpack.c.l.b16 %v9255
    %v9375 = vunpack.c.l.b16 %v9256
    %v9376 = vunpack.c.l.b16 %v9257
    %v9377 = vunpack.c.l.b16 %v9258
    %v9378 = vunpack.c.l.b16 %v9259
    %v9379 = vunpack.c.l.b16 %v9260
    %v9380 = vunpack.c.l.b16 %v9261
    %v9381 = vunpack.c.l.b16 %v9262
    %v9382 = vunpack.c.l.b16 %v9263
    %v9383 = vunpack.c.l.b16 %v9264
    %v9384 = vunpack.c.l.b16 %v9265
    %v9385 = vunpack.c.l.b16 %v9266
    %v9386 = vunpack.c.l.b16 %v9267
    %v9387 = vunpack.c.l.b16 %v9268
    %v9388 = vunpack.c.l.b16 %v9269
    %v9389 = vunpack.c.l.b16 %v9270
    %v9390 = vunpack.c.l.b16 %v9271
    %v9391 = vunpack.c.l.b16 %v9272
    %v9392 = vunpack.c.l.b16 %v9273
    %v9393 = vunpack.c.l.b16 %v9274
    %v9394 = vunpack.c.l.b16 %v9275
    %v9395 = vunpack.c.l.b16 %v9276
    %v9396 = vunpack.c.l.b16 %v9277
    %v9397 = vunpack.c.l.b16 %v9278
    %v9398 = vunpack.c.l.b16 %v9279
    %v9399 = vunpack.c.l.b16 %v9280
    %v9400 = vunpack.c.l.b16 %v9281
    %v9401 = vunpack.c.l.b16 %v9282
    %v9402 = vunpack.c.l.b16 %v9283
    %v9403 = vunpack.c.l.b16 %v9284
    %v9404 = vunpack.c.l.b16 %v9285
    %v9405 = vunpack.c.l.b16 %v9286
    %v9406 = vunpack.c.l.b16 %v9287
    %v9407 = vpack.c.b16 %v9352, %v9351
    %v9408 = vpack.c.b16 %v9354, %v9353
    %v9409 = vpack.c.b16 %v9356, %v9355
    %v9410 = vpack.c.b16 %v9358, %v9357
    %v9411 = vpack.c.b16 %v9360, %v9359
    %v9412 = vpack.c.b16 %v9362, %v9361
    %v9413 = vpack.c.b16 %v9364, %v9363
    %v9414 = vpack.c.b16 %v9366, %v9365
    %v9415 = vpack.c.b16 %v9368, %v9367
    %v9416 = vpack.c.b16 %v9370, %v9369
    %v9417 = vpack.c.b16 %v9372, %v9371
    %v9418 = vpack.c.b16 %v9374, %v9373
    %v9419 = vpack.c.b16 %v9376, %v9375
    %v9420 = vpack.c.b16 %v9378, %v9377
    %v9421 = vpack.c.b16 %v9380, %v9379
    %v9422 = vpack.c.b16 %v9382, %v9381
    %v9423 = vpack.c.b16 %v9384, %v9383
    %v9424 = vpack.c.b16 %v9386, %v9385
    %v9425 = vpack.c.b16 %v9388, %v9387
    %v9426 = vpack.c.b16 %v9390, %v9389
    %v9427 = vpack.c.b16 %v9392, %v9391
    %v9428 = vpack.c.b16 %v9394, %v9393
    %v9429 = vpack.c.b16 %v9396, %v9395
    %v9430 = vpack.c.b16 %v9398, %v9397
    %v9431 = vpack.c.b16 %v9400, %v9399
    %v9432 = vpack.c.b16 %v9402, %v9401
    %v9433 = vpack.c.b16 %v9404, %v9403
    %v9434 = vpack.c.b16 %v9406, %v9405
    %v9464 = vsel %vm1053, %v9231, 0
    %9466 = vmatprep.subr.bf16.mxu0 0
    %9467 = vmatpush1.bf16.msra.mxu0 %v9407
    %9468 = vmatprep.subr.bf16.mxu0 0
    %9469 = vmatpush1.bf16.msra.mxu0 %v9408
    %9470 = vmatprep.subr.bf16.mxu0 0
    %9471 = vmatpush1.bf16.msra.mxu0 %v9409
    %9472 = vmatprep.subr.bf16.mxu0 0
    %9473 = vmatpush1.bf16.msra.mxu0 %v9410
    %9474 = vmatprep.subr.bf16.mxu0 0
    %9475 = vmatpush1.bf16.msra.mxu0 %v9411
    %9476 = vmatprep.subr.bf16.mxu0 0
    %9477 = vmatpush1.bf16.msra.mxu0 %v9412
    %9478 = vmatprep.subr.bf16.mxu0 0
    %9479 = vmatpush1.bf16.msra.mxu0 %v9413
    %9480 = vmatprep.subr.bf16.mxu0 0
    %9481 = vmatpush1.bf16.msra.mxu0 %v9414
    %9482 = vmatprep.subr.bf16.mxu0 0
    %9483 = vmatpush1.bf16.msra.mxu0 %v9415
    %9484 = vmatprep.subr.bf16.mxu0 0
    %9485 = vmatpush1.bf16.msra.mxu0 %v9416
    %9486 = vmatprep.subr.bf16.mxu0 0
    %9487 = vmatpush1.bf16.msra.mxu0 %v9417
    %9488 = vmatprep.subr.bf16.mxu0 0
    %9489 = vmatpush1.bf16.msra.mxu0 %v9418
    %9490 = vmatprep.subr.bf16.mxu0 0
    %9491 = vmatpush1.bf16.msra.mxu0 %v9419
    %9492 = vmatprep.subr.bf16.mxu0 0
    %9493 = vmatpush1.bf16.msra.mxu0 %v9420
    %9494 = vmatprep.subr.bf16.mxu0 0
    %9495 = vmatpush1.bf16.msra.mxu0 %v9421
    %9496 = vmatprep.subr.bf16.mxu0 0
    %9497 = vmatpush1.bf16.msra.mxu0 %v9422
    %9498 = vmatprep.mubr.bf16.mxu0 %v9229
    %9499 = vmatmul.mubr.bf16.gmra.mrb[0].mxu0 %v9228
    %v9500 = vpop.f32.mrb[0].mxu0
    %v9501 = vadd.f32 %v9293, %v9500
    %v9502 = vpop.f32.mrb[0].mxu0
    %v9503 = vpop.f32.mrb[0].mxu0
    %v9504 = vpop.f32.mrb[0].mxu0
    %9505 = vdwg.mxu0
    %9506 = vmatprep.subr.bf16.mxu0 0
    %9507 = vmatpush1.bf16.msra.mxu0 %v9423
    %9508 = vmatprep.subr.bf16.mxu0 0
    %9509 = vmatpush1.bf16.msra.mxu0 %v9424
    %9510 = vmatprep.subr.bf16.mxu0 0
    %9511 = vmatpush1.bf16.msra.mxu0 %v9425
    %9512 = vmatprep.subr.bf16.mxu0 0
    %9513 = vmatpush1.bf16.msra.mxu0 %v9426
    %9514 = vmatprep.subr.bf16.mxu0 0
    %9515 = vmatpush1.bf16.msra.mxu0 %v9427
    %9516 = vmatprep.subr.bf16.mxu0 0
    %9517 = vmatpush1.bf16.msra.mxu0 %v9428
    %9518 = vmatprep.subr.bf16.mxu0 0
    %9519 = vmatpush1.bf16.msra.mxu0 %v9429
    %9520 = vmatprep.subr.bf16.mxu0 0
    %9521 = vmatpush1.bf16.msra.mxu0 %v9430
    %9522 = vmatprep.subr.bf16.mxu0 0
    %9523 = vmatpush1.bf16.msra.mxu0 %v9431
    %9524 = vmatprep.subr.bf16.mxu0 0
    %9525 = vmatpush1.bf16.msra.mxu0 %v9432
    %9526 = vmatprep.subr.bf16.mxu0 0
    %9527 = vmatpush1.bf16.msra.mxu0 %v9433
    %9528 = vmatprep.subr.bf16.mxu0 0
    %9529 = vmatpush1.bf16.msra.mxu0 %v9434
    %9530 = vmatprep.subr.bf16.mxu0 0
    %9531 = vmatpush1.bf16.msra.mxu0 0
    %9532 = vmatprep.subr.bf16.mxu0 0
    %9533 = vmatpush1.bf16.msra.mxu0 0
    %9534 = vmatprep.subr.bf16.mxu0 0
    %9535 = vmatpush1.bf16.msra.mxu0 0
    %9536 = vmatprep.subr.bf16.mxu0 0
    %9537 = vmatpush1.bf16.msra.mxu0 0
    %9538 = vmatprep.mubr.bf16.mxu0 %v9464
    %9539 = vmatmul.mubr.bf16.gmra.mrb[0].mxu0 %v9230
    %v9540 = vpop.f32.mrb[0].mxu0
    %v9541 = vadd.f32 %v9501, %v9540
    %v9542 = vpop.f32.mrb[0].mxu0
    %v9543 = vpop.f32.mrb[0].mxu0
    %v9544 = vpop.f32.mrb[0].mxu0
    %9545 = vdwg.mxu0
    %vm9546 = vcmask 25600
    %9547 = vst.msk [vmem:[#allocation4] sm:$0x3] %vm9546, %v9541
    // Predicated region
    $region66: #{dqn_image_forward.1} parent=1 // pred_check
      _
    $region67: #{dqn_image_forward.1} parent=1 // pred_check_branch
      %9549 = sbr.rel (0) target = $region69
    $region68: #{dqn_image_forward.1} parent=1 // pred_region
      %s9551 = ssub.s32 32, 32
      %9552 = vsyncadd [#allocation5], %s9551
      %s9554 = sshll.u32 [#allocation4], 4
      %s9555 = int_to_ptr.vmem [resolvable:$true] %s9554
      %9557 = dma.vmem_to_hbm [thread:$0]  %s9555, 32, %s16, [#allocation5]
    $region69: #{dqn_image_forward.1} parent=1 // pred_fallthru
      _
    // Predicated region
    $region70: #{dqn_image_forward.1} parent=1 // pred_check
      _
    $region71: #{dqn_image_forward.1} parent=1 // pred_check_branch
      %9559 = sbr.rel (0) target = $region73
    $region72: #{dqn_image_forward.1} parent=1 // pred_region
      %9560 = dma.done [#allocation5], 32
    $region73: #{dqn_image_forward.1} parent=1 // pred_fallthru
      _
    %9561 = vsyncpa [#allocation5], 1

</llo_original>
